<compile_context>
chip_gen: v7x
topology: tpu7x:2x2x1
jax: 0.10.0
libtpu: 0.0.40
codegen_flags: <defaults>
</compile_context>

<pallas_src>
import jax
import jax.numpy as jnp
from jax import lax
from jax.experimental import pallas as pl
from jax.experimental.pallas import tpu as pltpu

_BN_EPS = 1e-5
_VMEM_LIMIT = 32 * 1024 * 1024   # safe scoped-VMEM limit on v5e / v6e / v7x


# ----------------------------------------------------------------------------
# Tile-size helpers
# ----------------------------------------------------------------------------
def _pick_conv_row_tile(h, w, target_m=128):
    """Rows per conv grid step so that TR*W ~= target_m (MXU M dim)."""
    tr = max(1, min(h, max(1, target_m // max(1, w))))
    while h % tr:
        tr -= 1
    return tr


def _pick_row_tile(n, target=1024):
    """Largest divisor of n that is a multiple of 8 and <= target (mem-bound tiles)."""
    t = min(n, target)
    t -= t % 8
    while t >= 8:
        if n % t == 0:
            return t
        t -= 8
    return n


# ----------------------------------------------------------------------------
# Kernel 1/2: 3x3 conv (optionally with fused BN+ReLU on its input) + BN stats
# ----------------------------------------------------------------------------
def _make_conv_kernel(H, W, TR, KH, KW, Cin, Cout, fuse_bn_relu):
    def kernel(*refs):
        if fuse_bn_relu:
            x_ref, sc_ref, sh_ref, w_ref, y_ref, s_ref, ss_ref, pad_ref = refs
        else:
            x_ref, w_ref, y_ref, s_ref, ss_ref, pad_ref = refs
            sc_ref = sh_ref = None

        t = pl.program_id(1)   # row-band index within the current image

        # Build the zero-padded bf16 image in VMEM once per batch image.
        @pl.when(t == 0)
        def _():
            pad_ref[...] = jnp.zeros_like(pad_ref)
            img = x_ref[0].astype(jnp.float32)                       # (H, W, Cin)
            if fuse_bn_relu:
                img = img * sc_ref[0].reshape(1, 1, Cin) + sh_ref[0].reshape(1, 1, Cin)
                img = jnp.maximum(img, 0.0)                          # ReLU
            pad_ref[1:H + 1, 1:W + 1, :] = img.astype(pad_ref.dtype)

        r0 = t * TR
        acc = jnp.zeros((TR * W, Cout), jnp.float32)
        for di in range(KH):
            for dj in range(KW):
                patch = pad_ref[pl.ds(r0 + di, TR), dj:dj + W, :]    # (TR, W, Cin) bf16
                acc = acc + jnp.dot(patch.reshape(TR * W, Cin),
                                    w_ref[di * KW + dj],             # (Cin, Cout) bf16
                                    preferred_element_type=jnp.float32)

        y_ref[...] = acc.reshape(1, TR, W, Cout).astype(y_ref.dtype)
        # Per-tile BN partials from the f32 accumulator (two-phase BatchNorm).
        s_ref[...] = jnp.sum(acc, axis=0, keepdims=True).reshape(1, 1, 1, Cout)
        ss_ref[...] = jnp.sum(acc * acc, axis=0, keepdims=True).reshape(1, 1, 1, Cout)

    return kernel


def conv3x3(x_img, w_oihw, *, scale=None, shift=None, out_dtype=jnp.bfloat16):
    """Conv2d(3x3, stride 1, zero pad 1) over NHWC input.

    If `scale`/`shift` are given, y = relu(x*scale + shift) is applied to the
    input tiles first (fused BatchNorm + ReLU of the previous layer).
    Returns (y[B,H,W,Cout], tile_sum[B,NT,1,Cout], tile_sumsq[B,NT,1,Cout]).
    """
    B, H, W, Cin = x_img.shape
    Cout, cin2, KH, KW = w_oihw.shape
    assert cin2 == Cin and KH == 3 and KW == 3
    assert Cin % 128 == 0 and Cout % 128 == 0, "channels must be multiples of 128"
    assert W % 8 == 0, "W must be a multiple of 8"

    TR = _pick_conv_row_tile(H, W)          # TR*W ~= 128 (raise to 256 on v6e/v7x)
    NT = H // TR

    # OIHW -> (KH*KW, Cin, Cout), tap-major; stays resident in VMEM (constant map).
    w_taps = jnp.transpose(w_oihw, (2, 3, 1, 0)).reshape(KH * KW, Cin, Cout)
    w_taps = w_taps.astype(jnp.bfloat16)

    fuse = scale is not None
    in_specs = [pl.BlockSpec((1, H, W, Cin), lambda b, t: (b, 0, 0, 0))]
    args = [x_img]
    if fuse:
        vspec = pl.BlockSpec((1, Cin), lambda b, t: (0, 0))
        in_specs += [vspec, vspec]
        args += [scale, shift]
    in_specs.append(pl.BlockSpec((KH * KW, Cin, Cout), lambda b, t: (0, 0, 0)))
    args.append(w_taps)

    out_specs = (
        pl.BlockSpec((1, TR, W, Cout), lambda b, t: (b, t, 0, 0)),
        pl.BlockSpec((1, 1, 1, Cout), lambda b, t: (b, t, 0, 0)),
        pl.BlockSpec((1, 1, 1, Cout), lambda b, t: (b, t, 0, 0)),
    )
    out_shape = (
        jax.ShapeDtypeStruct((B, H, W, Cout), out_dtype),
        jax.ShapeDtypeStruct((B, NT, 1, Cout), jnp.float32),
        jax.ShapeDtypeStruct((B, NT, 1, Cout), jnp.float32),
    )

    return pl.pallas_call(
        _make_conv_kernel(H, W, TR, KH, KW, Cin, Cout, fuse),
        out_shape=out_shape,
        grid_spec=pltpu.PrefetchScalarGridSpec(
            num_scalar_prefetch=0,
            grid=(B, NT),
            in_specs=in_specs,
            out_specs=out_specs,
            scratch_shapes=[pltpu.VMEM((H + 2, W + 2, Cin), jnp.bfloat16)],
        ),
        compiler_params=pltpu.CompilerParams(
            dimension_semantics=("parallel", "arbitrary"),
            vmem_limit_bytes=_VMEM_LIMIT),
    )(*args)


# ----------------------------------------------------------------------------
# Kernel 3: BatchNorm2 apply + residual add (mem-bound streaming)
# ----------------------------------------------------------------------------
def _bn_residual_kernel(y_ref, sc_ref, sh_ref, r_ref, o_ref):
    v = y_ref[...].astype(jnp.float32) * sc_ref[...] + sh_ref[...]
    o_ref[...] = (v + r_ref[...].astype(jnp.float32)).astype(o_ref.dtype)


def bn_apply_residual(y, scale, shift, residual, out_dtype=jnp.float32):
    M, C = y.shape
    TRn = _pick_row_tile(M)                       # large lane-dense tiles
    row_spec = pl.BlockSpec((TRn, C), lambda m: (m, 0))
    vec_spec = pl.BlockSpec((1, C), lambda m: (0, 0))
    return pl.pallas_call(
        _bn_residual_kernel,
        out_shape=jax.ShapeDtypeStruct((M, C), out_dtype),
        grid_spec=pltpu.PrefetchScalarGridSpec(
            num_scalar_prefetch=0,
            grid=(M // TRn,),
            in_specs=[row_spec, vec_spec, vec_spec, row_spec],
            out_specs=row_spec,
        ),
        compiler_params=pltpu.CompilerParams(
            dimension_semantics=("parallel",),
            vmem_limit_bytes=_VMEM_LIMIT),
    )(y, scale, shift, residual)


# ----------------------------------------------------------------------------
# Glue: per-channel mean/var -> scale/shift (tiny reduction over tile partials)
# ----------------------------------------------------------------------------
def _bn_scale_shift(tile_sum, tile_sumsq, gamma, beta, count):
    total = jnp.sum(tile_sum, axis=(0, 1, 2))       # (C,)
    total_sq = jnp.sum(tile_sumsq, axis=(0, 1, 2))  # (C,)
    mean = total / count
    # NOTE: E[x^2]-E[x]^2 in f32 can cancel for large means; clamped at 0.
    var = jnp.maximum(total_sq / count - mean * mean, 0.0)   # biased (training mode)
    scale = gamma * lax.rsqrt(var + _BN_EPS)
    shift = beta - mean * scale
    return scale.reshape(1, -1), shift.reshape(1, -1)


# ----------------------------------------------------------------------------
# ResBlock forward + parameter init
# ----------------------------------------------------------------------------
def resblock_forward(params, x_nchw):
    B, Cin, H, W = x_nchw.shape
    Cout = params["w2"].shape[0]
    assert Cin == Cout, "residual add requires inChannel == outChannel"

    # TODO(synk): for chained ResBlocks keep activations NHWC and hoist these transposes.
    x = jnp.transpose(x_nchw, (0, 2, 3, 1)).astype(jnp.float32)     # NHWC, also identity
    count = float(B * H * W)

    # conv1 (Cin -> 128): bf16 MXU taps, f32 accumulation, per-tile BN partials.
    y1, s1, ss1 = conv3x3(x, params["w1"])
    sc1, sh1 = _bn_scale_shift(s1, ss1, params["g1"], params["b1"], count)

    # conv2 (128 -> Cout) with BN1-apply + ReLU fused onto its input tiles.
    y2, s2, ss2 = conv3x3(y1, params["w2"], scale=sc1, shift=sh1)
    sc2, sh2 = _bn_scale_shift(s2, ss2, params["g2"], params["b2"], count)

    # BN2 apply + residual add.
    out = bn_apply_residual(y2.reshape(B * H * W, Cout), sc2, sh2,
                            x.reshape(B * H * W, Cin))
    return jnp.transpose(out.reshape(B, H, W, Cout), (0, 3, 1, 2))   # back to NCHW


def init_resblock_params(key, in_channel=128, out_channel=128, mid_channel=128):
    k1, k2 = jax.random.split(key)

    def conv_w(k, cout, cin):
        bound = 1.0 / float((cin * 9) ** 0.5)     # PyTorch-style kaiming-uniform bound
        return jax.random.uniform(k, (cout, cin, 3, 3), jnp.float32, -bound, bound)

    return {
        "w1": conv_w(k1, mid_channel, in_channel),        # OIHW
        "g1": jnp.ones((mid_channel,), jnp.float32),      # BN gamma
        "b1": jnp.zeros((mid_channel,), jnp.float32),     # BN beta
        "w2": conv_w(k2, out_channel, mid_channel),
        "g2": jnp.ones((out_channel,), jnp.float32),
        "b2": jnp.zeros((out_channel,), jnp.float32),
        # Conv biases omitted: cancelled exactly by training-mode BN mean subtraction.
    }


# ----------------------------------------------------------------------------
# Demo
# ----------------------------------------------------------------------------
if __name__ == "__main__":
    # Module defaults: inChannel = outChannel = 128 (mid channels hard-coded 128).
    B, C, H, W = 2, 128, 16, 16

    key = jax.random.PRNGKey(0)
    pkey, xkey = jax.random.split(key)
    params = init_resblock_params(pkey, in_channel=C, out_channel=C)
    x = jax.random.normal(xkey, (B, C, H, W), dtype=jnp.float32)   # NCHW like PyTorch

    fwd = jax.jit(resblock_forward)
    out = jax.block_until_ready(fwd(params, x))

    assert out.shape == (B, C, H, W), out.shape
    assert out.dtype == jnp.float32
    assert bool(jnp.all(jnp.isfinite(out)))
    print("KERNEL_OK")
</pallas_src>

<mosaic_0001>
module attributes {stable_mosaic.version = 11 : i64} {
  func.func @kernel(%arg0: i32, %arg1: i32, %arg2: memref<1x16x16x128xf32, #tpu.memory_space<vmem>>, %arg3: memref<9x128x128xbf16, #tpu.memory_space<vmem>>, %arg4: memref<1x8x16x128xbf16, #tpu.memory_space<vmem>>, %arg5: memref<1x1x1x128xf32, #tpu.memory_space<vmem>>, %arg6: memref<1x1x1x128xf32, #tpu.memory_space<vmem>>, %arg7: memref<18x18x128xbf16, #tpu.memory_space<vmem>>) attributes {dimension_semantics = [#tpu.dimension_semantics<parallel>, #tpu.dimension_semantics<arbitrary>], iteration_bounds = array<i64: 2, 2>, scalar_prefetch = 0 : i64, scratch_operands = 1 : i64, tpu.core_type = #tpu.core_type<tc>, window_params = [{transform_indices = @transform_0, window_bounds = array<i64: 1, 16, 16, 128>}, {pipeline_mode = #tpu.pipeline_mode<synchronous>, transform_indices = @transform_1, window_bounds = array<i64: 9, 128, 128>}, {transform_indices = @transform_2, window_bounds = array<i64: 1, 8, 16, 128>}, {transform_indices = @transform_3, window_bounds = array<i64: 1, 1, 1, 128>}, {transform_indices = @transform_4, window_bounds = array<i64: 1, 1, 1, 128>}]} {
    %c0_i32 = arith.constant 0 : i32
    %0 = arith.cmpi eq, %arg1, %c0_i32 : i32
    %1 = arith.extui %0 : i1 to i32
    %c0_i32_0 = arith.constant 0 : i32
    %2 = arith.cmpi ne, %1, %c0_i32_0 : i32
    scf.if %2 {
      %cst_67 = arith.constant 0.000000e+00 : bf16
      %89 = vector.broadcast %cst_67 : bf16 to vector<18x18x128xbf16>
      %c0_68 = arith.constant 0 : index
      %c0_69 = arith.constant 0 : index
      %c0_70 = arith.constant 0 : index
      %90 = vector.load %arg7[%c0_68, %c0_69, %c0_70] : memref<18x18x128xbf16, #tpu.memory_space<vmem>>, vector<18x18x128xbf16>
      tpu.vector_store %arg7[%c0_68, %c0_69, %c0_70], %89 {strides = array<i32>} : memref<18x18x128xbf16, #tpu.memory_space<vmem>>, vector<18x18x128xbf16>,
      %c0_71 = arith.constant 0 : index
      %c0_72 = arith.constant 0 : index
      %c0_73 = arith.constant 0 : index
      %c0_74 = arith.constant 0 : index
      %91 = vector.load %arg2[%c0_71, %c0_72, %c0_73, %c0_74] : memref<1x16x16x128xf32, #tpu.memory_space<vmem>>, vector<1x16x16x128xf32>
      %92 = vector.shape_cast %91 : vector<1x16x16x128xf32> to vector<16x16x128xf32>
      %93 = arith.truncf %92 : vector<16x16x128xf32> to vector<16x16x128xbf16>
      %c1_75 = arith.constant 1 : index
      %c1_76 = arith.constant 1 : index
      %c0_77 = arith.constant 0 : index
      %94 = vector.load %arg7[%c1_75, %c1_76, %c0_77] : memref<18x18x128xbf16, #tpu.memory_space<vmem>>, vector<16x16x128xbf16>
      tpu.vector_store %arg7[%c1_75, %c1_76, %c0_77], %93 {strides = array<i32>} : memref<18x18x128xbf16, #tpu.memory_space<vmem>>, vector<16x16x128xbf16>,
    } else {
    }
    %c8_i32 = arith.constant 8 : i32
    %3 = arith.muli %arg1, %c8_i32 : i32
    %cst = arith.constant 0.000000e+00 : f32
    %4 = vector.broadcast %cst : f32 to vector<128x128xf32>
    %c0_i32_1 = arith.constant 0 : i32
    %5 = arith.addi %3, %c0_i32_1 : i32
    %6 = arith.index_cast %5 : i32 to index
    %c0 = arith.constant 0 : index
    %c0_2 = arith.constant 0 : index
    %7 = vector.load %arg7[%6, %c0, %c0_2] : memref<18x18x128xbf16, #tpu.memory_space<vmem>>, vector<8x16x128xbf16>
    %8 = vector.shape_cast %7 : vector<8x16x128xbf16> to vector<128x128xbf16>
    %c0_3 = arith.constant 0 : index
    %c0_4 = arith.constant 0 : index
    %c0_5 = arith.constant 0 : index
    %9 = vector.load %arg3[%c0_3, %c0_4, %c0_5] : memref<9x128x128xbf16, #tpu.memory_space<vmem>>, vector<1x128x128xbf16>
    %10 = vector.shape_cast %9 : vector<1x128x128xbf16> to vector<128x128xbf16>
    %cst_6 = arith.constant dense<0.000000e+00> : vector<128x128xf32>
    %11 = tpu.matmul %8, %10, %cst_6 {dimension_numbers = #tpu.dot_dimension_numbers<[1], [0], [0], [1], [0, 0, 1, 1], [], []>} : vector<128x128xbf16>, vector<128x128xbf16>, vector<128x128xf32> -> vector<128x128xf32>
    %12 = arith.addf %4, %11 : vector<128x128xf32>
    %c0_i32_7 = arith.constant 0 : i32
    %13 = arith.addi %3, %c0_i32_7 : i32
    %14 = arith.index_cast %13 : i32 to index
    %c1 = arith.constant 1 : index
    %c0_8 = arith.constant 0 : index
    %15 = vector.load %arg7[%14, %c1, %c0_8] : memref<18x18x128xbf16, #tpu.memory_space<vmem>>, vector<8x16x128xbf16>
    %16 = vector.shape_cast %15 : vector<8x16x128xbf16> to vector<128x128xbf16>
    %c1_9 = arith.constant 1 : index
    %c0_10 = arith.constant 0 : index
    %c0_11 = arith.constant 0 : index
    %17 = vector.load %arg3[%c1_9, %c0_10, %c0_11] : memref<9x128x128xbf16, #tpu.memory_space<vmem>>, vector<1x128x128xbf16>
    %18 = vector.shape_cast %17 : vector<1x128x128xbf16> to vector<128x128xbf16>
    %cst_12 = arith.constant dense<0.000000e+00> : vector<128x128xf32>
    %19 = tpu.matmul %16, %18, %cst_12 {dimension_numbers = #tpu.dot_dimension_numbers<[1], [0], [0], [1], [0, 0, 1, 1], [], []>} : vector<128x128xbf16>, vector<128x128xbf16>, vector<128x128xf32> -> vector<128x128xf32>
    %20 = arith.addf %12, %19 : vector<128x128xf32>
    %c0_i32_13 = arith.constant 0 : i32
    %21 = arith.addi %3, %c0_i32_13 : i32
    %22 = arith.index_cast %21 : i32 to index
    %c2 = arith.constant 2 : index
    %c0_14 = arith.constant 0 : index
    %23 = vector.load %arg7[%22, %c2, %c0_14] : memref<18x18x128xbf16, #tpu.memory_space<vmem>>, vector<8x16x128xbf16>
    %24 = vector.shape_cast %23 : vector<8x16x128xbf16> to vector<128x128xbf16>
    %c2_15 = arith.constant 2 : index
    %c0_16 = arith.constant 0 : index
    %c0_17 = arith.constant 0 : index
    %25 = vector.load %arg3[%c2_15, %c0_16, %c0_17] : memref<9x128x128xbf16, #tpu.memory_space<vmem>>, vector<1x128x128xbf16>
    %26 = vector.shape_cast %25 : vector<1x128x128xbf16> to vector<128x128xbf16>
    %cst_18 = arith.constant dense<0.000000e+00> : vector<128x128xf32>
    %27 = tpu.matmul %24, %26, %cst_18 {dimension_numbers = #tpu.dot_dimension_numbers<[1], [0], [0], [1], [0, 0, 1, 1], [], []>} : vector<128x128xbf16>, vector<128x128xbf16>, vector<128x128xf32> -> vector<128x128xf32>
    %28 = arith.addf %20, %27 : vector<128x128xf32>
    %c1_i32 = arith.constant 1 : i32
    %29 = arith.addi %3, %c1_i32 : i32
    %30 = arith.index_cast %29 : i32 to index
    %c0_19 = arith.constant 0 : index
    %c0_20 = arith.constant 0 : index
    %31 = vector.load %arg7[%30, %c0_19, %c0_20] : memref<18x18x128xbf16, #tpu.memory_space<vmem>>, vector<8x16x128xbf16>
    %32 = vector.shape_cast %31 : vector<8x16x128xbf16> to vector<128x128xbf16>
    %c3 = arith.constant 3 : index
    %c0_21 = arith.constant 0 : index
    %c0_22 = arith.constant 0 : index
    %33 = vector.load %arg3[%c3, %c0_21, %c0_22] : memref<9x128x128xbf16, #tpu.memory_space<vmem>>, vector<1x128x128xbf16>
    %34 = vector.shape_cast %33 : vector<1x128x128xbf16> to vector<128x128xbf16>
    %cst_23 = arith.constant dense<0.000000e+00> : vector<128x128xf32>
    %35 = tpu.matmul %32, %34, %cst_23 {dimension_numbers = #tpu.dot_dimension_numbers<[1], [0], [0], [1], [0, 0, 1, 1], [], []>} : vector<128x128xbf16>, vector<128x128xbf16>, vector<128x128xf32> -> vector<128x128xf32>
    %36 = arith.addf %28, %35 : vector<128x128xf32>
    %c1_i32_24 = arith.constant 1 : i32
    %37 = arith.addi %3, %c1_i32_24 : i32
    %38 = arith.index_cast %37 : i32 to index
    %c1_25 = arith.constant 1 : index
    %c0_26 = arith.constant 0 : index
    %39 = vector.load %arg7[%38, %c1_25, %c0_26] : memref<18x18x128xbf16, #tpu.memory_space<vmem>>, vector<8x16x128xbf16>
    %40 = vector.shape_cast %39 : vector<8x16x128xbf16> to vector<128x128xbf16>
    %c4 = arith.constant 4 : index
    %c0_27 = arith.constant 0 : index
    %c0_28 = arith.constant 0 : index
    %41 = vector.load %arg3[%c4, %c0_27, %c0_28] : memref<9x128x128xbf16, #tpu.memory_space<vmem>>, vector<1x128x128xbf16>
    %42 = vector.shape_cast %41 : vector<1x128x128xbf16> to vector<128x128xbf16>
    %cst_29 = arith.constant dense<0.000000e+00> : vector<128x128xf32>
    %43 = tpu.matmul %40, %42, %cst_29 {dimension_numbers = #tpu.dot_dimension_numbers<[1], [0], [0], [1], [0, 0, 1, 1], [], []>} : vector<128x128xbf16>, vector<128x128xbf16>, vector<128x128xf32> -> vector<128x128xf32>
    %44 = arith.addf %36, %43 : vector<128x128xf32>
    %c1_i32_30 = arith.constant 1 : i32
    %45 = arith.addi %3, %c1_i32_30 : i32
    %46 = arith.index_cast %45 : i32 to index
    %c2_31 = arith.constant 2 : index
    %c0_32 = arith.constant 0 : index
    %47 = vector.load %arg7[%46, %c2_31, %c0_32] : memref<18x18x128xbf16, #tpu.memory_space<vmem>>, vector<8x16x128xbf16>
    %48 = vector.shape_cast %47 : vector<8x16x128xbf16> to vector<128x128xbf16>
    %c5 = arith.constant 5 : index
    %c0_33 = arith.constant 0 : index
    %c0_34 = arith.constant 0 : index
    %49 = vector.load %arg3[%c5, %c0_33, %c0_34] : memref<9x128x128xbf16, #tpu.memory_space<vmem>>, vector<1x128x128xbf16>
    %50 = vector.shape_cast %49 : vector<1x128x128xbf16> to vector<128x128xbf16>
    %cst_35 = arith.constant dense<0.000000e+00> : vector<128x128xf32>
    %51 = tpu.matmul %48, %50, %cst_35 {dimension_numbers = #tpu.dot_dimension_numbers<[1], [0], [0], [1], [0, 0, 1, 1], [], []>} : vector<128x128xbf16>, vector<128x128xbf16>, vector<128x128xf32> -> vector<128x128xf32>
    %52 = arith.addf %44, %51 : vector<128x128xf32>
    %c2_i32 = arith.constant 2 : i32
    %53 = arith.addi %3, %c2_i32 : i32
    %54 = arith.index_cast %53 : i32 to index
    %c0_36 = arith.constant 0 : index
    %c0_37 = arith.constant 0 : index
    %55 = vector.load %arg7[%54, %c0_36, %c0_37] : memref<18x18x128xbf16, #tpu.memory_space<vmem>>, vector<8x16x128xbf16>
    %56 = vector.shape_cast %55 : vector<8x16x128xbf16> to vector<128x128xbf16>
    %c6 = arith.constant 6 : index
    %c0_38 = arith.constant 0 : index
    %c0_39 = arith.constant 0 : index
    %57 = vector.load %arg3[%c6, %c0_38, %c0_39] : memref<9x128x128xbf16, #tpu.memory_space<vmem>>, vector<1x128x128xbf16>
    %58 = vector.shape_cast %57 : vector<1x128x128xbf16> to vector<128x128xbf16>
    %cst_40 = arith.constant dense<0.000000e+00> : vector<128x128xf32>
    %59 = tpu.matmul %56, %58, %cst_40 {dimension_numbers = #tpu.dot_dimension_numbers<[1], [0], [0], [1], [0, 0, 1, 1], [], []>} : vector<128x128xbf16>, vector<128x128xbf16>, vector<128x128xf32> -> vector<128x128xf32>
    %60 = arith.addf %52, %59 : vector<128x128xf32>
    %c2_i32_41 = arith.constant 2 : i32
    %61 = arith.addi %3, %c2_i32_41 : i32
    %62 = arith.index_cast %61 : i32 to index
    %c1_42 = arith.constant 1 : index
    %c0_43 = arith.constant 0 : index
    %63 = vector.load %arg7[%62, %c1_42, %c0_43] : memref<18x18x128xbf16, #tpu.memory_space<vmem>>, vector<8x16x128xbf16>
    %64 = vector.shape_cast %63 : vector<8x16x128xbf16> to vector<128x128xbf16>
    %c7 = arith.constant 7 : index
    %c0_44 = arith.constant 0 : index
    %c0_45 = arith.constant 0 : index
    %65 = vector.load %arg3[%c7, %c0_44, %c0_45] : memref<9x128x128xbf16, #tpu.memory_space<vmem>>, vector<1x128x128xbf16>
    %66 = vector.shape_cast %65 : vector<1x128x128xbf16> to vector<128x128xbf16>
    %cst_46 = arith.constant dense<0.000000e+00> : vector<128x128xf32>
    %67 = tpu.matmul %64, %66, %cst_46 {dimension_numbers = #tpu.dot_dimension_numbers<[1], [0], [0], [1], [0, 0, 1, 1], [], []>} : vector<128x128xbf16>, vector<128x128xbf16>, vector<128x128xf32> -> vector<128x128xf32>
    %68 = arith.addf %60, %67 : vector<128x128xf32>
    %c2_i32_47 = arith.constant 2 : i32
    %69 = arith.addi %3, %c2_i32_47 : i32
    %70 = arith.index_cast %69 : i32 to index
    %c2_48 = arith.constant 2 : index
    %c0_49 = arith.constant 0 : index
    %71 = vector.load %arg7[%70, %c2_48, %c0_49] : memref<18x18x128xbf16, #tpu.memory_space<vmem>>, vector<8x16x128xbf16>
    %72 = vector.shape_cast %71 : vector<8x16x128xbf16> to vector<128x128xbf16>
    %c8 = arith.constant 8 : index
    %c0_50 = arith.constant 0 : index
    %c0_51 = arith.constant 0 : index
    %73 = vector.load %arg3[%c8, %c0_50, %c0_51] : memref<9x128x128xbf16, #tpu.memory_space<vmem>>, vector<1x128x128xbf16>
    %74 = vector.shape_cast %73 : vector<1x128x128xbf16> to vector<128x128xbf16>
    %cst_52 = arith.constant dense<0.000000e+00> : vector<128x128xf32>
    %75 = tpu.matmul %72, %74, %cst_52 {dimension_numbers = #tpu.dot_dimension_numbers<[1], [0], [0], [1], [0, 0, 1, 1], [], []>} : vector<128x128xbf16>, vector<128x128xbf16>, vector<128x128xf32> -> vector<128x128xf32>
    %76 = arith.addf %68, %75 : vector<128x128xf32>
    %77 = vector.shape_cast %76 : vector<128x128xf32> to vector<1x8x16x128xf32>
    %78 = arith.truncf %77 : vector<1x8x16x128xf32> to vector<1x8x16x128xbf16>
    %c0_53 = arith.constant 0 : index
    %c0_54 = arith.constant 0 : index
    %c0_55 = arith.constant 0 : index
    %c0_56 = arith.constant 0 : index
    %79 = vector.load %arg4[%c0_53, %c0_54, %c0_55, %c0_56] : memref<1x8x16x128xbf16, #tpu.memory_space<vmem>>, vector<1x8x16x128xbf16>
    tpu.vector_store %arg4[%c0_53, %c0_54, %c0_55, %c0_56], %78 {strides = array<i32>} : memref<1x8x16x128xbf16, #tpu.memory_space<vmem>>, vector<1x8x16x128xbf16>,
    %cst_57 = arith.constant dense<0.000000e+00> : vector<128xf32>
    %80 = vector.multi_reduction <add>, %76, %cst_57 [0] : vector<128x128xf32> to vector<128xf32>
    %81 = vector.shape_cast %80 : vector<128xf32> to vector<1x128xf32>
    %82 = vector.shape_cast %81 : vector<1x128xf32> to vector<1x1x1x128xf32>
    %c0_58 = arith.constant 0 : index
    %c0_59 = arith.constant 0 : index
    %c0_60 = arith.constant 0 : index
    %c0_61 = arith.constant 0 : index
    %83 = vector.load %arg5[%c0_58, %c0_59, %c0_60, %c0_61] : memref<1x1x1x128xf32, #tpu.memory_space<vmem>>, vector<1x1x1x128xf32>
    tpu.vector_store %arg5[%c0_58, %c0_59, %c0_60, %c0_61], %82 {strides = array<i32>} : memref<1x1x1x128xf32, #tpu.memory_space<vmem>>, vector<1x1x1x128xf32>,
    %84 = arith.mulf %76, %76 : vector<128x128xf32>
    %cst_62 = arith.constant dense<0.000000e+00> : vector<128xf32>
    %85 = vector.multi_reduction <add>, %84, %cst_62 [0] : vector<128x128xf32> to vector<128xf32>
    %86 = vector.shape_cast %85 : vector<128xf32> to vector<1x128xf32>
    %87 = vector.shape_cast %86 : vector<1x128xf32> to vector<1x1x1x128xf32>
    %c0_63 = arith.constant 0 : index
    %c0_64 = arith.constant 0 : index
    %c0_65 = arith.constant 0 : index
    %c0_66 = arith.constant 0 : index
    %88 = vector.load %arg6[%c0_63, %c0_64, %c0_65, %c0_66] : memref<1x1x1x128xf32, #tpu.memory_space<vmem>>, vector<1x1x1x128xf32>
    tpu.vector_store %arg6[%c0_63, %c0_64, %c0_65, %c0_66], %87 {strides = array<i32>} : memref<1x1x1x128xf32, #tpu.memory_space<vmem>>, vector<1x1x1x128xf32>,
    return
  }
  func.func @transform_0(%arg0: i32, %arg1: i32) -> (i32, i32, i32, i32) {
    %c0_i32 = arith.constant 0 : i32
    %c0_i32_0 = arith.constant 0 : i32
    %c0_i32_1 = arith.constant 0 : i32
    %c0_i32_2 = arith.constant 0 : i32
    return %arg0, %c0_i32, %c0_i32_0, %c0_i32_1 : i32, i32, i32, i32
  }
  func.func @transform_1(%arg0: i32, %arg1: i32) -> (i32, i32, i32) {
    %c0_i32 = arith.constant 0 : i32
    %c0_i32_0 = arith.constant 0 : i32
    %c0_i32_1 = arith.constant 0 : i32
    %c0_i32_2 = arith.constant 0 : i32
    return %c0_i32, %c0_i32_0, %c0_i32_1 : i32, i32, i32
  }
  func.func @transform_2(%arg0: i32, %arg1: i32) -> (i32, i32, i32, i32) {
    %c0_i32 = arith.constant 0 : i32
    %c0_i32_0 = arith.constant 0 : i32
    %c0_i32_1 = arith.constant 0 : i32
    return %arg0, %arg1, %c0_i32, %c0_i32_0 : i32, i32, i32, i32
  }
  func.func @transform_3(%arg0: i32, %arg1: i32) -> (i32, i32, i32, i32) {
    %c0_i32 = arith.constant 0 : i32
    %c0_i32_0 = arith.constant 0 : i32
    %c0_i32_1 = arith.constant 0 : i32
    return %arg0, %arg1, %c0_i32, %c0_i32_0 : i32, i32, i32, i32
  }
  func.func @transform_4(%arg0: i32, %arg1: i32) -> (i32, i32, i32, i32) {
    %c0_i32 = arith.constant 0 : i32
    %c0_i32_0 = arith.constant 0 : i32
    %c0_i32_1 = arith.constant 0 : i32
    return %arg0, %arg1, %c0_i32, %c0_i32_0 : i32, i32, i32, i32
  }
}

module attributes {stable_mosaic.version = 11 : i64} {
  func.func @kernel(%arg0: i32, %arg1: i32, %arg2: memref<1x16x16x128xbf16, #tpu.memory_space<vmem>>, %arg3: memref<1x128xf32, #tpu.memory_space<vmem>>, %arg4: memref<1x128xf32, #tpu.memory_space<vmem>>, %arg5: memref<9x128x128xbf16, #tpu.memory_space<vmem>>, %arg6: memref<1x8x16x128xbf16, #tpu.memory_space<vmem>>, %arg7: memref<1x1x1x128xf32, #tpu.memory_space<vmem>>, %arg8: memref<1x1x1x128xf32, #tpu.memory_space<vmem>>, %arg9: memref<18x18x128xbf16, #tpu.memory_space<vmem>>) attributes {dimension_semantics = [#tpu.dimension_semantics<parallel>, #tpu.dimension_semantics<arbitrary>], iteration_bounds = array<i64: 2, 2>, scalar_prefetch = 0 : i64, scratch_operands = 1 : i64, tpu.core_type = #tpu.core_type<tc>, window_params = [{transform_indices = @transform_0, window_bounds = array<i64: 1, 16, 16, 128>}, {pipeline_mode = #tpu.pipeline_mode<synchronous>, transform_indices = @transform_1, window_bounds = array<i64: 1, 128>}, {pipeline_mode = #tpu.pipeline_mode<synchronous>, transform_indices = @transform_2, window_bounds = array<i64: 1, 128>}, {pipeline_mode = #tpu.pipeline_mode<synchronous>, transform_indices = @transform_3, window_bounds = array<i64: 9, 128, 128>}, {transform_indices = @transform_4, window_bounds = array<i64: 1, 8, 16, 128>}, {transform_indices = @transform_5, window_bounds = array<i64: 1, 1, 1, 128>}, {transform_indices = @transform_6, window_bounds = array<i64: 1, 1, 1, 128>}]} {
    %c0_i32 = arith.constant 0 : i32
    %0 = arith.cmpi eq, %arg1, %c0_i32 : i32
    %1 = arith.extui %0 : i1 to i32
    %c0_i32_0 = arith.constant 0 : i32
    %2 = arith.cmpi ne, %1, %c0_i32_0 : i32
    scf.if %2 {
      %cst_67 = arith.constant 0.000000e+00 : bf16
      %89 = vector.broadcast %cst_67 : bf16 to vector<18x18x128xbf16>
      %c0_68 = arith.constant 0 : index
      %c0_69 = arith.constant 0 : index
      %c0_70 = arith.constant 0 : index
      %90 = vector.load %arg9[%c0_68, %c0_69, %c0_70] : memref<18x18x128xbf16, #tpu.memory_space<vmem>>, vector<18x18x128xbf16>
      tpu.vector_store %arg9[%c0_68, %c0_69, %c0_70], %89 {strides = array<i32>} : memref<18x18x128xbf16, #tpu.memory_space<vmem>>, vector<18x18x128xbf16>,
      %c0_71 = arith.constant 0 : index
      %c0_72 = arith.constant 0 : index
      %c0_73 = arith.constant 0 : index
      %c0_74 = arith.constant 0 : index
      %91 = vector.load %arg2[%c0_71, %c0_72, %c0_73, %c0_74] : memref<1x16x16x128xbf16, #tpu.memory_space<vmem>>, vector<1x16x16x128xbf16>
      %92 = vector.shape_cast %91 : vector<1x16x16x128xbf16> to vector<16x16x128xbf16>
      %93 = arith.extf %92 : vector<16x16x128xbf16> to vector<16x16x128xf32>
      %c0_75 = arith.constant 0 : index
      %c0_76 = arith.constant 0 : index
      %94 = vector.load %arg3[%c0_75, %c0_76] : memref<1x128xf32, #tpu.memory_space<vmem>>, vector<1x128xf32>
      %95 = vector.shape_cast %94 : vector<1x128xf32> to vector<128xf32>
      %96 = vector.shape_cast %95 : vector<128xf32> to vector<1x1x128xf32>
      %97 = vector.broadcast %96 : vector<1x1x128xf32> to vector<16x16x128xf32>
      %98 = arith.mulf %93, %97 : vector<16x16x128xf32>
      %c0_77 = arith.constant 0 : index
      %c0_78 = arith.constant 0 : index
      %99 = vector.load %arg4[%c0_77, %c0_78] : memref<1x128xf32, #tpu.memory_space<vmem>>, vector<1x128xf32>
      %100 = vector.shape_cast %99 : vector<1x128xf32> to vector<128xf32>
      %101 = vector.shape_cast %100 : vector<128xf32> to vector<1x1x128xf32>
      %102 = vector.broadcast %101 : vector<1x1x128xf32> to vector<16x16x128xf32>
      %103 = arith.addf %98, %102 : vector<16x16x128xf32>
      %cst_79 = arith.constant 0.000000e+00 : f32
      %104 = vector.broadcast %cst_79 : f32 to vector<16x16x128xf32>
      %105 = arith.maximumf %103, %104 : vector<16x16x128xf32>
      %106 = arith.truncf %105 : vector<16x16x128xf32> to vector<16x16x128xbf16>
      %c1_80 = arith.constant 1 : index
      %c1_81 = arith.constant 1 : index
      %c0_82 = arith.constant 0 : index
      %107 = vector.load %arg9[%c1_80, %c1_81, %c0_82] : memref<18x18x128xbf16, #tpu.memory_space<vmem>>, vector<16x16x128xbf16>
      tpu.vector_store %arg9[%c1_80, %c1_81, %c0_82], %106 {strides = array<i32>} : memref<18x18x128xbf16, #tpu.memory_space<vmem>>, vector<16x16x128xbf16>,
    } else {
    }
    %c8_i32 = arith.constant 8 : i32
    %3 = arith.muli %arg1, %c8_i32 : i32
    %cst = arith.constant 0.000000e+00 : f32
    %4 = vector.broadcast %cst : f32 to vector<128x128xf32>
    %c0_i32_1 = arith.constant 0 : i32
    %5 = arith.addi %3, %c0_i32_1 : i32
    %6 = arith.index_cast %5 : i32 to index
    %c0 = arith.constant 0 : index
    %c0_2 = arith.constant 0 : index
    %7 = vector.load %arg9[%6, %c0, %c0_2] : memref<18x18x128xbf16, #tpu.memory_space<vmem>>, vector<8x16x128xbf16>
    %8 = vector.shape_cast %7 : vector<8x16x128xbf16> to vector<128x128xbf16>
    %c0_3 = arith.constant 0 : index
    %c0_4 = arith.constant 0 : index
    %c0_5 = arith.constant 0 : index
    %9 = vector.load %arg5[%c0_3, %c0_4, %c0_5] : memref<9x128x128xbf16, #tpu.memory_space<vmem>>, vector<1x128x128xbf16>
    %10 = vector.shape_cast %9 : vector<1x128x128xbf16> to vector<128x128xbf16>
    %cst_6 = arith.constant dense<0.000000e+00> : vector<128x128xf32>
    %11 = tpu.matmul %8, %10, %cst_6 {dimension_numbers = #tpu.dot_dimension_numbers<[1], [0], [0], [1], [0, 0, 1, 1], [], []>} : vector<128x128xbf16>, vector<128x128xbf16>, vector<128x128xf32> -> vector<128x128xf32>
    %12 = arith.addf %4, %11 : vector<128x128xf32>
    %c0_i32_7 = arith.constant 0 : i32
    %13 = arith.addi %3, %c0_i32_7 : i32
    %14 = arith.index_cast %13 : i32 to index
    %c1 = arith.constant 1 : index
    %c0_8 = arith.constant 0 : index
    %15 = vector.load %arg9[%14, %c1, %c0_8] : memref<18x18x128xbf16, #tpu.memory_space<vmem>>, vector<8x16x128xbf16>
    %16 = vector.shape_cast %15 : vector<8x16x128xbf16> to vector<128x128xbf16>
    %c1_9 = arith.constant 1 : index
    %c0_10 = arith.constant 0 : index
    %c0_11 = arith.constant 0 : index
    %17 = vector.load %arg5[%c1_9, %c0_10, %c0_11] : memref<9x128x128xbf16, #tpu.memory_space<vmem>>, vector<1x128x128xbf16>
    %18 = vector.shape_cast %17 : vector<1x128x128xbf16> to vector<128x128xbf16>
    %cst_12 = arith.constant dense<0.000000e+00> : vector<128x128xf32>
    %19 = tpu.matmul %16, %18, %cst_12 {dimension_numbers = #tpu.dot_dimension_numbers<[1], [0], [0], [1], [0, 0, 1, 1], [], []>} : vector<128x128xbf16>, vector<128x128xbf16>, vector<128x128xf32> -> vector<128x128xf32>
    %20 = arith.addf %12, %19 : vector<128x128xf32>
    %c0_i32_13 = arith.constant 0 : i32
    %21 = arith.addi %3, %c0_i32_13 : i32
    %22 = arith.index_cast %21 : i32 to index
    %c2 = arith.constant 2 : index
    %c0_14 = arith.constant 0 : index
    %23 = vector.load %arg9[%22, %c2, %c0_14] : memref<18x18x128xbf16, #tpu.memory_space<vmem>>, vector<8x16x128xbf16>
    %24 = vector.shape_cast %23 : vector<8x16x128xbf16> to vector<128x128xbf16>
    %c2_15 = arith.constant 2 : index
    %c0_16 = arith.constant 0 : index
    %c0_17 = arith.constant 0 : index
    %25 = vector.load %arg5[%c2_15, %c0_16, %c0_17] : memref<9x128x128xbf16, #tpu.memory_space<vmem>>, vector<1x128x128xbf16>
    %26 = vector.shape_cast %25 : vector<1x128x128xbf16> to vector<128x128xbf16>
    %cst_18 = arith.constant dense<0.000000e+00> : vector<128x128xf32>
    %27 = tpu.matmul %24, %26, %cst_18 {dimension_numbers = #tpu.dot_dimension_numbers<[1], [0], [0], [1], [0, 0, 1, 1], [], []>} : vector<128x128xbf16>, vector<128x128xbf16>, vector<128x128xf32> -> vector<128x128xf32>
    %28 = arith.addf %20, %27 : vector<128x128xf32>
    %c1_i32 = arith.constant 1 : i32
    %29 = arith.addi %3, %c1_i32 : i32
    %30 = arith.index_cast %29 : i32 to index
    %c0_19 = arith.constant 0 : index
    %c0_20 = arith.constant 0 : index
    %31 = vector.load %arg9[%30, %c0_19, %c0_20] : memref<18x18x128xbf16, #tpu.memory_space<vmem>>, vector<8x16x128xbf16>
    %32 = vector.shape_cast %31 : vector<8x16x128xbf16> to vector<128x128xbf16>
    %c3 = arith.constant 3 : index
    %c0_21 = arith.constant 0 : index
    %c0_22 = arith.constant 0 : index
    %33 = vector.load %arg5[%c3, %c0_21, %c0_22] : memref<9x128x128xbf16, #tpu.memory_space<vmem>>, vector<1x128x128xbf16>
    %34 = vector.shape_cast %33 : vector<1x128x128xbf16> to vector<128x128xbf16>
    %cst_23 = arith.constant dense<0.000000e+00> : vector<128x128xf32>
    %35 = tpu.matmul %32, %34, %cst_23 {dimension_numbers = #tpu.dot_dimension_numbers<[1], [0], [0], [1], [0, 0, 1, 1], [], []>} : vector<128x128xbf16>, vector<128x128xbf16>, vector<128x128xf32> -> vector<128x128xf32>
    %36 = arith.addf %28, %35 : vector<128x128xf32>
    %c1_i32_24 = arith.constant 1 : i32
    %37 = arith.addi %3, %c1_i32_24 : i32
    %38 = arith.index_cast %37 : i32 to index
    %c1_25 = arith.constant 1 : index
    %c0_26 = arith.constant 0 : index
    %39 = vector.load %arg9[%38, %c1_25, %c0_26] : memref<18x18x128xbf16, #tpu.memory_space<vmem>>, vector<8x16x128xbf16>
    %40 = vector.shape_cast %39 : vector<8x16x128xbf16> to vector<128x128xbf16>
    %c4 = arith.constant 4 : index
    %c0_27 = arith.constant 0 : index
    %c0_28 = arith.constant 0 : index
    %41 = vector.load %arg5[%c4, %c0_27, %c0_28] : memref<9x128x128xbf16, #tpu.memory_space<vmem>>, vector<1x128x128xbf16>
    %42 = vector.shape_cast %41 : vector<1x128x128xbf16> to vector<128x128xbf16>
    %cst_29 = arith.constant dense<0.000000e+00> : vector<128x128xf32>
    %43 = tpu.matmul %40, %42, %cst_29 {dimension_numbers = #tpu.dot_dimension_numbers<[1], [0], [0], [1], [0, 0, 1, 1], [], []>} : vector<128x128xbf16>, vector<128x128xbf16>, vector<128x128xf32> -> vector<128x128xf32>
    %44 = arith.addf %36, %43 : vector<128x128xf32>
    %c1_i32_30 = arith.constant 1 : i32
    %45 = arith.addi %3, %c1_i32_30 : i32
    %46 = arith.index_cast %45 : i32 to index
    %c2_31 = arith.constant 2 : index
    %c0_32 = arith.constant 0 : index
    %47 = vector.load %arg9[%46, %c2_31, %c0_32] : memref<18x18x128xbf16, #tpu.memory_space<vmem>>, vector<8x16x128xbf16>
    %48 = vector.shape_cast %47 : vector<8x16x128xbf16> to vector<128x128xbf16>
    %c5 = arith.constant 5 : index
    %c0_33 = arith.constant 0 : index
    %c0_34 = arith.constant 0 : index
    %49 = vector.load %arg5[%c5, %c0_33, %c0_34] : memref<9x128x128xbf16, #tpu.memory_space<vmem>>, vector<1x128x128xbf16>
    %50 = vector.shape_cast %49 : vector<1x128x128xbf16> to vector<128x128xbf16>
    %cst_35 = arith.constant dense<0.000000e+00> : vector<128x128xf32>
    %51 = tpu.matmul %48, %50, %cst_35 {dimension_numbers = #tpu.dot_dimension_numbers<[1], [0], [0], [1], [0, 0, 1, 1], [], []>} : vector<128x128xbf16>, vector<128x128xbf16>, vector<128x128xf32> -> vector<128x128xf32>
    %52 = arith.addf %44, %51 : vector<128x128xf32>
    %c2_i32 = arith.constant 2 : i32
    %53 = arith.addi %3, %c2_i32 : i32
    %54 = arith.index_cast %53 : i32 to index
    %c0_36 = arith.constant 0 : index
    %c0_37 = arith.constant 0 : index
    %55 = vector.load %arg9[%54, %c0_36, %c0_37] : memref<18x18x128xbf16, #tpu.memory_space<vmem>>, vector<8x16x128xbf16>
    %56 = vector.shape_cast %55 : vector<8x16x128xbf16> to vector<128x128xbf16>
    %c6 = arith.constant 6 : index
    %c0_38 = arith.constant 0 : index
    %c0_39 = arith.constant 0 : index
    %57 = vector.load %arg5[%c6, %c0_38, %c0_39] : memref<9x128x128xbf16, #tpu.memory_space<vmem>>, vector<1x128x128xbf16>
    %58 = vector.shape_cast %57 : vector<1x128x128xbf16> to vector<128x128xbf16>
    %cst_40 = arith.constant dense<0.000000e+00> : vector<128x128xf32>
    %59 = tpu.matmul %56, %58, %cst_40 {dimension_numbers = #tpu.dot_dimension_numbers<[1], [0], [0], [1], [0, 0, 1, 1], [], []>} : vector<128x128xbf16>, vector<128x128xbf16>, vector<128x128xf32> -> vector<128x128xf32>
    %60 = arith.addf %52, %59 : vector<128x128xf32>
    %c2_i32_41 = arith.constant 2 : i32
    %61 = arith.addi %3, %c2_i32_41 : i32
    %62 = arith.index_cast %61 : i32 to index
    %c1_42 = arith.constant 1 : index
    %c0_43 = arith.constant 0 : index
    %63 = vector.load %arg9[%62, %c1_42, %c0_43] : memref<18x18x128xbf16, #tpu.memory_space<vmem>>, vector<8x16x128xbf16>
    %64 = vector.shape_cast %63 : vector<8x16x128xbf16> to vector<128x128xbf16>
    %c7 = arith.constant 7 : index
    %c0_44 = arith.constant 0 : index
    %c0_45 = arith.constant 0 : index
    %65 = vector.load %arg5[%c7, %c0_44, %c0_45] : memref<9x128x128xbf16, #tpu.memory_space<vmem>>, vector<1x128x128xbf16>
    %66 = vector.shape_cast %65 : vector<1x128x128xbf16> to vector<128x128xbf16>
    %cst_46 = arith.constant dense<0.000000e+00> : vector<128x128xf32>
    %67 = tpu.matmul %64, %66, %cst_46 {dimension_numbers = #tpu.dot_dimension_numbers<[1], [0], [0], [1], [0, 0, 1, 1], [], []>} : vector<128x128xbf16>, vector<128x128xbf16>, vector<128x128xf32> -> vector<128x128xf32>
    %68 = arith.addf %60, %67 : vector<128x128xf32>
    %c2_i32_47 = arith.constant 2 : i32
    %69 = arith.addi %3, %c2_i32_47 : i32
    %70 = arith.index_cast %69 : i32 to index
    %c2_48 = arith.constant 2 : index
    %c0_49 = arith.constant 0 : index
    %71 = vector.load %arg9[%70, %c2_48, %c0_49] : memref<18x18x128xbf16, #tpu.memory_space<vmem>>, vector<8x16x128xbf16>
    %72 = vector.shape_cast %71 : vector<8x16x128xbf16> to vector<128x128xbf16>
    %c8 = arith.constant 8 : index
    %c0_50 = arith.constant 0 : index
    %c0_51 = arith.constant 0 : index
    %73 = vector.load %arg5[%c8, %c0_50, %c0_51] : memref<9x128x128xbf16, #tpu.memory_space<vmem>>, vector<1x128x128xbf16>
    %74 = vector.shape_cast %73 : vector<1x128x128xbf16> to vector<128x128xbf16>
    %cst_52 = arith.constant dense<0.000000e+00> : vector<128x128xf32>
    %75 = tpu.matmul %72, %74, %cst_52 {dimension_numbers = #tpu.dot_dimension_numbers<[1], [0], [0], [1], [0, 0, 1, 1], [], []>} : vector<128x128xbf16>, vector<128x128xbf16>, vector<128x128xf32> -> vector<128x128xf32>
    %76 = arith.addf %68, %75 : vector<128x128xf32>
    %77 = vector.shape_cast %76 : vector<128x128xf32> to vector<1x8x16x128xf32>
    %78 = arith.truncf %77 : vector<1x8x16x128xf32> to vector<1x8x16x128xbf16>
    %c0_53 = arith.constant 0 : index
    %c0_54 = arith.constant 0 : index
    %c0_55 = arith.constant 0 : index
    %c0_56 = arith.constant 0 : index
    %79 = vector.load %arg6[%c0_53, %c0_54, %c0_55, %c0_56] : memref<1x8x16x128xbf16, #tpu.memory_space<vmem>>, vector<1x8x16x128xbf16>
    tpu.vector_store %arg6[%c0_53, %c0_54, %c0_55, %c0_56], %78 {strides = array<i32>} : memref<1x8x16x128xbf16, #tpu.memory_space<vmem>>, vector<1x8x16x128xbf16>,
    %cst_57 = arith.constant dense<0.000000e+00> : vector<128xf32>
    %80 = vector.multi_reduction <add>, %76, %cst_57 [0] : vector<128x128xf32> to vector<128xf32>
    %81 = vector.shape_cast %80 : vector<128xf32> to vector<1x128xf32>
    %82 = vector.shape_cast %81 : vector<1x128xf32> to vector<1x1x1x128xf32>
    %c0_58 = arith.constant 0 : index
    %c0_59 = arith.constant 0 : index
    %c0_60 = arith.constant 0 : index
    %c0_61 = arith.constant 0 : index
    %83 = vector.load %arg7[%c0_58, %c0_59, %c0_60, %c0_61] : memref<1x1x1x128xf32, #tpu.memory_space<vmem>>, vector<1x1x1x128xf32>
    tpu.vector_store %arg7[%c0_58, %c0_59, %c0_60, %c0_61], %82 {strides = array<i32>} : memref<1x1x1x128xf32, #tpu.memory_space<vmem>>, vector<1x1x1x128xf32>,
    %84 = arith.mulf %76, %76 : vector<128x128xf32>
    %cst_62 = arith.constant dense<0.000000e+00> : vector<128xf32>
    %85 = vector.multi_reduction <add>, %84, %cst_62 [0] : vector<128x128xf32> to vector<128xf32>
    %86 = vector.shape_cast %85 : vector<128xf32> to vector<1x128xf32>
    %87 = vector.shape_cast %86 : vector<1x128xf32> to vector<1x1x1x128xf32>
    %c0_63 = arith.constant 0 : index
    %c0_64 = arith.constant 0 : index
    %c0_65 = arith.constant 0 : index
    %c0_66 = arith.constant 0 : index
    %88 = vector.load %arg8[%c0_63, %c0_64, %c0_65, %c0_66] : memref<1x1x1x128xf32, #tpu.memory_space<vmem>>, vector<1x1x1x128xf32>
    tpu.vector_store %arg8[%c0_63, %c0_64, %c0_65, %c0_66], %87 {strides = array<i32>} : memref<1x1x1x128xf32, #tpu.memory_space<vmem>>, vector<1x1x1x128xf32>,
    return
  }
  func.func @transform_0(%arg0: i32, %arg1: i32) -> (i32, i32, i32, i32) {
    %c0_i32 = arith.constant 0 : i32
    %c0_i32_0 = arith.constant 0 : i32
    %c0_i32_1 = arith.constant 0 : i32
    %c0_i32_2 = arith.constant 0 : i32
    return %arg0, %c0_i32, %c0_i32_0, %c0_i32_1 : i32, i32, i32, i32
  }
  func.func @transform_1(%arg0: i32, %arg1: i32) -> (i32, i32) {
    %c0_i32 = arith.constant 0 : i32
    %c0_i32_0 = arith.constant 0 : i32
    %c0_i32_1 = arith.constant 0 : i32
    return %c0_i32, %c0_i32_0 : i32, i32
  }
  func.func @transform_2(%arg0: i32, %arg1: i32) -> (i32, i32) {
    %c0_i32 = arith.constant 0 : i32
    %c0_i32_0 = arith.constant 0 : i32
    %c0_i32_1 = arith.constant 0 : i32
    return %c0_i32, %c0_i32_0 : i32, i32
  }
  func.func @transform_3(%arg0: i32, %arg1: i32) -> (i32, i32, i32) {
    %c0_i32 = arith.constant 0 : i32
    %c0_i32_0 = arith.constant 0 : i32
    %c0_i32_1 = arith.constant 0 : i32
    %c0_i32_2 = arith.constant 0 : i32
    return %c0_i32, %c0_i32_0, %c0_i32_1 : i32, i32, i32
  }
  func.func @transform_4(%arg0: i32, %arg1: i32) -> (i32, i32, i32, i32) {
    %c0_i32 = arith.constant 0 : i32
    %c0_i32_0 = arith.constant 0 : i32
    %c0_i32_1 = arith.constant 0 : i32
    return %arg0, %arg1, %c0_i32, %c0_i32_0 : i32, i32, i32, i32
  }
  func.func @transform_5(%arg0: i32, %arg1: i32) -> (i32, i32, i32, i32) {
    %c0_i32 = arith.constant 0 : i32
    %c0_i32_0 = arith.constant 0 : i32
    %c0_i32_1 = arith.constant 0 : i32
    return %arg0, %arg1, %c0_i32, %c0_i32_0 : i32, i32, i32, i32
  }
  func.func @transform_6(%arg0: i32, %arg1: i32) -> (i32, i32, i32, i32) {
    %c0_i32 = arith.constant 0 : i32
    %c0_i32_0 = arith.constant 0 : i32
    %c0_i32_1 = arith.constant 0 : i32
    return %arg0, %arg1, %c0_i32, %c0_i32_0 : i32, i32, i32, i32
  }
}

module attributes {stable_mosaic.version = 11 : i64} {
  func.func @_bn_residual_kernel(%arg0: i32, %arg1: memref<512x128xbf16, #tpu.memory_space<vmem>>, %arg2: memref<1x128xf32, #tpu.memory_space<vmem>>, %arg3: memref<1x128xf32, #tpu.memory_space<vmem>>, %arg4: memref<512x128xf32, #tpu.memory_space<vmem>>, %arg5: memref<512x128xf32, #tpu.memory_space<vmem>>) attributes {dimension_semantics = [#tpu.dimension_semantics<parallel>], iteration_bounds = array<i64: 1>, scalar_prefetch = 0 : i64, scratch_operands = 0 : i64, tpu.core_type = #tpu.core_type<tc>, window_params = [{transform_indices = @transform_0, window_bounds = array<i64: 512, 128>}, {pipeline_mode = #tpu.pipeline_mode<synchronous>, transform_indices = @transform_1, window_bounds = array<i64: 1, 128>}, {pipeline_mode = #tpu.pipeline_mode<synchronous>, transform_indices = @transform_2, window_bounds = array<i64: 1, 128>}, {transform_indices = @transform_3, window_bounds = array<i64: 512, 128>}, {transform_indices = @transform_4, window_bounds = array<i64: 512, 128>}]} {
    %c0 = arith.constant 0 : index
    %c0_0 = arith.constant 0 : index
    %0 = vector.load %arg1[%c0, %c0_0] : memref<512x128xbf16, #tpu.memory_space<vmem>>, vector<512x128xbf16>
    %1 = arith.extf %0 : vector<512x128xbf16> to vector<512x128xf32>
    %c0_1 = arith.constant 0 : index
    %c0_2 = arith.constant 0 : index
    %2 = vector.load %arg2[%c0_1, %c0_2] : memref<1x128xf32, #tpu.memory_space<vmem>>, vector<1x128xf32>
    %3 = vector.broadcast %2 : vector<1x128xf32> to vector<512x128xf32>
    %4 = arith.mulf %1, %3 : vector<512x128xf32>
    %c0_3 = arith.constant 0 : index
    %c0_4 = arith.constant 0 : index
    %5 = vector.load %arg3[%c0_3, %c0_4] : memref<1x128xf32, #tpu.memory_space<vmem>>, vector<1x128xf32>
    %6 = vector.broadcast %5 : vector<1x128xf32> to vector<512x128xf32>
    %7 = arith.addf %4, %6 : vector<512x128xf32>
    %c0_5 = arith.constant 0 : index
    %c0_6 = arith.constant 0 : index
    %8 = vector.load %arg4[%c0_5, %c0_6] : memref<512x128xf32, #tpu.memory_space<vmem>>, vector<512x128xf32>
    %9 = arith.addf %7, %8 : vector<512x128xf32>
    %c0_7 = arith.constant 0 : index
    %c0_8 = arith.constant 0 : index
    %10 = vector.load %arg5[%c0_7, %c0_8] : memref<512x128xf32, #tpu.memory_space<vmem>>, vector<512x128xf32>
    tpu.vector_store %arg5[%c0_7, %c0_8], %9 {strides = array<i32>} : memref<512x128xf32, #tpu.memory_space<vmem>>, vector<512x128xf32>,
    return
  }
  func.func @transform_0(%arg0: i32) -> (i32, i32) {
    %c0_i32 = arith.constant 0 : i32
    %c0_i32_0 = arith.constant 0 : i32
    return %arg0, %c0_i32 : i32, i32
  }
  func.func @transform_1(%arg0: i32) -> (i32, i32) {
    %c0_i32 = arith.constant 0 : i32
    %c0_i32_0 = arith.constant 0 : i32
    %c0_i32_1 = arith.constant 0 : i32
    return %c0_i32, %c0_i32_0 : i32, i32
  }
  func.func @transform_2(%arg0: i32) -> (i32, i32) {
    %c0_i32 = arith.constant 0 : i32
    %c0_i32_0 = arith.constant 0 : i32
    %c0_i32_1 = arith.constant 0 : i32
    return %c0_i32, %c0_i32_0 : i32, i32
  }
  func.func @transform_3(%arg0: i32) -> (i32, i32) {
    %c0_i32 = arith.constant 0 : i32
    %c0_i32_0 = arith.constant 0 : i32
    return %arg0, %c0_i32 : i32, i32
  }
  func.func @transform_4(%arg0: i32) -> (i32, i32) {
    %c0_i32 = arith.constant 0 : i32
    %c0_i32_0 = arith.constant 0 : i32
    return %arg0, %c0_i32 : i32, i32
  }
}

</mosaic_0001>

<llo_original>
// kernel: resblock_forward.5
$region0: #{resblock_forward.5}
  #allocation0 [shape = 'u32[]', space=smem, size = 0x4, offset = 0x4, fixed_abs, tag = 'smem constant byte address 0x4 - core index']
  #allocation1 [shape = 'u32[144,128]{1,0:T(1,128)}', space=vmem, size = 0x12000, scoped, tag = 'internal scratch']
  %s0 = inlined_call_operand.vmem [shape: bf16[512,128], index: 0, kind: input, shape index: {}]
  %s1 = inlined_call_operand.vmem [shape: f32[1,128], index: 1, kind: input, shape index: {}]
  %s2 = inlined_call_operand.vmem [shape: f32[1,128], index: 2, kind: input, shape index: {}]
  %s3 = inlined_call_operand.vmem [shape: f32[512,128], index: 3, kind: input, shape index: {}]
  %s4 = inlined_call_operand.hbm [shape: f32[512,128], index: 4, kind: output, shape index: {}]
  %s5 = sld [smem:[#allocation0]]
  $region26: #{resblock_forward.5} parent=0
    _
  %s7 = ssub.s32 1, %s5
  %s8 = scalar_select 0, %s7, %s5
  $region1: #{resblock_forward.5} parent=0
    #allocation2 [shape = 'u8[262144]{0}', space=vmem, size = 0x40000, scoped, tag = 'output window, operand 0, single buffered']
    #allocation3 [shape = 's32[1]{0}', space=sflag, size = 0x4, scoped, tag = 'scoped memory for resblock_forward.5']
    %9 = vsyncpa [#allocation3], 0
    // Predicated region
    $region2: #{resblock_forward.5} parent=1 // pred_check
      _
    $region3: #{resblock_forward.5} parent=1 // pred_check_branch
      %11 = sbr.rel (0) target = $region5
    $region4: #{resblock_forward.5} parent=1 // pred_region
      _
    $region5: #{resblock_forward.5} parent=1 // pred_fallthru
      _
    // Predicated region
    $region6: #{resblock_forward.5} parent=1 // pred_check
      _
    $region7: #{resblock_forward.5} parent=1 // pred_check_branch
      %13 = sbr.rel (0) target = $region9
    $region8: #{resblock_forward.5} parent=1 // pred_region
      _
    $region9: #{resblock_forward.5} parent=1 // pred_fallthru
      _
    // Predicated region
    $region10: #{resblock_forward.5} parent=1 // pred_check
      _
    $region11: #{resblock_forward.5} parent=1 // pred_check_branch
      %15 = sbr.rel (0) target = $region13
    $region12: #{resblock_forward.5} parent=1 // pred_region
      _
    $region13: #{resblock_forward.5} parent=1 // pred_fallthru
      _
    // Predicated region
    $region14: #{resblock_forward.5} parent=1 // pred_check
      _
    $region15: #{resblock_forward.5} parent=1 // pred_check_branch
      %17 = sbr.rel (0) target = $region17
    $region16: #{resblock_forward.5} parent=1 // pred_region
      _
    $region17: #{resblock_forward.5} parent=1 // pred_fallthru
      _
    %v18 = vld [vmem:[%s0] sm:$0xf]
    %v19 = vld [vmem:[%s0 + $0x4] sm:$0xf]
    %v20 = vld [vmem:[%s0 + $0x8] sm:$0xf]
    %v21 = vld [vmem:[%s0 + $0xc] sm:$0xf]
    %v22 = vld [vmem:[%s0 + $0x10] sm:$0xf]
    %v23 = vld [vmem:[%s0 + $0x14] sm:$0xf]
    %v24 = vld [vmem:[%s0 + $0x18] sm:$0xf]
    %v25 = vld [vmem:[%s0 + $0x1c] sm:$0xf]
    %v26 = vld [vmem:[%s0 + $0x20] sm:$0xf]
    %v27 = vld [vmem:[%s0 + $0x24] sm:$0xf]
    %v28 = vld [vmem:[%s0 + $0x28] sm:$0xf]
    %v29 = vld [vmem:[%s0 + $0x2c] sm:$0xf]
    %v30 = vld [vmem:[%s0 + $0x30] sm:$0xf]
    %v31 = vld [vmem:[%s0 + $0x34] sm:$0xf]
    %v32 = vld [vmem:[%s0 + $0x38] sm:$0xf]
    %v33 = vld [vmem:[%s0 + $0x3c] sm:$0xf]
    %v34 = vld [vmem:[%s0 + $0x40] sm:$0xf]
    %v35 = vld [vmem:[%s0 + $0x44] sm:$0xf]
    %v36 = vld [vmem:[%s0 + $0x48] sm:$0xf]
    %v37 = vld [vmem:[%s0 + $0x4c] sm:$0xf]
    %v38 = vld [vmem:[%s0 + $0x50] sm:$0xf]
    %v39 = vld [vmem:[%s0 + $0x54] sm:$0xf]
    %v40 = vld [vmem:[%s0 + $0x58] sm:$0xf]
    %v41 = vld [vmem:[%s0 + $0x5c] sm:$0xf]
    %v42 = vld [vmem:[%s0 + $0x60] sm:$0xf]
    %v43 = vld [vmem:[%s0 + $0x64] sm:$0xf]
    %v44 = vld [vmem:[%s0 + $0x68] sm:$0xf]
    %v45 = vld [vmem:[%s0 + $0x6c] sm:$0xf]
    %v46 = vld [vmem:[%s0 + $0x70] sm:$0xf]
    %v47 = vld [vmem:[%s0 + $0x74] sm:$0xf]
    %v48 = vld [vmem:[%s0 + $0x78] sm:$0xf]
    %v49 = vld [vmem:[%s0 + $0x7c] sm:$0xf]
    %v50 = vld [vmem:[%s0 + $0x80] sm:$0xf]
    %v51 = vld [vmem:[%s0 + $0x84] sm:$0xf]
    %v52 = vld [vmem:[%s0 + $0x88] sm:$0xf]
    %v53 = vld [vmem:[%s0 + $0x8c] sm:$0xf]
    %v54 = vld [vmem:[%s0 + $0x90] sm:$0xf]
    %v55 = vld [vmem:[%s0 + $0x94] sm:$0xf]
    %v56 = vld [vmem:[%s0 + $0x98] sm:$0xf]
    %v57 = vld [vmem:[%s0 + $0x9c] sm:$0xf]
    %v58 = vld [vmem:[%s0 + $0xa0] sm:$0xf]
    %v59 = vld [vmem:[%s0 + $0xa4] sm:$0xf]
    %v60 = vld [vmem:[%s0 + $0xa8] sm:$0xf]
    %v61 = vld [vmem:[%s0 + $0xac] sm:$0xf]
    %v62 = vld [vmem:[%s0 + $0xb0] sm:$0xf]
    %v63 = vld [vmem:[%s0 + $0xb4] sm:$0xf]
    %v64 = vld [vmem:[%s0 + $0xb8] sm:$0xf]
    %v65 = vld [vmem:[%s0 + $0xbc] sm:$0xf]
    %v66 = vld [vmem:[%s0 + $0xc0] sm:$0xf]
    %v67 = vld [vmem:[%s0 + $0xc4] sm:$0xf]
    %v68 = vld [vmem:[%s0 + $0xc8] sm:$0xf]
    %v69 = vld [vmem:[%s0 + $0xcc] sm:$0xf]
    %v70 = vld [vmem:[%s0 + $0xd0] sm:$0xf]
    %v71 = vld [vmem:[%s0 + $0xd4] sm:$0xf]
    %v72 = vld [vmem:[%s0 + $0xd8] sm:$0xf]
    %v73 = vld [vmem:[%s0 + $0xdc] sm:$0xf]
    %v74 = vld [vmem:[%s0 + $0xe0] sm:$0xf]
    %v75 = vld [vmem:[%s0 + $0xe4] sm:$0xf]
    %v76 = vld [vmem:[%s0 + $0xe8] sm:$0xf]
    %v77 = vld [vmem:[%s0 + $0xec] sm:$0xf]
    %v78 = vld [vmem:[%s0 + $0xf0] sm:$0xf]
    %v79 = vld [vmem:[%s0 + $0xf4] sm:$0xf]
    %v80 = vld [vmem:[%s0 + $0xf8] sm:$0xf]
    %v81 = vld [vmem:[%s0 + $0xfc] sm:$0xf]
    %v82 = vunpack.c.l.bf16 %v18
    %v83 = vunpack.c.l.bf16 %v19
    %v84 = vunpack.c.l.bf16 %v20
    %v85 = vunpack.c.l.bf16 %v21
    %v86 = vunpack.c.l.bf16 %v22
    %v87 = vunpack.c.l.bf16 %v23
    %v88 = vunpack.c.l.bf16 %v24
    %v89 = vunpack.c.l.bf16 %v25
    %v90 = vunpack.c.l.bf16 %v26
    %v91 = vunpack.c.l.bf16 %v27
    %v92 = vunpack.c.l.bf16 %v28
    %v93 = vunpack.c.l.bf16 %v29
    %v94 = vunpack.c.l.bf16 %v30
    %v95 = vunpack.c.l.bf16 %v31
    %v96 = vunpack.c.l.bf16 %v32
    %v97 = vunpack.c.l.bf16 %v33
    %v98 = vunpack.c.l.bf16 %v34
    %v99 = vunpack.c.l.bf16 %v35
    %v100 = vunpack.c.l.bf16 %v36
    %v101 = vunpack.c.l.bf16 %v37
    %v102 = vunpack.c.l.bf16 %v38
    %v103 = vunpack.c.l.bf16 %v39
    %v104 = vunpack.c.l.bf16 %v40
    %v105 = vunpack.c.l.bf16 %v41
    %v106 = vunpack.c.l.bf16 %v42
    %v107 = vunpack.c.l.bf16 %v43
    %v108 = vunpack.c.l.bf16 %v44
    %v109 = vunpack.c.l.bf16 %v45
    %v110 = vunpack.c.l.bf16 %v46
    %v111 = vunpack.c.l.bf16 %v47
    %v112 = vunpack.c.l.bf16 %v48
    %v113 = vunpack.c.l.bf16 %v49
    %v114 = vunpack.c.l.bf16 %v50
    %v115 = vunpack.c.l.bf16 %v51
    %v116 = vunpack.c.l.bf16 %v52
    %v117 = vunpack.c.l.bf16 %v53
    %v118 = vunpack.c.l.bf16 %v54
    %v119 = vunpack.c.l.bf16 %v55
    %v120 = vunpack.c.l.bf16 %v56
    %v121 = vunpack.c.l.bf16 %v57
    %v122 = vunpack.c.l.bf16 %v58
    %v123 = vunpack.c.l.bf16 %v59
    %v124 = vunpack.c.l.bf16 %v60
    %v125 = vunpack.c.l.bf16 %v61
    %v126 = vunpack.c.l.bf16 %v62
    %v127 = vunpack.c.l.bf16 %v63
    %v128 = vunpack.c.l.bf16 %v64
    %v129 = vunpack.c.l.bf16 %v65
    %v130 = vunpack.c.l.bf16 %v66
    %v131 = vunpack.c.l.bf16 %v67
    %v132 = vunpack.c.l.bf16 %v68
    %v133 = vunpack.c.l.bf16 %v69
    %v134 = vunpack.c.l.bf16 %v70
    %v135 = vunpack.c.l.bf16 %v71
    %v136 = vunpack.c.l.bf16 %v72
    %v137 = vunpack.c.l.bf16 %v73
    %v138 = vunpack.c.l.bf16 %v74
    %v139 = vunpack.c.l.bf16 %v75
    %v140 = vunpack.c.l.bf16 %v76
    %v141 = vunpack.c.l.bf16 %v77
    %v142 = vunpack.c.l.bf16 %v78
    %v143 = vunpack.c.l.bf16 %v79
    %v144 = vunpack.c.l.bf16 %v80
    %v145 = vunpack.c.l.bf16 %v81
    %v146 = vld [vmem:[%s1] sm:$0x1]
    %v148 = vlaneseq
    %v149 = vshrl.u32 %v148, 7
    %v150 = vsub.s32 0, %v149
    %v151 = vrot.slane %v146, %v150
    %v153 = vmul.f32 %v82, %v151
    %v154 = vmul.f32 %v83, %v151
    %v155 = vmul.f32 %v84, %v151
    %v156 = vmul.f32 %v85, %v151
    %v157 = vmul.f32 %v86, %v151
    %v158 = vmul.f32 %v87, %v151
    %v159 = vmul.f32 %v88, %v151
    %v160 = vmul.f32 %v89, %v151
    %v161 = vmul.f32 %v90, %v151
    %v162 = vmul.f32 %v91, %v151
    %v163 = vmul.f32 %v92, %v151
    %v164 = vmul.f32 %v93, %v151
    %v165 = vmul.f32 %v94, %v151
    %v166 = vmul.f32 %v95, %v151
    %v167 = vmul.f32 %v96, %v151
    %v168 = vmul.f32 %v97, %v151
    %v169 = vmul.f32 %v98, %v151
    %v170 = vmul.f32 %v99, %v151
    %v171 = vmul.f32 %v100, %v151
    %v172 = vmul.f32 %v101, %v151
    %v173 = vmul.f32 %v102, %v151
    %v174 = vmul.f32 %v103, %v151
    %v175 = vmul.f32 %v104, %v151
    %v176 = vmul.f32 %v105, %v151
    %v177 = vmul.f32 %v106, %v151
    %v178 = vmul.f32 %v107, %v151
    %v179 = vmul.f32 %v108, %v151
    %v180 = vmul.f32 %v109, %v151
    %v181 = vmul.f32 %v110, %v151
    %v182 = vmul.f32 %v111, %v151
    %v183 = vmul.f32 %v112, %v151
    %v184 = vmul.f32 %v113, %v151
    %v185 = vmul.f32 %v114, %v151
    %v186 = vmul.f32 %v115, %v151
    %v187 = vmul.f32 %v116, %v151
    %v188 = vmul.f32 %v117, %v151
    %v189 = vmul.f32 %v118, %v151
    %v190 = vmul.f32 %v119, %v151
    %v191 = vmul.f32 %v120, %v151
    %v192 = vmul.f32 %v121, %v151
    %v193 = vmul.f32 %v122, %v151
    %v194 = vmul.f32 %v123, %v151
    %v195 = vmul.f32 %v124, %v151
    %v196 = vmul.f32 %v125, %v151
    %v197 = vmul.f32 %v126, %v151
    %v198 = vmul.f32 %v127, %v151
    %v199 = vmul.f32 %v128, %v151
    %v200 = vmul.f32 %v129, %v151
    %v201 = vmul.f32 %v130, %v151
    %v202 = vmul.f32 %v131, %v151
    %v203 = vmul.f32 %v132, %v151
    %v204 = vmul.f32 %v133, %v151
    %v205 = vmul.f32 %v134, %v151
    %v206 = vmul.f32 %v135, %v151
    %v207 = vmul.f32 %v136, %v151
    %v208 = vmul.f32 %v137, %v151
    %v209 = vmul.f32 %v138, %v151
    %v210 = vmul.f32 %v139, %v151
    %v211 = vmul.f32 %v140, %v151
    %v212 = vmul.f32 %v141, %v151
    %v213 = vmul.f32 %v142, %v151
    %v214 = vmul.f32 %v143, %v151
    %v215 = vmul.f32 %v144, %v151
    %v216 = vmul.f32 %v145, %v151
    %v217 = vld [vmem:[%s2] sm:$0x1]
    %v219 = vlaneseq
    %v220 = vshrl.u32 %v219, 7
    %v221 = vsub.s32 0, %v220
    %v222 = vrot.slane %v217, %v221
    %v224 = vadd.f32 %v153, %v222
    %v225 = vadd.f32 %v154, %v222
    %v226 = vadd.f32 %v155, %v222
    %v227 = vadd.f32 %v156, %v222
    %v228 = vadd.f32 %v157, %v222
    %v229 = vadd.f32 %v158, %v222
    %v230 = vadd.f32 %v159, %v222
    %v231 = vadd.f32 %v160, %v222
    %v232 = vadd.f32 %v161, %v222
    %v233 = vadd.f32 %v162, %v222
    %v234 = vadd.f32 %v163, %v222
    %v235 = vadd.f32 %v164, %v222
    %v236 = vadd.f32 %v165, %v222
    %v237 = vadd.f32 %v166, %v222
    %v238 = vadd.f32 %v167, %v222
    %v239 = vadd.f32 %v168, %v222
    %v240 = vadd.f32 %v169, %v222
    %v241 = vadd.f32 %v170, %v222
    %v242 = vadd.f32 %v171, %v222
    %v243 = vadd.f32 %v172, %v222
    %v244 = vadd.f32 %v173, %v222
    %v245 = vadd.f32 %v174, %v222
    %v246 = vadd.f32 %v175, %v222
    %v247 = vadd.f32 %v176, %v222
    %v248 = vadd.f32 %v177, %v222
    %v249 = vadd.f32 %v178, %v222
    %v250 = vadd.f32 %v179, %v222
    %v251 = vadd.f32 %v180, %v222
    %v252 = vadd.f32 %v181, %v222
    %v253 = vadd.f32 %v182, %v222
    %v254 = vadd.f32 %v183, %v222
    %v255 = vadd.f32 %v184, %v222
    %v256 = vadd.f32 %v185, %v222
    %v257 = vadd.f32 %v186, %v222
    %v258 = vadd.f32 %v187, %v222
    %v259 = vadd.f32 %v188, %v222
    %v260 = vadd.f32 %v189, %v222
    %v261 = vadd.f32 %v190, %v222
    %v262 = vadd.f32 %v191, %v222
    %v263 = vadd.f32 %v192, %v222
    %v264 = vadd.f32 %v193, %v222
    %v265 = vadd.f32 %v194, %v222
    %v266 = vadd.f32 %v195, %v222
    %v267 = vadd.f32 %v196, %v222
    %v268 = vadd.f32 %v197, %v222
    %v269 = vadd.f32 %v198, %v222
    %v270 = vadd.f32 %v199, %v222
    %v271 = vadd.f32 %v200, %v222
    %v272 = vadd.f32 %v201, %v222
    %v273 = vadd.f32 %v202, %v222
    %v274 = vadd.f32 %v203, %v222
    %v275 = vadd.f32 %v204, %v222
    %v276 = vadd.f32 %v205, %v222
    %v277 = vadd.f32 %v206, %v222
    %v278 = vadd.f32 %v207, %v222
    %v279 = vadd.f32 %v208, %v222
    %v280 = vadd.f32 %v209, %v222
    %v281 = vadd.f32 %v210, %v222
    %v282 = vadd.f32 %v211, %v222
    %v283 = vadd.f32 %v212, %v222
    %v284 = vadd.f32 %v213, %v222
    %v285 = vadd.f32 %v214, %v222
    %v286 = vadd.f32 %v215, %v222
    %v287 = vadd.f32 %v216, %v222
    %v288 = vld [vmem:[%s3] sm:$0xff]
    %v289 = vld [vmem:[%s3 + $0x8] sm:$0xff]
    %v290 = vld [vmem:[%s3 + $0x10] sm:$0xff]
    %v291 = vld [vmem:[%s3 + $0x18] sm:$0xff]
    %v292 = vld [vmem:[%s3 + $0x20] sm:$0xff]
    %v293 = vld [vmem:[%s3 + $0x28] sm:$0xff]
    %v294 = vld [vmem:[%s3 + $0x30] sm:$0xff]
    %v295 = vld [vmem:[%s3 + $0x38] sm:$0xff]
    %v296 = vld [vmem:[%s3 + $0x40] sm:$0xff]
    %v297 = vld [vmem:[%s3 + $0x48] sm:$0xff]
    %v298 = vld [vmem:[%s3 + $0x50] sm:$0xff]
    %v299 = vld [vmem:[%s3 + $0x58] sm:$0xff]
    %v300 = vld [vmem:[%s3 + $0x60] sm:$0xff]
    %v301 = vld [vmem:[%s3 + $0x68] sm:$0xff]
    %v302 = vld [vmem:[%s3 + $0x70] sm:$0xff]
    %v303 = vld [vmem:[%s3 + $0x78] sm:$0xff]
    %v304 = vld [vmem:[%s3 + $0x80] sm:$0xff]
    %v305 = vld [vmem:[%s3 + $0x88] sm:$0xff]
    %v306 = vld [vmem:[%s3 + $0x90] sm:$0xff]
    %v307 = vld [vmem:[%s3 + $0x98] sm:$0xff]
    %v308 = vld [vmem:[%s3 + $0xa0] sm:$0xff]
    %v309 = vld [vmem:[%s3 + $0xa8] sm:$0xff]
    %v310 = vld [vmem:[%s3 + $0xb0] sm:$0xff]
    %v311 = vld [vmem:[%s3 + $0xb8] sm:$0xff]
    %v312 = vld [vmem:[%s3 + $0xc0] sm:$0xff]
    %v313 = vld [vmem:[%s3 + $0xc8] sm:$0xff]
    %v314 = vld [vmem:[%s3 + $0xd0] sm:$0xff]
    %v315 = vld [vmem:[%s3 + $0xd8] sm:$0xff]
    %v316 = vld [vmem:[%s3 + $0xe0] sm:$0xff]
    %v317 = vld [vmem:[%s3 + $0xe8] sm:$0xff]
    %v318 = vld [vmem:[%s3 + $0xf0] sm:$0xff]
    %v319 = vld [vmem:[%s3 + $0xf8] sm:$0xff]
    %v320 = vld [vmem:[%s3 + $0x100] sm:$0xff]
    %v321 = vld [vmem:[%s3 + $0x108] sm:$0xff]
    %v322 = vld [vmem:[%s3 + $0x110] sm:$0xff]
    %v323 = vld [vmem:[%s3 + $0x118] sm:$0xff]
    %v324 = vld [vmem:[%s3 + $0x120] sm:$0xff]
    %v325 = vld [vmem:[%s3 + $0x128] sm:$0xff]
    %v326 = vld [vmem:[%s3 + $0x130] sm:$0xff]
    %v327 = vld [vmem:[%s3 + $0x138] sm:$0xff]
    %v328 = vld [vmem:[%s3 + $0x140] sm:$0xff]
    %v329 = vld [vmem:[%s3 + $0x148] sm:$0xff]
    %v330 = vld [vmem:[%s3 + $0x150] sm:$0xff]
    %v331 = vld [vmem:[%s3 + $0x158] sm:$0xff]
    %v332 = vld [vmem:[%s3 + $0x160] sm:$0xff]
    %v333 = vld [vmem:[%s3 + $0x168] sm:$0xff]
    %v334 = vld [vmem:[%s3 + $0x170] sm:$0xff]
    %v335 = vld [vmem:[%s3 + $0x178] sm:$0xff]
    %v336 = vld [vmem:[%s3 + $0x180] sm:$0xff]
    %v337 = vld [vmem:[%s3 + $0x188] sm:$0xff]
    %v338 = vld [vmem:[%s3 + $0x190] sm:$0xff]
    %v339 = vld [vmem:[%s3 + $0x198] sm:$0xff]
    %v340 = vld [vmem:[%s3 + $0x1a0] sm:$0xff]
    %v341 = vld [vmem:[%s3 + $0x1a8] sm:$0xff]
    %v342 = vld [vmem:[%s3 + $0x1b0] sm:$0xff]
    %v343 = vld [vmem:[%s3 + $0x1b8] sm:$0xff]
    %v344 = vld [vmem:[%s3 + $0x1c0] sm:$0xff]
    %v345 = vld [vmem:[%s3 + $0x1c8] sm:$0xff]
    %v346 = vld [vmem:[%s3 + $0x1d0] sm:$0xff]
    %v347 = vld [vmem:[%s3 + $0x1d8] sm:$0xff]
    %v348 = vld [vmem:[%s3 + $0x1e0] sm:$0xff]
    %v349 = vld [vmem:[%s3 + $0x1e8] sm:$0xff]
    %v350 = vld [vmem:[%s3 + $0x1f0] sm:$0xff]
    %v351 = vld [vmem:[%s3 + $0x1f8] sm:$0xff]
    %v352 = vadd.f32 %v224, %v288
    %v353 = vadd.f32 %v225, %v289
    %v354 = vadd.f32 %v226, %v290
    %v355 = vadd.f32 %v227, %v291
    %v356 = vadd.f32 %v228, %v292
    %v357 = vadd.f32 %v229, %v293
    %v358 = vadd.f32 %v230, %v294
    %v359 = vadd.f32 %v231, %v295
    %v360 = vadd.f32 %v232, %v296
    %v361 = vadd.f32 %v233, %v297
    %v362 = vadd.f32 %v234, %v298
    %v363 = vadd.f32 %v235, %v299
    %v364 = vadd.f32 %v236, %v300
    %v365 = vadd.f32 %v237, %v301
    %v366 = vadd.f32 %v238, %v302
    %v367 = vadd.f32 %v239, %v303
    %v368 = vadd.f32 %v240, %v304
    %v369 = vadd.f32 %v241, %v305
    %v370 = vadd.f32 %v242, %v306
    %v371 = vadd.f32 %v243, %v307
    %v372 = vadd.f32 %v244, %v308
    %v373 = vadd.f32 %v245, %v309
    %v374 = vadd.f32 %v246, %v310
    %v375 = vadd.f32 %v247, %v311
    %v376 = vadd.f32 %v248, %v312
    %v377 = vadd.f32 %v249, %v313
    %v378 = vadd.f32 %v250, %v314
    %v379 = vadd.f32 %v251, %v315
    %v380 = vadd.f32 %v252, %v316
    %v381 = vadd.f32 %v253, %v317
    %v382 = vadd.f32 %v254, %v318
    %v383 = vadd.f32 %v255, %v319
    %v384 = vadd.f32 %v256, %v320
    %v385 = vadd.f32 %v257, %v321
    %v386 = vadd.f32 %v258, %v322
    %v387 = vadd.f32 %v259, %v323
    %v388 = vadd.f32 %v260, %v324
    %v389 = vadd.f32 %v261, %v325
    %v390 = vadd.f32 %v262, %v326
    %v391 = vadd.f32 %v263, %v327
    %v392 = vadd.f32 %v264, %v328
    %v393 = vadd.f32 %v265, %v329
    %v394 = vadd.f32 %v266, %v330
    %v395 = vadd.f32 %v267, %v331
    %v396 = vadd.f32 %v268, %v332
    %v397 = vadd.f32 %v269, %v333
    %v398 = vadd.f32 %v270, %v334
    %v399 = vadd.f32 %v271, %v335
    %v400 = vadd.f32 %v272, %v336
    %v401 = vadd.f32 %v273, %v337
    %v402 = vadd.f32 %v274, %v338
    %v403 = vadd.f32 %v275, %v339
    %v404 = vadd.f32 %v276, %v340
    %v405 = vadd.f32 %v277, %v341
    %v406 = vadd.f32 %v278, %v342
    %v407 = vadd.f32 %v279, %v343
    %v408 = vadd.f32 %v280, %v344
    %v409 = vadd.f32 %v281, %v345
    %v410 = vadd.f32 %v282, %v346
    %v411 = vadd.f32 %v283, %v347
    %v412 = vadd.f32 %v284, %v348
    %v413 = vadd.f32 %v285, %v349
    %v414 = vadd.f32 %v286, %v350
    %v415 = vadd.f32 %v287, %v351
    %416 = vst [vmem:[#allocation2] sm:$0xff] %v352
    %417 = vst [vmem:[#allocation2 + $0x8] sm:$0xff] %v353
    %418 = vst [vmem:[#allocation2 + $0x10] sm:$0xff] %v354
    %419 = vst [vmem:[#allocation2 + $0x18] sm:$0xff] %v355
    %420 = vst [vmem:[#allocation2 + $0x20] sm:$0xff] %v356
    %421 = vst [vmem:[#allocation2 + $0x28] sm:$0xff] %v357
    %422 = vst [vmem:[#allocation2 + $0x30] sm:$0xff] %v358
    %423 = vst [vmem:[#allocation2 + $0x38] sm:$0xff] %v359
    %424 = vst [vmem:[#allocation2 + $0x40] sm:$0xff] %v360
    %425 = vst [vmem:[#allocation2 + $0x48] sm:$0xff] %v361
    %426 = vst [vmem:[#allocation2 + $0x50] sm:$0xff] %v362
    %427 = vst [vmem:[#allocation2 + $0x58] sm:$0xff] %v363
    %428 = vst [vmem:[#allocation2 + $0x60] sm:$0xff] %v364
    %429 = vst [vmem:[#allocation2 + $0x68] sm:$0xff] %v365
    %430 = vst [vmem:[#allocation2 + $0x70] sm:$0xff] %v366
    %431 = vst [vmem:[#allocation2 + $0x78] sm:$0xff] %v367
    %432 = vst [vmem:[#allocation2 + $0x80] sm:$0xff] %v368
    %433 = vst [vmem:[#allocation2 + $0x88] sm:$0xff] %v369
    %434 = vst [vmem:[#allocation2 + $0x90] sm:$0xff] %v370
    %435 = vst [vmem:[#allocation2 + $0x98] sm:$0xff] %v371
    %436 = vst [vmem:[#allocation2 + $0xa0] sm:$0xff] %v372
    %437 = vst [vmem:[#allocation2 + $0xa8] sm:$0xff] %v373
    %438 = vst [vmem:[#allocation2 + $0xb0] sm:$0xff] %v374
    %439 = vst [vmem:[#allocation2 + $0xb8] sm:$0xff] %v375
    %440 = vst [vmem:[#allocation2 + $0xc0] sm:$0xff] %v376
    %441 = vst [vmem:[#allocation2 + $0xc8] sm:$0xff] %v377
    %442 = vst [vmem:[#allocation2 + $0xd0] sm:$0xff] %v378
    %443 = vst [vmem:[#allocation2 + $0xd8] sm:$0xff] %v379
    %444 = vst [vmem:[#allocation2 + $0xe0] sm:$0xff] %v380
    %445 = vst [vmem:[#allocation2 + $0xe8] sm:$0xff] %v381
    %446 = vst [vmem:[#allocation2 + $0xf0] sm:$0xff] %v382
    %447 = vst [vmem:[#allocation2 + $0xf8] sm:$0xff] %v383
    %448 = vst [vmem:[#allocation2 + $0x100] sm:$0xff] %v384
    %449 = vst [vmem:[#allocation2 + $0x108] sm:$0xff] %v385
    %450 = vst [vmem:[#allocation2 + $0x110] sm:$0xff] %v386
    %451 = vst [vmem:[#allocation2 + $0x118] sm:$0xff] %v387
    %452 = vst [vmem:[#allocation2 + $0x120] sm:$0xff] %v388
    %453 = vst [vmem:[#allocation2 + $0x128] sm:$0xff] %v389
    %454 = vst [vmem:[#allocation2 + $0x130] sm:$0xff] %v390
    %455 = vst [vmem:[#allocation2 + $0x138] sm:$0xff] %v391
    %456 = vst [vmem:[#allocation2 + $0x140] sm:$0xff] %v392
    %457 = vst [vmem:[#allocation2 + $0x148] sm:$0xff] %v393
    %458 = vst [vmem:[#allocation2 + $0x150] sm:$0xff] %v394
    %459 = vst [vmem:[#allocation2 + $0x158] sm:$0xff] %v395
    %460 = vst [vmem:[#allocation2 + $0x160] sm:$0xff] %v396
    %461 = vst [vmem:[#allocation2 + $0x168] sm:$0xff] %v397
    %462 = vst [vmem:[#allocation2 + $0x170] sm:$0xff] %v398
    %463 = vst [vmem:[#allocation2 + $0x178] sm:$0xff] %v399
    %464 = vst [vmem:[#allocation2 + $0x180] sm:$0xff] %v400
    %465 = vst [vmem:[#allocation2 + $0x188] sm:$0xff] %v401
    %466 = vst [vmem:[#allocation2 + $0x190] sm:$0xff] %v402
    %467 = vst [vmem:[#allocation2 + $0x198] sm:$0xff] %v403
    %468 = vst [vmem:[#allocation2 + $0x1a0] sm:$0xff] %v404
    %469 = vst [vmem:[#allocation2 + $0x1a8] sm:$0xff] %v405
    %470 = vst [vmem:[#allocation2 + $0x1b0] sm:$0xff] %v406
    %471 = vst [vmem:[#allocation2 + $0x1b8] sm:$0xff] %v407
    %472 = vst [vmem:[#allocation2 + $0x1c0] sm:$0xff] %v408
    %473 = vst [vmem:[#allocation2 + $0x1c8] sm:$0xff] %v409
    %474 = vst [vmem:[#allocation2 + $0x1d0] sm:$0xff] %v410
    %475 = vst [vmem:[#allocation2 + $0x1d8] sm:$0xff] %v411
    %476 = vst [vmem:[#allocation2 + $0x1e0] sm:$0xff] %v412
    %477 = vst [vmem:[#allocation2 + $0x1e8] sm:$0xff] %v413
    %478 = vst [vmem:[#allocation2 + $0x1f0] sm:$0xff] %v414
    %479 = vst [vmem:[#allocation2 + $0x1f8] sm:$0xff] %v415
    // Predicated region
    $region18: #{resblock_forward.5} parent=1 // pred_check
      _
    $region19: #{resblock_forward.5} parent=1 // pred_check_branch
      %481 = sbr.rel (0) target = $region21
    $region20: #{resblock_forward.5} parent=1 // pred_region
      %s483 = ssub.s32 8192, 8192
      %484 = vsyncadd [#allocation3], %s483
      %s485 = sshll.u32 [#allocation2], 4
      %s486 = int_to_ptr.vmem [resolvable:$true] %s485
      %491 = dma.vmem_to_hbm [thread:$0]  %s486, 8192, %s4, [#allocation3], 128, 128, 8
    $region21: #{resblock_forward.5} parent=1 // pred_fallthru
      _
    // Predicated region
    $region22: #{resblock_forward.5} parent=1 // pred_check
      _
    $region23: #{resblock_forward.5} parent=1 // pred_check_branch
      %493 = sbr.rel (0) target = $region25
    $region24: #{resblock_forward.5} parent=1 // pred_region
      %494 = dma.done [#allocation3], 8192
    $region25: #{resblock_forward.5} parent=1 // pred_fallthru
      _
    %495 = vsyncpa [#allocation3], 1

// kernel: resblock_forward.3
$region0: #{resblock_forward.3}
  #allocation0 [shape = 'u32[]', space=smem, size = 0x4, offset = 0x4, fixed_abs, tag = 'smem constant byte address 0x4 - core index']
  #allocation1 [shape = 'u32[144,128]{1,0:T(1,128)}', space=vmem, size = 0x12000, scoped, tag = 'internal scratch']
  #allocation2 [shape = 'bf16[18,18,128]{2,1,0:T(8,128)(2,1)}', space=vmem, size = 0x1b000, scoped, tag = 'scratch operand']
  %s0 = inlined_call_operand.vmem [shape: f32[2,16,16,128], index: 0, kind: input, shape index: {}]
  %s1 = inlined_call_operand.vmem [shape: bf16[9,128,128], index: 1, kind: input, shape index: {}]
  %s2 = inlined_call_operand.vmem [shape: bf16[2,16,16,128], index: 2, kind: output, shape index: {0}]
  %s3 = inlined_call_operand.vmem [shape: f32[2,2,1,128], index: 3, kind: output, shape index: {1}]
  %s4 = inlined_call_operand.vmem [shape: f32[2,2,1,128], index: 4, kind: output, shape index: {2}]
  %5 = xla_tuple %s2, %s3, %s4
  %s6 = sld [smem:[#allocation0]]
  $region61: #{resblock_forward.3} parent=0
    _
  %s8 = ssub.s32 1, %s6
  %s9 = scalar_select 0, %s8, %s6
  loop: start=0, step=1, limit=6
  $region2: #{resblock_forward.3} parent=0 // loop_pre_header
    _
  $region3: #{resblock_forward.3} parent=0 // loop_header
    %s11 = sphi 0, %s15
    %p12 = scmp.ge.s32.totalorder %s11, 6
    %s18 = sphi 0, %s30
    %s19 = sphi 0, %s26
    %s20 = sphi 0, %s18
    %s21 = sphi 0, %s19
    %s22 = sphi 0, %s20
    %s23 = sphi 0, %s21
    %s33 = sphi 0, %s35
    %s36 = sphi 0, %s33
    %s37 = sphi 0, %s36
    %s53 = sphi 0, %s37
    %s57 = sphi 0, %s57
    %s59 = sphi 0, %s57
    %s60 = sphi 0, %s59
    %s74 = sphi 0, %s60
    %s82 = sphi 0, %s84
    %s85 = sphi 0, %s82
    %s86 = sphi 0, %s85
    %s102 = sphi 0, %s86
    %s110 = sphi 0, %s112
    %s113 = sphi 0, %s110
    %s114 = sphi 0, %s113
    %s130 = sphi 0, %s114
    %s138 = sphi 0, %s140
    %s141 = sphi 0, %s138
    %s142 = sphi 0, %s141
    %s158 = sphi 0, %s142
  $region4: #{resblock_forward.3} parent=0 // loop_header_branch
    %14 = sbr.rel (%p12) target = $region8
  $region5: #{resblock_forward.3} parent=0 // loop_body
    %s16 = ssub.s32 %s11, 1
    %s17 = ssub.s32 %s11, 2
    %s24 = sadd.s32 1, %s19
    %p25 = scmp.ge.s32.totalorder %s24, 2
    %s26 = scalar_select %p25, 0, %s24
    %s27 = sadd.s32 1, %s18
    %s28 = scalar_select %p25, %s27, %s18
    %p29 = scmp.ge.s32.totalorder %s28, 2
    %s30 = scalar_select %p29, 0, %s28
    %s31 = ssub.s32 %s18, %s30
    %p32 = scmp.eq.s32.totalorder %s31, 0
    %s34 = sadd.s32 %s33, 1
    %s35 = scalar_select %p32, %s33, %s34
    %p38 = pneg %p32
    %p39 = scmp.eq.s32.totalorder %s11, 3
    %p40 = por %p38, %p39
    %p41 = scmp.ne.s32.totalorder %s33, %s36
    %p42 = scmp.eq.s32.totalorder %s11, 0
    %p43 = por %p41, %p42
    %p44 = scmp.ne.s32.totalorder %s33, %s36
    %p45 = scmp.eq.s32.totalorder %s16, 3
    %p46 = por %p44, %p45
    %p47 = scmp.ne.s32.totalorder %s36, %s37
    %p48 = scmp.eq.s32.totalorder %s16, 0
    %p49 = por %p47, %p48
    %p50 = scmp.ne.s32.totalorder %s36, %s37
    %p51 = scmp.eq.s32.totalorder %s17, 3
    %p52 = por %p50, %p51
    %p54 = scmp.ne.s32.totalorder %s37, %s53
    %p55 = scmp.eq.s32.totalorder %s17, 0
    %p56 = por %p54, %p55
    %s58 = sadd.s32 %s57, 1
    %p61 = scmp.eq.s32.totalorder %s11, 3
    %p62 = scmp.ne.s32.totalorder %s57, %s59
    %p63 = scmp.eq.s32.totalorder %s11, 0
    %p64 = por %p62, %p63
    %p65 = scmp.ne.s32.totalorder %s57, %s59
    %p66 = scmp.eq.s32.totalorder %s16, 3
    %p67 = por %p65, %p66
    %p68 = scmp.ne.s32.totalorder %s59, %s60
    %p69 = scmp.eq.s32.totalorder %s16, 0
    %p70 = por %p68, %p69
    %p71 = scmp.ne.s32.totalorder %s59, %s60
    %p72 = scmp.eq.s32.totalorder %s17, 3
    %p73 = por %p71, %p72
    %p75 = scmp.ne.s32.totalorder %s60, %s74
    %p76 = scmp.eq.s32.totalorder %s17, 0
    %p77 = por %p75, %p76
    %s78 = ssub.s32 %s18, %s30
    %s79 = ssub.s32 %s19, %s26
    %s80 = sor.u32 %s78, %s79
    %p81 = scmp.eq.s32.totalorder %s80, 0
    %s83 = sadd.s32 %s82, 1
    %s84 = scalar_select %p81, %s82, %s83
    %p87 = pneg %p81
    %p88 = scmp.eq.s32.totalorder %s11, 3
    %p89 = por %p87, %p88
    %p90 = scmp.ne.s32.totalorder %s82, %s85
    %p91 = scmp.eq.s32.totalorder %s11, 0
    %p92 = por %p90, %p91
    %p93 = scmp.ne.s32.totalorder %s82, %s85
    %p94 = scmp.eq.s32.totalorder %s16, 3
    %p95 = por %p93, %p94
    %p96 = scmp.ne.s32.totalorder %s85, %s86
    %p97 = scmp.eq.s32.totalorder %s16, 0
    %p98 = por %p96, %p97
    %p99 = scmp.ne.s32.totalorder %s85, %s86
    %p100 = scmp.eq.s32.totalorder %s17, 3
    %p101 = por %p99, %p100
    %p103 = scmp.ne.s32.totalorder %s86, %s102
    %p104 = scmp.eq.s32.totalorder %s17, 0
    %p105 = por %p103, %p104
    %s106 = ssub.s32 %s18, %s30
    %s107 = ssub.s32 %s19, %s26
    %s108 = sor.u32 %s106, %s107
    %p109 = scmp.eq.s32.totalorder %s108, 0
    %s111 = sadd.s32 %s110, 1
    %s112 = scalar_select %p109, %s110, %s111
    %p115 = pneg %p109
    %p116 = scmp.eq.s32.totalorder %s11, 3
    %p117 = por %p115, %p116
    %p118 = scmp.ne.s32.totalorder %s110, %s113
    %p119 = scmp.eq.s32.totalorder %s11, 0
    %p120 = por %p118, %p119
    %p121 = scmp.ne.s32.totalorder %s110, %s113
    %p122 = scmp.eq.s32.totalorder %s16, 3
    %p123 = por %p121, %p122
    %p124 = scmp.ne.s32.totalorder %s113, %s114
    %p125 = scmp.eq.s32.totalorder %s16, 0
    %p126 = por %p124, %p125
    %p127 = scmp.ne.s32.totalorder %s113, %s114
    %p128 = scmp.eq.s32.totalorder %s17, 3
    %p129 = por %p127, %p128
    %p131 = scmp.ne.s32.totalorder %s114, %s130
    %p132 = scmp.eq.s32.totalorder %s17, 0
    %p133 = por %p131, %p132
    %s134 = ssub.s32 %s18, %s30
    %s135 = ssub.s32 %s19, %s26
    %s136 = sor.u32 %s134, %s135
    %p137 = scmp.eq.s32.totalorder %s136, 0
    %s139 = sadd.s32 %s138, 1
    %s140 = scalar_select %p137, %s138, %s139
    %p143 = pneg %p137
    %p144 = scmp.eq.s32.totalorder %s11, 3
    %p145 = por %p143, %p144
    %p146 = scmp.ne.s32.totalorder %s138, %s141
    %p147 = scmp.eq.s32.totalorder %s11, 0
    %p148 = por %p146, %p147
    %p149 = scmp.ne.s32.totalorder %s138, %s141
    %p150 = scmp.eq.s32.totalorder %s16, 3
    %p151 = por %p149, %p150
    %p152 = scmp.ne.s32.totalorder %s141, %s142
    %p153 = scmp.eq.s32.totalorder %s16, 0
    %p154 = por %p152, %p153
    %p155 = scmp.ne.s32.totalorder %s141, %s142
    %p156 = scmp.eq.s32.totalorder %s17, 3
    %p157 = por %p155, %p156
    %p159 = scmp.ne.s32.totalorder %s142, %s158
    %p160 = scmp.eq.s32.totalorder %s17, 0
    %p161 = por %p159, %p160
    %p162 = scmp.le.s32.totalorder 1, %s11
    %p163 = scmp.lt.s32.totalorder %s11, 5
    %p164 = pnand %p162, %p163
    %p165 = pneg %p164
    // Predicated region
    $region9: #{resblock_forward.3} parent=5 // pred_check
      _
    $region10: #{resblock_forward.3} parent=5 // pred_check_branch
      %167 = sbr.rel (%p164) target = $region12
    $region11: #{resblock_forward.3} parent=5 // pred_region
      %s168 = ssub.s32 %s11, 1
      // Predicated region
      $region13: #{resblock_forward.3} parent=11 // pred_check
        %p169 = pneg %p70
      $region14: #{resblock_forward.3} parent=11 // pred_check_branch
        %171 = sbr.rel (%p169) target = $region16
      $region15: #{resblock_forward.3} parent=11 // pred_region
        _
      $region16: #{resblock_forward.3} parent=11 // pred_fallthru
        _
    $region12: #{resblock_forward.3} parent=5 // pred_fallthru
      _
    %p172 = scmp.lt.s32.totalorder %s11, 4
    // Predicated region
    $region17: #{resblock_forward.3} parent=5 // pred_check
      %p173 = pneg %p172
    $region18: #{resblock_forward.3} parent=5 // pred_check_branch
      %175 = sbr.rel (%p173) target = $region20
    $region19: #{resblock_forward.3} parent=5 // pred_region
      // Predicated region
      $region21: #{resblock_forward.3} parent=19 // pred_check
        %p176 = pneg %p43
      $region22: #{resblock_forward.3} parent=19 // pred_check_branch
        %178 = sbr.rel (%p176) target = $region24
      $region23: #{resblock_forward.3} parent=19 // pred_region
        %p179 = scmp.lt.s32.totalorder %s18, 1
        %s180 = scalar_select %p179, %s18, 1
        %s181 = smul.addr %s180, 32
        %s182 = smul.addr %s181, 8
        %s183 = scalar_lea.vmem %s0, %s182
      $region24: #{resblock_forward.3} parent=19 // pred_fallthru
        _
    $region20: #{resblock_forward.3} parent=5 // pred_fallthru
      _
    %p184 = scmp.le.s32.totalorder 1, %s11
    %p185 = scmp.lt.s32.totalorder %s11, 5
    %p186 = pnand %p184, %p185
    %p187 = pneg %p186
    // Predicated region
    $region25: #{resblock_forward.3} parent=5 // pred_check
      _
    $region26: #{resblock_forward.3} parent=5 // pred_check_branch
      %189 = sbr.rel (%p186) target = $region28
    $region27: #{resblock_forward.3} parent=5 // pred_region
      %s190 = ssub.s32 %s11, 1
      %p191 = scmp.lt.s32.totalorder %s20, 1
      %s192 = scalar_select %p191, %s20, 1
      %s193 = smul.addr %s192, 32
      %s194 = smul.addr %s193, 8
      %s195 = scalar_lea.vmem %s0, %s194
      %p196 = pneg %p49
      %p197 = pneg %p46
      %p198 = pneg %p70
      %p199 = pneg %p67
      %p200 = pneg %p98
      %p201 = pneg %p95
      %s202 = smul.u32 8, %s21
      %p203 = scmp.lt.s32.totalorder %s20, 1
      %s204 = scalar_select %p203, %s20, 1
      %p205 = scmp.lt.s32.totalorder %s202, 15
      %s206 = scalar_select %p205, %s202, 15
      %s207 = smul.addr %s206, 2
      %s208 = smul.addr %s204, 32
      %s209 = sadd.s32 %s207, %s208
      %s210 = smul.addr %s209, 4
      %s211 = scalar_lea.vmem %s2, %s210
      %p212 = pneg %p126
      %p213 = pneg %p123
      %p214 = scmp.lt.s32.totalorder %s20, 1
      %s215 = scalar_select %p214, %s20, 1
      %p216 = scmp.lt.s32.totalorder %s21, 1
      %s217 = scalar_select %p216, %s21, 1
      %s218 = smul.addr %s215, 2
      %s219 = sadd.s32 %s217, %s218
      %s220 = scalar_lea.vmem %s3, %s219
      %p221 = pneg %p154
      %p222 = pneg %p151
      %p223 = scmp.lt.s32.totalorder %s20, 1
      %s224 = scalar_select %p223, %s20, 1
      %p225 = scmp.lt.s32.totalorder %s21, 1
      %s226 = scalar_select %p225, %s21, 1
      %s227 = smul.addr %s224, 2
      %s228 = sadd.s32 %s226, %s227
      %s229 = scalar_lea.vmem %s4, %s228
      %p230 = scmp.lt.s32.totalorder %s20, 1
      %s231 = scalar_select %p230, %s20, 1
      %s232 = smul.addr %s231, 32
      %s233 = smul.addr %s232, 8
      %s234 = scalar_lea.vmem %s0, %s233
      %s235 = smul.u32 8, %s21
      %p236 = scmp.lt.s32.totalorder %s20, 1
      %s237 = scalar_select %p236, %s20, 1
      %p238 = scmp.lt.s32.totalorder %s235, 15
      %s239 = scalar_select %p238, %s235, 15
      %s240 = smul.addr %s239, 2
      %s241 = smul.addr %s237, 32
      %s242 = sadd.s32 %s240, %s241
      %s243 = smul.addr %s242, 4
      %s244 = scalar_lea.vmem %s2, %s243
      %s245 = smul.u32 8, %s21
      %p246 = scmp.lt.s32.totalorder %s20, 1
      %s247 = scalar_select %p246, %s20, 1
      %p248 = scmp.lt.s32.totalorder %s21, 1
      %s249 = scalar_select %p248, %s21, 1
      %s250 = smul.addr %s247, 2
      %s251 = sadd.s32 %s249, %s250
      %s252 = scalar_lea.vmem %s3, %s251
      %p253 = scmp.lt.s32.totalorder %s20, 1
      %s254 = scalar_select %p253, %s20, 1
      %p255 = scmp.lt.s32.totalorder %s21, 1
      %s256 = scalar_select %p255, %s21, 1
      %s257 = smul.addr %s254, 2
      %s258 = sadd.s32 %s256, %s257
      %s259 = scalar_lea.vmem %s4, %s258
      %p261 = scmp.eq.s32.totalorder %s21, 0
      // Predicated region
      $region29: #{resblock_forward.3} parent=27 // pred_check
        %p262 = pneg %p261
      $region30: #{resblock_forward.3} parent=27 // pred_check_branch
        %264 = sbr.rel (%p262) target = $region32
      $region31: #{resblock_forward.3} parent=27 // pred_region
        %265 = vst [vmem:[#allocation2] sm:$0xf] 0
        %266 = vst [vmem:[#allocation2 + $0x4] sm:$0xf] 0
        %267 = vst [vmem:[#allocation2 + $0x8] sm:$0x1] 0
        %268 = vst [vmem:[#allocation2 + $0xc] sm:$0xf] 0
        %269 = vst [vmem:[#allocation2 + $0x10] sm:$0xf] 0
        %270 = vst [vmem:[#allocation2 + $0x14] sm:$0x1] 0
        %271 = vst [vmem:[#allocation2 + $0x18] sm:$0xf] 0
        %272 = vst [vmem:[#allocation2 + $0x1c] sm:$0xf] 0
        %273 = vst [vmem:[#allocation2 + $0x20] sm:$0x1] 0
        %274 = vst [vmem:[#allocation2 + $0x24] sm:$0xf] 0
        %275 = vst [vmem:[#allocation2 + $0x28] sm:$0xf] 0
        %276 = vst [vmem:[#allocation2 + $0x2c] sm:$0x1] 0
        %277 = vst [vmem:[#allocation2 + $0x30] sm:$0xf] 0
        %278 = vst [vmem:[#allocation2 + $0x34] sm:$0xf] 0
        %279 = vst [vmem:[#allocation2 + $0x38] sm:$0x1] 0
        %280 = vst [vmem:[#allocation2 + $0x3c] sm:$0xf] 0
        %281 = vst [vmem:[#allocation2 + $0x40] sm:$0xf] 0
        %282 = vst [vmem:[#allocation2 + $0x44] sm:$0x1] 0
        %283 = vst [vmem:[#allocation2 + $0x48] sm:$0xf] 0
        %284 = vst [vmem:[#allocation2 + $0x4c] sm:$0xf] 0
        %285 = vst [vmem:[#allocation2 + $0x50] sm:$0x1] 0
        %286 = vst [vmem:[#allocation2 + $0x54] sm:$0xf] 0
        %287 = vst [vmem:[#allocation2 + $0x58] sm:$0xf] 0
        %288 = vst [vmem:[#allocation2 + $0x5c] sm:$0x1] 0
        %289 = vst [vmem:[#allocation2 + $0x60] sm:$0xf] 0
        %290 = vst [vmem:[#allocation2 + $0x64] sm:$0xf] 0
        %291 = vst [vmem:[#allocation2 + $0x68] sm:$0x1] 0
        %292 = vst [vmem:[#allocation2 + $0x6c] sm:$0xf] 0
        %293 = vst [vmem:[#allocation2 + $0x70] sm:$0xf] 0
        %294 = vst [vmem:[#allocation2 + $0x74] sm:$0x1] 0
        %295 = vst [vmem:[#allocation2 + $0x78] sm:$0xf] 0
        %296 = vst [vmem:[#allocation2 + $0x7c] sm:$0xf] 0
        %297 = vst [vmem:[#allocation2 + $0x80] sm:$0x1] 0
        %298 = vst [vmem:[#allocation2 + $0x84] sm:$0xf] 0
        %299 = vst [vmem:[#allocation2 + $0x88] sm:$0xf] 0
        %300 = vst [vmem:[#allocation2 + $0x8c] sm:$0x1] 0
        %301 = vst [vmem:[#allocation2 + $0x90] sm:$0xf] 0
        %302 = vst [vmem:[#allocation2 + $0x94] sm:$0xf] 0
        %303 = vst [vmem:[#allocation2 + $0x98] sm:$0x1] 0
        %304 = vst [vmem:[#allocation2 + $0x9c] sm:$0xf] 0
        %305 = vst [vmem:[#allocation2 + $0xa0] sm:$0xf] 0
        %306 = vst [vmem:[#allocation2 + $0xa4] sm:$0x1] 0
        %307 = vst [vmem:[#allocation2 + $0xa8] sm:$0xf] 0
        %308 = vst [vmem:[#allocation2 + $0xac] sm:$0xf] 0
        %309 = vst [vmem:[#allocation2 + $0xb0] sm:$0x1] 0
        %310 = vst [vmem:[#allocation2 + $0xb4] sm:$0xf] 0
        %311 = vst [vmem:[#allocation2 + $0xb8] sm:$0xf] 0
        %312 = vst [vmem:[#allocation2 + $0xbc] sm:$0x1] 0
        %313 = vst [vmem:[#allocation2 + $0xc0] sm:$0xf] 0
        %314 = vst [vmem:[#allocation2 + $0xc4] sm:$0xf] 0
        %315 = vst [vmem:[#allocation2 + $0xc8] sm:$0x1] 0
        %316 = vst [vmem:[#allocation2 + $0xcc] sm:$0xf] 0
        %317 = vst [vmem:[#allocation2 + $0xd0] sm:$0xf] 0
        %318 = vst [vmem:[#allocation2 + $0xd4] sm:$0x1] 0
        %v319 = vld [vmem:[%s234] sm:$0xff]
        %v320 = vld [vmem:[%s234 + $0x8] sm:$0xff]
        %v321 = vld [vmem:[%s234 + $0x10] sm:$0xff]
        %v322 = vld [vmem:[%s234 + $0x18] sm:$0xff]
        %v323 = vld [vmem:[%s234 + $0x20] sm:$0xff]
        %v324 = vld [vmem:[%s234 + $0x28] sm:$0xff]
        %v325 = vld [vmem:[%s234 + $0x30] sm:$0xff]
        %v326 = vld [vmem:[%s234 + $0x38] sm:$0xff]
        %v327 = vld [vmem:[%s234 + $0x40] sm:$0xff]
        %v328 = vld [vmem:[%s234 + $0x48] sm:$0xff]
        %v329 = vld [vmem:[%s234 + $0x50] sm:$0xff]
        %v330 = vld [vmem:[%s234 + $0x58] sm:$0xff]
        %v331 = vld [vmem:[%s234 + $0x60] sm:$0xff]
        %v332 = vld [vmem:[%s234 + $0x68] sm:$0xff]
        %v333 = vld [vmem:[%s234 + $0x70] sm:$0xff]
        %v334 = vld [vmem:[%s234 + $0x78] sm:$0xff]
        %v335 = vld [vmem:[%s234 + $0x80] sm:$0xff]
        %v336 = vld [vmem:[%s234 + $0x88] sm:$0xff]
        %v337 = vld [vmem:[%s234 + $0x90] sm:$0xff]
        %v338 = vld [vmem:[%s234 + $0x98] sm:$0xff]
        %v339 = vld [vmem:[%s234 + $0xa0] sm:$0xff]
        %v340 = vld [vmem:[%s234 + $0xa8] sm:$0xff]
        %v341 = vld [vmem:[%s234 + $0xb0] sm:$0xff]
        %v342 = vld [vmem:[%s234 + $0xb8] sm:$0xff]
        %v343 = vld [vmem:[%s234 + $0xc0] sm:$0xff]
        %v344 = vld [vmem:[%s234 + $0xc8] sm:$0xff]
        %v345 = vld [vmem:[%s234 + $0xd0] sm:$0xff]
        %v346 = vld [vmem:[%s234 + $0xd8] sm:$0xff]
        %v347 = vld [vmem:[%s234 + $0xe0] sm:$0xff]
        %v348 = vld [vmem:[%s234 + $0xe8] sm:$0xff]
        %v349 = vld [vmem:[%s234 + $0xf0] sm:$0xff]
        %v350 = vld [vmem:[%s234 + $0xf8] sm:$0xff]
        %v351 = vpack.c.bf16 %v320, %v319
        %v352 = vpack.c.bf16 %v322, %v321
        %v353 = vpack.c.bf16 %v324, %v323
        %v354 = vpack.c.bf16 %v326, %v325
        %v355 = vpack.c.bf16 %v328, %v327
        %v356 = vpack.c.bf16 %v330, %v329
        %v357 = vpack.c.bf16 %v332, %v331
        %v358 = vpack.c.bf16 %v334, %v333
        %v359 = vpack.c.bf16 %v336, %v335
        %v360 = vpack.c.bf16 %v338, %v337
        %v361 = vpack.c.bf16 %v340, %v339
        %v362 = vpack.c.bf16 %v342, %v341
        %v363 = vpack.c.bf16 %v344, %v343
        %v364 = vpack.c.bf16 %v346, %v345
        %v365 = vpack.c.bf16 %v348, %v347
        %v366 = vpack.c.bf16 %v350, %v349
        %v383 = vunpack.c.l.b16 %v351
        %v384 = vunpack.c.h.b16 %v351
        %v385 = vunpack.c.l.b16 %v352
        %v386 = vunpack.c.h.b16 %v352
        %v387 = vunpack.c.l.b16 %v353
        %v388 = vunpack.c.h.b16 %v353
        %v389 = vunpack.c.l.b16 %v354
        %v390 = vunpack.c.h.b16 %v354
        %v391 = vunpack.c.l.b16 %v355
        %v392 = vunpack.c.h.b16 %v355
        %v393 = vunpack.c.l.b16 %v356
        %v394 = vunpack.c.h.b16 %v356
        %v395 = vunpack.c.l.b16 %v357
        %v396 = vunpack.c.h.b16 %v357
        %v397 = vunpack.c.l.b16 %v358
        %v398 = vunpack.c.h.b16 %v358
        %v399 = vunpack.c.l.b16 %v359
        %v400 = vunpack.c.h.b16 %v359
        %v401 = vunpack.c.l.b16 %v360
        %v402 = vunpack.c.h.b16 %v360
        %v403 = vunpack.c.l.b16 %v361
        %v404 = vunpack.c.h.b16 %v361
        %v405 = vunpack.c.l.b16 %v362
        %v406 = vunpack.c.h.b16 %v362
        %v407 = vunpack.c.l.b16 %v363
        %v408 = vunpack.c.h.b16 %v363
        %v409 = vunpack.c.l.b16 %v364
        %v410 = vunpack.c.h.b16 %v364
        %v411 = vunpack.c.l.b16 %v365
        %v412 = vunpack.c.h.b16 %v365
        %v413 = vunpack.c.l.b16 %v366
        %v414 = vunpack.c.h.b16 %v366
        %v415 = vpack.c.b16 %v383, %v383
        %v416 = vpack.c.b16 %v384, %v384
        %v417 = vpack.c.b16 %v385, %v385
        %v418 = vpack.c.b16 %v386, %v386
        %v419 = vpack.c.b16 %v387, %v387
        %v420 = vpack.c.b16 %v388, %v388
        %v421 = vpack.c.b16 %v389, %v389
        %v422 = vpack.c.b16 %v390, %v390
        %v423 = vpack.c.b16 %v391, %v391
        %v424 = vpack.c.b16 %v392, %v392
        %v425 = vpack.c.b16 %v393, %v393
        %v426 = vpack.c.b16 %v394, %v394
        %v427 = vpack.c.b16 %v395, %v395
        %v428 = vpack.c.b16 %v396, %v396
        %v429 = vpack.c.b16 %v397, %v397
        %v430 = vpack.c.b16 %v398, %v398
        %v431 = vpack.c.b16 %v399, %v399
        %v432 = vpack.c.b16 %v400, %v400
        %v433 = vpack.c.b16 %v401, %v401
        %v434 = vpack.c.b16 %v402, %v402
        %v435 = vpack.c.b16 %v403, %v403
        %v436 = vpack.c.b16 %v404, %v404
        %v437 = vpack.c.b16 %v405, %v405
        %v438 = vpack.c.b16 %v406, %v406
        %v439 = vpack.c.b16 %v407, %v407
        %v440 = vpack.c.b16 %v408, %v408
        %v441 = vpack.c.b16 %v409, %v409
        %v442 = vpack.c.b16 %v410, %v410
        %v443 = vpack.c.b16 %v411, %v411
        %v444 = vpack.c.b16 %v412, %v412
        %v445 = vpack.c.b16 %v413, %v413
        %v446 = vpack.c.b16 %v414, %v414
        %vm447 = vsmask.f32 256
        %vm448 = vsmask.f32 4368
        %vm449 = vmor %vm447, %vm448
        %v451 = vshrl.u32 %v415, 16
        %v453 = vrot.slane %v451, 7
        %v454 = vshll.u32 %v415, 16
        %v456 = vor.u32 %v453, %v454
        %v457 = vrot.slane %v453, 4
        %v459 = vshrl.u32 %v416, 16
        %v461 = vrot.slane %v459, 7
        %v462 = vshll.u32 %v416, 16
        %v464 = vor.u32 %v461, %v462
        %v465 = vsel %vm449, %v457, %v464
        %v466 = vrot.slane %v461, 4
        %v468 = vshrl.u32 %v417, 16
        %v470 = vrot.slane %v468, 7
        %v471 = vshll.u32 %v417, 16
        %v473 = vor.u32 %v470, %v471
        %v474 = vrot.slane %v470, 4
        %v476 = vshrl.u32 %v418, 16
        %v478 = vrot.slane %v476, 7
        %v479 = vshll.u32 %v418, 16
        %v481 = vor.u32 %v478, %v479
        %v482 = vsel %vm449, %v474, %v481
        %v483 = vrot.slane %v478, 4
        %v485 = vshrl.u32 %v419, 16
        %v487 = vrot.slane %v485, 7
        %v488 = vshll.u32 %v419, 16
        %v490 = vor.u32 %v487, %v488
        %v491 = vrot.slane %v487, 4
        %v493 = vshrl.u32 %v420, 16
        %v495 = vrot.slane %v493, 7
        %v496 = vshll.u32 %v420, 16
        %v498 = vor.u32 %v495, %v496
        %v499 = vsel %vm449, %v491, %v498
        %v500 = vrot.slane %v495, 4
        %v502 = vshrl.u32 %v421, 16
        %v504 = vrot.slane %v502, 7
        %v505 = vshll.u32 %v421, 16
        %v507 = vor.u32 %v504, %v505
        %v508 = vrot.slane %v504, 4
        %v510 = vshrl.u32 %v422, 16
        %v512 = vrot.slane %v510, 7
        %v513 = vshll.u32 %v422, 16
        %v515 = vor.u32 %v512, %v513
        %v516 = vsel %vm449, %v508, %v515
        %v517 = vrot.slane %v512, 4
        %v519 = vshrl.u32 %v423, 16
        %v521 = vrot.slane %v519, 7
        %v522 = vshll.u32 %v423, 16
        %v524 = vor.u32 %v521, %v522
        %v525 = vrot.slane %v521, 4
        %v527 = vshrl.u32 %v424, 16
        %v529 = vrot.slane %v527, 7
        %v530 = vshll.u32 %v424, 16
        %v532 = vor.u32 %v529, %v530
        %v533 = vsel %vm449, %v525, %v532
        %v534 = vrot.slane %v529, 4
        %v536 = vshrl.u32 %v425, 16
        %v538 = vrot.slane %v536, 7
        %v539 = vshll.u32 %v425, 16
        %v541 = vor.u32 %v538, %v539
        %v542 = vrot.slane %v538, 4
        %v544 = vshrl.u32 %v426, 16
        %v546 = vrot.slane %v544, 7
        %v547 = vshll.u32 %v426, 16
        %v549 = vor.u32 %v546, %v547
        %v550 = vsel %vm449, %v542, %v549
        %v551 = vrot.slane %v546, 4
        %v553 = vshrl.u32 %v427, 16
        %v555 = vrot.slane %v553, 7
        %v556 = vshll.u32 %v427, 16
        %v558 = vor.u32 %v555, %v556
        %v559 = vrot.slane %v555, 4
        %v561 = vshrl.u32 %v428, 16
        %v563 = vrot.slane %v561, 7
        %v564 = vshll.u32 %v428, 16
        %v566 = vor.u32 %v563, %v564
        %v567 = vsel %vm449, %v559, %v566
        %v568 = vrot.slane %v563, 4
        %v570 = vshrl.u32 %v429, 16
        %v572 = vrot.slane %v570, 7
        %v573 = vshll.u32 %v429, 16
        %v575 = vor.u32 %v572, %v573
        %v576 = vrot.slane %v572, 4
        %v578 = vshrl.u32 %v430, 16
        %v580 = vrot.slane %v578, 7
        %v581 = vshll.u32 %v430, 16
        %v583 = vor.u32 %v580, %v581
        %v584 = vsel %vm449, %v576, %v583
        %v585 = vrot.slane %v580, 4
        %v587 = vshrl.u32 %v431, 16
        %v589 = vrot.slane %v587, 7
        %v590 = vshll.u32 %v431, 16
        %v592 = vor.u32 %v589, %v590
        %v593 = vrot.slane %v589, 4
        %v595 = vshrl.u32 %v432, 16
        %v597 = vrot.slane %v595, 7
        %v598 = vshll.u32 %v432, 16
        %v600 = vor.u32 %v597, %v598
        %v601 = vsel %vm449, %v593, %v600
        %v602 = vrot.slane %v597, 4
        %v604 = vshrl.u32 %v433, 16
        %v606 = vrot.slane %v604, 7
        %v607 = vshll.u32 %v433, 16
        %v609 = vor.u32 %v606, %v607
        %v610 = vrot.slane %v606, 4
        %v612 = vshrl.u32 %v434, 16
        %v614 = vrot.slane %v612, 7
        %v615 = vshll.u32 %v434, 16
        %v617 = vor.u32 %v614, %v615
        %v618 = vsel %vm449, %v610, %v617
        %v619 = vrot.slane %v614, 4
        %v621 = vshrl.u32 %v435, 16
        %v623 = vrot.slane %v621, 7
        %v624 = vshll.u32 %v435, 16
        %v626 = vor.u32 %v623, %v624
        %v627 = vrot.slane %v623, 4
        %v629 = vshrl.u32 %v436, 16
        %v631 = vrot.slane %v629, 7
        %v632 = vshll.u32 %v436, 16
        %v634 = vor.u32 %v631, %v632
        %v635 = vsel %vm449, %v627, %v634
        %v636 = vrot.slane %v631, 4
        %v638 = vshrl.u32 %v437, 16
        %v640 = vrot.slane %v638, 7
        %v641 = vshll.u32 %v437, 16
        %v643 = vor.u32 %v640, %v641
        %v644 = vrot.slane %v640, 4
        %v646 = vshrl.u32 %v438, 16
        %v648 = vrot.slane %v646, 7
        %v649 = vshll.u32 %v438, 16
        %v651 = vor.u32 %v648, %v649
        %v652 = vsel %vm449, %v644, %v651
        %v653 = vrot.slane %v648, 4
        %v655 = vshrl.u32 %v439, 16
        %v657 = vrot.slane %v655, 7
        %v658 = vshll.u32 %v439, 16
        %v660 = vor.u32 %v657, %v658
        %v661 = vrot.slane %v657, 4
        %v663 = vshrl.u32 %v440, 16
        %v665 = vrot.slane %v663, 7
        %v666 = vshll.u32 %v440, 16
        %v668 = vor.u32 %v665, %v666
        %v669 = vsel %vm449, %v661, %v668
        %v670 = vrot.slane %v665, 4
        %v672 = vshrl.u32 %v441, 16
        %v674 = vrot.slane %v672, 7
        %v675 = vshll.u32 %v441, 16
        %v677 = vor.u32 %v674, %v675
        %v678 = vrot.slane %v674, 4
        %v680 = vshrl.u32 %v442, 16
        %v682 = vrot.slane %v680, 7
        %v683 = vshll.u32 %v442, 16
        %v685 = vor.u32 %v682, %v683
        %v686 = vsel %vm449, %v678, %v685
        %v687 = vrot.slane %v682, 4
        %v689 = vshrl.u32 %v443, 16
        %v691 = vrot.slane %v689, 7
        %v692 = vshll.u32 %v443, 16
        %v694 = vor.u32 %v691, %v692
        %v695 = vrot.slane %v691, 4
        %v697 = vshrl.u32 %v444, 16
        %v699 = vrot.slane %v697, 7
        %v700 = vshll.u32 %v444, 16
        %v702 = vor.u32 %v699, %v700
        %v703 = vsel %vm449, %v695, %v702
        %v704 = vrot.slane %v699, 4
        %v706 = vshrl.u32 %v445, 16
        %v708 = vrot.slane %v706, 7
        %v709 = vshll.u32 %v445, 16
        %v711 = vor.u32 %v708, %v709
        %v712 = vrot.slane %v708, 4
        %v714 = vshrl.u32 %v446, 16
        %v716 = vrot.slane %v714, 7
        %v717 = vshll.u32 %v446, 16
        %v719 = vor.u32 %v716, %v717
        %v720 = vsel %vm449, %v712, %v719
        %v721 = vrot.slane %v716, 4
        %s770 = scalar_lea.vmem [#allocation2], 12
        %vm771 = vcmask 1043456
        %vm772 = vsmask.f32 7938
        %vm773 = vmand %vm771, %vm772
        %v774 = vld [vmem:[%s770] sm:$0xf]
        %v775 = vsel %vm773, %v456, %v774
        %776 = vst [vmem:[%s770] sm:$0xf] %v775
        %777 = vst [vmem:[%s770 + $0x4] sm:$0xf] %v465
        %vm778 = vcmask 1040384
        %vm779 = vmand %vm778, %vm447
        %v780 = vld [vmem:[%s770 + $0x8] sm:$0x1]
        %v781 = vsel %vm779, %v466, %v780
        %782 = vst [vmem:[%s770 + $0x8] sm:$0x1] %v781
        %v783 = vld [vmem:[%s770 + $0xc] sm:$0xf]
        %v784 = vsel %vm773, %v473, %v783
        %785 = vst [vmem:[%s770 + $0xc] sm:$0xf] %v784
        %786 = vst [vmem:[%s770 + $0x10] sm:$0xf] %v482
        %v787 = vld [vmem:[%s770 + $0x14] sm:$0x1]
        %v788 = vsel %vm779, %v483, %v787
        %789 = vst [vmem:[%s770 + $0x14] sm:$0x1] %v788
        %v790 = vld [vmem:[%s770 + $0x18] sm:$0xf]
        %v791 = vsel %vm773, %v490, %v790
        %792 = vst [vmem:[%s770 + $0x18] sm:$0xf] %v791
        %793 = vst [vmem:[%s770 + $0x1c] sm:$0xf] %v499
        %v794 = vld [vmem:[%s770 + $0x20] sm:$0x1]
        %v795 = vsel %vm779, %v500, %v794
        %796 = vst [vmem:[%s770 + $0x20] sm:$0x1] %v795
        %v797 = vld [vmem:[%s770 + $0x24] sm:$0xf]
        %v798 = vsel %vm773, %v507, %v797
        %799 = vst [vmem:[%s770 + $0x24] sm:$0xf] %v798
        %800 = vst [vmem:[%s770 + $0x28] sm:$0xf] %v516
        %v801 = vld [vmem:[%s770 + $0x2c] sm:$0x1]
        %v802 = vsel %vm779, %v517, %v801
        %803 = vst [vmem:[%s770 + $0x2c] sm:$0x1] %v802
        %v804 = vld [vmem:[%s770 + $0x30] sm:$0xf]
        %v805 = vsel %vm773, %v524, %v804
        %806 = vst [vmem:[%s770 + $0x30] sm:$0xf] %v805
        %807 = vst [vmem:[%s770 + $0x34] sm:$0xf] %v533
        %v808 = vld [vmem:[%s770 + $0x38] sm:$0x1]
        %v809 = vsel %vm779, %v534, %v808
        %810 = vst [vmem:[%s770 + $0x38] sm:$0x1] %v809
        %v811 = vld [vmem:[%s770 + $0x3c] sm:$0xf]
        %v812 = vsel %vm773, %v541, %v811
        %813 = vst [vmem:[%s770 + $0x3c] sm:$0xf] %v812
        %814 = vst [vmem:[%s770 + $0x40] sm:$0xf] %v550
        %v815 = vld [vmem:[%s770 + $0x44] sm:$0x1]
        %v816 = vsel %vm779, %v551, %v815
        %817 = vst [vmem:[%s770 + $0x44] sm:$0x1] %v816
        %v818 = vld [vmem:[%s770 + $0x48] sm:$0xf]
        %v819 = vsel %vm773, %v558, %v818
        %820 = vst [vmem:[%s770 + $0x48] sm:$0xf] %v819
        %821 = vst [vmem:[%s770 + $0x4c] sm:$0xf] %v567
        %v822 = vld [vmem:[%s770 + $0x50] sm:$0x1]
        %v823 = vsel %vm779, %v568, %v822
        %824 = vst [vmem:[%s770 + $0x50] sm:$0x1] %v823
        %v825 = vld [vmem:[%s770 + $0x54] sm:$0xf]
        %v826 = vsel %vm773, %v575, %v825
        %827 = vst [vmem:[%s770 + $0x54] sm:$0xf] %v826
        %828 = vst [vmem:[%s770 + $0x58] sm:$0xf] %v584
        %v829 = vld [vmem:[%s770 + $0x5c] sm:$0x1]
        %v830 = vsel %vm779, %v585, %v829
        %831 = vst [vmem:[%s770 + $0x5c] sm:$0x1] %v830
        %v832 = vld [vmem:[%s770 + $0x60] sm:$0xf]
        %v833 = vsel %vm773, %v592, %v832
        %834 = vst [vmem:[%s770 + $0x60] sm:$0xf] %v833
        %835 = vst [vmem:[%s770 + $0x64] sm:$0xf] %v601
        %v836 = vld [vmem:[%s770 + $0x68] sm:$0x1]
        %v837 = vsel %vm779, %v602, %v836
        %838 = vst [vmem:[%s770 + $0x68] sm:$0x1] %v837
        %v839 = vld [vmem:[%s770 + $0x6c] sm:$0xf]
        %v840 = vsel %vm773, %v609, %v839
        %841 = vst [vmem:[%s770 + $0x6c] sm:$0xf] %v840
        %842 = vst [vmem:[%s770 + $0x70] sm:$0xf] %v618
        %v843 = vld [vmem:[%s770 + $0x74] sm:$0x1]
        %v844 = vsel %vm779, %v619, %v843
        %845 = vst [vmem:[%s770 + $0x74] sm:$0x1] %v844
        %v846 = vld [vmem:[%s770 + $0x78] sm:$0xf]
        %v847 = vsel %vm773, %v626, %v846
        %848 = vst [vmem:[%s770 + $0x78] sm:$0xf] %v847
        %849 = vst [vmem:[%s770 + $0x7c] sm:$0xf] %v635
        %v850 = vld [vmem:[%s770 + $0x80] sm:$0x1]
        %v851 = vsel %vm779, %v636, %v850
        %852 = vst [vmem:[%s770 + $0x80] sm:$0x1] %v851
        %v853 = vld [vmem:[%s770 + $0x84] sm:$0xf]
        %v854 = vsel %vm773, %v643, %v853
        %855 = vst [vmem:[%s770 + $0x84] sm:$0xf] %v854
        %856 = vst [vmem:[%s770 + $0x88] sm:$0xf] %v652
        %v857 = vld [vmem:[%s770 + $0x8c] sm:$0x1]
        %v858 = vsel %vm779, %v653, %v857
        %859 = vst [vmem:[%s770 + $0x8c] sm:$0x1] %v858
        %v860 = vld [vmem:[%s770 + $0x90] sm:$0xf]
        %v861 = vsel %vm773, %v660, %v860
        %862 = vst [vmem:[%s770 + $0x90] sm:$0xf] %v861
        %863 = vst [vmem:[%s770 + $0x94] sm:$0xf] %v669
        %v864 = vld [vmem:[%s770 + $0x98] sm:$0x1]
        %v865 = vsel %vm779, %v670, %v864
        %866 = vst [vmem:[%s770 + $0x98] sm:$0x1] %v865
        %v867 = vld [vmem:[%s770 + $0x9c] sm:$0xf]
        %v868 = vsel %vm773, %v677, %v867
        %869 = vst [vmem:[%s770 + $0x9c] sm:$0xf] %v868
        %870 = vst [vmem:[%s770 + $0xa0] sm:$0xf] %v686
        %v871 = vld [vmem:[%s770 + $0xa4] sm:$0x1]
        %v872 = vsel %vm779, %v687, %v871
        %873 = vst [vmem:[%s770 + $0xa4] sm:$0x1] %v872
        %v874 = vld [vmem:[%s770 + $0xa8] sm:$0xf]
        %v875 = vsel %vm773, %v694, %v874
        %876 = vst [vmem:[%s770 + $0xa8] sm:$0xf] %v875
        %877 = vst [vmem:[%s770 + $0xac] sm:$0xf] %v703
        %v878 = vld [vmem:[%s770 + $0xb0] sm:$0x1]
        %v879 = vsel %vm779, %v704, %v878
        %880 = vst [vmem:[%s770 + $0xb0] sm:$0x1] %v879
        %v881 = vld [vmem:[%s770 + $0xb4] sm:$0xf]
        %v882 = vsel %vm773, %v711, %v881
        %883 = vst [vmem:[%s770 + $0xb4] sm:$0xf] %v882
        %884 = vst [vmem:[%s770 + $0xb8] sm:$0xf] %v720
        %v885 = vld [vmem:[%s770 + $0xbc] sm:$0x1]
        %v886 = vsel %vm779, %v721, %v885
        %887 = vst [vmem:[%s770 + $0xbc] sm:$0x1] %v886
      $region32: #{resblock_forward.3} parent=27 // pred_fallthru
        _
      %s888 = smul.u32 %s21, 8
      %s889 = smul.u32 %s888, 3
      %s890 = smul.addr %s889, 4
      %s891 = scalar_lea.vmem [#allocation2], %s890
      %v892 = vld [vmem:[%s891] sm:$0xf]
      %v893 = vld [vmem:[%s891 + $0x4] sm:$0xf]
      %v894 = vld [vmem:[%s891 + $0xc] sm:$0xf]
      %v895 = vld [vmem:[%s891 + $0x10] sm:$0xf]
      %v896 = vld [vmem:[%s891 + $0x18] sm:$0xf]
      %v897 = vld [vmem:[%s891 + $0x1c] sm:$0xf]
      %v898 = vld [vmem:[%s891 + $0x24] sm:$0xf]
      %v899 = vld [vmem:[%s891 + $0x28] sm:$0xf]
      %v900 = vld [vmem:[%s891 + $0x30] sm:$0xf]
      %v901 = vld [vmem:[%s891 + $0x34] sm:$0xf]
      %v902 = vld [vmem:[%s891 + $0x3c] sm:$0xf]
      %v903 = vld [vmem:[%s891 + $0x40] sm:$0xf]
      %v904 = vld [vmem:[%s891 + $0x48] sm:$0xf]
      %v905 = vld [vmem:[%s891 + $0x4c] sm:$0xf]
      %v906 = vld [vmem:[%s891 + $0x54] sm:$0xf]
      %v907 = vld [vmem:[%s891 + $0x58] sm:$0xf]
      %v908 = vld [vmem:[%s1] sm:$0xf]
      %v909 = vld [vmem:[%s1 + $0x4] sm:$0xf]
      %v910 = vld [vmem:[%s1 + $0x8] sm:$0xf]
      %v911 = vld [vmem:[%s1 + $0xc] sm:$0xf]
      %v912 = vld [vmem:[%s1 + $0x10] sm:$0xf]
      %v913 = vld [vmem:[%s1 + $0x14] sm:$0xf]
      %v914 = vld [vmem:[%s1 + $0x18] sm:$0xf]
      %v915 = vld [vmem:[%s1 + $0x1c] sm:$0xf]
      %v916 = vld [vmem:[%s1 + $0x20] sm:$0xf]
      %v917 = vld [vmem:[%s1 + $0x24] sm:$0xf]
      %v918 = vld [vmem:[%s1 + $0x28] sm:$0xf]
      %v919 = vld [vmem:[%s1 + $0x2c] sm:$0xf]
      %v920 = vld [vmem:[%s1 + $0x30] sm:$0xf]
      %v921 = vld [vmem:[%s1 + $0x34] sm:$0xf]
      %v922 = vld [vmem:[%s1 + $0x38] sm:$0xf]
      %v923 = vld [vmem:[%s1 + $0x3c] sm:$0xf]
      %v924 = vld [vmem:[%s891 + $0x8] sm:$0x1]
      %v925 = vld [vmem:[%s891 + $0x14] sm:$0x1]
      %v926 = vld [vmem:[%s891 + $0x20] sm:$0x1]
      %v927 = vld [vmem:[%s891 + $0x2c] sm:$0x1]
      %v928 = vld [vmem:[%s891 + $0x38] sm:$0x1]
      %v929 = vld [vmem:[%s891 + $0x44] sm:$0x1]
      %v930 = vld [vmem:[%s891 + $0x50] sm:$0x1]
      %v931 = vld [vmem:[%s891 + $0x5c] sm:$0x1]
      %vm932 = vsmask.f32 3328
      %vm933 = vsmask.f32 7440
      %vm934 = vmor %vm932, %vm933
      %v936 = vshrl.u32 %v892, 16
      %v938 = vrot.slane %v936, 4
      %v939 = vshll.u32 %v892, 16
      %v941 = vrot.slane %v939, 5
      %v942 = vor.u32 %v938, %v941
      %v943 = vrot.slane %v942, 4
      %v945 = vshll.u32 %v893, 16
      %v947 = vrot.slane %v945, 5
      %v948 = vsel %vm934, %v943, %v947
      %v949 = vshrl.u32 %v893, 16
      %v951 = vrot.slane %v949, 4
      %v952 = vor.u32 %v951, %v947
      %v953 = vrot.slane %v952, 4
      %v955 = vshll.u32 %v924, 16
      %v957 = vrot.slane %v955, 5
      %v958 = vsel %vm934, %v953, %v957
      %v960 = vshrl.u32 %v894, 16
      %v962 = vrot.slane %v960, 4
      %v963 = vshll.u32 %v894, 16
      %v965 = vrot.slane %v963, 5
      %v966 = vor.u32 %v962, %v965
      %v967 = vrot.slane %v966, 4
      %v969 = vshll.u32 %v895, 16
      %v971 = vrot.slane %v969, 5
      %v972 = vsel %vm934, %v967, %v971
      %v973 = vshrl.u32 %v895, 16
      %v975 = vrot.slane %v973, 4
      %v976 = vor.u32 %v975, %v971
      %v977 = vrot.slane %v976, 4
      %v979 = vshll.u32 %v925, 16
      %v981 = vrot.slane %v979, 5
      %v982 = vsel %vm934, %v977, %v981
      %v984 = vshrl.u32 %v896, 16
      %v986 = vrot.slane %v984, 4
      %v987 = vshll.u32 %v896, 16
      %v989 = vrot.slane %v987, 5
      %v990 = vor.u32 %v986, %v989
      %v991 = vrot.slane %v990, 4
      %v993 = vshll.u32 %v897, 16
      %v995 = vrot.slane %v993, 5
      %v996 = vsel %vm934, %v991, %v995
      %v997 = vshrl.u32 %v897, 16
      %v999 = vrot.slane %v997, 4
      %v1000 = vor.u32 %v999, %v995
      %v1001 = vrot.slane %v1000, 4
      %v1003 = vshll.u32 %v926, 16
      %v1005 = vrot.slane %v1003, 5
      %v1006 = vsel %vm934, %v1001, %v1005
      %v1008 = vshrl.u32 %v898, 16
      %v1010 = vrot.slane %v1008, 4
      %v1011 = vshll.u32 %v898, 16
      %v1013 = vrot.slane %v1011, 5
      %v1014 = vor.u32 %v1010, %v1013
      %v1015 = vrot.slane %v1014, 4
      %v1017 = vshll.u32 %v899, 16
      %v1019 = vrot.slane %v1017, 5
      %v1020 = vsel %vm934, %v1015, %v1019
      %v1021 = vshrl.u32 %v899, 16
      %v1023 = vrot.slane %v1021, 4
      %v1024 = vor.u32 %v1023, %v1019
      %v1025 = vrot.slane %v1024, 4
      %v1027 = vshll.u32 %v927, 16
      %v1029 = vrot.slane %v1027, 5
      %v1030 = vsel %vm934, %v1025, %v1029
      %v1032 = vshrl.u32 %v900, 16
      %v1034 = vrot.slane %v1032, 4
      %v1035 = vshll.u32 %v900, 16
      %v1037 = vrot.slane %v1035, 5
      %v1038 = vor.u32 %v1034, %v1037
      %v1039 = vrot.slane %v1038, 4
      %v1041 = vshll.u32 %v901, 16
      %v1043 = vrot.slane %v1041, 5
      %v1044 = vsel %vm934, %v1039, %v1043
      %v1045 = vshrl.u32 %v901, 16
      %v1047 = vrot.slane %v1045, 4
      %v1048 = vor.u32 %v1047, %v1043
      %v1049 = vrot.slane %v1048, 4
      %v1051 = vshll.u32 %v928, 16
      %v1053 = vrot.slane %v1051, 5
      %v1054 = vsel %vm934, %v1049, %v1053
      %v1056 = vshrl.u32 %v902, 16
      %v1058 = vrot.slane %v1056, 4
      %v1059 = vshll.u32 %v902, 16
      %v1061 = vrot.slane %v1059, 5
      %v1062 = vor.u32 %v1058, %v1061
      %v1063 = vrot.slane %v1062, 4
      %v1065 = vshll.u32 %v903, 16
      %v1067 = vrot.slane %v1065, 5
      %v1068 = vsel %vm934, %v1063, %v1067
      %v1069 = vshrl.u32 %v903, 16
      %v1071 = vrot.slane %v1069, 4
      %v1072 = vor.u32 %v1071, %v1067
      %v1073 = vrot.slane %v1072, 4
      %v1075 = vshll.u32 %v929, 16
      %v1077 = vrot.slane %v1075, 5
      %v1078 = vsel %vm934, %v1073, %v1077
      %v1080 = vshrl.u32 %v904, 16
      %v1082 = vrot.slane %v1080, 4
      %v1083 = vshll.u32 %v904, 16
      %v1085 = vrot.slane %v1083, 5
      %v1086 = vor.u32 %v1082, %v1085
      %v1087 = vrot.slane %v1086, 4
      %v1089 = vshll.u32 %v905, 16
      %v1091 = vrot.slane %v1089, 5
      %v1092 = vsel %vm934, %v1087, %v1091
      %v1093 = vshrl.u32 %v905, 16
      %v1095 = vrot.slane %v1093, 4
      %v1096 = vor.u32 %v1095, %v1091
      %v1097 = vrot.slane %v1096, 4
      %v1099 = vshll.u32 %v930, 16
      %v1101 = vrot.slane %v1099, 5
      %v1102 = vsel %vm934, %v1097, %v1101
      %v1104 = vshrl.u32 %v906, 16
      %v1106 = vrot.slane %v1104, 4
      %v1107 = vshll.u32 %v906, 16
      %v1109 = vrot.slane %v1107, 5
      %v1110 = vor.u32 %v1106, %v1109
      %v1111 = vrot.slane %v1110, 4
      %v1113 = vshll.u32 %v907, 16
      %v1115 = vrot.slane %v1113, 5
      %v1116 = vsel %vm934, %v1111, %v1115
      %v1117 = vshrl.u32 %v907, 16
      %v1119 = vrot.slane %v1117, 4
      %v1120 = vor.u32 %v1119, %v1115
      %v1121 = vrot.slane %v1120, 4
      %v1123 = vshll.u32 %v931, 16
      %v1125 = vrot.slane %v1123, 5
      %v1126 = vsel %vm934, %v1121, %v1125
      %s1127 = scalar_lea.vmem %s1, 64
      %v1128 = vld [vmem:[%s1127] sm:$0xf]
      %v1129 = vld [vmem:[%s1127 + $0x4] sm:$0xf]
      %v1130 = vld [vmem:[%s1127 + $0x8] sm:$0xf]
      %v1131 = vld [vmem:[%s1127 + $0xc] sm:$0xf]
      %v1132 = vld [vmem:[%s1127 + $0x10] sm:$0xf]
      %v1133 = vld [vmem:[%s1127 + $0x14] sm:$0xf]
      %v1134 = vld [vmem:[%s1127 + $0x18] sm:$0xf]
      %v1135 = vld [vmem:[%s1127 + $0x1c] sm:$0xf]
      %v1136 = vld [vmem:[%s1127 + $0x20] sm:$0xf]
      %v1137 = vld [vmem:[%s1127 + $0x24] sm:$0xf]
      %v1138 = vld [vmem:[%s1127 + $0x28] sm:$0xf]
      %v1139 = vld [vmem:[%s1127 + $0x2c] sm:$0xf]
      %v1140 = vld [vmem:[%s1127 + $0x30] sm:$0xf]
      %v1141 = vld [vmem:[%s1127 + $0x34] sm:$0xf]
      %v1142 = vld [vmem:[%s1127 + $0x38] sm:$0xf]
      %v1143 = vld [vmem:[%s1127 + $0x3c] sm:$0xf]
      %v1144 = vunpack.c.l.b16 %v948
      %v1145 = vunpack.c.l.b16 %v958
      %v1146 = vunpack.c.l.b16 %v972
      %v1147 = vunpack.c.l.b16 %v982
      %v1148 = vunpack.c.l.b16 %v996
      %v1149 = vunpack.c.l.b16 %v1006
      %v1150 = vunpack.c.l.b16 %v1020
      %v1151 = vunpack.c.l.b16 %v1030
      %v1152 = vunpack.c.l.b16 %v1044
      %v1153 = vunpack.c.l.b16 %v1054
      %v1154 = vunpack.c.l.b16 %v1068
      %v1155 = vunpack.c.l.b16 %v1078
      %v1156 = vunpack.c.l.b16 %v1092
      %v1157 = vunpack.c.l.b16 %v1102
      %v1158 = vunpack.c.l.b16 %v1116
      %v1159 = vunpack.c.l.b16 %v1126
      %v1160 = vpack.c.b16 %v1145, %v1144
      %v1161 = vpack.c.b16 %v1147, %v1146
      %v1162 = vpack.c.b16 %v1149, %v1148
      %v1163 = vpack.c.b16 %v1151, %v1150
      %v1164 = vpack.c.b16 %v1153, %v1152
      %v1165 = vpack.c.b16 %v1155, %v1154
      %v1166 = vpack.c.b16 %v1157, %v1156
      %v1167 = vpack.c.b16 %v1159, %v1158
      %v1192 = vunpack.c.l.b16 %v1128
      %v1193 = vunpack.c.l.b16 %v1129
      %v1194 = vunpack.c.l.b16 %v1130
      %v1195 = vunpack.c.l.b16 %v1131
      %v1196 = vunpack.c.l.b16 %v1132
      %v1197 = vunpack.c.l.b16 %v1133
      %v1198 = vunpack.c.l.b16 %v1134
      %v1199 = vunpack.c.l.b16 %v1135
      %v1200 = vunpack.c.l.b16 %v1136
      %v1201 = vunpack.c.l.b16 %v1137
      %v1202 = vunpack.c.l.b16 %v1138
      %v1203 = vunpack.c.l.b16 %v1139
      %v1204 = vunpack.c.l.b16 %v1140
      %v1205 = vunpack.c.l.b16 %v1141
      %v1206 = vunpack.c.l.b16 %v1142
      %v1207 = vunpack.c.l.b16 %v1143
      %v1208 = vpack.c.b16 %v1193, %v1192
      %v1209 = vpack.c.b16 %v1195, %v1194
      %v1210 = vpack.c.b16 %v1197, %v1196
      %v1211 = vpack.c.b16 %v1199, %v1198
      %v1212 = vpack.c.b16 %v1201, %v1200
      %v1213 = vpack.c.b16 %v1203, %v1202
      %v1214 = vpack.c.b16 %v1205, %v1204
      %v1215 = vpack.c.b16 %v1207, %v1206
      %1224 = vmatprep.subr.bf16.mxu0 0
      %1225 = vmatpush1.bf16.msra.mxu0 %v1208
      %1226 = vmatprep.subr.bf16.mxu0 0
      %1227 = vmatpush1.bf16.msra.mxu0 %v1209
      %1228 = vmatprep.subr.bf16.mxu0 0
      %1229 = vmatpush1.bf16.msra.mxu0 %v1210
      %1230 = vmatprep.subr.bf16.mxu0 0
      %1231 = vmatpush1.bf16.msra.mxu0 %v1211
      %1232 = vmatprep.subr.bf16.mxu0 0
      %1233 = vmatpush1.bf16.msra.mxu0 %v1212
      %1234 = vmatprep.subr.bf16.mxu0 0
      %1235 = vmatpush1.bf16.msra.mxu0 %v1213
      %1236 = vmatprep.subr.bf16.mxu0 0
      %1237 = vmatpush1.bf16.msra.mxu0 %v1214
      %1238 = vmatprep.subr.bf16.mxu0 0
      %1239 = vmatpush1.bf16.msra.mxu0 %v1215
      %1240 = vmatprep.subr.bf16.mxu0 0
      %1241 = vmatpush1.bf16.msra.mxu0 0
      %1242 = vmatprep.subr.bf16.mxu0 0
      %1243 = vmatpush1.bf16.msra.mxu0 0
      %1244 = vmatprep.subr.bf16.mxu0 0
      %1245 = vmatpush1.bf16.msra.mxu0 0
      %1246 = vmatprep.subr.bf16.mxu0 0
      %1247 = vmatpush1.bf16.msra.mxu0 0
      %1248 = vmatprep.subr.bf16.mxu0 0
      %1249 = vmatpush1.bf16.msra.mxu0 0
      %1250 = vmatprep.subr.bf16.mxu0 0
      %1251 = vmatpush1.bf16.msra.mxu0 0
      %1252 = vmatprep.subr.bf16.mxu0 0
      %1253 = vmatpush1.bf16.msra.mxu0 0
      %1254 = vmatprep.subr.bf16.mxu0 0
      %1255 = vmatpush1.bf16.msra.mxu0 0
      %1256 = vmatprep.mubr.bf16.mxu0 0
      %1257 = vmatmul.mubr.bf16.gmra.mrb[0].mxu0 %v1160
      %v1258 = vpop.f32.mrb[0].mxu0
      %v1259 = vadd.f32 0.0, %v1258
      %v1260 = vpop.f32.mrb[0].mxu0
      %v1261 = vpop.f32.mrb[0].mxu0
      %v1262 = vadd.f32 0.0, %v1261
      %v1263 = vpop.f32.mrb[0].mxu0
      %1264 = vmatprep.mubr.bf16.mxu0 0
      %1265 = vmatmul.mubr.bf16.gmra.mrb[0].mxu0 %v1161
      %v1266 = vpop.f32.mrb[0].mxu0
      %v1267 = vadd.f32 0.0, %v1266
      %v1268 = vpop.f32.mrb[0].mxu0
      %v1269 = vpop.f32.mrb[0].mxu0
      %v1270 = vadd.f32 0.0, %v1269
      %v1271 = vpop.f32.mrb[0].mxu0
      %1272 = vmatprep.mubr.bf16.mxu0 0
      %1273 = vmatmul.mubr.bf16.gmra.mrb[0].mxu0 %v1162
      %v1274 = vpop.f32.mrb[0].mxu0
      %v1275 = vadd.f32 0.0, %v1274
      %v1276 = vpop.f32.mrb[0].mxu0
      %v1277 = vpop.f32.mrb[0].mxu0
      %v1278 = vadd.f32 0.0, %v1277
      %v1279 = vpop.f32.mrb[0].mxu0
      %1280 = vmatprep.mubr.bf16.mxu0 0
      %1281 = vmatmul.mubr.bf16.gmra.mrb[0].mxu0 %v1163
      %v1282 = vpop.f32.mrb[0].mxu0
      %v1283 = vadd.f32 0.0, %v1282
      %v1284 = vpop.f32.mrb[0].mxu0
      %v1285 = vpop.f32.mrb[0].mxu0
      %v1286 = vadd.f32 0.0, %v1285
      %v1287 = vpop.f32.mrb[0].mxu0
      %1288 = vmatprep.mubr.bf16.mxu0 0
      %1289 = vmatmul.mubr.bf16.gmra.mrb[0].mxu0 %v1164
      %v1290 = vpop.f32.mrb[0].mxu0
      %v1291 = vadd.f32 0.0, %v1290
      %v1292 = vpop.f32.mrb[0].mxu0
      %v1293 = vpop.f32.mrb[0].mxu0
      %v1294 = vadd.f32 0.0, %v1293
      %v1295 = vpop.f32.mrb[0].mxu0
      %1296 = vmatprep.mubr.bf16.mxu0 0
      %1297 = vmatmul.mubr.bf16.gmra.mrb[0].mxu0 %v1165
      %v1298 = vpop.f32.mrb[0].mxu0
      %v1299 = vadd.f32 0.0, %v1298
      %v1300 = vpop.f32.mrb[0].mxu0
      %v1301 = vpop.f32.mrb[0].mxu0
      %v1302 = vadd.f32 0.0, %v1301
      %v1303 = vpop.f32.mrb[0].mxu0
      %1304 = vmatprep.mubr.bf16.mxu0 0
      %1305 = vmatmul.mubr.bf16.gmra.mrb[0].mxu0 %v1166
      %v1306 = vpop.f32.mrb[0].mxu0
      %v1307 = vadd.f32 0.0, %v1306
      %v1308 = vpop.f32.mrb[0].mxu0
      %v1309 = vpop.f32.mrb[0].mxu0
      %v1310 = vadd.f32 0.0, %v1309
      %v1311 = vpop.f32.mrb[0].mxu0
      %1312 = vmatprep.mubr.bf16.mxu0 0
      %1313 = vmatmul.mubr.bf16.gmra.mrb[0].mxu0 %v1167
      %v1314 = vpop.f32.mrb[0].mxu0
      %v1315 = vadd.f32 0.0, %v1314
      %v1316 = vpop.f32.mrb[0].mxu0
      %v1317 = vpop.f32.mrb[0].mxu0
      %v1318 = vadd.f32 0.0, %v1317
      %v1319 = vpop.f32.mrb[0].mxu0
      %1320 = vdwg.mxu0
      %v1337 = vunpack.c.l.b16 %v892
      %v1338 = vunpack.c.l.b16 %v893
      %v1339 = vunpack.c.l.b16 %v894
      %v1340 = vunpack.c.l.b16 %v895
      %v1341 = vunpack.c.l.b16 %v896
      %v1342 = vunpack.c.l.b16 %v897
      %v1343 = vunpack.c.l.b16 %v898
      %v1344 = vunpack.c.l.b16 %v899
      %v1345 = vunpack.c.l.b16 %v900
      %v1346 = vunpack.c.l.b16 %v901
      %v1347 = vunpack.c.l.b16 %v902
      %v1348 = vunpack.c.l.b16 %v903
      %v1349 = vunpack.c.l.b16 %v904
      %v1350 = vunpack.c.l.b16 %v905
      %v1351 = vunpack.c.l.b16 %v906
      %v1352 = vunpack.c.l.b16 %v907
      %v1353 = vpack.c.b16 %v1338, %v1337
      %v1354 = vpack.c.b16 %v1340, %v1339
      %v1355 = vpack.c.b16 %v1342, %v1341
      %v1356 = vpack.c.b16 %v1344, %v1343
      %v1357 = vpack.c.b16 %v1346, %v1345
      %v1358 = vpack.c.b16 %v1348, %v1347
      %v1359 = vpack.c.b16 %v1350, %v1349
      %v1360 = vpack.c.b16 %v1352, %v1351
      %v1385 = vunpack.c.l.b16 %v908
      %v1386 = vunpack.c.l.b16 %v909
      %v1387 = vunpack.c.l.b16 %v910
      %v1388 = vunpack.c.l.b16 %v911
      %v1389 = vunpack.c.l.b16 %v912
      %v1390 = vunpack.c.l.b16 %v913
      %v1391 = vunpack.c.l.b16 %v914
      %v1392 = vunpack.c.l.b16 %v915
      %v1393 = vunpack.c.l.b16 %v916
      %v1394 = vunpack.c.l.b16 %v917
      %v1395 = vunpack.c.l.b16 %v918
      %v1396 = vunpack.c.l.b16 %v919
      %v1397 = vunpack.c.l.b16 %v920
      %v1398 = vunpack.c.l.b16 %v921
      %v1399 = vunpack.c.l.b16 %v922
      %v1400 = vunpack.c.l.b16 %v923
      %v1401 = vpack.c.b16 %v1386, %v1385
      %v1402 = vpack.c.b16 %v1388, %v1387
      %v1403 = vpack.c.b16 %v1390, %v1389
      %v1404 = vpack.c.b16 %v1392, %v1391
      %v1405 = vpack.c.b16 %v1394, %v1393
      %v1406 = vpack.c.b16 %v1396, %v1395
      %v1407 = vpack.c.b16 %v1398, %v1397
      %v1408 = vpack.c.b16 %v1400, %v1399
      %1417 = vmatprep.subr.bf16.mxu0 0
      %1418 = vmatpush1.bf16.msra.mxu0 %v1401
      %1419 = vmatprep.subr.bf16.mxu0 0
      %1420 = vmatpush1.bf16.msra.mxu0 %v1402
      %1421 = vmatprep.subr.bf16.mxu0 0
      %1422 = vmatpush1.bf16.msra.mxu0 %v1403
      %1423 = vmatprep.subr.bf16.mxu0 0
      %1424 = vmatpush1.bf16.msra.mxu0 %v1404
      %1425 = vmatprep.subr.bf16.mxu0 0
      %1426 = vmatpush1.bf16.msra.mxu0 %v1405
      %1427 = vmatprep.subr.bf16.mxu0 0
      %1428 = vmatpush1.bf16.msra.mxu0 %v1406
      %1429 = vmatprep.subr.bf16.mxu0 0
      %1430 = vmatpush1.bf16.msra.mxu0 %v1407
      %1431 = vmatprep.subr.bf16.mxu0 0
      %1432 = vmatpush1.bf16.msra.mxu0 %v1408
      %1433 = vmatprep.subr.bf16.mxu0 0
      %1434 = vmatpush1.bf16.msra.mxu0 0
      %1435 = vmatprep.subr.bf16.mxu0 0
      %1436 = vmatpush1.bf16.msra.mxu0 0
      %1437 = vmatprep.subr.bf16.mxu0 0
      %1438 = vmatpush1.bf16.msra.mxu0 0
      %1439 = vmatprep.subr.bf16.mxu0 0
      %1440 = vmatpush1.bf16.msra.mxu0 0
      %1441 = vmatprep.subr.bf16.mxu0 0
      %1442 = vmatpush1.bf16.msra.mxu0 0
      %1443 = vmatprep.subr.bf16.mxu0 0
      %1444 = vmatpush1.bf16.msra.mxu0 0
      %1445 = vmatprep.subr.bf16.mxu0 0
      %1446 = vmatpush1.bf16.msra.mxu0 0
      %1447 = vmatprep.subr.bf16.mxu0 0
      %1448 = vmatpush1.bf16.msra.mxu0 0
      %1449 = vmatprep.mubr.bf16.mxu0 0
      %1450 = vmatmul.mubr.bf16.gmra.mrb[0].mxu0 %v1353
      %v1451 = vpop.f32.mrb[0].mxu0
      %v1452 = vadd.f32 %v1259, %v1451
      %v1453 = vpop.f32.mrb[0].mxu0
      %v1454 = vpop.f32.mrb[0].mxu0
      %v1455 = vadd.f32 %v1262, %v1454
      %v1456 = vpop.f32.mrb[0].mxu0
      %1457 = vmatprep.mubr.bf16.mxu0 0
      %1458 = vmatmul.mubr.bf16.gmra.mrb[0].mxu0 %v1354
      %v1459 = vpop.f32.mrb[0].mxu0
      %v1460 = vadd.f32 %v1267, %v1459
      %v1461 = vpop.f32.mrb[0].mxu0
      %v1462 = vpop.f32.mrb[0].mxu0
      %v1463 = vadd.f32 %v1270, %v1462
      %v1464 = vpop.f32.mrb[0].mxu0
      %1465 = vmatprep.mubr.bf16.mxu0 0
      %1466 = vmatmul.mubr.bf16.gmra.mrb[0].mxu0 %v1355
      %v1467 = vpop.f32.mrb[0].mxu0
      %v1468 = vadd.f32 %v1275, %v1467
      %v1469 = vpop.f32.mrb[0].mxu0
      %v1470 = vpop.f32.mrb[0].mxu0
      %v1471 = vadd.f32 %v1278, %v1470
      %v1472 = vpop.f32.mrb[0].mxu0
      %1473 = vmatprep.mubr.bf16.mxu0 0
      %1474 = vmatmul.mubr.bf16.gmra.mrb[0].mxu0 %v1356
      %v1475 = vpop.f32.mrb[0].mxu0
      %v1476 = vadd.f32 %v1283, %v1475
      %v1477 = vpop.f32.mrb[0].mxu0
      %v1478 = vpop.f32.mrb[0].mxu0
      %v1479 = vadd.f32 %v1286, %v1478
      %v1480 = vpop.f32.mrb[0].mxu0
      %1481 = vmatprep.mubr.bf16.mxu0 0
      %1482 = vmatmul.mubr.bf16.gmra.mrb[0].mxu0 %v1357
      %v1483 = vpop.f32.mrb[0].mxu0
      %v1484 = vadd.f32 %v1291, %v1483
      %v1485 = vpop.f32.mrb[0].mxu0
      %v1486 = vpop.f32.mrb[0].mxu0
      %v1487 = vadd.f32 %v1294, %v1486
      %v1488 = vpop.f32.mrb[0].mxu0
      %1489 = vmatprep.mubr.bf16.mxu0 0
      %1490 = vmatmul.mubr.bf16.gmra.mrb[0].mxu0 %v1358
      %v1491 = vpop.f32.mrb[0].mxu0
      %v1492 = vadd.f32 %v1299, %v1491
      %v1493 = vpop.f32.mrb[0].mxu0
      %v1494 = vpop.f32.mrb[0].mxu0
      %v1495 = vadd.f32 %v1302, %v1494
      %v1496 = vpop.f32.mrb[0].mxu0
      %1497 = vmatprep.mubr.bf16.mxu0 0
      %1498 = vmatmul.mubr.bf16.gmra.mrb[0].mxu0 %v1359
      %v1499 = vpop.f32.mrb[0].mxu0
      %v1500 = vadd.f32 %v1307, %v1499
      %v1501 = vpop.f32.mrb[0].mxu0
      %v1502 = vpop.f32.mrb[0].mxu0
      %v1503 = vadd.f32 %v1310, %v1502
      %v1504 = vpop.f32.mrb[0].mxu0
      %1505 = vmatprep.mubr.bf16.mxu0 0
      %1506 = vmatmul.mubr.bf16.gmra.mrb[0].mxu0 %v1360
      %v1507 = vpop.f32.mrb[0].mxu0
      %v1508 = vadd.f32 %v1315, %v1507
      %v1509 = vpop.f32.mrb[0].mxu0
      %v1510 = vpop.f32.mrb[0].mxu0
      %v1511 = vadd.f32 %v1318, %v1510
      %v1512 = vpop.f32.mrb[0].mxu0
      %1513 = vdwg.mxu0
      %v1514 = vld [vmem:[%s891] sm:$0xe]
      %v1515 = vld [vmem:[%s891 + $0xc] sm:$0xe]
      %v1516 = vld [vmem:[%s891 + $0x18] sm:$0xe]
      %v1517 = vld [vmem:[%s891 + $0x24] sm:$0xe]
      %v1518 = vld [vmem:[%s891 + $0x30] sm:$0xe]
      %v1519 = vld [vmem:[%s891 + $0x3c] sm:$0xe]
      %v1520 = vld [vmem:[%s891 + $0x48] sm:$0xe]
      %v1521 = vld [vmem:[%s891 + $0x54] sm:$0xe]
      %vm1538 = vcmask 1042432
      %vm1539 = vcmask 1046532
      %vm1540 = vmor %vm1538, %vm1539
      %v1541 = vrot.slane %v1514, 5
      %v1542 = vrot.slane %v1541, 4
      %v1543 = vrot.slane %v893, 5
      %v1544 = vsel %vm1540, %v1542, %v1543
      %v1545 = vrot.slane %v1543, 4
      %v1546 = vrot.slane %v924, 5
      %v1547 = vsel %vm1540, %v1545, %v1546
      %v1548 = vrot.slane %v1515, 5
      %v1549 = vrot.slane %v1548, 4
      %v1550 = vrot.slane %v895, 5
      %v1551 = vsel %vm1540, %v1549, %v1550
      %v1552 = vrot.slane %v1550, 4
      %v1553 = vrot.slane %v925, 5
      %v1554 = vsel %vm1540, %v1552, %v1553
      %v1555 = vrot.slane %v1516, 5
      %v1556 = vrot.slane %v1555, 4
      %v1557 = vrot.slane %v897, 5
      %v1558 = vsel %vm1540, %v1556, %v1557
      %v1559 = vrot.slane %v1557, 4
      %v1560 = vrot.slane %v926, 5
      %v1561 = vsel %vm1540, %v1559, %v1560
      %v1562 = vrot.slane %v1517, 5
      %v1563 = vrot.slane %v1562, 4
      %v1564 = vrot.slane %v899, 5
      %v1565 = vsel %vm1540, %v1563, %v1564
      %v1566 = vrot.slane %v1564, 4
      %v1567 = vrot.slane %v927, 5
      %v1568 = vsel %vm1540, %v1566, %v1567
      %v1569 = vrot.slane %v1518, 5
      %v1570 = vrot.slane %v1569, 4
      %v1571 = vrot.slane %v901, 5
      %v1572 = vsel %vm1540, %v1570, %v1571
      %v1573 = vrot.slane %v1571, 4
      %v1574 = vrot.slane %v928, 5
      %v1575 = vsel %vm1540, %v1573, %v1574
      %v1576 = vrot.slane %v1519, 5
      %v1577 = vrot.slane %v1576, 4
      %v1578 = vrot.slane %v903, 5
      %v1579 = vsel %vm1540, %v1577, %v1578
      %v1580 = vrot.slane %v1578, 4
      %v1581 = vrot.slane %v929, 5
      %v1582 = vsel %vm1540, %v1580, %v1581
      %v1583 = vrot.slane %v1520, 5
      %v1584 = vrot.slane %v1583, 4
      %v1585 = vrot.slane %v905, 5
      %v1586 = vsel %vm1540, %v1584, %v1585
      %v1587 = vrot.slane %v1585, 4
      %v1588 = vrot.slane %v930, 5
      %v1589 = vsel %vm1540, %v1587, %v1588
      %v1590 = vrot.slane %v1521, 5
      %v1591 = vrot.slane %v1590, 4
      %v1592 = vrot.slane %v907, 5
      %v1593 = vsel %vm1540, %v1591, %v1592
      %v1594 = vrot.slane %v1592, 4
      %v1595 = vrot.slane %v931, 5
      %v1596 = vsel %vm1540, %v1594, %v1595
      %s1597 = scalar_lea.vmem %s1, 128
      %v1598 = vld [vmem:[%s1597] sm:$0xf]
      %v1599 = vld [vmem:[%s1597 + $0x4] sm:$0xf]
      %v1600 = vld [vmem:[%s1597 + $0x8] sm:$0xf]
      %v1601 = vld [vmem:[%s1597 + $0xc] sm:$0xf]
      %v1602 = vld [vmem:[%s1597 + $0x10] sm:$0xf]
      %v1603 = vld [vmem:[%s1597 + $0x14] sm:$0xf]
      %v1604 = vld [vmem:[%s1597 + $0x18] sm:$0xf]
      %v1605 = vld [vmem:[%s1597 + $0x1c] sm:$0xf]
      %v1606 = vld [vmem:[%s1597 + $0x20] sm:$0xf]
      %v1607 = vld [vmem:[%s1597 + $0x24] sm:$0xf]
      %v1608 = vld [vmem:[%s1597 + $0x28] sm:$0xf]
      %v1609 = vld [vmem:[%s1597 + $0x2c] sm:$0xf]
      %v1610 = vld [vmem:[%s1597 + $0x30] sm:$0xf]
      %v1611 = vld [vmem:[%s1597 + $0x34] sm:$0xf]
      %v1612 = vld [vmem:[%s1597 + $0x38] sm:$0xf]
      %v1613 = vld [vmem:[%s1597 + $0x3c] sm:$0xf]
      %v1614 = vunpack.c.l.b16 %v1544
      %v1615 = vunpack.c.l.b16 %v1547
      %v1616 = vunpack.c.l.b16 %v1551
      %v1617 = vunpack.c.l.b16 %v1554
      %v1618 = vunpack.c.l.b16 %v1558
      %v1619 = vunpack.c.l.b16 %v1561
      %v1620 = vunpack.c.l.b16 %v1565
      %v1621 = vunpack.c.l.b16 %v1568
      %v1622 = vunpack.c.l.b16 %v1572
      %v1623 = vunpack.c.l.b16 %v1575
      %v1624 = vunpack.c.l.b16 %v1579
      %v1625 = vunpack.c.l.b16 %v1582
      %v1626 = vunpack.c.l.b16 %v1586
      %v1627 = vunpack.c.l.b16 %v1589
      %v1628 = vunpack.c.l.b16 %v1593
      %v1629 = vunpack.c.l.b16 %v1596
      %v1630 = vpack.c.b16 %v1615, %v1614
      %v1631 = vpack.c.b16 %v1617, %v1616
      %v1632 = vpack.c.b16 %v1619, %v1618
      %v1633 = vpack.c.b16 %v1621, %v1620
      %v1634 = vpack.c.b16 %v1623, %v1622
      %v1635 = vpack.c.b16 %v1625, %v1624
      %v1636 = vpack.c.b16 %v1627, %v1626
      %v1637 = vpack.c.b16 %v1629, %v1628
      %v1662 = vunpack.c.l.b16 %v1598
      %v1663 = vunpack.c.l.b16 %v1599
      %v1664 = vunpack.c.l.b16 %v1600
      %v1665 = vunpack.c.l.b16 %v1601
      %v1666 = vunpack.c.l.b16 %v1602
      %v1667 = vunpack.c.l.b16 %v1603
      %v1668 = vunpack.c.l.b16 %v1604
      %v1669 = vunpack.c.l.b16 %v1605
      %v1670 = vunpack.c.l.b16 %v1606
      %v1671 = vunpack.c.l.b16 %v1607
      %v1672 = vunpack.c.l.b16 %v1608
      %v1673 = vunpack.c.l.b16 %v1609
      %v1674 = vunpack.c.l.b16 %v1610
      %v1675 = vunpack.c.l.b16 %v1611
      %v1676 = vunpack.c.l.b16 %v1612
      %v1677 = vunpack.c.l.b16 %v1613
      %v1678 = vpack.c.b16 %v1663, %v1662
      %v1679 = vpack.c.b16 %v1665, %v1664
      %v1680 = vpack.c.b16 %v1667, %v1666
      %v1681 = vpack.c.b16 %v1669, %v1668
      %v1682 = vpack.c.b16 %v1671, %v1670
      %v1683 = vpack.c.b16 %v1673, %v1672
      %v1684 = vpack.c.b16 %v1675, %v1674
      %v1685 = vpack.c.b16 %v1677, %v1676
      %1694 = vmatprep.subr.bf16.mxu0 0
      %1695 = vmatpush1.bf16.msra.mxu0 %v1678
      %1696 = vmatprep.subr.bf16.mxu0 0
      %1697 = vmatpush1.bf16.msra.mxu0 %v1679
      %1698 = vmatprep.subr.bf16.mxu0 0
      %1699 = vmatpush1.bf16.msra.mxu0 %v1680
      %1700 = vmatprep.subr.bf16.mxu0 0
      %1701 = vmatpush1.bf16.msra.mxu0 %v1681
      %1702 = vmatprep.subr.bf16.mxu0 0
      %1703 = vmatpush1.bf16.msra.mxu0 %v1682
      %1704 = vmatprep.subr.bf16.mxu0 0
      %1705 = vmatpush1.bf16.msra.mxu0 %v1683
      %1706 = vmatprep.subr.bf16.mxu0 0
      %1707 = vmatpush1.bf16.msra.mxu0 %v1684
      %1708 = vmatprep.subr.bf16.mxu0 0
      %1709 = vmatpush1.bf16.msra.mxu0 %v1685
      %1710 = vmatprep.subr.bf16.mxu0 0
      %1711 = vmatpush1.bf16.msra.mxu0 0
      %1712 = vmatprep.subr.bf16.mxu0 0
      %1713 = vmatpush1.bf16.msra.mxu0 0
      %1714 = vmatprep.subr.bf16.mxu0 0
      %1715 = vmatpush1.bf16.msra.mxu0 0
      %1716 = vmatprep.subr.bf16.mxu0 0
      %1717 = vmatpush1.bf16.msra.mxu0 0
      %1718 = vmatprep.subr.bf16.mxu0 0
      %1719 = vmatpush1.bf16.msra.mxu0 0
      %1720 = vmatprep.subr.bf16.mxu0 0
      %1721 = vmatpush1.bf16.msra.mxu0 0
      %1722 = vmatprep.subr.bf16.mxu0 0
      %1723 = vmatpush1.bf16.msra.mxu0 0
      %1724 = vmatprep.subr.bf16.mxu0 0
      %1725 = vmatpush1.bf16.msra.mxu0 0
      %1726 = vmatprep.mubr.bf16.mxu0 0
      %1727 = vmatmul.mubr.bf16.gmra.mrb[0].mxu0 %v1630
      %v1728 = vpop.f32.mrb[0].mxu0
      %v1729 = vadd.f32 0.0, %v1728
      %v1730 = vpop.f32.mrb[0].mxu0
      %v1731 = vpop.f32.mrb[0].mxu0
      %v1732 = vadd.f32 0.0, %v1731
      %v1733 = vpop.f32.mrb[0].mxu0
      %1734 = vmatprep.mubr.bf16.mxu0 0
      %1735 = vmatmul.mubr.bf16.gmra.mrb[0].mxu0 %v1631
      %v1736 = vpop.f32.mrb[0].mxu0
      %v1737 = vadd.f32 0.0, %v1736
      %v1738 = vpop.f32.mrb[0].mxu0
      %v1739 = vpop.f32.mrb[0].mxu0
      %v1740 = vadd.f32 0.0, %v1739
      %v1741 = vpop.f32.mrb[0].mxu0
      %1742 = vmatprep.mubr.bf16.mxu0 0
      %1743 = vmatmul.mubr.bf16.gmra.mrb[0].mxu0 %v1632
      %v1744 = vpop.f32.mrb[0].mxu0
      %v1745 = vadd.f32 0.0, %v1744
      %v1746 = vpop.f32.mrb[0].mxu0
      %v1747 = vpop.f32.mrb[0].mxu0
      %v1748 = vadd.f32 0.0, %v1747
      %v1749 = vpop.f32.mrb[0].mxu0
      %1750 = vmatprep.mubr.bf16.mxu0 0
      %1751 = vmatmul.mubr.bf16.gmra.mrb[0].mxu0 %v1633
      %v1752 = vpop.f32.mrb[0].mxu0
      %v1753 = vadd.f32 0.0, %v1752
      %v1754 = vpop.f32.mrb[0].mxu0
      %v1755 = vpop.f32.mrb[0].mxu0
      %v1756 = vadd.f32 0.0, %v1755
      %v1757 = vpop.f32.mrb[0].mxu0
      %1758 = vmatprep.mubr.bf16.mxu0 0
      %1759 = vmatmul.mubr.bf16.gmra.mrb[0].mxu0 %v1634
      %v1760 = vpop.f32.mrb[0].mxu0
      %v1761 = vadd.f32 0.0, %v1760
      %v1762 = vpop.f32.mrb[0].mxu0
      %v1763 = vpop.f32.mrb[0].mxu0
      %v1764 = vadd.f32 0.0, %v1763
      %v1765 = vpop.f32.mrb[0].mxu0
      %1766 = vmatprep.mubr.bf16.mxu0 0
      %1767 = vmatmul.mubr.bf16.gmra.mrb[0].mxu0 %v1635
      %v1768 = vpop.f32.mrb[0].mxu0
      %v1769 = vadd.f32 0.0, %v1768
      %v1770 = vpop.f32.mrb[0].mxu0
      %v1771 = vpop.f32.mrb[0].mxu0
      %v1772 = vadd.f32 0.0, %v1771
      %v1773 = vpop.f32.mrb[0].mxu0
      %1774 = vmatprep.mubr.bf16.mxu0 0
      %1775 = vmatmul.mubr.bf16.gmra.mrb[0].mxu0 %v1636
      %v1776 = vpop.f32.mrb[0].mxu0
      %v1777 = vadd.f32 0.0, %v1776
      %v1778 = vpop.f32.mrb[0].mxu0
      %v1779 = vpop.f32.mrb[0].mxu0
      %v1780 = vadd.f32 0.0, %v1779
      %v1781 = vpop.f32.mrb[0].mxu0
      %1782 = vmatprep.mubr.bf16.mxu0 0
      %1783 = vmatmul.mubr.bf16.gmra.mrb[0].mxu0 %v1637
      %v1784 = vpop.f32.mrb[0].mxu0
      %v1785 = vadd.f32 0.0, %v1784
      %v1786 = vpop.f32.mrb[0].mxu0
      %v1787 = vpop.f32.mrb[0].mxu0
      %v1788 = vadd.f32 0.0, %v1787
      %v1789 = vpop.f32.mrb[0].mxu0
      %1790 = vdwg.mxu0
      %v1791 = vadd.f32 %v1452, %v1729
      %v1792 = vadd.f32 %v1455, %v1732
      %v1793 = vadd.f32 %v1460, %v1737
      %v1794 = vadd.f32 %v1463, %v1740
      %v1795 = vadd.f32 %v1468, %v1745
      %v1796 = vadd.f32 %v1471, %v1748
      %v1797 = vadd.f32 %v1476, %v1753
      %v1798 = vadd.f32 %v1479, %v1756
      %v1799 = vadd.f32 %v1484, %v1761
      %v1800 = vadd.f32 %v1487, %v1764
      %v1801 = vadd.f32 %v1492, %v1769
      %v1802 = vadd.f32 %v1495, %v1772
      %v1803 = vadd.f32 %v1500, %v1777
      %v1804 = vadd.f32 %v1503, %v1780
      %v1805 = vadd.f32 %v1508, %v1785
      %v1806 = vadd.f32 %v1511, %v1788
      %s1807 = sadd.s32 %s888, 1
      %s1808 = smul.u32 %s1807, 3
      %s1809 = smul.addr %s1808, 4
      %s1810 = scalar_lea.vmem [#allocation2], %s1809
      %v1811 = vld [vmem:[%s1810] sm:$0xf]
      %v1812 = vld [vmem:[%s1810 + $0x4] sm:$0xf]
      %v1813 = vld [vmem:[%s1810 + $0xc] sm:$0xf]
      %v1814 = vld [vmem:[%s1810 + $0x10] sm:$0xf]
      %v1815 = vld [vmem:[%s1810 + $0x18] sm:$0xf]
      %v1816 = vld [vmem:[%s1810 + $0x1c] sm:$0xf]
      %v1817 = vld [vmem:[%s1810 + $0x24] sm:$0xf]
      %v1818 = vld [vmem:[%s1810 + $0x28] sm:$0xf]
      %v1819 = vld [vmem:[%s1810 + $0x30] sm:$0xf]
      %v1820 = vld [vmem:[%s1810 + $0x34] sm:$0xf]
      %v1821 = vld [vmem:[%s1810 + $0x3c] sm:$0xf]
      %v1822 = vld [vmem:[%s1810 + $0x40] sm:$0xf]
      %v1823 = vld [vmem:[%s1810 + $0x48] sm:$0xf]
      %v1824 = vld [vmem:[%s1810 + $0x4c] sm:$0xf]
      %v1825 = vld [vmem:[%s1810 + $0x54] sm:$0xf]
      %v1826 = vld [vmem:[%s1810 + $0x58] sm:$0xf]
      %s1827 = scalar_lea.vmem %s1, 192
      %v1828 = vld [vmem:[%s1827] sm:$0xf]
      %v1829 = vld [vmem:[%s1827 + $0x4] sm:$0xf]
      %v1830 = vld [vmem:[%s1827 + $0x8] sm:$0xf]
      %v1831 = vld [vmem:[%s1827 + $0xc] sm:$0xf]
      %v1832 = vld [vmem:[%s1827 + $0x10] sm:$0xf]
      %v1833 = vld [vmem:[%s1827 + $0x14] sm:$0xf]
      %v1834 = vld [vmem:[%s1827 + $0x18] sm:$0xf]
      %v1835 = vld [vmem:[%s1827 + $0x1c] sm:$0xf]
      %v1836 = vld [vmem:[%s1827 + $0x20] sm:$0xf]
      %v1837 = vld [vmem:[%s1827 + $0x24] sm:$0xf]
      %v1838 = vld [vmem:[%s1827 + $0x28] sm:$0xf]
      %v1839 = vld [vmem:[%s1827 + $0x2c] sm:$0xf]
      %v1840 = vld [vmem:[%s1827 + $0x30] sm:$0xf]
      %v1841 = vld [vmem:[%s1827 + $0x34] sm:$0xf]
      %v1842 = vld [vmem:[%s1827 + $0x38] sm:$0xf]
      %v1843 = vld [vmem:[%s1827 + $0x3c] sm:$0xf]
      %v1860 = vunpack.c.l.b16 %v1811
      %v1861 = vunpack.c.l.b16 %v1812
      %v1862 = vunpack.c.l.b16 %v1813
      %v1863 = vunpack.c.l.b16 %v1814
      %v1864 = vunpack.c.l.b16 %v1815
      %v1865 = vunpack.c.l.b16 %v1816
      %v1866 = vunpack.c.l.b16 %v1817
      %v1867 = vunpack.c.l.b16 %v1818
      %v1868 = vunpack.c.l.b16 %v1819
      %v1869 = vunpack.c.l.b16 %v1820
      %v1870 = vunpack.c.l.b16 %v1821
      %v1871 = vunpack.c.l.b16 %v1822
      %v1872 = vunpack.c.l.b16 %v1823
      %v1873 = vunpack.c.l.b16 %v1824
      %v1874 = vunpack.c.l.b16 %v1825
      %v1875 = vunpack.c.l.b16 %v1826
      %v1876 = vpack.c.b16 %v1861, %v1860
      %v1877 = vpack.c.b16 %v1863, %v1862
      %v1878 = vpack.c.b16 %v1865, %v1864
      %v1879 = vpack.c.b16 %v1867, %v1866
      %v1880 = vpack.c.b16 %v1869, %v1868
      %v1881 = vpack.c.b16 %v1871, %v1870
      %v1882 = vpack.c.b16 %v1873, %v1872
      %v1883 = vpack.c.b16 %v1875, %v1874
      %v1908 = vunpack.c.l.b16 %v1828
      %v1909 = vunpack.c.l.b16 %v1829
      %v1910 = vunpack.c.l.b16 %v1830
      %v1911 = vunpack.c.l.b16 %v1831
      %v1912 = vunpack.c.l.b16 %v1832
      %v1913 = vunpack.c.l.b16 %v1833
      %v1914 = vunpack.c.l.b16 %v1834
      %v1915 = vunpack.c.l.b16 %v1835
      %v1916 = vunpack.c.l.b16 %v1836
      %v1917 = vunpack.c.l.b16 %v1837
      %v1918 = vunpack.c.l.b16 %v1838
      %v1919 = vunpack.c.l.b16 %v1839
      %v1920 = vunpack.c.l.b16 %v1840
      %v1921 = vunpack.c.l.b16 %v1841
      %v1922 = vunpack.c.l.b16 %v1842
      %v1923 = vunpack.c.l.b16 %v1843
      %v1924 = vpack.c.b16 %v1909, %v1908
      %v1925 = vpack.c.b16 %v1911, %v1910
      %v1926 = vpack.c.b16 %v1913, %v1912
      %v1927 = vpack.c.b16 %v1915, %v1914
      %v1928 = vpack.c.b16 %v1917, %v1916
      %v1929 = vpack.c.b16 %v1919, %v1918
      %v1930 = vpack.c.b16 %v1921, %v1920
      %v1931 = vpack.c.b16 %v1923, %v1922
      %1940 = vmatprep.subr.bf16.mxu0 0
      %1941 = vmatpush1.bf16.msra.mxu0 %v1924
      %1942 = vmatprep.subr.bf16.mxu0 0
      %1943 = vmatpush1.bf16.msra.mxu0 %v1925
      %1944 = vmatprep.subr.bf16.mxu0 0
      %1945 = vmatpush1.bf16.msra.mxu0 %v1926
      %1946 = vmatprep.subr.bf16.mxu0 0
      %1947 = vmatpush1.bf16.msra.mxu0 %v1927
      %1948 = vmatprep.subr.bf16.mxu0 0
      %1949 = vmatpush1.bf16.msra.mxu0 %v1928
      %1950 = vmatprep.subr.bf16.mxu0 0
      %1951 = vmatpush1.bf16.msra.mxu0 %v1929
      %1952 = vmatprep.subr.bf16.mxu0 0
      %1953 = vmatpush1.bf16.msra.mxu0 %v1930
      %1954 = vmatprep.subr.bf16.mxu0 0
      %1955 = vmatpush1.bf16.msra.mxu0 %v1931
      %1956 = vmatprep.subr.bf16.mxu0 0
      %1957 = vmatpush1.bf16.msra.mxu0 0
      %1958 = vmatprep.subr.bf16.mxu0 0
      %1959 = vmatpush1.bf16.msra.mxu0 0
      %1960 = vmatprep.subr.bf16.mxu0 0
      %1961 = vmatpush1.bf16.msra.mxu0 0
      %1962 = vmatprep.subr.bf16.mxu0 0
      %1963 = vmatpush1.bf16.msra.mxu0 0
      %1964 = vmatprep.subr.bf16.mxu0 0
      %1965 = vmatpush1.bf16.msra.mxu0 0
      %1966 = vmatprep.subr.bf16.mxu0 0
      %1967 = vmatpush1.bf16.msra.mxu0 0
      %1968 = vmatprep.subr.bf16.mxu0 0
      %1969 = vmatpush1.bf16.msra.mxu0 0
      %1970 = vmatprep.subr.bf16.mxu0 0
      %1971 = vmatpush1.bf16.msra.mxu0 0
      %1972 = vmatprep.mubr.bf16.mxu0 0
      %1973 = vmatmul.mubr.bf16.gmra.mrb[0].mxu0 %v1876
      %v1974 = vpop.f32.mrb[0].mxu0
      %v1975 = vadd.f32 0.0, %v1974
      %v1976 = vpop.f32.mrb[0].mxu0
      %v1977 = vpop.f32.mrb[0].mxu0
      %v1978 = vadd.f32 0.0, %v1977
      %v1979 = vpop.f32.mrb[0].mxu0
      %1980 = vmatprep.mubr.bf16.mxu0 0
      %1981 = vmatmul.mubr.bf16.gmra.mrb[0].mxu0 %v1877
      %v1982 = vpop.f32.mrb[0].mxu0
      %v1983 = vadd.f32 0.0, %v1982
      %v1984 = vpop.f32.mrb[0].mxu0
      %v1985 = vpop.f32.mrb[0].mxu0
      %v1986 = vadd.f32 0.0, %v1985
      %v1987 = vpop.f32.mrb[0].mxu0
      %1988 = vmatprep.mubr.bf16.mxu0 0
      %1989 = vmatmul.mubr.bf16.gmra.mrb[0].mxu0 %v1878
      %v1990 = vpop.f32.mrb[0].mxu0
      %v1991 = vadd.f32 0.0, %v1990
      %v1992 = vpop.f32.mrb[0].mxu0
      %v1993 = vpop.f32.mrb[0].mxu0
      %v1994 = vadd.f32 0.0, %v1993
      %v1995 = vpop.f32.mrb[0].mxu0
      %1996 = vmatprep.mubr.bf16.mxu0 0
      %1997 = vmatmul.mubr.bf16.gmra.mrb[0].mxu0 %v1879
      %v1998 = vpop.f32.mrb[0].mxu0
      %v1999 = vadd.f32 0.0, %v1998
      %v2000 = vpop.f32.mrb[0].mxu0
      %v2001 = vpop.f32.mrb[0].mxu0
      %v2002 = vadd.f32 0.0, %v2001
      %v2003 = vpop.f32.mrb[0].mxu0
      %2004 = vmatprep.mubr.bf16.mxu0 0
      %2005 = vmatmul.mubr.bf16.gmra.mrb[0].mxu0 %v1880
      %v2006 = vpop.f32.mrb[0].mxu0
      %v2007 = vadd.f32 0.0, %v2006
      %v2008 = vpop.f32.mrb[0].mxu0
      %v2009 = vpop.f32.mrb[0].mxu0
      %v2010 = vadd.f32 0.0, %v2009
      %v2011 = vpop.f32.mrb[0].mxu0
      %2012 = vmatprep.mubr.bf16.mxu0 0
      %2013 = vmatmul.mubr.bf16.gmra.mrb[0].mxu0 %v1881
      %v2014 = vpop.f32.mrb[0].mxu0
      %v2015 = vadd.f32 0.0, %v2014
      %v2016 = vpop.f32.mrb[0].mxu0
      %v2017 = vpop.f32.mrb[0].mxu0
      %v2018 = vadd.f32 0.0, %v2017
      %v2019 = vpop.f32.mrb[0].mxu0
      %2020 = vmatprep.mubr.bf16.mxu0 0
      %2021 = vmatmul.mubr.bf16.gmra.mrb[0].mxu0 %v1882
      %v2022 = vpop.f32.mrb[0].mxu0
      %v2023 = vadd.f32 0.0, %v2022
      %v2024 = vpop.f32.mrb[0].mxu0
      %v2025 = vpop.f32.mrb[0].mxu0
      %v2026 = vadd.f32 0.0, %v2025
      %v2027 = vpop.f32.mrb[0].mxu0
      %2028 = vmatprep.mubr.bf16.mxu0 0
      %2029 = vmatmul.mubr.bf16.gmra.mrb[0].mxu0 %v1883
      %v2030 = vpop.f32.mrb[0].mxu0
      %v2031 = vadd.f32 0.0, %v2030
      %v2032 = vpop.f32.mrb[0].mxu0
      %v2033 = vpop.f32.mrb[0].mxu0
      %v2034 = vadd.f32 0.0, %v2033
      %v2035 = vpop.f32.mrb[0].mxu0
      %2036 = vdwg.mxu0
      %v2037 = vadd.f32 %v1791, %v1975
      %v2038 = vadd.f32 %v1792, %v1978
      %v2039 = vadd.f32 %v1793, %v1983
      %v2040 = vadd.f32 %v1794, %v1986
      %v2041 = vadd.f32 %v1795, %v1991
      %v2042 = vadd.f32 %v1796, %v1994
      %v2043 = vadd.f32 %v1797, %v1999
      %v2044 = vadd.f32 %v1798, %v2002
      %v2045 = vadd.f32 %v1799, %v2007
      %v2046 = vadd.f32 %v1800, %v2010
      %v2047 = vadd.f32 %v1801, %v2015
      %v2048 = vadd.f32 %v1802, %v2018
      %v2049 = vadd.f32 %v1803, %v2023
      %v2050 = vadd.f32 %v1804, %v2026
      %v2051 = vadd.f32 %v1805, %v2031
      %v2052 = vadd.f32 %v1806, %v2034
      %v2053 = vld [vmem:[%s1810] sm:$0xf]
      %v2054 = vld [vmem:[%s1810 + $0x4] sm:$0xf]
      %v2055 = vld [vmem:[%s1810 + $0x8] sm:$0x1]
      %v2056 = vld [vmem:[%s1810 + $0xc] sm:$0xf]
      %v2057 = vld [vmem:[%s1810 + $0x10] sm:$0xf]
      %v2058 = vld [vmem:[%s1810 + $0x14] sm:$0x1]
      %v2059 = vld [vmem:[%s1810 + $0x18] sm:$0xf]
      %v2060 = vld [vmem:[%s1810 + $0x1c] sm:$0xf]
      %v2061 = vld [vmem:[%s1810 + $0x20] sm:$0x1]
      %v2062 = vld [vmem:[%s1810 + $0x24] sm:$0xf]
      %v2063 = vld [vmem:[%s1810 + $0x28] sm:$0xf]
      %v2064 = vld [vmem:[%s1810 + $0x2c] sm:$0x1]
      %v2065 = vld [vmem:[%s1810 + $0x30] sm:$0xf]
      %v2066 = vld [vmem:[%s1810 + $0x34] sm:$0xf]
      %v2067 = vld [vmem:[%s1810 + $0x38] sm:$0x1]
      %v2068 = vld [vmem:[%s1810 + $0x3c] sm:$0xf]
      %v2069 = vld [vmem:[%s1810 + $0x40] sm:$0xf]
      %v2070 = vld [vmem:[%s1810 + $0x44] sm:$0x1]
      %v2071 = vld [vmem:[%s1810 + $0x48] sm:$0xf]
      %v2072 = vld [vmem:[%s1810 + $0x4c] sm:$0xf]
      %v2073 = vld [vmem:[%s1810 + $0x50] sm:$0x1]
      %v2074 = vld [vmem:[%s1810 + $0x54] sm:$0xf]
      %v2075 = vld [vmem:[%s1810 + $0x58] sm:$0xf]
      %v2076 = vld [vmem:[%s1810 + $0x5c] sm:$0x1]
      %v2078 = vshrl.u32 %v2053, 16
      %v2080 = vrot.slane %v2078, 4
      %v2081 = vshll.u32 %v2053, 16
      %v2083 = vrot.slane %v2081, 5
      %v2084 = vor.u32 %v2080, %v2083
      %v2085 = vrot.slane %v2084, 4
      %v2087 = vshll.u32 %v2054, 16
      %v2089 = vrot.slane %v2087, 5
      %v2090 = vsel %vm934, %v2085, %v2089
      %v2091 = vshrl.u32 %v2054, 16
      %v2093 = vrot.slane %v2091, 4
      %v2094 = vor.u32 %v2093, %v2089
      %v2095 = vrot.slane %v2094, 4
      %v2097 = vshll.u32 %v2055, 16
      %v2099 = vrot.slane %v2097, 5
      %v2100 = vsel %vm934, %v2095, %v2099
      %v2102 = vshrl.u32 %v2056, 16
      %v2104 = vrot.slane %v2102, 4
      %v2105 = vshll.u32 %v2056, 16
      %v2107 = vrot.slane %v2105, 5
      %v2108 = vor.u32 %v2104, %v2107
      %v2109 = vrot.slane %v2108, 4
      %v2111 = vshll.u32 %v2057, 16
      %v2113 = vrot.slane %v2111, 5
      %v2114 = vsel %vm934, %v2109, %v2113
      %v2115 = vshrl.u32 %v2057, 16
      %v2117 = vrot.slane %v2115, 4
      %v2118 = vor.u32 %v2117, %v2113
      %v2119 = vrot.slane %v2118, 4
      %v2121 = vshll.u32 %v2058, 16
      %v2123 = vrot.slane %v2121, 5
      %v2124 = vsel %vm934, %v2119, %v2123
      %v2126 = vshrl.u32 %v2059, 16
      %v2128 = vrot.slane %v2126, 4
      %v2129 = vshll.u32 %v2059, 16
      %v2131 = vrot.slane %v2129, 5
      %v2132 = vor.u32 %v2128, %v2131
      %v2133 = vrot.slane %v2132, 4
      %v2135 = vshll.u32 %v2060, 16
      %v2137 = vrot.slane %v2135, 5
      %v2138 = vsel %vm934, %v2133, %v2137
      %v2139 = vshrl.u32 %v2060, 16
      %v2141 = vrot.slane %v2139, 4
      %v2142 = vor.u32 %v2141, %v2137
      %v2143 = vrot.slane %v2142, 4
      %v2145 = vshll.u32 %v2061, 16
      %v2147 = vrot.slane %v2145, 5
      %v2148 = vsel %vm934, %v2143, %v2147
      %v2150 = vshrl.u32 %v2062, 16
      %v2152 = vrot.slane %v2150, 4
      %v2153 = vshll.u32 %v2062, 16
      %v2155 = vrot.slane %v2153, 5
      %v2156 = vor.u32 %v2152, %v2155
      %v2157 = vrot.slane %v2156, 4
      %v2159 = vshll.u32 %v2063, 16
      %v2161 = vrot.slane %v2159, 5
      %v2162 = vsel %vm934, %v2157, %v2161
      %v2163 = vshrl.u32 %v2063, 16
      %v2165 = vrot.slane %v2163, 4
      %v2166 = vor.u32 %v2165, %v2161
      %v2167 = vrot.slane %v2166, 4
      %v2169 = vshll.u32 %v2064, 16
      %v2171 = vrot.slane %v2169, 5
      %v2172 = vsel %vm934, %v2167, %v2171
      %v2174 = vshrl.u32 %v2065, 16
      %v2176 = vrot.slane %v2174, 4
      %v2177 = vshll.u32 %v2065, 16
      %v2179 = vrot.slane %v2177, 5
      %v2180 = vor.u32 %v2176, %v2179
      %v2181 = vrot.slane %v2180, 4
      %v2183 = vshll.u32 %v2066, 16
      %v2185 = vrot.slane %v2183, 5
      %v2186 = vsel %vm934, %v2181, %v2185
      %v2187 = vshrl.u32 %v2066, 16
      %v2189 = vrot.slane %v2187, 4
      %v2190 = vor.u32 %v2189, %v2185
      %v2191 = vrot.slane %v2190, 4
      %v2193 = vshll.u32 %v2067, 16
      %v2195 = vrot.slane %v2193, 5
      %v2196 = vsel %vm934, %v2191, %v2195
      %v2198 = vshrl.u32 %v2068, 16
      %v2200 = vrot.slane %v2198, 4
      %v2201 = vshll.u32 %v2068, 16
      %v2203 = vrot.slane %v2201, 5
      %v2204 = vor.u32 %v2200, %v2203
      %v2205 = vrot.slane %v2204, 4
      %v2207 = vshll.u32 %v2069, 16
      %v2209 = vrot.slane %v2207, 5
      %v2210 = vsel %vm934, %v2205, %v2209
      %v2211 = vshrl.u32 %v2069, 16
      %v2213 = vrot.slane %v2211, 4
      %v2214 = vor.u32 %v2213, %v2209
      %v2215 = vrot.slane %v2214, 4
      %v2217 = vshll.u32 %v2070, 16
      %v2219 = vrot.slane %v2217, 5
      %v2220 = vsel %vm934, %v2215, %v2219
      %v2222 = vshrl.u32 %v2071, 16
      %v2224 = vrot.slane %v2222, 4
      %v2225 = vshll.u32 %v2071, 16
      %v2227 = vrot.slane %v2225, 5
      %v2228 = vor.u32 %v2224, %v2227
      %v2229 = vrot.slane %v2228, 4
      %v2231 = vshll.u32 %v2072, 16
      %v2233 = vrot.slane %v2231, 5
      %v2234 = vsel %vm934, %v2229, %v2233
      %v2235 = vshrl.u32 %v2072, 16
      %v2237 = vrot.slane %v2235, 4
      %v2238 = vor.u32 %v2237, %v2233
      %v2239 = vrot.slane %v2238, 4
      %v2241 = vshll.u32 %v2073, 16
      %v2243 = vrot.slane %v2241, 5
      %v2244 = vsel %vm934, %v2239, %v2243
      %v2246 = vshrl.u32 %v2074, 16
      %v2248 = vrot.slane %v2246, 4
      %v2249 = vshll.u32 %v2074, 16
      %v2251 = vrot.slane %v2249, 5
      %v2252 = vor.u32 %v2248, %v2251
      %v2253 = vrot.slane %v2252, 4
      %v2255 = vshll.u32 %v2075, 16
      %v2257 = vrot.slane %v2255, 5
      %v2258 = vsel %vm934, %v2253, %v2257
      %v2259 = vshrl.u32 %v2075, 16
      %v2261 = vrot.slane %v2259, 4
      %v2262 = vor.u32 %v2261, %v2257
      %v2263 = vrot.slane %v2262, 4
      %v2265 = vshll.u32 %v2076, 16
      %v2267 = vrot.slane %v2265, 5
      %v2268 = vsel %vm934, %v2263, %v2267
      %s2269 = scalar_lea.vmem %s1, 256
      %v2270 = vld [vmem:[%s2269] sm:$0xf]
      %v2271 = vld [vmem:[%s2269 + $0x4] sm:$0xf]
      %v2272 = vld [vmem:[%s2269 + $0x8] sm:$0xf]
      %v2273 = vld [vmem:[%s2269 + $0xc] sm:$0xf]
      %v2274 = vld [vmem:[%s2269 + $0x10] sm:$0xf]
      %v2275 = vld [vmem:[%s2269 + $0x14] sm:$0xf]
      %v2276 = vld [vmem:[%s2269 + $0x18] sm:$0xf]
      %v2277 = vld [vmem:[%s2269 + $0x1c] sm:$0xf]
      %v2278 = vld [vmem:[%s2269 + $0x20] sm:$0xf]
      %v2279 = vld [vmem:[%s2269 + $0x24] sm:$0xf]
      %v2280 = vld [vmem:[%s2269 + $0x28] sm:$0xf]
      %v2281 = vld [vmem:[%s2269 + $0x2c] sm:$0xf]
      %v2282 = vld [vmem:[%s2269 + $0x30] sm:$0xf]
      %v2283 = vld [vmem:[%s2269 + $0x34] sm:$0xf]
      %v2284 = vld [vmem:[%s2269 + $0x38] sm:$0xf]
      %v2285 = vld [vmem:[%s2269 + $0x3c] sm:$0xf]
      %v2286 = vunpack.c.l.b16 %v2090
      %v2287 = vunpack.c.l.b16 %v2100
      %v2288 = vunpack.c.l.b16 %v2114
      %v2289 = vunpack.c.l.b16 %v2124
      %v2290 = vunpack.c.l.b16 %v2138
      %v2291 = vunpack.c.l.b16 %v2148
      %v2292 = vunpack.c.l.b16 %v2162
      %v2293 = vunpack.c.l.b16 %v2172
      %v2294 = vunpack.c.l.b16 %v2186
      %v2295 = vunpack.c.l.b16 %v2196
      %v2296 = vunpack.c.l.b16 %v2210
      %v2297 = vunpack.c.l.b16 %v2220
      %v2298 = vunpack.c.l.b16 %v2234
      %v2299 = vunpack.c.l.b16 %v2244
      %v2300 = vunpack.c.l.b16 %v2258
      %v2301 = vunpack.c.l.b16 %v2268
      %v2302 = vpack.c.b16 %v2287, %v2286
      %v2303 = vpack.c.b16 %v2289, %v2288
      %v2304 = vpack.c.b16 %v2291, %v2290
      %v2305 = vpack.c.b16 %v2293, %v2292
      %v2306 = vpack.c.b16 %v2295, %v2294
      %v2307 = vpack.c.b16 %v2297, %v2296
      %v2308 = vpack.c.b16 %v2299, %v2298
      %v2309 = vpack.c.b16 %v2301, %v2300
      %v2334 = vunpack.c.l.b16 %v2270
      %v2335 = vunpack.c.l.b16 %v2271
      %v2336 = vunpack.c.l.b16 %v2272
      %v2337 = vunpack.c.l.b16 %v2273
      %v2338 = vunpack.c.l.b16 %v2274
      %v2339 = vunpack.c.l.b16 %v2275
      %v2340 = vunpack.c.l.b16 %v2276
      %v2341 = vunpack.c.l.b16 %v2277
      %v2342 = vunpack.c.l.b16 %v2278
      %v2343 = vunpack.c.l.b16 %v2279
      %v2344 = vunpack.c.l.b16 %v2280
      %v2345 = vunpack.c.l.b16 %v2281
      %v2346 = vunpack.c.l.b16 %v2282
      %v2347 = vunpack.c.l.b16 %v2283
      %v2348 = vunpack.c.l.b16 %v2284
      %v2349 = vunpack.c.l.b16 %v2285
      %v2350 = vpack.c.b16 %v2335, %v2334
      %v2351 = vpack.c.b16 %v2337, %v2336
      %v2352 = vpack.c.b16 %v2339, %v2338
      %v2353 = vpack.c.b16 %v2341, %v2340
      %v2354 = vpack.c.b16 %v2343, %v2342
      %v2355 = vpack.c.b16 %v2345, %v2344
      %v2356 = vpack.c.b16 %v2347, %v2346
      %v2357 = vpack.c.b16 %v2349, %v2348
      %2366 = vmatprep.subr.bf16.mxu0 0
      %2367 = vmatpush1.bf16.msra.mxu0 %v2350
      %2368 = vmatprep.subr.bf16.mxu0 0
      %2369 = vmatpush1.bf16.msra.mxu0 %v2351
      %2370 = vmatprep.subr.bf16.mxu0 0
      %2371 = vmatpush1.bf16.msra.mxu0 %v2352
      %2372 = vmatprep.subr.bf16.mxu0 0
      %2373 = vmatpush1.bf16.msra.mxu0 %v2353
      %2374 = vmatprep.subr.bf16.mxu0 0
      %2375 = vmatpush1.bf16.msra.mxu0 %v2354
      %2376 = vmatprep.subr.bf16.mxu0 0
      %2377 = vmatpush1.bf16.msra.mxu0 %v2355
      %2378 = vmatprep.subr.bf16.mxu0 0
      %2379 = vmatpush1.bf16.msra.mxu0 %v2356
      %2380 = vmatprep.subr.bf16.mxu0 0
      %2381 = vmatpush1.bf16.msra.mxu0 %v2357
      %2382 = vmatprep.subr.bf16.mxu0 0
      %2383 = vmatpush1.bf16.msra.mxu0 0
      %2384 = vmatprep.subr.bf16.mxu0 0
      %2385 = vmatpush1.bf16.msra.mxu0 0
      %2386 = vmatprep.subr.bf16.mxu0 0
      %2387 = vmatpush1.bf16.msra.mxu0 0
      %2388 = vmatprep.subr.bf16.mxu0 0
      %2389 = vmatpush1.bf16.msra.mxu0 0
      %2390 = vmatprep.subr.bf16.mxu0 0
      %2391 = vmatpush1.bf16.msra.mxu0 0
      %2392 = vmatprep.subr.bf16.mxu0 0
      %2393 = vmatpush1.bf16.msra.mxu0 0
      %2394 = vmatprep.subr.bf16.mxu0 0
      %2395 = vmatpush1.bf16.msra.mxu0 0
      %2396 = vmatprep.subr.bf16.mxu0 0
      %2397 = vmatpush1.bf16.msra.mxu0 0
      %2398 = vmatprep.mubr.bf16.mxu0 0
      %2399 = vmatmul.mubr.bf16.gmra.mrb[0].mxu0 %v2302
      %v2400 = vpop.f32.mrb[0].mxu0
      %v2401 = vadd.f32 0.0, %v2400
      %v2402 = vpop.f32.mrb[0].mxu0
      %v2403 = vpop.f32.mrb[0].mxu0
      %v2404 = vadd.f32 0.0, %v2403
      %v2405 = vpop.f32.mrb[0].mxu0
      %2406 = vmatprep.mubr.bf16.mxu0 0
      %2407 = vmatmul.mubr.bf16.gmra.mrb[0].mxu0 %v2303
      %v2408 = vpop.f32.mrb[0].mxu0
      %v2409 = vadd.f32 0.0, %v2408
      %v2410 = vpop.f32.mrb[0].mxu0
      %v2411 = vpop.f32.mrb[0].mxu0
      %v2412 = vadd.f32 0.0, %v2411
      %v2413 = vpop.f32.mrb[0].mxu0
      %2414 = vmatprep.mubr.bf16.mxu0 0
      %2415 = vmatmul.mubr.bf16.gmra.mrb[0].mxu0 %v2304
      %v2416 = vpop.f32.mrb[0].mxu0
      %v2417 = vadd.f32 0.0, %v2416
      %v2418 = vpop.f32.mrb[0].mxu0
      %v2419 = vpop.f32.mrb[0].mxu0
      %v2420 = vadd.f32 0.0, %v2419
      %v2421 = vpop.f32.mrb[0].mxu0
      %2422 = vmatprep.mubr.bf16.mxu0 0
      %2423 = vmatmul.mubr.bf16.gmra.mrb[0].mxu0 %v2305
      %v2424 = vpop.f32.mrb[0].mxu0
      %v2425 = vadd.f32 0.0, %v2424
      %v2426 = vpop.f32.mrb[0].mxu0
      %v2427 = vpop.f32.mrb[0].mxu0
      %v2428 = vadd.f32 0.0, %v2427
      %v2429 = vpop.f32.mrb[0].mxu0
      %2430 = vmatprep.mubr.bf16.mxu0 0
      %2431 = vmatmul.mubr.bf16.gmra.mrb[0].mxu0 %v2306
      %v2432 = vpop.f32.mrb[0].mxu0
      %v2433 = vadd.f32 0.0, %v2432
      %v2434 = vpop.f32.mrb[0].mxu0
      %v2435 = vpop.f32.mrb[0].mxu0
      %v2436 = vadd.f32 0.0, %v2435
      %v2437 = vpop.f32.mrb[0].mxu0
      %2438 = vmatprep.mubr.bf16.mxu0 0
      %2439 = vmatmul.mubr.bf16.gmra.mrb[0].mxu0 %v2307
      %v2440 = vpop.f32.mrb[0].mxu0
      %v2441 = vadd.f32 0.0, %v2440
      %v2442 = vpop.f32.mrb[0].mxu0
      %v2443 = vpop.f32.mrb[0].mxu0
      %v2444 = vadd.f32 0.0, %v2443
      %v2445 = vpop.f32.mrb[0].mxu0
      %2446 = vmatprep.mubr.bf16.mxu0 0
      %2447 = vmatmul.mubr.bf16.gmra.mrb[0].mxu0 %v2308
      %v2448 = vpop.f32.mrb[0].mxu0
      %v2449 = vadd.f32 0.0, %v2448
      %v2450 = vpop.f32.mrb[0].mxu0
      %v2451 = vpop.f32.mrb[0].mxu0
      %v2452 = vadd.f32 0.0, %v2451
      %v2453 = vpop.f32.mrb[0].mxu0
      %2454 = vmatprep.mubr.bf16.mxu0 0
      %2455 = vmatmul.mubr.bf16.gmra.mrb[0].mxu0 %v2309
      %v2456 = vpop.f32.mrb[0].mxu0
      %v2457 = vadd.f32 0.0, %v2456
      %v2458 = vpop.f32.mrb[0].mxu0
      %v2459 = vpop.f32.mrb[0].mxu0
      %v2460 = vadd.f32 0.0, %v2459
      %v2461 = vpop.f32.mrb[0].mxu0
      %2462 = vdwg.mxu0
      %v2463 = vadd.f32 %v2037, %v2401
      %v2464 = vadd.f32 %v2038, %v2404
      %v2465 = vadd.f32 %v2039, %v2409
      %v2466 = vadd.f32 %v2040, %v2412
      %v2467 = vadd.f32 %v2041, %v2417
      %v2468 = vadd.f32 %v2042, %v2420
      %v2469 = vadd.f32 %v2043, %v2425
      %v2470 = vadd.f32 %v2044, %v2428
      %v2471 = vadd.f32 %v2045, %v2433
      %v2472 = vadd.f32 %v2046, %v2436
      %v2473 = vadd.f32 %v2047, %v2441
      %v2474 = vadd.f32 %v2048, %v2444
      %v2475 = vadd.f32 %v2049, %v2449
      %v2476 = vadd.f32 %v2050, %v2452
      %v2477 = vadd.f32 %v2051, %v2457
      %v2478 = vadd.f32 %v2052, %v2460
      %v2479 = vld [vmem:[%s1810] sm:$0xe]
      %v2480 = vld [vmem:[%s1810 + $0xc] sm:$0xe]
      %v2481 = vld [vmem:[%s1810 + $0x18] sm:$0xe]
      %v2482 = vld [vmem:[%s1810 + $0x24] sm:$0xe]
      %v2483 = vld [vmem:[%s1810 + $0x30] sm:$0xe]
      %v2484 = vld [vmem:[%s1810 + $0x3c] sm:$0xe]
      %v2485 = vld [vmem:[%s1810 + $0x48] sm:$0xe]
      %v2486 = vld [vmem:[%s1810 + $0x54] sm:$0xe]
      %v2511 = vrot.slane %v2479, 5
      %v2512 = vrot.slane %v2511, 4
      %v2513 = vrot.slane %v2054, 5
      %v2514 = vsel %vm1540, %v2512, %v2513
      %v2515 = vrot.slane %v2513, 4
      %v2516 = vrot.slane %v2055, 5
      %v2517 = vsel %vm1540, %v2515, %v2516
      %v2518 = vrot.slane %v2480, 5
      %v2519 = vrot.slane %v2518, 4
      %v2520 = vrot.slane %v2057, 5
      %v2521 = vsel %vm1540, %v2519, %v2520
      %v2522 = vrot.slane %v2520, 4
      %v2523 = vrot.slane %v2058, 5
      %v2524 = vsel %vm1540, %v2522, %v2523
      %v2525 = vrot.slane %v2481, 5
      %v2526 = vrot.slane %v2525, 4
      %v2527 = vrot.slane %v2060, 5
      %v2528 = vsel %vm1540, %v2526, %v2527
      %v2529 = vrot.slane %v2527, 4
      %v2530 = vrot.slane %v2061, 5
      %v2531 = vsel %vm1540, %v2529, %v2530
      %v2532 = vrot.slane %v2482, 5
      %v2533 = vrot.slane %v2532, 4
      %v2534 = vrot.slane %v2063, 5
      %v2535 = vsel %vm1540, %v2533, %v2534
      %v2536 = vrot.slane %v2534, 4
      %v2537 = vrot.slane %v2064, 5
      %v2538 = vsel %vm1540, %v2536, %v2537
      %v2539 = vrot.slane %v2483, 5
      %v2540 = vrot.slane %v2539, 4
      %v2541 = vrot.slane %v2066, 5
      %v2542 = vsel %vm1540, %v2540, %v2541
      %v2543 = vrot.slane %v2541, 4
      %v2544 = vrot.slane %v2067, 5
      %v2545 = vsel %vm1540, %v2543, %v2544
      %v2546 = vrot.slane %v2484, 5
      %v2547 = vrot.slane %v2546, 4
      %v2548 = vrot.slane %v2069, 5
      %v2549 = vsel %vm1540, %v2547, %v2548
      %v2550 = vrot.slane %v2548, 4
      %v2551 = vrot.slane %v2070, 5
      %v2552 = vsel %vm1540, %v2550, %v2551
      %v2553 = vrot.slane %v2485, 5
      %v2554 = vrot.slane %v2553, 4
      %v2555 = vrot.slane %v2072, 5
      %v2556 = vsel %vm1540, %v2554, %v2555
      %v2557 = vrot.slane %v2555, 4
      %v2558 = vrot.slane %v2073, 5
      %v2559 = vsel %vm1540, %v2557, %v2558
      %v2560 = vrot.slane %v2486, 5
      %v2561 = vrot.slane %v2560, 4
      %v2562 = vrot.slane %v2075, 5
      %v2563 = vsel %vm1540, %v2561, %v2562
      %v2564 = vrot.slane %v2562, 4
      %v2565 = vrot.slane %v2076, 5
      %v2566 = vsel %vm1540, %v2564, %v2565
      %s2567 = scalar_lea.vmem %s1, 320
      %v2568 = vld [vmem:[%s2567] sm:$0xf]
      %v2569 = vld [vmem:[%s2567 + $0x4] sm:$0xf]
      %v2570 = vld [vmem:[%s2567 + $0x8] sm:$0xf]
      %v2571 = vld [vmem:[%s2567 + $0xc] sm:$0xf]
      %v2572 = vld [vmem:[%s2567 + $0x10] sm:$0xf]
      %v2573 = vld [vmem:[%s2567 + $0x14] sm:$0xf]
      %v2574 = vld [vmem:[%s2567 + $0x18] sm:$0xf]
      %v2575 = vld [vmem:[%s2567 + $0x1c] sm:$0xf]
      %v2576 = vld [vmem:[%s2567 + $0x20] sm:$0xf]
      %v2577 = vld [vmem:[%s2567 + $0x24] sm:$0xf]
      %v2578 = vld [vmem:[%s2567 + $0x28] sm:$0xf]
      %v2579 = vld [vmem:[%s2567 + $0x2c] sm:$0xf]
      %v2580 = vld [vmem:[%s2567 + $0x30] sm:$0xf]
      %v2581 = vld [vmem:[%s2567 + $0x34] sm:$0xf]
      %v2582 = vld [vmem:[%s2567 + $0x38] sm:$0xf]
      %v2583 = vld [vmem:[%s2567 + $0x3c] sm:$0xf]
      %v2584 = vunpack.c.l.b16 %v2514
      %v2585 = vunpack.c.l.b16 %v2517
      %v2586 = vunpack.c.l.b16 %v2521
      %v2587 = vunpack.c.l.b16 %v2524
      %v2588 = vunpack.c.l.b16 %v2528
      %v2589 = vunpack.c.l.b16 %v2531
      %v2590 = vunpack.c.l.b16 %v2535
      %v2591 = vunpack.c.l.b16 %v2538
      %v2592 = vunpack.c.l.b16 %v2542
      %v2593 = vunpack.c.l.b16 %v2545
      %v2594 = vunpack.c.l.b16 %v2549
      %v2595 = vunpack.c.l.b16 %v2552
      %v2596 = vunpack.c.l.b16 %v2556
      %v2597 = vunpack.c.l.b16 %v2559
      %v2598 = vunpack.c.l.b16 %v2563
      %v2599 = vunpack.c.l.b16 %v2566
      %v2600 = vpack.c.b16 %v2585, %v2584
      %v2601 = vpack.c.b16 %v2587, %v2586
      %v2602 = vpack.c.b16 %v2589, %v2588
      %v2603 = vpack.c.b16 %v2591, %v2590
      %v2604 = vpack.c.b16 %v2593, %v2592
      %v2605 = vpack.c.b16 %v2595, %v2594
      %v2606 = vpack.c.b16 %v2597, %v2596
      %v2607 = vpack.c.b16 %v2599, %v2598
      %v2632 = vunpack.c.l.b16 %v2568
      %v2633 = vunpack.c.l.b16 %v2569
      %v2634 = vunpack.c.l.b16 %v2570
      %v2635 = vunpack.c.l.b16 %v2571
      %v2636 = vunpack.c.l.b16 %v2572
      %v2637 = vunpack.c.l.b16 %v2573
      %v2638 = vunpack.c.l.b16 %v2574
      %v2639 = vunpack.c.l.b16 %v2575
      %v2640 = vunpack.c.l.b16 %v2576
      %v2641 = vunpack.c.l.b16 %v2577
      %v2642 = vunpack.c.l.b16 %v2578
      %v2643 = vunpack.c.l.b16 %v2579
      %v2644 = vunpack.c.l.b16 %v2580
      %v2645 = vunpack.c.l.b16 %v2581
      %v2646 = vunpack.c.l.b16 %v2582
      %v2647 = vunpack.c.l.b16 %v2583
      %v2648 = vpack.c.b16 %v2633, %v2632
      %v2649 = vpack.c.b16 %v2635, %v2634
      %v2650 = vpack.c.b16 %v2637, %v2636
      %v2651 = vpack.c.b16 %v2639, %v2638
      %v2652 = vpack.c.b16 %v2641, %v2640
      %v2653 = vpack.c.b16 %v2643, %v2642
      %v2654 = vpack.c.b16 %v2645, %v2644
      %v2655 = vpack.c.b16 %v2647, %v2646
      %2664 = vmatprep.subr.bf16.mxu0 0
      %2665 = vmatpush1.bf16.msra.mxu0 %v2648
      %2666 = vmatprep.subr.bf16.mxu0 0
      %2667 = vmatpush1.bf16.msra.mxu0 %v2649
      %2668 = vmatprep.subr.bf16.mxu0 0
      %2669 = vmatpush1.bf16.msra.mxu0 %v2650
      %2670 = vmatprep.subr.bf16.mxu0 0
      %2671 = vmatpush1.bf16.msra.mxu0 %v2651
      %2672 = vmatprep.subr.bf16.mxu0 0
      %2673 = vmatpush1.bf16.msra.mxu0 %v2652
      %2674 = vmatprep.subr.bf16.mxu0 0
      %2675 = vmatpush1.bf16.msra.mxu0 %v2653
      %2676 = vmatprep.subr.bf16.mxu0 0
      %2677 = vmatpush1.bf16.msra.mxu0 %v2654
      %2678 = vmatprep.subr.bf16.mxu0 0
      %2679 = vmatpush1.bf16.msra.mxu0 %v2655
      %2680 = vmatprep.subr.bf16.mxu0 0
      %2681 = vmatpush1.bf16.msra.mxu0 0
      %2682 = vmatprep.subr.bf16.mxu0 0
      %2683 = vmatpush1.bf16.msra.mxu0 0
      %2684 = vmatprep.subr.bf16.mxu0 0
      %2685 = vmatpush1.bf16.msra.mxu0 0
      %2686 = vmatprep.subr.bf16.mxu0 0
      %2687 = vmatpush1.bf16.msra.mxu0 0
      %2688 = vmatprep.subr.bf16.mxu0 0
      %2689 = vmatpush1.bf16.msra.mxu0 0
      %2690 = vmatprep.subr.bf16.mxu0 0
      %2691 = vmatpush1.bf16.msra.mxu0 0
      %2692 = vmatprep.subr.bf16.mxu0 0
      %2693 = vmatpush1.bf16.msra.mxu0 0
      %2694 = vmatprep.subr.bf16.mxu0 0
      %2695 = vmatpush1.bf16.msra.mxu0 0
      %2696 = vmatprep.mubr.bf16.mxu0 0
      %2697 = vmatmul.mubr.bf16.gmra.mrb[0].mxu0 %v2600
      %v2698 = vpop.f32.mrb[0].mxu0
      %v2699 = vadd.f32 0.0, %v2698
      %v2700 = vpop.f32.mrb[0].mxu0
      %v2701 = vpop.f32.mrb[0].mxu0
      %v2702 = vadd.f32 0.0, %v2701
      %v2703 = vpop.f32.mrb[0].mxu0
      %2704 = vmatprep.mubr.bf16.mxu0 0
      %2705 = vmatmul.mubr.bf16.gmra.mrb[0].mxu0 %v2601
      %v2706 = vpop.f32.mrb[0].mxu0
      %v2707 = vadd.f32 0.0, %v2706
      %v2708 = vpop.f32.mrb[0].mxu0
      %v2709 = vpop.f32.mrb[0].mxu0
      %v2710 = vadd.f32 0.0, %v2709
      %v2711 = vpop.f32.mrb[0].mxu0
      %2712 = vmatprep.mubr.bf16.mxu0 0
      %2713 = vmatmul.mubr.bf16.gmra.mrb[0].mxu0 %v2602
      %v2714 = vpop.f32.mrb[0].mxu0
      %v2715 = vadd.f32 0.0, %v2714
      %v2716 = vpop.f32.mrb[0].mxu0
      %v2717 = vpop.f32.mrb[0].mxu0
      %v2718 = vadd.f32 0.0, %v2717
      %v2719 = vpop.f32.mrb[0].mxu0
      %2720 = vmatprep.mubr.bf16.mxu0 0
      %2721 = vmatmul.mubr.bf16.gmra.mrb[0].mxu0 %v2603
      %v2722 = vpop.f32.mrb[0].mxu0
      %v2723 = vadd.f32 0.0, %v2722
      %v2724 = vpop.f32.mrb[0].mxu0
      %v2725 = vpop.f32.mrb[0].mxu0
      %v2726 = vadd.f32 0.0, %v2725
      %v2727 = vpop.f32.mrb[0].mxu0
      %2728 = vmatprep.mubr.bf16.mxu0 0
      %2729 = vmatmul.mubr.bf16.gmra.mrb[0].mxu0 %v2604
      %v2730 = vpop.f32.mrb[0].mxu0
      %v2731 = vadd.f32 0.0, %v2730
      %v2732 = vpop.f32.mrb[0].mxu0
      %v2733 = vpop.f32.mrb[0].mxu0
      %v2734 = vadd.f32 0.0, %v2733
      %v2735 = vpop.f32.mrb[0].mxu0
      %2736 = vmatprep.mubr.bf16.mxu0 0
      %2737 = vmatmul.mubr.bf16.gmra.mrb[0].mxu0 %v2605
      %v2738 = vpop.f32.mrb[0].mxu0
      %v2739 = vadd.f32 0.0, %v2738
      %v2740 = vpop.f32.mrb[0].mxu0
      %v2741 = vpop.f32.mrb[0].mxu0
      %v2742 = vadd.f32 0.0, %v2741
      %v2743 = vpop.f32.mrb[0].mxu0
      %2744 = vmatprep.mubr.bf16.mxu0 0
      %2745 = vmatmul.mubr.bf16.gmra.mrb[0].mxu0 %v2606
      %v2746 = vpop.f32.mrb[0].mxu0
      %v2747 = vadd.f32 0.0, %v2746
      %v2748 = vpop.f32.mrb[0].mxu0
      %v2749 = vpop.f32.mrb[0].mxu0
      %v2750 = vadd.f32 0.0, %v2749
      %v2751 = vpop.f32.mrb[0].mxu0
      %2752 = vmatprep.mubr.bf16.mxu0 0
      %2753 = vmatmul.mubr.bf16.gmra.mrb[0].mxu0 %v2607
      %v2754 = vpop.f32.mrb[0].mxu0
      %v2755 = vadd.f32 0.0, %v2754
      %v2756 = vpop.f32.mrb[0].mxu0
      %v2757 = vpop.f32.mrb[0].mxu0
      %v2758 = vadd.f32 0.0, %v2757
      %v2759 = vpop.f32.mrb[0].mxu0
      %2760 = vdwg.mxu0
      %v2761 = vadd.f32 %v2463, %v2699
      %v2762 = vadd.f32 %v2464, %v2702
      %v2763 = vadd.f32 %v2465, %v2707
      %v2764 = vadd.f32 %v2466, %v2710
      %v2765 = vadd.f32 %v2467, %v2715
      %v2766 = vadd.f32 %v2468, %v2718
      %v2767 = vadd.f32 %v2469, %v2723
      %v2768 = vadd.f32 %v2470, %v2726
      %v2769 = vadd.f32 %v2471, %v2731
      %v2770 = vadd.f32 %v2472, %v2734
      %v2771 = vadd.f32 %v2473, %v2739
      %v2772 = vadd.f32 %v2474, %v2742
      %v2773 = vadd.f32 %v2475, %v2747
      %v2774 = vadd.f32 %v2476, %v2750
      %v2775 = vadd.f32 %v2477, %v2755
      %v2776 = vadd.f32 %v2478, %v2758
      %s2777 = sadd.s32 %s888, 2
      %s2778 = smul.u32 %s2777, 3
      %s2779 = smul.addr %s2778, 4
      %s2780 = scalar_lea.vmem [#allocation2], %s2779
      %v2781 = vld [vmem:[%s2780] sm:$0xf]
      %v2782 = vld [vmem:[%s2780 + $0x4] sm:$0xf]
      %v2783 = vld [vmem:[%s2780 + $0xc] sm:$0xf]
      %v2784 = vld [vmem:[%s2780 + $0x10] sm:$0xf]
      %v2785 = vld [vmem:[%s2780 + $0x18] sm:$0xf]
      %v2786 = vld [vmem:[%s2780 + $0x1c] sm:$0xf]
      %v2787 = vld [vmem:[%s2780 + $0x24] sm:$0xf]
      %v2788 = vld [vmem:[%s2780 + $0x28] sm:$0xf]
      %v2789 = vld [vmem:[%s2780 + $0x30] sm:$0xf]
      %v2790 = vld [vmem:[%s2780 + $0x34] sm:$0xf]
      %v2791 = vld [vmem:[%s2780 + $0x3c] sm:$0xf]
      %v2792 = vld [vmem:[%s2780 + $0x40] sm:$0xf]
      %v2793 = vld [vmem:[%s2780 + $0x48] sm:$0xf]
      %v2794 = vld [vmem:[%s2780 + $0x4c] sm:$0xf]
      %v2795 = vld [vmem:[%s2780 + $0x54] sm:$0xf]
      %v2796 = vld [vmem:[%s2780 + $0x58] sm:$0xf]
      %s2797 = scalar_lea.vmem %s1, 384
      %v2798 = vld [vmem:[%s2797] sm:$0xf]
      %v2799 = vld [vmem:[%s2797 + $0x4] sm:$0xf]
      %v2800 = vld [vmem:[%s2797 + $0x8] sm:$0xf]
      %v2801 = vld [vmem:[%s2797 + $0xc] sm:$0xf]
      %v2802 = vld [vmem:[%s2797 + $0x10] sm:$0xf]
      %v2803 = vld [vmem:[%s2797 + $0x14] sm:$0xf]
      %v2804 = vld [vmem:[%s2797 + $0x18] sm:$0xf]
      %v2805 = vld [vmem:[%s2797 + $0x1c] sm:$0xf]
      %v2806 = vld [vmem:[%s2797 + $0x20] sm:$0xf]
      %v2807 = vld [vmem:[%s2797 + $0x24] sm:$0xf]
      %v2808 = vld [vmem:[%s2797 + $0x28] sm:$0xf]
      %v2809 = vld [vmem:[%s2797 + $0x2c] sm:$0xf]
      %v2810 = vld [vmem:[%s2797 + $0x30] sm:$0xf]
      %v2811 = vld [vmem:[%s2797 + $0x34] sm:$0xf]
      %v2812 = vld [vmem:[%s2797 + $0x38] sm:$0xf]
      %v2813 = vld [vmem:[%s2797 + $0x3c] sm:$0xf]
      %v2830 = vunpack.c.l.b16 %v2781
      %v2831 = vunpack.c.l.b16 %v2782
      %v2832 = vunpack.c.l.b16 %v2783
      %v2833 = vunpack.c.l.b16 %v2784
      %v2834 = vunpack.c.l.b16 %v2785
      %v2835 = vunpack.c.l.b16 %v2786
      %v2836 = vunpack.c.l.b16 %v2787
      %v2837 = vunpack.c.l.b16 %v2788
      %v2838 = vunpack.c.l.b16 %v2789
      %v2839 = vunpack.c.l.b16 %v2790
      %v2840 = vunpack.c.l.b16 %v2791
      %v2841 = vunpack.c.l.b16 %v2792
      %v2842 = vunpack.c.l.b16 %v2793
      %v2843 = vunpack.c.l.b16 %v2794
      %v2844 = vunpack.c.l.b16 %v2795
      %v2845 = vunpack.c.l.b16 %v2796
      %v2846 = vpack.c.b16 %v2831, %v2830
      %v2847 = vpack.c.b16 %v2833, %v2832
      %v2848 = vpack.c.b16 %v2835, %v2834
      %v2849 = vpack.c.b16 %v2837, %v2836
      %v2850 = vpack.c.b16 %v2839, %v2838
      %v2851 = vpack.c.b16 %v2841, %v2840
      %v2852 = vpack.c.b16 %v2843, %v2842
      %v2853 = vpack.c.b16 %v2845, %v2844
      %v2878 = vunpack.c.l.b16 %v2798
      %v2879 = vunpack.c.l.b16 %v2799
      %v2880 = vunpack.c.l.b16 %v2800
      %v2881 = vunpack.c.l.b16 %v2801
      %v2882 = vunpack.c.l.b16 %v2802
      %v2883 = vunpack.c.l.b16 %v2803
      %v2884 = vunpack.c.l.b16 %v2804
      %v2885 = vunpack.c.l.b16 %v2805
      %v2886 = vunpack.c.l.b16 %v2806
      %v2887 = vunpack.c.l.b16 %v2807
      %v2888 = vunpack.c.l.b16 %v2808
      %v2889 = vunpack.c.l.b16 %v2809
      %v2890 = vunpack.c.l.b16 %v2810
      %v2891 = vunpack.c.l.b16 %v2811
      %v2892 = vunpack.c.l.b16 %v2812
      %v2893 = vunpack.c.l.b16 %v2813
      %v2894 = vpack.c.b16 %v2879, %v2878
      %v2895 = vpack.c.b16 %v2881, %v2880
      %v2896 = vpack.c.b16 %v2883, %v2882
      %v2897 = vpack.c.b16 %v2885, %v2884
      %v2898 = vpack.c.b16 %v2887, %v2886
      %v2899 = vpack.c.b16 %v2889, %v2888
      %v2900 = vpack.c.b16 %v2891, %v2890
      %v2901 = vpack.c.b16 %v2893, %v2892
      %2910 = vmatprep.subr.bf16.mxu0 0
      %2911 = vmatpush1.bf16.msra.mxu0 %v2894
      %2912 = vmatprep.subr.bf16.mxu0 0
      %2913 = vmatpush1.bf16.msra.mxu0 %v2895
      %2914 = vmatprep.subr.bf16.mxu0 0
      %2915 = vmatpush1.bf16.msra.mxu0 %v2896
      %2916 = vmatprep.subr.bf16.mxu0 0
      %2917 = vmatpush1.bf16.msra.mxu0 %v2897
      %2918 = vmatprep.subr.bf16.mxu0 0
      %2919 = vmatpush1.bf16.msra.mxu0 %v2898
      %2920 = vmatprep.subr.bf16.mxu0 0
      %2921 = vmatpush1.bf16.msra.mxu0 %v2899
      %2922 = vmatprep.subr.bf16.mxu0 0
      %2923 = vmatpush1.bf16.msra.mxu0 %v2900
      %2924 = vmatprep.subr.bf16.mxu0 0
      %2925 = vmatpush1.bf16.msra.mxu0 %v2901
      %2926 = vmatprep.subr.bf16.mxu0 0
      %2927 = vmatpush1.bf16.msra.mxu0 0
      %2928 = vmatprep.subr.bf16.mxu0 0
      %2929 = vmatpush1.bf16.msra.mxu0 0
      %2930 = vmatprep.subr.bf16.mxu0 0
      %2931 = vmatpush1.bf16.msra.mxu0 0
      %2932 = vmatprep.subr.bf16.mxu0 0
      %2933 = vmatpush1.bf16.msra.mxu0 0
      %2934 = vmatprep.subr.bf16.mxu0 0
      %2935 = vmatpush1.bf16.msra.mxu0 0
      %2936 = vmatprep.subr.bf16.mxu0 0
      %2937 = vmatpush1.bf16.msra.mxu0 0
      %2938 = vmatprep.subr.bf16.mxu0 0
      %2939 = vmatpush1.bf16.msra.mxu0 0
      %2940 = vmatprep.subr.bf16.mxu0 0
      %2941 = vmatpush1.bf16.msra.mxu0 0
      %2942 = vmatprep.mubr.bf16.mxu0 0
      %2943 = vmatmul.mubr.bf16.gmra.mrb[0].mxu0 %v2846
      %v2944 = vpop.f32.mrb[0].mxu0
      %v2945 = vadd.f32 0.0, %v2944
      %v2946 = vpop.f32.mrb[0].mxu0
      %v2947 = vpop.f32.mrb[0].mxu0
      %v2948 = vadd.f32 0.0, %v2947
      %v2949 = vpop.f32.mrb[0].mxu0
      %2950 = vmatprep.mubr.bf16.mxu0 0
      %2951 = vmatmul.mubr.bf16.gmra.mrb[0].mxu0 %v2847
      %v2952 = vpop.f32.mrb[0].mxu0
      %v2953 = vadd.f32 0.0, %v2952
      %v2954 = vpop.f32.mrb[0].mxu0
      %v2955 = vpop.f32.mrb[0].mxu0
      %v2956 = vadd.f32 0.0, %v2955
      %v2957 = vpop.f32.mrb[0].mxu0
      %2958 = vmatprep.mubr.bf16.mxu0 0
      %2959 = vmatmul.mubr.bf16.gmra.mrb[0].mxu0 %v2848
      %v2960 = vpop.f32.mrb[0].mxu0
      %v2961 = vadd.f32 0.0, %v2960
      %v2962 = vpop.f32.mrb[0].mxu0
      %v2963 = vpop.f32.mrb[0].mxu0
      %v2964 = vadd.f32 0.0, %v2963
      %v2965 = vpop.f32.mrb[0].mxu0
      %2966 = vmatprep.mubr.bf16.mxu0 0
      %2967 = vmatmul.mubr.bf16.gmra.mrb[0].mxu0 %v2849
      %v2968 = vpop.f32.mrb[0].mxu0
      %v2969 = vadd.f32 0.0, %v2968
      %v2970 = vpop.f32.mrb[0].mxu0
      %v2971 = vpop.f32.mrb[0].mxu0
      %v2972 = vadd.f32 0.0, %v2971
      %v2973 = vpop.f32.mrb[0].mxu0
      %2974 = vmatprep.mubr.bf16.mxu0 0
      %2975 = vmatmul.mubr.bf16.gmra.mrb[0].mxu0 %v2850
      %v2976 = vpop.f32.mrb[0].mxu0
      %v2977 = vadd.f32 0.0, %v2976
      %v2978 = vpop.f32.mrb[0].mxu0
      %v2979 = vpop.f32.mrb[0].mxu0
      %v2980 = vadd.f32 0.0, %v2979
      %v2981 = vpop.f32.mrb[0].mxu0
      %2982 = vmatprep.mubr.bf16.mxu0 0
      %2983 = vmatmul.mubr.bf16.gmra.mrb[0].mxu0 %v2851
      %v2984 = vpop.f32.mrb[0].mxu0
      %v2985 = vadd.f32 0.0, %v2984
      %v2986 = vpop.f32.mrb[0].mxu0
      %v2987 = vpop.f32.mrb[0].mxu0
      %v2988 = vadd.f32 0.0, %v2987
      %v2989 = vpop.f32.mrb[0].mxu0
      %2990 = vmatprep.mubr.bf16.mxu0 0
      %2991 = vmatmul.mubr.bf16.gmra.mrb[0].mxu0 %v2852
      %v2992 = vpop.f32.mrb[0].mxu0
      %v2993 = vadd.f32 0.0, %v2992
      %v2994 = vpop.f32.mrb[0].mxu0
      %v2995 = vpop.f32.mrb[0].mxu0
      %v2996 = vadd.f32 0.0, %v2995
      %v2997 = vpop.f32.mrb[0].mxu0
      %2998 = vmatprep.mubr.bf16.mxu0 0
      %2999 = vmatmul.mubr.bf16.gmra.mrb[0].mxu0 %v2853
      %v3000 = vpop.f32.mrb[0].mxu0
      %v3001 = vadd.f32 0.0, %v3000
      %v3002 = vpop.f32.mrb[0].mxu0
      %v3003 = vpop.f32.mrb[0].mxu0
      %v3004 = vadd.f32 0.0, %v3003
      %v3005 = vpop.f32.mrb[0].mxu0
      %3006 = vdwg.mxu0
      %v3007 = vadd.f32 %v2761, %v2945
      %v3008 = vadd.f32 %v2762, %v2948
      %v3009 = vadd.f32 %v2763, %v2953
      %v3010 = vadd.f32 %v2764, %v2956
      %v3011 = vadd.f32 %v2765, %v2961
      %v3012 = vadd.f32 %v2766, %v2964
      %v3013 = vadd.f32 %v2767, %v2969
      %v3014 = vadd.f32 %v2768, %v2972
      %v3015 = vadd.f32 %v2769, %v2977
      %v3016 = vadd.f32 %v2770, %v2980
      %v3017 = vadd.f32 %v2771, %v2985
      %v3018 = vadd.f32 %v2772, %v2988
      %v3019 = vadd.f32 %v2773, %v2993
      %v3020 = vadd.f32 %v2774, %v2996
      %v3021 = vadd.f32 %v2775, %v3001
      %v3022 = vadd.f32 %v2776, %v3004
      %v3023 = vld [vmem:[%s2780] sm:$0xf]
      %v3024 = vld [vmem:[%s2780 + $0x4] sm:$0xf]
      %v3025 = vld [vmem:[%s2780 + $0x8] sm:$0x1]
      %v3026 = vld [vmem:[%s2780 + $0xc] sm:$0xf]
      %v3027 = vld [vmem:[%s2780 + $0x10] sm:$0xf]
      %v3028 = vld [vmem:[%s2780 + $0x14] sm:$0x1]
      %v3029 = vld [vmem:[%s2780 + $0x18] sm:$0xf]
      %v3030 = vld [vmem:[%s2780 + $0x1c] sm:$0xf]
      %v3031 = vld [vmem:[%s2780 + $0x20] sm:$0x1]
      %v3032 = vld [vmem:[%s2780 + $0x24] sm:$0xf]
      %v3033 = vld [vmem:[%s2780 + $0x28] sm:$0xf]
      %v3034 = vld [vmem:[%s2780 + $0x2c] sm:$0x1]
      %v3035 = vld [vmem:[%s2780 + $0x30] sm:$0xf]
      %v3036 = vld [vmem:[%s2780 + $0x34] sm:$0xf]
      %v3037 = vld [vmem:[%s2780 + $0x38] sm:$0x1]
      %v3038 = vld [vmem:[%s2780 + $0x3c] sm:$0xf]
      %v3039 = vld [vmem:[%s2780 + $0x40] sm:$0xf]
      %v3040 = vld [vmem:[%s2780 + $0x44] sm:$0x1]
      %v3041 = vld [vmem:[%s2780 + $0x48] sm:$0xf]
      %v3042 = vld [vmem:[%s2780 + $0x4c] sm:$0xf]
      %v3043 = vld [vmem:[%s2780 + $0x50] sm:$0x1]
      %v3044 = vld [vmem:[%s2780 + $0x54] sm:$0xf]
      %v3045 = vld [vmem:[%s2780 + $0x58] sm:$0xf]
      %v3046 = vld [vmem:[%s2780 + $0x5c] sm:$0x1]
      %v3048 = vshrl.u32 %v3023, 16
      %v3050 = vrot.slane %v3048, 4
      %v3051 = vshll.u32 %v3023, 16
      %v3053 = vrot.slane %v3051, 5
      %v3054 = vor.u32 %v3050, %v3053
      %v3055 = vrot.slane %v3054, 4
      %v3057 = vshll.u32 %v3024, 16
      %v3059 = vrot.slane %v3057, 5
      %v3060 = vsel %vm934, %v3055, %v3059
      %v3061 = vshrl.u32 %v3024, 16
      %v3063 = vrot.slane %v3061, 4
      %v3064 = vor.u32 %v3063, %v3059
      %v3065 = vrot.slane %v3064, 4
      %v3067 = vshll.u32 %v3025, 16
      %v3069 = vrot.slane %v3067, 5
      %v3070 = vsel %vm934, %v3065, %v3069
      %v3072 = vshrl.u32 %v3026, 16
      %v3074 = vrot.slane %v3072, 4
      %v3075 = vshll.u32 %v3026, 16
      %v3077 = vrot.slane %v3075, 5
      %v3078 = vor.u32 %v3074, %v3077
      %v3079 = vrot.slane %v3078, 4
      %v3081 = vshll.u32 %v3027, 16
      %v3083 = vrot.slane %v3081, 5
      %v3084 = vsel %vm934, %v3079, %v3083
      %v3085 = vshrl.u32 %v3027, 16
      %v3087 = vrot.slane %v3085, 4
      %v3088 = vor.u32 %v3087, %v3083
      %v3089 = vrot.slane %v3088, 4
      %v3091 = vshll.u32 %v3028, 16
      %v3093 = vrot.slane %v3091, 5
      %v3094 = vsel %vm934, %v3089, %v3093
      %v3096 = vshrl.u32 %v3029, 16
      %v3098 = vrot.slane %v3096, 4
      %v3099 = vshll.u32 %v3029, 16
      %v3101 = vrot.slane %v3099, 5
      %v3102 = vor.u32 %v3098, %v3101
      %v3103 = vrot.slane %v3102, 4
      %v3105 = vshll.u32 %v3030, 16
      %v3107 = vrot.slane %v3105, 5
      %v3108 = vsel %vm934, %v3103, %v3107
      %v3109 = vshrl.u32 %v3030, 16
      %v3111 = vrot.slane %v3109, 4
      %v3112 = vor.u32 %v3111, %v3107
      %v3113 = vrot.slane %v3112, 4
      %v3115 = vshll.u32 %v3031, 16
      %v3117 = vrot.slane %v3115, 5
      %v3118 = vsel %vm934, %v3113, %v3117
      %v3120 = vshrl.u32 %v3032, 16
      %v3122 = vrot.slane %v3120, 4
      %v3123 = vshll.u32 %v3032, 16
      %v3125 = vrot.slane %v3123, 5
      %v3126 = vor.u32 %v3122, %v3125
      %v3127 = vrot.slane %v3126, 4
      %v3129 = vshll.u32 %v3033, 16
      %v3131 = vrot.slane %v3129, 5
      %v3132 = vsel %vm934, %v3127, %v3131
      %v3133 = vshrl.u32 %v3033, 16
      %v3135 = vrot.slane %v3133, 4
      %v3136 = vor.u32 %v3135, %v3131
      %v3137 = vrot.slane %v3136, 4
      %v3139 = vshll.u32 %v3034, 16
      %v3141 = vrot.slane %v3139, 5
      %v3142 = vsel %vm934, %v3137, %v3141
      %v3144 = vshrl.u32 %v3035, 16
      %v3146 = vrot.slane %v3144, 4
      %v3147 = vshll.u32 %v3035, 16
      %v3149 = vrot.slane %v3147, 5
      %v3150 = vor.u32 %v3146, %v3149
      %v3151 = vrot.slane %v3150, 4
      %v3153 = vshll.u32 %v3036, 16
      %v3155 = vrot.slane %v3153, 5
      %v3156 = vsel %vm934, %v3151, %v3155
      %v3157 = vshrl.u32 %v3036, 16
      %v3159 = vrot.slane %v3157, 4
      %v3160 = vor.u32 %v3159, %v3155
      %v3161 = vrot.slane %v3160, 4
      %v3163 = vshll.u32 %v3037, 16
      %v3165 = vrot.slane %v3163, 5
      %v3166 = vsel %vm934, %v3161, %v3165
      %v3168 = vshrl.u32 %v3038, 16
      %v3170 = vrot.slane %v3168, 4
      %v3171 = vshll.u32 %v3038, 16
      %v3173 = vrot.slane %v3171, 5
      %v3174 = vor.u32 %v3170, %v3173
      %v3175 = vrot.slane %v3174, 4
      %v3177 = vshll.u32 %v3039, 16
      %v3179 = vrot.slane %v3177, 5
      %v3180 = vsel %vm934, %v3175, %v3179
      %v3181 = vshrl.u32 %v3039, 16
      %v3183 = vrot.slane %v3181, 4
      %v3184 = vor.u32 %v3183, %v3179
      %v3185 = vrot.slane %v3184, 4
      %v3187 = vshll.u32 %v3040, 16
      %v3189 = vrot.slane %v3187, 5
      %v3190 = vsel %vm934, %v3185, %v3189
      %v3192 = vshrl.u32 %v3041, 16
      %v3194 = vrot.slane %v3192, 4
      %v3195 = vshll.u32 %v3041, 16
      %v3197 = vrot.slane %v3195, 5
      %v3198 = vor.u32 %v3194, %v3197
      %v3199 = vrot.slane %v3198, 4
      %v3201 = vshll.u32 %v3042, 16
      %v3203 = vrot.slane %v3201, 5
      %v3204 = vsel %vm934, %v3199, %v3203
      %v3205 = vshrl.u32 %v3042, 16
      %v3207 = vrot.slane %v3205, 4
      %v3208 = vor.u32 %v3207, %v3203
      %v3209 = vrot.slane %v3208, 4
      %v3211 = vshll.u32 %v3043, 16
      %v3213 = vrot.slane %v3211, 5
      %v3214 = vsel %vm934, %v3209, %v3213
      %v3216 = vshrl.u32 %v3044, 16
      %v3218 = vrot.slane %v3216, 4
      %v3219 = vshll.u32 %v3044, 16
      %v3221 = vrot.slane %v3219, 5
      %v3222 = vor.u32 %v3218, %v3221
      %v3223 = vrot.slane %v3222, 4
      %v3225 = vshll.u32 %v3045, 16
      %v3227 = vrot.slane %v3225, 5
      %v3228 = vsel %vm934, %v3223, %v3227
      %v3229 = vshrl.u32 %v3045, 16
      %v3231 = vrot.slane %v3229, 4
      %v3232 = vor.u32 %v3231, %v3227
      %v3233 = vrot.slane %v3232, 4
      %v3235 = vshll.u32 %v3046, 16
      %v3237 = vrot.slane %v3235, 5
      %v3238 = vsel %vm934, %v3233, %v3237
      %s3239 = scalar_lea.vmem %s1, 448
      %v3240 = vld [vmem:[%s3239] sm:$0xf]
      %v3241 = vld [vmem:[%s3239 + $0x4] sm:$0xf]
      %v3242 = vld [vmem:[%s3239 + $0x8] sm:$0xf]
      %v3243 = vld [vmem:[%s3239 + $0xc] sm:$0xf]
      %v3244 = vld [vmem:[%s3239 + $0x10] sm:$0xf]
      %v3245 = vld [vmem:[%s3239 + $0x14] sm:$0xf]
      %v3246 = vld [vmem:[%s3239 + $0x18] sm:$0xf]
      %v3247 = vld [vmem:[%s3239 + $0x1c] sm:$0xf]
      %v3248 = vld [vmem:[%s3239 + $0x20] sm:$0xf]
      %v3249 = vld [vmem:[%s3239 + $0x24] sm:$0xf]
      %v3250 = vld [vmem:[%s3239 + $0x28] sm:$0xf]
      %v3251 = vld [vmem:[%s3239 + $0x2c] sm:$0xf]
      %v3252 = vld [vmem:[%s3239 + $0x30] sm:$0xf]
      %v3253 = vld [vmem:[%s3239 + $0x34] sm:$0xf]
      %v3254 = vld [vmem:[%s3239 + $0x38] sm:$0xf]
      %v3255 = vld [vmem:[%s3239 + $0x3c] sm:$0xf]
      %v3256 = vunpack.c.l.b16 %v3060
      %v3257 = vunpack.c.l.b16 %v3070
      %v3258 = vunpack.c.l.b16 %v3084
      %v3259 = vunpack.c.l.b16 %v3094
      %v3260 = vunpack.c.l.b16 %v3108
      %v3261 = vunpack.c.l.b16 %v3118
      %v3262 = vunpack.c.l.b16 %v3132
      %v3263 = vunpack.c.l.b16 %v3142
      %v3264 = vunpack.c.l.b16 %v3156
      %v3265 = vunpack.c.l.b16 %v3166
      %v3266 = vunpack.c.l.b16 %v3180
      %v3267 = vunpack.c.l.b16 %v3190
      %v3268 = vunpack.c.l.b16 %v3204
      %v3269 = vunpack.c.l.b16 %v3214
      %v3270 = vunpack.c.l.b16 %v3228
      %v3271 = vunpack.c.l.b16 %v3238
      %v3272 = vpack.c.b16 %v3257, %v3256
      %v3273 = vpack.c.b16 %v3259, %v3258
      %v3274 = vpack.c.b16 %v3261, %v3260
      %v3275 = vpack.c.b16 %v3263, %v3262
      %v3276 = vpack.c.b16 %v3265, %v3264
      %v3277 = vpack.c.b16 %v3267, %v3266
      %v3278 = vpack.c.b16 %v3269, %v3268
      %v3279 = vpack.c.b16 %v3271, %v3270
      %v3304 = vunpack.c.l.b16 %v3240
      %v3305 = vunpack.c.l.b16 %v3241
      %v3306 = vunpack.c.l.b16 %v3242
      %v3307 = vunpack.c.l.b16 %v3243
      %v3308 = vunpack.c.l.b16 %v3244
      %v3309 = vunpack.c.l.b16 %v3245
      %v3310 = vunpack.c.l.b16 %v3246
      %v3311 = vunpack.c.l.b16 %v3247
      %v3312 = vunpack.c.l.b16 %v3248
      %v3313 = vunpack.c.l.b16 %v3249
      %v3314 = vunpack.c.l.b16 %v3250
      %v3315 = vunpack.c.l.b16 %v3251
      %v3316 = vunpack.c.l.b16 %v3252
      %v3317 = vunpack.c.l.b16 %v3253
      %v3318 = vunpack.c.l.b16 %v3254
      %v3319 = vunpack.c.l.b16 %v3255
      %v3320 = vpack.c.b16 %v3305, %v3304
      %v3321 = vpack.c.b16 %v3307, %v3306
      %v3322 = vpack.c.b16 %v3309, %v3308
      %v3323 = vpack.c.b16 %v3311, %v3310
      %v3324 = vpack.c.b16 %v3313, %v3312
      %v3325 = vpack.c.b16 %v3315, %v3314
      %v3326 = vpack.c.b16 %v3317, %v3316
      %v3327 = vpack.c.b16 %v3319, %v3318
      %3336 = vmatprep.subr.bf16.mxu0 0
      %3337 = vmatpush1.bf16.msra.mxu0 %v3320
      %3338 = vmatprep.subr.bf16.mxu0 0
      %3339 = vmatpush1.bf16.msra.mxu0 %v3321
      %3340 = vmatprep.subr.bf16.mxu0 0
      %3341 = vmatpush1.bf16.msra.mxu0 %v3322
      %3342 = vmatprep.subr.bf16.mxu0 0
      %3343 = vmatpush1.bf16.msra.mxu0 %v3323
      %3344 = vmatprep.subr.bf16.mxu0 0
      %3345 = vmatpush1.bf16.msra.mxu0 %v3324
      %3346 = vmatprep.subr.bf16.mxu0 0
      %3347 = vmatpush1.bf16.msra.mxu0 %v3325
      %3348 = vmatprep.subr.bf16.mxu0 0
      %3349 = vmatpush1.bf16.msra.mxu0 %v3326
      %3350 = vmatprep.subr.bf16.mxu0 0
      %3351 = vmatpush1.bf16.msra.mxu0 %v3327
      %3352 = vmatprep.subr.bf16.mxu0 0
      %3353 = vmatpush1.bf16.msra.mxu0 0
      %3354 = vmatprep.subr.bf16.mxu0 0
      %3355 = vmatpush1.bf16.msra.mxu0 0
      %3356 = vmatprep.subr.bf16.mxu0 0
      %3357 = vmatpush1.bf16.msra.mxu0 0
      %3358 = vmatprep.subr.bf16.mxu0 0
      %3359 = vmatpush1.bf16.msra.mxu0 0
      %3360 = vmatprep.subr.bf16.mxu0 0
      %3361 = vmatpush1.bf16.msra.mxu0 0
      %3362 = vmatprep.subr.bf16.mxu0 0
      %3363 = vmatpush1.bf16.msra.mxu0 0
      %3364 = vmatprep.subr.bf16.mxu0 0
      %3365 = vmatpush1.bf16.msra.mxu0 0
      %3366 = vmatprep.subr.bf16.mxu0 0
      %3367 = vmatpush1.bf16.msra.mxu0 0
      %3368 = vmatprep.mubr.bf16.mxu0 0
      %3369 = vmatmul.mubr.bf16.gmra.mrb[0].mxu0 %v3272
      %v3370 = vpop.f32.mrb[0].mxu0
      %v3371 = vadd.f32 0.0, %v3370
      %v3372 = vpop.f32.mrb[0].mxu0
      %v3373 = vpop.f32.mrb[0].mxu0
      %v3374 = vadd.f32 0.0, %v3373
      %v3375 = vpop.f32.mrb[0].mxu0
      %3376 = vmatprep.mubr.bf16.mxu0 0
      %3377 = vmatmul.mubr.bf16.gmra.mrb[0].mxu0 %v3273
      %v3378 = vpop.f32.mrb[0].mxu0
      %v3379 = vadd.f32 0.0, %v3378
      %v3380 = vpop.f32.mrb[0].mxu0
      %v3381 = vpop.f32.mrb[0].mxu0
      %v3382 = vadd.f32 0.0, %v3381
      %v3383 = vpop.f32.mrb[0].mxu0
      %3384 = vmatprep.mubr.bf16.mxu0 0
      %3385 = vmatmul.mubr.bf16.gmra.mrb[0].mxu0 %v3274
      %v3386 = vpop.f32.mrb[0].mxu0
      %v3387 = vadd.f32 0.0, %v3386
      %v3388 = vpop.f32.mrb[0].mxu0
      %v3389 = vpop.f32.mrb[0].mxu0
      %v3390 = vadd.f32 0.0, %v3389
      %v3391 = vpop.f32.mrb[0].mxu0
      %3392 = vmatprep.mubr.bf16.mxu0 0
      %3393 = vmatmul.mubr.bf16.gmra.mrb[0].mxu0 %v3275
      %v3394 = vpop.f32.mrb[0].mxu0
      %v3395 = vadd.f32 0.0, %v3394
      %v3396 = vpop.f32.mrb[0].mxu0
      %v3397 = vpop.f32.mrb[0].mxu0
      %v3398 = vadd.f32 0.0, %v3397
      %v3399 = vpop.f32.mrb[0].mxu0
      %3400 = vmatprep.mubr.bf16.mxu0 0
      %3401 = vmatmul.mubr.bf16.gmra.mrb[0].mxu0 %v3276
      %v3402 = vpop.f32.mrb[0].mxu0
      %v3403 = vadd.f32 0.0, %v3402
      %v3404 = vpop.f32.mrb[0].mxu0
      %v3405 = vpop.f32.mrb[0].mxu0
      %v3406 = vadd.f32 0.0, %v3405
      %v3407 = vpop.f32.mrb[0].mxu0
      %3408 = vmatprep.mubr.bf16.mxu0 0
      %3409 = vmatmul.mubr.bf16.gmra.mrb[0].mxu0 %v3277
      %v3410 = vpop.f32.mrb[0].mxu0
      %v3411 = vadd.f32 0.0, %v3410
      %v3412 = vpop.f32.mrb[0].mxu0
      %v3413 = vpop.f32.mrb[0].mxu0
      %v3414 = vadd.f32 0.0, %v3413
      %v3415 = vpop.f32.mrb[0].mxu0
      %3416 = vmatprep.mubr.bf16.mxu0 0
      %3417 = vmatmul.mubr.bf16.gmra.mrb[0].mxu0 %v3278
      %v3418 = vpop.f32.mrb[0].mxu0
      %v3419 = vadd.f32 0.0, %v3418
      %v3420 = vpop.f32.mrb[0].mxu0
      %v3421 = vpop.f32.mrb[0].mxu0
      %v3422 = vadd.f32 0.0, %v3421
      %v3423 = vpop.f32.mrb[0].mxu0
      %3424 = vmatprep.mubr.bf16.mxu0 0
      %3425 = vmatmul.mubr.bf16.gmra.mrb[0].mxu0 %v3279
      %v3426 = vpop.f32.mrb[0].mxu0
      %v3427 = vadd.f32 0.0, %v3426
      %v3428 = vpop.f32.mrb[0].mxu0
      %v3429 = vpop.f32.mrb[0].mxu0
      %v3430 = vadd.f32 0.0, %v3429
      %v3431 = vpop.f32.mrb[0].mxu0
      %3432 = vdwg.mxu0
      %v3433 = vadd.f32 %v3007, %v3371
      %v3434 = vadd.f32 %v3008, %v3374
      %v3435 = vadd.f32 %v3009, %v3379
      %v3436 = vadd.f32 %v3010, %v3382
      %v3437 = vadd.f32 %v3011, %v3387
      %v3438 = vadd.f32 %v3012, %v3390
      %v3439 = vadd.f32 %v3013, %v3395
      %v3440 = vadd.f32 %v3014, %v3398
      %v3441 = vadd.f32 %v3015, %v3403
      %v3442 = vadd.f32 %v3016, %v3406
      %v3443 = vadd.f32 %v3017, %v3411
      %v3444 = vadd.f32 %v3018, %v3414
      %v3445 = vadd.f32 %v3019, %v3419
      %v3446 = vadd.f32 %v3020, %v3422
      %v3447 = vadd.f32 %v3021, %v3427
      %v3448 = vadd.f32 %v3022, %v3430
      %v3449 = vld [vmem:[%s2780] sm:$0xe]
      %v3450 = vld [vmem:[%s2780 + $0xc] sm:$0xe]
      %v3451 = vld [vmem:[%s2780 + $0x18] sm:$0xe]
      %v3452 = vld [vmem:[%s2780 + $0x24] sm:$0xe]
      %v3453 = vld [vmem:[%s2780 + $0x30] sm:$0xe]
      %v3454 = vld [vmem:[%s2780 + $0x3c] sm:$0xe]
      %v3455 = vld [vmem:[%s2780 + $0x48] sm:$0xe]
      %v3456 = vld [vmem:[%s2780 + $0x54] sm:$0xe]
      %v3481 = vrot.slane %v3449, 5
      %v3482 = vrot.slane %v3481, 4
      %v3483 = vrot.slane %v3024, 5
      %v3484 = vsel %vm1540, %v3482, %v3483
      %v3485 = vrot.slane %v3483, 4
      %v3486 = vrot.slane %v3025, 5
      %v3487 = vsel %vm1540, %v3485, %v3486
      %v3488 = vrot.slane %v3450, 5
      %v3489 = vrot.slane %v3488, 4
      %v3490 = vrot.slane %v3027, 5
      %v3491 = vsel %vm1540, %v3489, %v3490
      %v3492 = vrot.slane %v3490, 4
      %v3493 = vrot.slane %v3028, 5
      %v3494 = vsel %vm1540, %v3492, %v3493
      %v3495 = vrot.slane %v3451, 5
      %v3496 = vrot.slane %v3495, 4
      %v3497 = vrot.slane %v3030, 5
      %v3498 = vsel %vm1540, %v3496, %v3497
      %v3499 = vrot.slane %v3497, 4
      %v3500 = vrot.slane %v3031, 5
      %v3501 = vsel %vm1540, %v3499, %v3500
      %v3502 = vrot.slane %v3452, 5
      %v3503 = vrot.slane %v3502, 4
      %v3504 = vrot.slane %v3033, 5
      %v3505 = vsel %vm1540, %v3503, %v3504
      %v3506 = vrot.slane %v3504, 4
      %v3507 = vrot.slane %v3034, 5
      %v3508 = vsel %vm1540, %v3506, %v3507
      %v3509 = vrot.slane %v3453, 5
      %v3510 = vrot.slane %v3509, 4
      %v3511 = vrot.slane %v3036, 5
      %v3512 = vsel %vm1540, %v3510, %v3511
      %v3513 = vrot.slane %v3511, 4
      %v3514 = vrot.slane %v3037, 5
      %v3515 = vsel %vm1540, %v3513, %v3514
      %v3516 = vrot.slane %v3454, 5
      %v3517 = vrot.slane %v3516, 4
      %v3518 = vrot.slane %v3039, 5
      %v3519 = vsel %vm1540, %v3517, %v3518
      %v3520 = vrot.slane %v3518, 4
      %v3521 = vrot.slane %v3040, 5
      %v3522 = vsel %vm1540, %v3520, %v3521
      %v3523 = vrot.slane %v3455, 5
      %v3524 = vrot.slane %v3523, 4
      %v3525 = vrot.slane %v3042, 5
      %v3526 = vsel %vm1540, %v3524, %v3525
      %v3527 = vrot.slane %v3525, 4
      %v3528 = vrot.slane %v3043, 5
      %v3529 = vsel %vm1540, %v3527, %v3528
      %v3530 = vrot.slane %v3456, 5
      %v3531 = vrot.slane %v3530, 4
      %v3532 = vrot.slane %v3045, 5
      %v3533 = vsel %vm1540, %v3531, %v3532
      %v3534 = vrot.slane %v3532, 4
      %v3535 = vrot.slane %v3046, 5
      %v3536 = vsel %vm1540, %v3534, %v3535
      %s3537 = scalar_lea.vmem %s1, 512
      %v3538 = vld [vmem:[%s3537] sm:$0xf]
      %v3539 = vld [vmem:[%s3537 + $0x4] sm:$0xf]
      %v3540 = vld [vmem:[%s3537 + $0x8] sm:$0xf]
      %v3541 = vld [vmem:[%s3537 + $0xc] sm:$0xf]
      %v3542 = vld [vmem:[%s3537 + $0x10] sm:$0xf]
      %v3543 = vld [vmem:[%s3537 + $0x14] sm:$0xf]
      %v3544 = vld [vmem:[%s3537 + $0x18] sm:$0xf]
      %v3545 = vld [vmem:[%s3537 + $0x1c] sm:$0xf]
      %v3546 = vld [vmem:[%s3537 + $0x20] sm:$0xf]
      %v3547 = vld [vmem:[%s3537 + $0x24] sm:$0xf]
      %v3548 = vld [vmem:[%s3537 + $0x28] sm:$0xf]
      %v3549 = vld [vmem:[%s3537 + $0x2c] sm:$0xf]
      %v3550 = vld [vmem:[%s3537 + $0x30] sm:$0xf]
      %v3551 = vld [vmem:[%s3537 + $0x34] sm:$0xf]
      %v3552 = vld [vmem:[%s3537 + $0x38] sm:$0xf]
      %v3553 = vld [vmem:[%s3537 + $0x3c] sm:$0xf]
      %v3554 = vunpack.c.l.b16 %v3484
      %v3555 = vunpack.c.l.b16 %v3487
      %v3556 = vunpack.c.l.b16 %v3491
      %v3557 = vunpack.c.l.b16 %v3494
      %v3558 = vunpack.c.l.b16 %v3498
      %v3559 = vunpack.c.l.b16 %v3501
      %v3560 = vunpack.c.l.b16 %v3505
      %v3561 = vunpack.c.l.b16 %v3508
      %v3562 = vunpack.c.l.b16 %v3512
      %v3563 = vunpack.c.l.b16 %v3515
      %v3564 = vunpack.c.l.b16 %v3519
      %v3565 = vunpack.c.l.b16 %v3522
      %v3566 = vunpack.c.l.b16 %v3526
      %v3567 = vunpack.c.l.b16 %v3529
      %v3568 = vunpack.c.l.b16 %v3533
      %v3569 = vunpack.c.l.b16 %v3536
      %v3570 = vpack.c.b16 %v3555, %v3554
      %v3571 = vpack.c.b16 %v3557, %v3556
      %v3572 = vpack.c.b16 %v3559, %v3558
      %v3573 = vpack.c.b16 %v3561, %v3560
      %v3574 = vpack.c.b16 %v3563, %v3562
      %v3575 = vpack.c.b16 %v3565, %v3564
      %v3576 = vpack.c.b16 %v3567, %v3566
      %v3577 = vpack.c.b16 %v3569, %v3568
      %v3602 = vunpack.c.l.b16 %v3538
      %v3603 = vunpack.c.l.b16 %v3539
      %v3604 = vunpack.c.l.b16 %v3540
      %v3605 = vunpack.c.l.b16 %v3541
      %v3606 = vunpack.c.l.b16 %v3542
      %v3607 = vunpack.c.l.b16 %v3543
      %v3608 = vunpack.c.l.b16 %v3544
      %v3609 = vunpack.c.l.b16 %v3545
      %v3610 = vunpack.c.l.b16 %v3546
      %v3611 = vunpack.c.l.b16 %v3547
      %v3612 = vunpack.c.l.b16 %v3548
      %v3613 = vunpack.c.l.b16 %v3549
      %v3614 = vunpack.c.l.b16 %v3550
      %v3615 = vunpack.c.l.b16 %v3551
      %v3616 = vunpack.c.l.b16 %v3552
      %v3617 = vunpack.c.l.b16 %v3553
      %v3618 = vpack.c.b16 %v3603, %v3602
      %v3619 = vpack.c.b16 %v3605, %v3604
      %v3620 = vpack.c.b16 %v3607, %v3606
      %v3621 = vpack.c.b16 %v3609, %v3608
      %v3622 = vpack.c.b16 %v3611, %v3610
      %v3623 = vpack.c.b16 %v3613, %v3612
      %v3624 = vpack.c.b16 %v3615, %v3614
      %v3625 = vpack.c.b16 %v3617, %v3616
      %3634 = vmatprep.subr.bf16.mxu0 0
      %3635 = vmatpush1.bf16.msra.mxu0 %v3618
      %3636 = vmatprep.subr.bf16.mxu0 0
      %3637 = vmatpush1.bf16.msra.mxu0 %v3619
      %3638 = vmatprep.subr.bf16.mxu0 0
      %3639 = vmatpush1.bf16.msra.mxu0 %v3620
      %3640 = vmatprep.subr.bf16.mxu0 0
      %3641 = vmatpush1.bf16.msra.mxu0 %v3621
      %3642 = vmatprep.subr.bf16.mxu0 0
      %3643 = vmatpush1.bf16.msra.mxu0 %v3622
      %3644 = vmatprep.subr.bf16.mxu0 0
      %3645 = vmatpush1.bf16.msra.mxu0 %v3623
      %3646 = vmatprep.subr.bf16.mxu0 0
      %3647 = vmatpush1.bf16.msra.mxu0 %v3624
      %3648 = vmatprep.subr.bf16.mxu0 0
      %3649 = vmatpush1.bf16.msra.mxu0 %v3625
      %3650 = vmatprep.subr.bf16.mxu0 0
      %3651 = vmatpush1.bf16.msra.mxu0 0
      %3652 = vmatprep.subr.bf16.mxu0 0
      %3653 = vmatpush1.bf16.msra.mxu0 0
      %3654 = vmatprep.subr.bf16.mxu0 0
      %3655 = vmatpush1.bf16.msra.mxu0 0
      %3656 = vmatprep.subr.bf16.mxu0 0
      %3657 = vmatpush1.bf16.msra.mxu0 0
      %3658 = vmatprep.subr.bf16.mxu0 0
      %3659 = vmatpush1.bf16.msra.mxu0 0
      %3660 = vmatprep.subr.bf16.mxu0 0
      %3661 = vmatpush1.bf16.msra.mxu0 0
      %3662 = vmatprep.subr.bf16.mxu0 0
      %3663 = vmatpush1.bf16.msra.mxu0 0
      %3664 = vmatprep.subr.bf16.mxu0 0
      %3665 = vmatpush1.bf16.msra.mxu0 0
      %3666 = vmatprep.mubr.bf16.mxu0 0
      %3667 = vmatmul.mubr.bf16.gmra.mrb[0].mxu0 %v3570
      %v3668 = vpop.f32.mrb[0].mxu0
      %v3669 = vadd.f32 0.0, %v3668
      %v3670 = vpop.f32.mrb[0].mxu0
      %v3671 = vpop.f32.mrb[0].mxu0
      %v3672 = vadd.f32 0.0, %v3671
      %v3673 = vpop.f32.mrb[0].mxu0
      %3674 = vmatprep.mubr.bf16.mxu0 0
      %3675 = vmatmul.mubr.bf16.gmra.mrb[0].mxu0 %v3571
      %v3676 = vpop.f32.mrb[0].mxu0
      %v3677 = vadd.f32 0.0, %v3676
      %v3678 = vpop.f32.mrb[0].mxu0
      %v3679 = vpop.f32.mrb[0].mxu0
      %v3680 = vadd.f32 0.0, %v3679
      %v3681 = vpop.f32.mrb[0].mxu0
      %3682 = vmatprep.mubr.bf16.mxu0 0
      %3683 = vmatmul.mubr.bf16.gmra.mrb[0].mxu0 %v3572
      %v3684 = vpop.f32.mrb[0].mxu0
      %v3685 = vadd.f32 0.0, %v3684
      %v3686 = vpop.f32.mrb[0].mxu0
      %v3687 = vpop.f32.mrb[0].mxu0
      %v3688 = vadd.f32 0.0, %v3687
      %v3689 = vpop.f32.mrb[0].mxu0
      %3690 = vmatprep.mubr.bf16.mxu0 0
      %3691 = vmatmul.mubr.bf16.gmra.mrb[0].mxu0 %v3573
      %v3692 = vpop.f32.mrb[0].mxu0
      %v3693 = vadd.f32 0.0, %v3692
      %v3694 = vpop.f32.mrb[0].mxu0
      %v3695 = vpop.f32.mrb[0].mxu0
      %v3696 = vadd.f32 0.0, %v3695
      %v3697 = vpop.f32.mrb[0].mxu0
      %3698 = vmatprep.mubr.bf16.mxu0 0
      %3699 = vmatmul.mubr.bf16.gmra.mrb[0].mxu0 %v3574
      %v3700 = vpop.f32.mrb[0].mxu0
      %v3701 = vadd.f32 0.0, %v3700
      %v3702 = vpop.f32.mrb[0].mxu0
      %v3703 = vpop.f32.mrb[0].mxu0
      %v3704 = vadd.f32 0.0, %v3703
      %v3705 = vpop.f32.mrb[0].mxu0
      %3706 = vmatprep.mubr.bf16.mxu0 0
      %3707 = vmatmul.mubr.bf16.gmra.mrb[0].mxu0 %v3575
      %v3708 = vpop.f32.mrb[0].mxu0
      %v3709 = vadd.f32 0.0, %v3708
      %v3710 = vpop.f32.mrb[0].mxu0
      %v3711 = vpop.f32.mrb[0].mxu0
      %v3712 = vadd.f32 0.0, %v3711
      %v3713 = vpop.f32.mrb[0].mxu0
      %3714 = vmatprep.mubr.bf16.mxu0 0
      %3715 = vmatmul.mubr.bf16.gmra.mrb[0].mxu0 %v3576
      %v3716 = vpop.f32.mrb[0].mxu0
      %v3717 = vadd.f32 0.0, %v3716
      %v3718 = vpop.f32.mrb[0].mxu0
      %v3719 = vpop.f32.mrb[0].mxu0
      %v3720 = vadd.f32 0.0, %v3719
      %v3721 = vpop.f32.mrb[0].mxu0
      %3722 = vmatprep.mubr.bf16.mxu0 0
      %3723 = vmatmul.mubr.bf16.gmra.mrb[0].mxu0 %v3577
      %v3724 = vpop.f32.mrb[0].mxu0
      %v3725 = vadd.f32 0.0, %v3724
      %v3726 = vpop.f32.mrb[0].mxu0
      %v3727 = vpop.f32.mrb[0].mxu0
      %v3728 = vadd.f32 0.0, %v3727
      %v3729 = vpop.f32.mrb[0].mxu0
      %3730 = vdwg.mxu0
      %v3731 = vadd.f32 %v3433, %v3669
      %v3732 = vadd.f32 %v3434, %v3672
      %v3733 = vadd.f32 %v3435, %v3677
      %v3734 = vadd.f32 %v3436, %v3680
      %v3735 = vadd.f32 %v3437, %v3685
      %v3736 = vadd.f32 %v3438, %v3688
      %v3737 = vadd.f32 %v3439, %v3693
      %v3738 = vadd.f32 %v3440, %v3696
      %v3739 = vadd.f32 %v3441, %v3701
      %v3740 = vadd.f32 %v3442, %v3704
      %v3741 = vadd.f32 %v3443, %v3709
      %v3742 = vadd.f32 %v3444, %v3712
      %v3743 = vadd.f32 %v3445, %v3717
      %v3744 = vadd.f32 %v3446, %v3720
      %v3745 = vadd.f32 %v3447, %v3725
      %v3746 = vadd.f32 %v3448, %v3728
      %v3747 = vpack.c.bf16 %v3732, %v3731
      %v3748 = vpack.c.bf16 %v3734, %v3733
      %v3749 = vpack.c.bf16 %v3736, %v3735
      %v3750 = vpack.c.bf16 %v3738, %v3737
      %v3751 = vpack.c.bf16 %v3740, %v3739
      %v3752 = vpack.c.bf16 %v3742, %v3741
      %v3753 = vpack.c.bf16 %v3744, %v3743
      %v3754 = vpack.c.bf16 %v3746, %v3745
      %v3763 = vunpack.c.l.b16 %v3747
      %v3764 = vunpack.c.h.b16 %v3747
      %v3765 = vunpack.c.l.b16 %v3748
      %v3766 = vunpack.c.h.b16 %v3748
      %v3767 = vunpack.c.l.b16 %v3749
      %v3768 = vunpack.c.h.b16 %v3749
      %v3769 = vunpack.c.l.b16 %v3750
      %v3770 = vunpack.c.h.b16 %v3750
      %v3771 = vunpack.c.l.b16 %v3751
      %v3772 = vunpack.c.h.b16 %v3751
      %v3773 = vunpack.c.l.b16 %v3752
      %v3774 = vunpack.c.h.b16 %v3752
      %v3775 = vunpack.c.l.b16 %v3753
      %v3776 = vunpack.c.h.b16 %v3753
      %v3777 = vunpack.c.l.b16 %v3754
      %v3778 = vunpack.c.h.b16 %v3754
      %v3779 = vpack.c.b16 %v3763, %v3763
      %v3780 = vpack.c.b16 %v3764, %v3764
      %v3781 = vpack.c.b16 %v3765, %v3765
      %v3782 = vpack.c.b16 %v3766, %v3766
      %v3783 = vpack.c.b16 %v3767, %v3767
      %v3784 = vpack.c.b16 %v3768, %v3768
      %v3785 = vpack.c.b16 %v3769, %v3769
      %v3786 = vpack.c.b16 %v3770, %v3770
      %v3787 = vpack.c.b16 %v3771, %v3771
      %v3788 = vpack.c.b16 %v3772, %v3772
      %v3789 = vpack.c.b16 %v3773, %v3773
      %v3790 = vpack.c.b16 %v3774, %v3774
      %v3791 = vpack.c.b16 %v3775, %v3775
      %v3792 = vpack.c.b16 %v3776, %v3776
      %v3793 = vpack.c.b16 %v3777, %v3777
      %v3794 = vpack.c.b16 %v3778, %v3778
      %3811 = vst [vmem:[%s244] sm:$0xf] %v3779
      %3812 = vst [vmem:[%s244 + $0x4] sm:$0xf] %v3780
      %3813 = vst [vmem:[%s244 + $0x8] sm:$0xf] %v3781
      %3814 = vst [vmem:[%s244 + $0xc] sm:$0xf] %v3782
      %3815 = vst [vmem:[%s244 + $0x10] sm:$0xf] %v3783
      %3816 = vst [vmem:[%s244 + $0x14] sm:$0xf] %v3784
      %3817 = vst [vmem:[%s244 + $0x18] sm:$0xf] %v3785
      %3818 = vst [vmem:[%s244 + $0x1c] sm:$0xf] %v3786
      %3819 = vst [vmem:[%s244 + $0x20] sm:$0xf] %v3787
      %3820 = vst [vmem:[%s244 + $0x24] sm:$0xf] %v3788
      %3821 = vst [vmem:[%s244 + $0x28] sm:$0xf] %v3789
      %3822 = vst [vmem:[%s244 + $0x2c] sm:$0xf] %v3790
      %3823 = vst [vmem:[%s244 + $0x30] sm:$0xf] %v3791
      %3824 = vst [vmem:[%s244 + $0x34] sm:$0xf] %v3792
      %3825 = vst [vmem:[%s244 + $0x38] sm:$0xf] %v3793
      %3826 = vst [vmem:[%s244 + $0x3c] sm:$0xf] %v3794
      %v3827 = vadd.f32 %v3731, %v3732
      %v3828 = vadd.f32 %v3827, %v3733
      %v3829 = vadd.f32 %v3828, %v3734
      %v3830 = vadd.f32 %v3829, %v3735
      %v3831 = vadd.f32 %v3830, %v3736
      %v3832 = vadd.f32 %v3831, %v3737
      %v3833 = vadd.f32 %v3832, %v3738
      %v3834 = vadd.f32 %v3833, %v3739
      %v3835 = vadd.f32 %v3834, %v3740
      %v3836 = vadd.f32 %v3835, %v3741
      %v3837 = vadd.f32 %v3836, %v3742
      %v3838 = vadd.f32 %v3837, %v3743
      %v3839 = vadd.f32 %v3838, %v3744
      %v3840 = vadd.f32 %v3839, %v3745
      %v3841 = vadd.f32 %v3840, %v3746
      %v3842 = vrot.slane %v3841, 4
      %v3843 = vadd.f32 %v3841, %v3842
      %v3844 = vrot.slane %v3843, 2
      %v3845 = vadd.f32 %v3843, %v3844
      %v3846 = vrot.slane %v3845, 1
      %v3847 = vadd.f32 %v3845, %v3846
      %3848 = vst [vmem:[%s252] sm:$0x1] %v3847
      %v3849 = vmul.f32 %v3731, %v3731
      %v3850 = vmul.f32 %v3732, %v3732
      %v3851 = vmul.f32 %v3733, %v3733
      %v3852 = vmul.f32 %v3734, %v3734
      %v3853 = vmul.f32 %v3735, %v3735
      %v3854 = vmul.f32 %v3736, %v3736
      %v3855 = vmul.f32 %v3737, %v3737
      %v3856 = vmul.f32 %v3738, %v3738
      %v3857 = vmul.f32 %v3739, %v3739
      %v3858 = vmul.f32 %v3740, %v3740
      %v3859 = vmul.f32 %v3741, %v3741
      %v3860 = vmul.f32 %v3742, %v3742
      %v3861 = vmul.f32 %v3743, %v3743
      %v3862 = vmul.f32 %v3744, %v3744
      %v3863 = vmul.f32 %v3745, %v3745
      %v3864 = vmul.f32 %v3746, %v3746
      %v3865 = vadd.f32 %v3849, %v3850
      %v3866 = vadd.f32 %v3865, %v3851
      %v3867 = vadd.f32 %v3866, %v3852
      %v3868 = vadd.f32 %v3867, %v3853
      %v3869 = vadd.f32 %v3868, %v3854
      %v3870 = vadd.f32 %v3869, %v3855
      %v3871 = vadd.f32 %v3870, %v3856
      %v3872 = vadd.f32 %v3871, %v3857
      %v3873 = vadd.f32 %v3872, %v3858
      %v3874 = vadd.f32 %v3873, %v3859
      %v3875 = vadd.f32 %v3874, %v3860
      %v3876 = vadd.f32 %v3875, %v3861
      %v3877 = vadd.f32 %v3876, %v3862
      %v3878 = vadd.f32 %v3877, %v3863
      %v3879 = vadd.f32 %v3878, %v3864
      %v3880 = vrot.slane %v3879, 4
      %v3881 = vadd.f32 %v3879, %v3880
      %v3882 = vrot.slane %v3881, 2
      %v3883 = vadd.f32 %v3881, %v3882
      %v3884 = vrot.slane %v3883, 1
      %v3885 = vadd.f32 %v3883, %v3884
      %3886 = vst [vmem:[%s259] sm:$0x1] %v3885
      %s3887 = smul.u32 8, %s21
      %p3888 = scmp.lt.s32.totalorder %s20, 1
      %s3889 = scalar_select %p3888, %s20, 1
      %p3890 = scmp.lt.s32.totalorder %s3887, 15
      %s3891 = scalar_select %p3890, %s3887, 15
      %s3892 = smul.addr %s3891, 2
      %s3893 = smul.addr %s3889, 32
      %s3894 = sadd.s32 %s3892, %s3893
      %s3895 = smul.addr %s3894, 4
      %s3896 = scalar_lea.vmem %s2, %s3895
      %p3897 = scmp.lt.s32.totalorder %s20, 1
      %s3898 = scalar_select %p3897, %s20, 1
      %p3899 = scmp.lt.s32.totalorder %s21, 1
      %s3900 = scalar_select %p3899, %s21, 1
      %s3901 = smul.addr %s3898, 2
      %s3902 = sadd.s32 %s3900, %s3901
      %s3903 = scalar_lea.vmem %s3, %s3902
      %p3904 = scmp.lt.s32.totalorder %s20, 1
      %s3905 = scalar_select %p3904, %s20, 1
      %p3906 = scmp.lt.s32.totalorder %s21, 1
      %s3907 = scalar_select %p3906, %s21, 1
      %s3908 = smul.addr %s3905, 2
      %s3909 = sadd.s32 %s3907, %s3908
      %s3910 = scalar_lea.vmem %s4, %s3909
      // Predicated region
      $region33: #{resblock_forward.3} parent=27 // pred_check
        %p3911 = pneg %p95
      $region34: #{resblock_forward.3} parent=27 // pred_check_branch
        %3913 = sbr.rel (%p3911) target = $region36
      $region35: #{resblock_forward.3} parent=27 // pred_region
        %s3914 = smul.u32 8, %s21
      $region36: #{resblock_forward.3} parent=27 // pred_fallthru
        _
      // Predicated region
      $region37: #{resblock_forward.3} parent=27 // pred_check
        %p3915 = pneg %p123
      $region38: #{resblock_forward.3} parent=27 // pred_check_branch
        %3917 = sbr.rel (%p3915) target = $region40
      $region39: #{resblock_forward.3} parent=27 // pred_region
        _
      $region40: #{resblock_forward.3} parent=27 // pred_fallthru
        _
      // Predicated region
      $region41: #{resblock_forward.3} parent=27 // pred_check
        %p3918 = pneg %p151
      $region42: #{resblock_forward.3} parent=27 // pred_check_branch
        %3920 = sbr.rel (%p3918) target = $region44
      $region43: #{resblock_forward.3} parent=27 // pred_region
        _
      $region44: #{resblock_forward.3} parent=27 // pred_fallthru
        _
    $region28: #{resblock_forward.3} parent=5 // pred_fallthru
      _
    %p3921 = scmp.le.s32.totalorder 2, %s11
    // Predicated region
    $region45: #{resblock_forward.3} parent=5 // pred_check
      %p3922 = pneg %p3921
    $region46: #{resblock_forward.3} parent=5 // pred_check_branch
      %3924 = sbr.rel (%p3922) target = $region48
    $region47: #{resblock_forward.3} parent=5 // pred_region
      %s3925 = ssub.s32 %s11, 2
      // Predicated region
      $region49: #{resblock_forward.3} parent=47 // pred_check
        %p3926 = pneg %p101
      $region50: #{resblock_forward.3} parent=47 // pred_check_branch
        %3928 = sbr.rel (%p3926) target = $region52
      $region51: #{resblock_forward.3} parent=47 // pred_region
        %s3929 = smul.u32 8, %s23
        %p3930 = scmp.lt.s32.totalorder %s22, 1
        %s3931 = scalar_select %p3930, %s22, 1
        %p3932 = scmp.lt.s32.totalorder %s3929, 15
        %s3933 = scalar_select %p3932, %s3929, 15
        %s3934 = smul.addr %s3933, 2
        %s3935 = smul.addr %s3931, 32
        %s3936 = sadd.s32 %s3934, %s3935
        %s3937 = smul.addr %s3936, 4
        %s3938 = scalar_lea.vmem %s2, %s3937
      $region52: #{resblock_forward.3} parent=47 // pred_fallthru
        _
      // Predicated region
      $region53: #{resblock_forward.3} parent=47 // pred_check
        %p3939 = pneg %p129
      $region54: #{resblock_forward.3} parent=47 // pred_check_branch
        %3941 = sbr.rel (%p3939) target = $region56
      $region55: #{resblock_forward.3} parent=47 // pred_region
        %p3942 = scmp.lt.s32.totalorder %s22, 1
        %s3943 = scalar_select %p3942, %s22, 1
        %p3944 = scmp.lt.s32.totalorder %s23, 1
        %s3945 = scalar_select %p3944, %s23, 1
        %s3946 = smul.addr %s3943, 2
        %s3947 = sadd.s32 %s3945, %s3946
        %s3948 = scalar_lea.vmem %s3, %s3947
      $region56: #{resblock_forward.3} parent=47 // pred_fallthru
        _
      // Predicated region
      $region57: #{resblock_forward.3} parent=47 // pred_check
        %p3949 = pneg %p157
      $region58: #{resblock_forward.3} parent=47 // pred_check_branch
        %3951 = sbr.rel (%p3949) target = $region60
      $region59: #{resblock_forward.3} parent=47 // pred_region
        %p3952 = scmp.lt.s32.totalorder %s22, 1
        %s3953 = scalar_select %p3952, %s22, 1
        %p3954 = scmp.lt.s32.totalorder %s23, 1
        %s3955 = scalar_select %p3954, %s23, 1
        %s3956 = smul.addr %s3953, 2
        %s3957 = sadd.s32 %s3955, %s3956
        %s3958 = scalar_lea.vmem %s4, %s3957
      $region60: #{resblock_forward.3} parent=47 // pred_fallthru
        _
    $region48: #{resblock_forward.3} parent=5 // pred_fallthru
      _
  $region6: #{resblock_forward.3} parent=0 // loop_footer
    %s15 = sadd.s32 1, %s11
  $region7: #{resblock_forward.3} parent=0 // loop_footer_branch
    %10 = sbr.rel target = $region3
  $region8: #{resblock_forward.3} parent=0 // loop_exit
    _

// kernel: resblock_forward.4
$region0: #{resblock_forward.4}
  #allocation0 [shape = 'u32[]', space=smem, size = 0x4, offset = 0x4, fixed_abs, tag = 'smem constant byte address 0x4 - core index']
  #allocation1 [shape = 'u32[144,128]{1,0:T(1,128)}', space=vmem, size = 0x12000, scoped, tag = 'internal scratch']
  #allocation2 [shape = 'bf16[18,18,128]{2,1,0:T(8,128)(2,1)}', space=vmem, size = 0x1b000, scoped, tag = 'scratch operand']
  %s0 = inlined_call_operand.vmem [shape: bf16[2,16,16,128], index: 0, kind: input, shape index: {}]
  %s1 = inlined_call_operand.vmem [shape: f32[1,128], index: 1, kind: input, shape index: {}]
  %s2 = inlined_call_operand.vmem [shape: f32[1,128], index: 2, kind: input, shape index: {}]
  %s3 = inlined_call_operand.vmem [shape: bf16[9,128,128], index: 3, kind: input, shape index: {}]
  %s4 = inlined_call_operand.vmem [shape: bf16[2,16,16,128], index: 4, kind: output, shape index: {0}]
  %s5 = inlined_call_operand.vmem [shape: f32[2,2,1,128], index: 5, kind: output, shape index: {1}]
  %s6 = inlined_call_operand.vmem [shape: f32[2,2,1,128], index: 6, kind: output, shape index: {2}]
  %7 = xla_tuple %s4, %s5, %s6
  %s8 = sld [smem:[#allocation0]]
  $region69: #{resblock_forward.4} parent=0
    _
  %s10 = ssub.s32 1, %s8
  %s11 = scalar_select 0, %s10, %s8
  loop: start=0, step=1, limit=6
  $region2: #{resblock_forward.4} parent=0 // loop_pre_header
    _
  $region3: #{resblock_forward.4} parent=0 // loop_header
    %s13 = sphi 0, %s17
    %p14 = scmp.ge.s32.totalorder %s13, 6
    %s20 = sphi 0, %s32
    %s21 = sphi 0, %s28
    %s22 = sphi 0, %s20
    %s23 = sphi 0, %s21
    %s24 = sphi 0, %s22
    %s25 = sphi 0, %s23
    %s35 = sphi 0, %s37
    %s38 = sphi 0, %s35
    %s39 = sphi 0, %s38
    %s55 = sphi 0, %s39
    %s59 = sphi 0, %s59
    %s61 = sphi 0, %s59
    %s62 = sphi 0, %s61
    %s76 = sphi 0, %s62
    %s80 = sphi 0, %s80
    %s82 = sphi 0, %s80
    %s83 = sphi 0, %s82
    %s97 = sphi 0, %s83
    %s101 = sphi 0, %s101
    %s103 = sphi 0, %s101
    %s104 = sphi 0, %s103
    %s118 = sphi 0, %s104
    %s126 = sphi 0, %s128
    %s129 = sphi 0, %s126
    %s130 = sphi 0, %s129
    %s146 = sphi 0, %s130
    %s154 = sphi 0, %s156
    %s157 = sphi 0, %s154
    %s158 = sphi 0, %s157
    %s174 = sphi 0, %s158
    %s182 = sphi 0, %s184
    %s185 = sphi 0, %s182
    %s186 = sphi 0, %s185
    %s202 = sphi 0, %s186
  $region4: #{resblock_forward.4} parent=0 // loop_header_branch
    %16 = sbr.rel (%p14) target = $region8
  $region5: #{resblock_forward.4} parent=0 // loop_body
    %s18 = ssub.s32 %s13, 1
    %s19 = ssub.s32 %s13, 2
    %s26 = sadd.s32 1, %s21
    %p27 = scmp.ge.s32.totalorder %s26, 2
    %s28 = scalar_select %p27, 0, %s26
    %s29 = sadd.s32 1, %s20
    %s30 = scalar_select %p27, %s29, %s20
    %p31 = scmp.ge.s32.totalorder %s30, 2
    %s32 = scalar_select %p31, 0, %s30
    %s33 = ssub.s32 %s20, %s32
    %p34 = scmp.eq.s32.totalorder %s33, 0
    %s36 = sadd.s32 %s35, 1
    %s37 = scalar_select %p34, %s35, %s36
    %p40 = pneg %p34
    %p41 = scmp.eq.s32.totalorder %s13, 3
    %p42 = por %p40, %p41
    %p43 = scmp.ne.s32.totalorder %s35, %s38
    %p44 = scmp.eq.s32.totalorder %s13, 0
    %p45 = por %p43, %p44
    %p46 = scmp.ne.s32.totalorder %s35, %s38
    %p47 = scmp.eq.s32.totalorder %s18, 3
    %p48 = por %p46, %p47
    %p49 = scmp.ne.s32.totalorder %s38, %s39
    %p50 = scmp.eq.s32.totalorder %s18, 0
    %p51 = por %p49, %p50
    %p52 = scmp.ne.s32.totalorder %s38, %s39
    %p53 = scmp.eq.s32.totalorder %s19, 3
    %p54 = por %p52, %p53
    %p56 = scmp.ne.s32.totalorder %s39, %s55
    %p57 = scmp.eq.s32.totalorder %s19, 0
    %p58 = por %p56, %p57
    %s60 = sadd.s32 %s59, 1
    %p63 = scmp.eq.s32.totalorder %s13, 3
    %p64 = scmp.ne.s32.totalorder %s59, %s61
    %p65 = scmp.eq.s32.totalorder %s13, 0
    %p66 = por %p64, %p65
    %p67 = scmp.ne.s32.totalorder %s59, %s61
    %p68 = scmp.eq.s32.totalorder %s18, 3
    %p69 = por %p67, %p68
    %p70 = scmp.ne.s32.totalorder %s61, %s62
    %p71 = scmp.eq.s32.totalorder %s18, 0
    %p72 = por %p70, %p71
    %p73 = scmp.ne.s32.totalorder %s61, %s62
    %p74 = scmp.eq.s32.totalorder %s19, 3
    %p75 = por %p73, %p74
    %p77 = scmp.ne.s32.totalorder %s62, %s76
    %p78 = scmp.eq.s32.totalorder %s19, 0
    %p79 = por %p77, %p78
    %s81 = sadd.s32 %s80, 1
    %p84 = scmp.eq.s32.totalorder %s13, 3
    %p85 = scmp.ne.s32.totalorder %s80, %s82
    %p86 = scmp.eq.s32.totalorder %s13, 0
    %p87 = por %p85, %p86
    %p88 = scmp.ne.s32.totalorder %s80, %s82
    %p89 = scmp.eq.s32.totalorder %s18, 3
    %p90 = por %p88, %p89
    %p91 = scmp.ne.s32.totalorder %s82, %s83
    %p92 = scmp.eq.s32.totalorder %s18, 0
    %p93 = por %p91, %p92
    %p94 = scmp.ne.s32.totalorder %s82, %s83
    %p95 = scmp.eq.s32.totalorder %s19, 3
    %p96 = por %p94, %p95
    %p98 = scmp.ne.s32.totalorder %s83, %s97
    %p99 = scmp.eq.s32.totalorder %s19, 0
    %p100 = por %p98, %p99
    %s102 = sadd.s32 %s101, 1
    %p105 = scmp.eq.s32.totalorder %s13, 3
    %p106 = scmp.ne.s32.totalorder %s101, %s103
    %p107 = scmp.eq.s32.totalorder %s13, 0
    %p108 = por %p106, %p107
    %p109 = scmp.ne.s32.totalorder %s101, %s103
    %p110 = scmp.eq.s32.totalorder %s18, 3
    %p111 = por %p109, %p110
    %p112 = scmp.ne.s32.totalorder %s103, %s104
    %p113 = scmp.eq.s32.totalorder %s18, 0
    %p114 = por %p112, %p113
    %p115 = scmp.ne.s32.totalorder %s103, %s104
    %p116 = scmp.eq.s32.totalorder %s19, 3
    %p117 = por %p115, %p116
    %p119 = scmp.ne.s32.totalorder %s104, %s118
    %p120 = scmp.eq.s32.totalorder %s19, 0
    %p121 = por %p119, %p120
    %s122 = ssub.s32 %s20, %s32
    %s123 = ssub.s32 %s21, %s28
    %s124 = sor.u32 %s122, %s123
    %p125 = scmp.eq.s32.totalorder %s124, 0
    %s127 = sadd.s32 %s126, 1
    %s128 = scalar_select %p125, %s126, %s127
    %p131 = pneg %p125
    %p132 = scmp.eq.s32.totalorder %s13, 3
    %p133 = por %p131, %p132
    %p134 = scmp.ne.s32.totalorder %s126, %s129
    %p135 = scmp.eq.s32.totalorder %s13, 0
    %p136 = por %p134, %p135
    %p137 = scmp.ne.s32.totalorder %s126, %s129
    %p138 = scmp.eq.s32.totalorder %s18, 3
    %p139 = por %p137, %p138
    %p140 = scmp.ne.s32.totalorder %s129, %s130
    %p141 = scmp.eq.s32.totalorder %s18, 0
    %p142 = por %p140, %p141
    %p143 = scmp.ne.s32.totalorder %s129, %s130
    %p144 = scmp.eq.s32.totalorder %s19, 3
    %p145 = por %p143, %p144
    %p147 = scmp.ne.s32.totalorder %s130, %s146
    %p148 = scmp.eq.s32.totalorder %s19, 0
    %p149 = por %p147, %p148
    %s150 = ssub.s32 %s20, %s32
    %s151 = ssub.s32 %s21, %s28
    %s152 = sor.u32 %s150, %s151
    %p153 = scmp.eq.s32.totalorder %s152, 0
    %s155 = sadd.s32 %s154, 1
    %s156 = scalar_select %p153, %s154, %s155
    %p159 = pneg %p153
    %p160 = scmp.eq.s32.totalorder %s13, 3
    %p161 = por %p159, %p160
    %p162 = scmp.ne.s32.totalorder %s154, %s157
    %p163 = scmp.eq.s32.totalorder %s13, 0
    %p164 = por %p162, %p163
    %p165 = scmp.ne.s32.totalorder %s154, %s157
    %p166 = scmp.eq.s32.totalorder %s18, 3
    %p167 = por %p165, %p166
    %p168 = scmp.ne.s32.totalorder %s157, %s158
    %p169 = scmp.eq.s32.totalorder %s18, 0
    %p170 = por %p168, %p169
    %p171 = scmp.ne.s32.totalorder %s157, %s158
    %p172 = scmp.eq.s32.totalorder %s19, 3
    %p173 = por %p171, %p172
    %p175 = scmp.ne.s32.totalorder %s158, %s174
    %p176 = scmp.eq.s32.totalorder %s19, 0
    %p177 = por %p175, %p176
    %s178 = ssub.s32 %s20, %s32
    %s179 = ssub.s32 %s21, %s28
    %s180 = sor.u32 %s178, %s179
    %p181 = scmp.eq.s32.totalorder %s180, 0
    %s183 = sadd.s32 %s182, 1
    %s184 = scalar_select %p181, %s182, %s183
    %p187 = pneg %p181
    %p188 = scmp.eq.s32.totalorder %s13, 3
    %p189 = por %p187, %p188
    %p190 = scmp.ne.s32.totalorder %s182, %s185
    %p191 = scmp.eq.s32.totalorder %s13, 0
    %p192 = por %p190, %p191
    %p193 = scmp.ne.s32.totalorder %s182, %s185
    %p194 = scmp.eq.s32.totalorder %s18, 3
    %p195 = por %p193, %p194
    %p196 = scmp.ne.s32.totalorder %s185, %s186
    %p197 = scmp.eq.s32.totalorder %s18, 0
    %p198 = por %p196, %p197
    %p199 = scmp.ne.s32.totalorder %s185, %s186
    %p200 = scmp.eq.s32.totalorder %s19, 3
    %p201 = por %p199, %p200
    %p203 = scmp.ne.s32.totalorder %s186, %s202
    %p204 = scmp.eq.s32.totalorder %s19, 0
    %p205 = por %p203, %p204
    %p206 = scmp.le.s32.totalorder 1, %s13
    %p207 = scmp.lt.s32.totalorder %s13, 5
    %p208 = pnand %p206, %p207
    %p209 = pneg %p208
    // Predicated region
    $region9: #{resblock_forward.4} parent=5 // pred_check
      _
    $region10: #{resblock_forward.4} parent=5 // pred_check_branch
      %211 = sbr.rel (%p208) target = $region12
    $region11: #{resblock_forward.4} parent=5 // pred_region
      %s212 = ssub.s32 %s13, 1
      // Predicated region
      $region13: #{resblock_forward.4} parent=11 // pred_check
        %p213 = pneg %p72
      $region14: #{resblock_forward.4} parent=11 // pred_check_branch
        %215 = sbr.rel (%p213) target = $region16
      $region15: #{resblock_forward.4} parent=11 // pred_region
        _
      $region16: #{resblock_forward.4} parent=11 // pred_fallthru
        _
      // Predicated region
      $region17: #{resblock_forward.4} parent=11 // pred_check
        %p216 = pneg %p93
      $region18: #{resblock_forward.4} parent=11 // pred_check_branch
        %218 = sbr.rel (%p216) target = $region20
      $region19: #{resblock_forward.4} parent=11 // pred_region
        _
      $region20: #{resblock_forward.4} parent=11 // pred_fallthru
        _
      // Predicated region
      $region21: #{resblock_forward.4} parent=11 // pred_check
        %p219 = pneg %p114
      $region22: #{resblock_forward.4} parent=11 // pred_check_branch
        %221 = sbr.rel (%p219) target = $region24
      $region23: #{resblock_forward.4} parent=11 // pred_region
        _
      $region24: #{resblock_forward.4} parent=11 // pred_fallthru
        _
    $region12: #{resblock_forward.4} parent=5 // pred_fallthru
      _
    %p222 = scmp.lt.s32.totalorder %s13, 4
    // Predicated region
    $region25: #{resblock_forward.4} parent=5 // pred_check
      %p223 = pneg %p222
    $region26: #{resblock_forward.4} parent=5 // pred_check_branch
      %225 = sbr.rel (%p223) target = $region28
    $region27: #{resblock_forward.4} parent=5 // pred_region
      // Predicated region
      $region29: #{resblock_forward.4} parent=27 // pred_check
        %p226 = pneg %p45
      $region30: #{resblock_forward.4} parent=27 // pred_check_branch
        %228 = sbr.rel (%p226) target = $region32
      $region31: #{resblock_forward.4} parent=27 // pred_region
        %p229 = scmp.lt.s32.totalorder %s20, 1
        %s230 = scalar_select %p229, %s20, 1
        %s231 = smul.addr %s230, 32
        %s232 = smul.addr %s231, 4
        %s233 = scalar_lea.vmem %s0, %s232
      $region32: #{resblock_forward.4} parent=27 // pred_fallthru
        _
    $region28: #{resblock_forward.4} parent=5 // pred_fallthru
      _
    %p234 = scmp.le.s32.totalorder 1, %s13
    %p235 = scmp.lt.s32.totalorder %s13, 5
    %p236 = pnand %p234, %p235
    %p237 = pneg %p236
    // Predicated region
    $region33: #{resblock_forward.4} parent=5 // pred_check
      _
    $region34: #{resblock_forward.4} parent=5 // pred_check_branch
      %239 = sbr.rel (%p236) target = $region36
    $region35: #{resblock_forward.4} parent=5 // pred_region
      %s240 = ssub.s32 %s13, 1
      %p241 = scmp.lt.s32.totalorder %s22, 1
      %s242 = scalar_select %p241, %s22, 1
      %s243 = smul.addr %s242, 32
      %s244 = smul.addr %s243, 4
      %s245 = scalar_lea.vmem %s0, %s244
      %p246 = pneg %p51
      %p247 = pneg %p48
      %p248 = pneg %p72
      %p249 = pneg %p69
      %p250 = pneg %p93
      %p251 = pneg %p90
      %p252 = pneg %p114
      %p253 = pneg %p111
      %p254 = pneg %p142
      %p255 = pneg %p139
      %s256 = smul.u32 8, %s23
      %p257 = scmp.lt.s32.totalorder %s22, 1
      %s258 = scalar_select %p257, %s22, 1
      %p259 = scmp.lt.s32.totalorder %s256, 15
      %s260 = scalar_select %p259, %s256, 15
      %s261 = smul.addr %s260, 2
      %s262 = smul.addr %s258, 32
      %s263 = sadd.s32 %s261, %s262
      %s264 = smul.addr %s263, 4
      %s265 = scalar_lea.vmem %s4, %s264
      %p266 = pneg %p170
      %p267 = pneg %p167
      %p268 = scmp.lt.s32.totalorder %s22, 1
      %s269 = scalar_select %p268, %s22, 1
      %p270 = scmp.lt.s32.totalorder %s23, 1
      %s271 = scalar_select %p270, %s23, 1
      %s272 = smul.addr %s269, 2
      %s273 = sadd.s32 %s271, %s272
      %s274 = scalar_lea.vmem %s5, %s273
      %p275 = pneg %p198
      %p276 = pneg %p195
      %p277 = scmp.lt.s32.totalorder %s22, 1
      %s278 = scalar_select %p277, %s22, 1
      %p279 = scmp.lt.s32.totalorder %s23, 1
      %s280 = scalar_select %p279, %s23, 1
      %s281 = smul.addr %s278, 2
      %s282 = sadd.s32 %s280, %s281
      %s283 = scalar_lea.vmem %s6, %s282
      %p284 = scmp.lt.s32.totalorder %s22, 1
      %s285 = scalar_select %p284, %s22, 1
      %s286 = smul.addr %s285, 32
      %s287 = smul.addr %s286, 4
      %s288 = scalar_lea.vmem %s0, %s287
      %s289 = smul.u32 8, %s23
      %p290 = scmp.lt.s32.totalorder %s22, 1
      %s291 = scalar_select %p290, %s22, 1
      %p292 = scmp.lt.s32.totalorder %s289, 15
      %s293 = scalar_select %p292, %s289, 15
      %s294 = smul.addr %s293, 2
      %s295 = smul.addr %s291, 32
      %s296 = sadd.s32 %s294, %s295
      %s297 = smul.addr %s296, 4
      %s298 = scalar_lea.vmem %s4, %s297
      %s299 = smul.u32 8, %s23
      %p300 = scmp.lt.s32.totalorder %s22, 1
      %s301 = scalar_select %p300, %s22, 1
      %p302 = scmp.lt.s32.totalorder %s23, 1
      %s303 = scalar_select %p302, %s23, 1
      %s304 = smul.addr %s301, 2
      %s305 = sadd.s32 %s303, %s304
      %s306 = scalar_lea.vmem %s5, %s305
      %p307 = scmp.lt.s32.totalorder %s22, 1
      %s308 = scalar_select %p307, %s22, 1
      %p309 = scmp.lt.s32.totalorder %s23, 1
      %s310 = scalar_select %p309, %s23, 1
      %s311 = smul.addr %s308, 2
      %s312 = sadd.s32 %s310, %s311
      %s313 = scalar_lea.vmem %s6, %s312
      %p315 = scmp.eq.s32.totalorder %s23, 0
      // Predicated region
      $region37: #{resblock_forward.4} parent=35 // pred_check
        %p316 = pneg %p315
      $region38: #{resblock_forward.4} parent=35 // pred_check_branch
        %318 = sbr.rel (%p316) target = $region40
      $region39: #{resblock_forward.4} parent=35 // pred_region
        %319 = vst [vmem:[#allocation2] sm:$0xf] 0
        %320 = vst [vmem:[#allocation2 + $0x4] sm:$0xf] 0
        %321 = vst [vmem:[#allocation2 + $0x8] sm:$0x1] 0
        %322 = vst [vmem:[#allocation2 + $0xc] sm:$0xf] 0
        %323 = vst [vmem:[#allocation2 + $0x10] sm:$0xf] 0
        %324 = vst [vmem:[#allocation2 + $0x14] sm:$0x1] 0
        %325 = vst [vmem:[#allocation2 + $0x18] sm:$0xf] 0
        %326 = vst [vmem:[#allocation2 + $0x1c] sm:$0xf] 0
        %327 = vst [vmem:[#allocation2 + $0x20] sm:$0x1] 0
        %328 = vst [vmem:[#allocation2 + $0x24] sm:$0xf] 0
        %329 = vst [vmem:[#allocation2 + $0x28] sm:$0xf] 0
        %330 = vst [vmem:[#allocation2 + $0x2c] sm:$0x1] 0
        %331 = vst [vmem:[#allocation2 + $0x30] sm:$0xf] 0
        %332 = vst [vmem:[#allocation2 + $0x34] sm:$0xf] 0
        %333 = vst [vmem:[#allocation2 + $0x38] sm:$0x1] 0
        %334 = vst [vmem:[#allocation2 + $0x3c] sm:$0xf] 0
        %335 = vst [vmem:[#allocation2 + $0x40] sm:$0xf] 0
        %336 = vst [vmem:[#allocation2 + $0x44] sm:$0x1] 0
        %337 = vst [vmem:[#allocation2 + $0x48] sm:$0xf] 0
        %338 = vst [vmem:[#allocation2 + $0x4c] sm:$0xf] 0
        %339 = vst [vmem:[#allocation2 + $0x50] sm:$0x1] 0
        %340 = vst [vmem:[#allocation2 + $0x54] sm:$0xf] 0
        %341 = vst [vmem:[#allocation2 + $0x58] sm:$0xf] 0
        %342 = vst [vmem:[#allocation2 + $0x5c] sm:$0x1] 0
        %343 = vst [vmem:[#allocation2 + $0x60] sm:$0xf] 0
        %344 = vst [vmem:[#allocation2 + $0x64] sm:$0xf] 0
        %345 = vst [vmem:[#allocation2 + $0x68] sm:$0x1] 0
        %346 = vst [vmem:[#allocation2 + $0x6c] sm:$0xf] 0
        %347 = vst [vmem:[#allocation2 + $0x70] sm:$0xf] 0
        %348 = vst [vmem:[#allocation2 + $0x74] sm:$0x1] 0
        %349 = vst [vmem:[#allocation2 + $0x78] sm:$0xf] 0
        %350 = vst [vmem:[#allocation2 + $0x7c] sm:$0xf] 0
        %351 = vst [vmem:[#allocation2 + $0x80] sm:$0x1] 0
        %352 = vst [vmem:[#allocation2 + $0x84] sm:$0xf] 0
        %353 = vst [vmem:[#allocation2 + $0x88] sm:$0xf] 0
        %354 = vst [vmem:[#allocation2 + $0x8c] sm:$0x1] 0
        %355 = vst [vmem:[#allocation2 + $0x90] sm:$0xf] 0
        %356 = vst [vmem:[#allocation2 + $0x94] sm:$0xf] 0
        %357 = vst [vmem:[#allocation2 + $0x98] sm:$0x1] 0
        %358 = vst [vmem:[#allocation2 + $0x9c] sm:$0xf] 0
        %359 = vst [vmem:[#allocation2 + $0xa0] sm:$0xf] 0
        %360 = vst [vmem:[#allocation2 + $0xa4] sm:$0x1] 0
        %361 = vst [vmem:[#allocation2 + $0xa8] sm:$0xf] 0
        %362 = vst [vmem:[#allocation2 + $0xac] sm:$0xf] 0
        %363 = vst [vmem:[#allocation2 + $0xb0] sm:$0x1] 0
        %364 = vst [vmem:[#allocation2 + $0xb4] sm:$0xf] 0
        %365 = vst [vmem:[#allocation2 + $0xb8] sm:$0xf] 0
        %366 = vst [vmem:[#allocation2 + $0xbc] sm:$0x1] 0
        %367 = vst [vmem:[#allocation2 + $0xc0] sm:$0xf] 0
        %368 = vst [vmem:[#allocation2 + $0xc4] sm:$0xf] 0
        %369 = vst [vmem:[#allocation2 + $0xc8] sm:$0x1] 0
        %370 = vst [vmem:[#allocation2 + $0xcc] sm:$0xf] 0
        %371 = vst [vmem:[#allocation2 + $0xd0] sm:$0xf] 0
        %372 = vst [vmem:[#allocation2 + $0xd4] sm:$0x1] 0
        %v373 = vld [vmem:[%s288] sm:$0xf]
        %v374 = vld [vmem:[%s288 + $0x4] sm:$0xf]
        %v375 = vld [vmem:[%s288 + $0x8] sm:$0xf]
        %v376 = vld [vmem:[%s288 + $0xc] sm:$0xf]
        %v377 = vld [vmem:[%s288 + $0x10] sm:$0xf]
        %v378 = vld [vmem:[%s288 + $0x14] sm:$0xf]
        %v379 = vld [vmem:[%s288 + $0x18] sm:$0xf]
        %v380 = vld [vmem:[%s288 + $0x1c] sm:$0xf]
        %v381 = vld [vmem:[%s288 + $0x20] sm:$0xf]
        %v382 = vld [vmem:[%s288 + $0x24] sm:$0xf]
        %v383 = vld [vmem:[%s288 + $0x28] sm:$0xf]
        %v384 = vld [vmem:[%s288 + $0x2c] sm:$0xf]
        %v385 = vld [vmem:[%s288 + $0x30] sm:$0xf]
        %v386 = vld [vmem:[%s288 + $0x34] sm:$0xf]
        %v387 = vld [vmem:[%s288 + $0x38] sm:$0xf]
        %v388 = vld [vmem:[%s288 + $0x3c] sm:$0xf]
        %v389 = vld [vmem:[%s288 + $0x40] sm:$0xf]
        %v390 = vld [vmem:[%s288 + $0x44] sm:$0xf]
        %v391 = vld [vmem:[%s288 + $0x48] sm:$0xf]
        %v392 = vld [vmem:[%s288 + $0x4c] sm:$0xf]
        %v393 = vld [vmem:[%s288 + $0x50] sm:$0xf]
        %v394 = vld [vmem:[%s288 + $0x54] sm:$0xf]
        %v395 = vld [vmem:[%s288 + $0x58] sm:$0xf]
        %v396 = vld [vmem:[%s288 + $0x5c] sm:$0xf]
        %v397 = vld [vmem:[%s288 + $0x60] sm:$0xf]
        %v398 = vld [vmem:[%s288 + $0x64] sm:$0xf]
        %v399 = vld [vmem:[%s288 + $0x68] sm:$0xf]
        %v400 = vld [vmem:[%s288 + $0x6c] sm:$0xf]
        %v401 = vld [vmem:[%s288 + $0x70] sm:$0xf]
        %v402 = vld [vmem:[%s288 + $0x74] sm:$0xf]
        %v403 = vld [vmem:[%s288 + $0x78] sm:$0xf]
        %v404 = vld [vmem:[%s288 + $0x7c] sm:$0xf]
        %v405 = vunpack.c.l.bf16 %v373
        %v406 = vunpack.c.l.bf16 %v374
        %v407 = vunpack.c.l.bf16 %v375
        %v408 = vunpack.c.l.bf16 %v376
        %v409 = vunpack.c.l.bf16 %v377
        %v410 = vunpack.c.l.bf16 %v378
        %v411 = vunpack.c.l.bf16 %v379
        %v412 = vunpack.c.l.bf16 %v380
        %v413 = vunpack.c.l.bf16 %v381
        %v414 = vunpack.c.l.bf16 %v382
        %v415 = vunpack.c.l.bf16 %v383
        %v416 = vunpack.c.l.bf16 %v384
        %v417 = vunpack.c.l.bf16 %v385
        %v418 = vunpack.c.l.bf16 %v386
        %v419 = vunpack.c.l.bf16 %v387
        %v420 = vunpack.c.l.bf16 %v388
        %v421 = vunpack.c.l.bf16 %v389
        %v422 = vunpack.c.l.bf16 %v390
        %v423 = vunpack.c.l.bf16 %v391
        %v424 = vunpack.c.l.bf16 %v392
        %v425 = vunpack.c.l.bf16 %v393
        %v426 = vunpack.c.l.bf16 %v394
        %v427 = vunpack.c.l.bf16 %v395
        %v428 = vunpack.c.l.bf16 %v396
        %v429 = vunpack.c.l.bf16 %v397
        %v430 = vunpack.c.l.bf16 %v398
        %v431 = vunpack.c.l.bf16 %v399
        %v432 = vunpack.c.l.bf16 %v400
        %v433 = vunpack.c.l.bf16 %v401
        %v434 = vunpack.c.l.bf16 %v402
        %v435 = vunpack.c.l.bf16 %v403
        %v436 = vunpack.c.l.bf16 %v404
        %v437 = vld [vmem:[%s1] sm:$0x1]
        %v439 = vlaneseq
        %v440 = vshrl.u32 %v439, 7
        %v441 = vsub.s32 0, %v440
        %v442 = vrot.slane %v437, %v441
        %v444 = vmul.f32 %v405, %v442
        %v445 = vmul.f32 %v406, %v442
        %v446 = vmul.f32 %v407, %v442
        %v447 = vmul.f32 %v408, %v442
        %v448 = vmul.f32 %v409, %v442
        %v449 = vmul.f32 %v410, %v442
        %v450 = vmul.f32 %v411, %v442
        %v451 = vmul.f32 %v412, %v442
        %v452 = vmul.f32 %v413, %v442
        %v453 = vmul.f32 %v414, %v442
        %v454 = vmul.f32 %v415, %v442
        %v455 = vmul.f32 %v416, %v442
        %v456 = vmul.f32 %v417, %v442
        %v457 = vmul.f32 %v418, %v442
        %v458 = vmul.f32 %v419, %v442
        %v459 = vmul.f32 %v420, %v442
        %v460 = vmul.f32 %v421, %v442
        %v461 = vmul.f32 %v422, %v442
        %v462 = vmul.f32 %v423, %v442
        %v463 = vmul.f32 %v424, %v442
        %v464 = vmul.f32 %v425, %v442
        %v465 = vmul.f32 %v426, %v442
        %v466 = vmul.f32 %v427, %v442
        %v467 = vmul.f32 %v428, %v442
        %v468 = vmul.f32 %v429, %v442
        %v469 = vmul.f32 %v430, %v442
        %v470 = vmul.f32 %v431, %v442
        %v471 = vmul.f32 %v432, %v442
        %v472 = vmul.f32 %v433, %v442
        %v473 = vmul.f32 %v434, %v442
        %v474 = vmul.f32 %v435, %v442
        %v475 = vmul.f32 %v436, %v442
        %v476 = vld [vmem:[%s2] sm:$0x1]
        %v478 = vlaneseq
        %v479 = vshrl.u32 %v478, 7
        %v480 = vsub.s32 0, %v479
        %v481 = vrot.slane %v476, %v480
        %v483 = vadd.f32 %v444, %v481
        %v484 = vadd.f32 %v445, %v481
        %v485 = vadd.f32 %v446, %v481
        %v486 = vadd.f32 %v447, %v481
        %v487 = vadd.f32 %v448, %v481
        %v488 = vadd.f32 %v449, %v481
        %v489 = vadd.f32 %v450, %v481
        %v490 = vadd.f32 %v451, %v481
        %v491 = vadd.f32 %v452, %v481
        %v492 = vadd.f32 %v453, %v481
        %v493 = vadd.f32 %v454, %v481
        %v494 = vadd.f32 %v455, %v481
        %v495 = vadd.f32 %v456, %v481
        %v496 = vadd.f32 %v457, %v481
        %v497 = vadd.f32 %v458, %v481
        %v498 = vadd.f32 %v459, %v481
        %v499 = vadd.f32 %v460, %v481
        %v500 = vadd.f32 %v461, %v481
        %v501 = vadd.f32 %v462, %v481
        %v502 = vadd.f32 %v463, %v481
        %v503 = vadd.f32 %v464, %v481
        %v504 = vadd.f32 %v465, %v481
        %v505 = vadd.f32 %v466, %v481
        %v506 = vadd.f32 %v467, %v481
        %v507 = vadd.f32 %v468, %v481
        %v508 = vadd.f32 %v469, %v481
        %v509 = vadd.f32 %v470, %v481
        %v510 = vadd.f32 %v471, %v481
        %v511 = vadd.f32 %v472, %v481
        %v512 = vadd.f32 %v473, %v481
        %v513 = vadd.f32 %v474, %v481
        %v514 = vadd.f32 %v475, %v481
        %v515 = vmax.f32 %v483, 0.0
        %v516 = vmax.f32 %v484, 0.0
        %v517 = vmax.f32 %v485, 0.0
        %v518 = vmax.f32 %v486, 0.0
        %v519 = vmax.f32 %v487, 0.0
        %v520 = vmax.f32 %v488, 0.0
        %v521 = vmax.f32 %v489, 0.0
        %v522 = vmax.f32 %v490, 0.0
        %v523 = vmax.f32 %v491, 0.0
        %v524 = vmax.f32 %v492, 0.0
        %v525 = vmax.f32 %v493, 0.0
        %v526 = vmax.f32 %v494, 0.0
        %v527 = vmax.f32 %v495, 0.0
        %v528 = vmax.f32 %v496, 0.0
        %v529 = vmax.f32 %v497, 0.0
        %v530 = vmax.f32 %v498, 0.0
        %v531 = vmax.f32 %v499, 0.0
        %v532 = vmax.f32 %v500, 0.0
        %v533 = vmax.f32 %v501, 0.0
        %v534 = vmax.f32 %v502, 0.0
        %v535 = vmax.f32 %v503, 0.0
        %v536 = vmax.f32 %v504, 0.0
        %v537 = vmax.f32 %v505, 0.0
        %v538 = vmax.f32 %v506, 0.0
        %v539 = vmax.f32 %v507, 0.0
        %v540 = vmax.f32 %v508, 0.0
        %v541 = vmax.f32 %v509, 0.0
        %v542 = vmax.f32 %v510, 0.0
        %v543 = vmax.f32 %v511, 0.0
        %v544 = vmax.f32 %v512, 0.0
        %v545 = vmax.f32 %v513, 0.0
        %v546 = vmax.f32 %v514, 0.0
        %v547 = vpack.c.bf16 %v516, %v515
        %v548 = vpack.c.bf16 %v518, %v517
        %v549 = vpack.c.bf16 %v520, %v519
        %v550 = vpack.c.bf16 %v522, %v521
        %v551 = vpack.c.bf16 %v524, %v523
        %v552 = vpack.c.bf16 %v526, %v525
        %v553 = vpack.c.bf16 %v528, %v527
        %v554 = vpack.c.bf16 %v530, %v529
        %v555 = vpack.c.bf16 %v532, %v531
        %v556 = vpack.c.bf16 %v534, %v533
        %v557 = vpack.c.bf16 %v536, %v535
        %v558 = vpack.c.bf16 %v538, %v537
        %v559 = vpack.c.bf16 %v540, %v539
        %v560 = vpack.c.bf16 %v542, %v541
        %v561 = vpack.c.bf16 %v544, %v543
        %v562 = vpack.c.bf16 %v546, %v545
        %v579 = vunpack.c.l.b16 %v547
        %v580 = vunpack.c.h.b16 %v547
        %v581 = vunpack.c.l.b16 %v548
        %v582 = vunpack.c.h.b16 %v548
        %v583 = vunpack.c.l.b16 %v549
        %v584 = vunpack.c.h.b16 %v549
        %v585 = vunpack.c.l.b16 %v550
        %v586 = vunpack.c.h.b16 %v550
        %v587 = vunpack.c.l.b16 %v551
        %v588 = vunpack.c.h.b16 %v551
        %v589 = vunpack.c.l.b16 %v552
        %v590 = vunpack.c.h.b16 %v552
        %v591 = vunpack.c.l.b16 %v553
        %v592 = vunpack.c.h.b16 %v553
        %v593 = vunpack.c.l.b16 %v554
        %v594 = vunpack.c.h.b16 %v554
        %v595 = vunpack.c.l.b16 %v555
        %v596 = vunpack.c.h.b16 %v555
        %v597 = vunpack.c.l.b16 %v556
        %v598 = vunpack.c.h.b16 %v556
        %v599 = vunpack.c.l.b16 %v557
        %v600 = vunpack.c.h.b16 %v557
        %v601 = vunpack.c.l.b16 %v558
        %v602 = vunpack.c.h.b16 %v558
        %v603 = vunpack.c.l.b16 %v559
        %v604 = vunpack.c.h.b16 %v559
        %v605 = vunpack.c.l.b16 %v560
        %v606 = vunpack.c.h.b16 %v560
        %v607 = vunpack.c.l.b16 %v561
        %v608 = vunpack.c.h.b16 %v561
        %v609 = vunpack.c.l.b16 %v562
        %v610 = vunpack.c.h.b16 %v562
        %v611 = vpack.c.b16 %v579, %v579
        %v612 = vpack.c.b16 %v580, %v580
        %v613 = vpack.c.b16 %v581, %v581
        %v614 = vpack.c.b16 %v582, %v582
        %v615 = vpack.c.b16 %v583, %v583
        %v616 = vpack.c.b16 %v584, %v584
        %v617 = vpack.c.b16 %v585, %v585
        %v618 = vpack.c.b16 %v586, %v586
        %v619 = vpack.c.b16 %v587, %v587
        %v620 = vpack.c.b16 %v588, %v588
        %v621 = vpack.c.b16 %v589, %v589
        %v622 = vpack.c.b16 %v590, %v590
        %v623 = vpack.c.b16 %v591, %v591
        %v624 = vpack.c.b16 %v592, %v592
        %v625 = vpack.c.b16 %v593, %v593
        %v626 = vpack.c.b16 %v594, %v594
        %v627 = vpack.c.b16 %v595, %v595
        %v628 = vpack.c.b16 %v596, %v596
        %v629 = vpack.c.b16 %v597, %v597
        %v630 = vpack.c.b16 %v598, %v598
        %v631 = vpack.c.b16 %v599, %v599
        %v632 = vpack.c.b16 %v600, %v600
        %v633 = vpack.c.b16 %v601, %v601
        %v634 = vpack.c.b16 %v602, %v602
        %v635 = vpack.c.b16 %v603, %v603
        %v636 = vpack.c.b16 %v604, %v604
        %v637 = vpack.c.b16 %v605, %v605
        %v638 = vpack.c.b16 %v606, %v606
        %v639 = vpack.c.b16 %v607, %v607
        %v640 = vpack.c.b16 %v608, %v608
        %v641 = vpack.c.b16 %v609, %v609
        %v642 = vpack.c.b16 %v610, %v610
        %vm643 = vsmask.f32 256
        %vm644 = vsmask.f32 4368
        %vm645 = vmor %vm643, %vm644
        %v647 = vshrl.u32 %v611, 16
        %v649 = vrot.slane %v647, 7
        %v650 = vshll.u32 %v611, 16
        %v652 = vor.u32 %v649, %v650
        %v653 = vrot.slane %v649, 4
        %v655 = vshrl.u32 %v612, 16
        %v657 = vrot.slane %v655, 7
        %v658 = vshll.u32 %v612, 16
        %v660 = vor.u32 %v657, %v658
        %v661 = vsel %vm645, %v653, %v660
        %v662 = vrot.slane %v657, 4
        %v664 = vshrl.u32 %v613, 16
        %v666 = vrot.slane %v664, 7
        %v667 = vshll.u32 %v613, 16
        %v669 = vor.u32 %v666, %v667
        %v670 = vrot.slane %v666, 4
        %v672 = vshrl.u32 %v614, 16
        %v674 = vrot.slane %v672, 7
        %v675 = vshll.u32 %v614, 16
        %v677 = vor.u32 %v674, %v675
        %v678 = vsel %vm645, %v670, %v677
        %v679 = vrot.slane %v674, 4
        %v681 = vshrl.u32 %v615, 16
        %v683 = vrot.slane %v681, 7
        %v684 = vshll.u32 %v615, 16
        %v686 = vor.u32 %v683, %v684
        %v687 = vrot.slane %v683, 4
        %v689 = vshrl.u32 %v616, 16
        %v691 = vrot.slane %v689, 7
        %v692 = vshll.u32 %v616, 16
        %v694 = vor.u32 %v691, %v692
        %v695 = vsel %vm645, %v687, %v694
        %v696 = vrot.slane %v691, 4
        %v698 = vshrl.u32 %v617, 16
        %v700 = vrot.slane %v698, 7
        %v701 = vshll.u32 %v617, 16
        %v703 = vor.u32 %v700, %v701
        %v704 = vrot.slane %v700, 4
        %v706 = vshrl.u32 %v618, 16
        %v708 = vrot.slane %v706, 7
        %v709 = vshll.u32 %v618, 16
        %v711 = vor.u32 %v708, %v709
        %v712 = vsel %vm645, %v704, %v711
        %v713 = vrot.slane %v708, 4
        %v715 = vshrl.u32 %v619, 16
        %v717 = vrot.slane %v715, 7
        %v718 = vshll.u32 %v619, 16
        %v720 = vor.u32 %v717, %v718
        %v721 = vrot.slane %v717, 4
        %v723 = vshrl.u32 %v620, 16
        %v725 = vrot.slane %v723, 7
        %v726 = vshll.u32 %v620, 16
        %v728 = vor.u32 %v725, %v726
        %v729 = vsel %vm645, %v721, %v728
        %v730 = vrot.slane %v725, 4
        %v732 = vshrl.u32 %v621, 16
        %v734 = vrot.slane %v732, 7
        %v735 = vshll.u32 %v621, 16
        %v737 = vor.u32 %v734, %v735
        %v738 = vrot.slane %v734, 4
        %v740 = vshrl.u32 %v622, 16
        %v742 = vrot.slane %v740, 7
        %v743 = vshll.u32 %v622, 16
        %v745 = vor.u32 %v742, %v743
        %v746 = vsel %vm645, %v738, %v745
        %v747 = vrot.slane %v742, 4
        %v749 = vshrl.u32 %v623, 16
        %v751 = vrot.slane %v749, 7
        %v752 = vshll.u32 %v623, 16
        %v754 = vor.u32 %v751, %v752
        %v755 = vrot.slane %v751, 4
        %v757 = vshrl.u32 %v624, 16
        %v759 = vrot.slane %v757, 7
        %v760 = vshll.u32 %v624, 16
        %v762 = vor.u32 %v759, %v760
        %v763 = vsel %vm645, %v755, %v762
        %v764 = vrot.slane %v759, 4
        %v766 = vshrl.u32 %v625, 16
        %v768 = vrot.slane %v766, 7
        %v769 = vshll.u32 %v625, 16
        %v771 = vor.u32 %v768, %v769
        %v772 = vrot.slane %v768, 4
        %v774 = vshrl.u32 %v626, 16
        %v776 = vrot.slane %v774, 7
        %v777 = vshll.u32 %v626, 16
        %v779 = vor.u32 %v776, %v777
        %v780 = vsel %vm645, %v772, %v779
        %v781 = vrot.slane %v776, 4
        %v783 = vshrl.u32 %v627, 16
        %v785 = vrot.slane %v783, 7
        %v786 = vshll.u32 %v627, 16
        %v788 = vor.u32 %v785, %v786
        %v789 = vrot.slane %v785, 4
        %v791 = vshrl.u32 %v628, 16
        %v793 = vrot.slane %v791, 7
        %v794 = vshll.u32 %v628, 16
        %v796 = vor.u32 %v793, %v794
        %v797 = vsel %vm645, %v789, %v796
        %v798 = vrot.slane %v793, 4
        %v800 = vshrl.u32 %v629, 16
        %v802 = vrot.slane %v800, 7
        %v803 = vshll.u32 %v629, 16
        %v805 = vor.u32 %v802, %v803
        %v806 = vrot.slane %v802, 4
        %v808 = vshrl.u32 %v630, 16
        %v810 = vrot.slane %v808, 7
        %v811 = vshll.u32 %v630, 16
        %v813 = vor.u32 %v810, %v811
        %v814 = vsel %vm645, %v806, %v813
        %v815 = vrot.slane %v810, 4
        %v817 = vshrl.u32 %v631, 16
        %v819 = vrot.slane %v817, 7
        %v820 = vshll.u32 %v631, 16
        %v822 = vor.u32 %v819, %v820
        %v823 = vrot.slane %v819, 4
        %v825 = vshrl.u32 %v632, 16
        %v827 = vrot.slane %v825, 7
        %v828 = vshll.u32 %v632, 16
        %v830 = vor.u32 %v827, %v828
        %v831 = vsel %vm645, %v823, %v830
        %v832 = vrot.slane %v827, 4
        %v834 = vshrl.u32 %v633, 16
        %v836 = vrot.slane %v834, 7
        %v837 = vshll.u32 %v633, 16
        %v839 = vor.u32 %v836, %v837
        %v840 = vrot.slane %v836, 4
        %v842 = vshrl.u32 %v634, 16
        %v844 = vrot.slane %v842, 7
        %v845 = vshll.u32 %v634, 16
        %v847 = vor.u32 %v844, %v845
        %v848 = vsel %vm645, %v840, %v847
        %v849 = vrot.slane %v844, 4
        %v851 = vshrl.u32 %v635, 16
        %v853 = vrot.slane %v851, 7
        %v854 = vshll.u32 %v635, 16
        %v856 = vor.u32 %v853, %v854
        %v857 = vrot.slane %v853, 4
        %v859 = vshrl.u32 %v636, 16
        %v861 = vrot.slane %v859, 7
        %v862 = vshll.u32 %v636, 16
        %v864 = vor.u32 %v861, %v862
        %v865 = vsel %vm645, %v857, %v864
        %v866 = vrot.slane %v861, 4
        %v868 = vshrl.u32 %v637, 16
        %v870 = vrot.slane %v868, 7
        %v871 = vshll.u32 %v637, 16
        %v873 = vor.u32 %v870, %v871
        %v874 = vrot.slane %v870, 4
        %v876 = vshrl.u32 %v638, 16
        %v878 = vrot.slane %v876, 7
        %v879 = vshll.u32 %v638, 16
        %v881 = vor.u32 %v878, %v879
        %v882 = vsel %vm645, %v874, %v881
        %v883 = vrot.slane %v878, 4
        %v885 = vshrl.u32 %v639, 16
        %v887 = vrot.slane %v885, 7
        %v888 = vshll.u32 %v639, 16
        %v890 = vor.u32 %v887, %v888
        %v891 = vrot.slane %v887, 4
        %v893 = vshrl.u32 %v640, 16
        %v895 = vrot.slane %v893, 7
        %v896 = vshll.u32 %v640, 16
        %v898 = vor.u32 %v895, %v896
        %v899 = vsel %vm645, %v891, %v898
        %v900 = vrot.slane %v895, 4
        %v902 = vshrl.u32 %v641, 16
        %v904 = vrot.slane %v902, 7
        %v905 = vshll.u32 %v641, 16
        %v907 = vor.u32 %v904, %v905
        %v908 = vrot.slane %v904, 4
        %v910 = vshrl.u32 %v642, 16
        %v912 = vrot.slane %v910, 7
        %v913 = vshll.u32 %v642, 16
        %v915 = vor.u32 %v912, %v913
        %v916 = vsel %vm645, %v908, %v915
        %v917 = vrot.slane %v912, 4
        %s966 = scalar_lea.vmem [#allocation2], 12
        %vm967 = vcmask 1043456
        %vm968 = vsmask.f32 7938
        %vm969 = vmand %vm967, %vm968
        %v970 = vld [vmem:[%s966] sm:$0xf]
        %v971 = vsel %vm969, %v652, %v970
        %972 = vst [vmem:[%s966] sm:$0xf] %v971
        %973 = vst [vmem:[%s966 + $0x4] sm:$0xf] %v661
        %vm974 = vcmask 1040384
        %vm975 = vmand %vm974, %vm643
        %v976 = vld [vmem:[%s966 + $0x8] sm:$0x1]
        %v977 = vsel %vm975, %v662, %v976
        %978 = vst [vmem:[%s966 + $0x8] sm:$0x1] %v977
        %v979 = vld [vmem:[%s966 + $0xc] sm:$0xf]
        %v980 = vsel %vm969, %v669, %v979
        %981 = vst [vmem:[%s966 + $0xc] sm:$0xf] %v980
        %982 = vst [vmem:[%s966 + $0x10] sm:$0xf] %v678
        %v983 = vld [vmem:[%s966 + $0x14] sm:$0x1]
        %v984 = vsel %vm975, %v679, %v983
        %985 = vst [vmem:[%s966 + $0x14] sm:$0x1] %v984
        %v986 = vld [vmem:[%s966 + $0x18] sm:$0xf]
        %v987 = vsel %vm969, %v686, %v986
        %988 = vst [vmem:[%s966 + $0x18] sm:$0xf] %v987
        %989 = vst [vmem:[%s966 + $0x1c] sm:$0xf] %v695
        %v990 = vld [vmem:[%s966 + $0x20] sm:$0x1]
        %v991 = vsel %vm975, %v696, %v990
        %992 = vst [vmem:[%s966 + $0x20] sm:$0x1] %v991
        %v993 = vld [vmem:[%s966 + $0x24] sm:$0xf]
        %v994 = vsel %vm969, %v703, %v993
        %995 = vst [vmem:[%s966 + $0x24] sm:$0xf] %v994
        %996 = vst [vmem:[%s966 + $0x28] sm:$0xf] %v712
        %v997 = vld [vmem:[%s966 + $0x2c] sm:$0x1]
        %v998 = vsel %vm975, %v713, %v997
        %999 = vst [vmem:[%s966 + $0x2c] sm:$0x1] %v998
        %v1000 = vld [vmem:[%s966 + $0x30] sm:$0xf]
        %v1001 = vsel %vm969, %v720, %v1000
        %1002 = vst [vmem:[%s966 + $0x30] sm:$0xf] %v1001
        %1003 = vst [vmem:[%s966 + $0x34] sm:$0xf] %v729
        %v1004 = vld [vmem:[%s966 + $0x38] sm:$0x1]
        %v1005 = vsel %vm975, %v730, %v1004
        %1006 = vst [vmem:[%s966 + $0x38] sm:$0x1] %v1005
        %v1007 = vld [vmem:[%s966 + $0x3c] sm:$0xf]
        %v1008 = vsel %vm969, %v737, %v1007
        %1009 = vst [vmem:[%s966 + $0x3c] sm:$0xf] %v1008
        %1010 = vst [vmem:[%s966 + $0x40] sm:$0xf] %v746
        %v1011 = vld [vmem:[%s966 + $0x44] sm:$0x1]
        %v1012 = vsel %vm975, %v747, %v1011
        %1013 = vst [vmem:[%s966 + $0x44] sm:$0x1] %v1012
        %v1014 = vld [vmem:[%s966 + $0x48] sm:$0xf]
        %v1015 = vsel %vm969, %v754, %v1014
        %1016 = vst [vmem:[%s966 + $0x48] sm:$0xf] %v1015
        %1017 = vst [vmem:[%s966 + $0x4c] sm:$0xf] %v763
        %v1018 = vld [vmem:[%s966 + $0x50] sm:$0x1]
        %v1019 = vsel %vm975, %v764, %v1018
        %1020 = vst [vmem:[%s966 + $0x50] sm:$0x1] %v1019
        %v1021 = vld [vmem:[%s966 + $0x54] sm:$0xf]
        %v1022 = vsel %vm969, %v771, %v1021
        %1023 = vst [vmem:[%s966 + $0x54] sm:$0xf] %v1022
        %1024 = vst [vmem:[%s966 + $0x58] sm:$0xf] %v780
        %v1025 = vld [vmem:[%s966 + $0x5c] sm:$0x1]
        %v1026 = vsel %vm975, %v781, %v1025
        %1027 = vst [vmem:[%s966 + $0x5c] sm:$0x1] %v1026
        %v1028 = vld [vmem:[%s966 + $0x60] sm:$0xf]
        %v1029 = vsel %vm969, %v788, %v1028
        %1030 = vst [vmem:[%s966 + $0x60] sm:$0xf] %v1029
        %1031 = vst [vmem:[%s966 + $0x64] sm:$0xf] %v797
        %v1032 = vld [vmem:[%s966 + $0x68] sm:$0x1]
        %v1033 = vsel %vm975, %v798, %v1032
        %1034 = vst [vmem:[%s966 + $0x68] sm:$0x1] %v1033
        %v1035 = vld [vmem:[%s966 + $0x6c] sm:$0xf]
        %v1036 = vsel %vm969, %v805, %v1035
        %1037 = vst [vmem:[%s966 + $0x6c] sm:$0xf] %v1036
        %1038 = vst [vmem:[%s966 + $0x70] sm:$0xf] %v814
        %v1039 = vld [vmem:[%s966 + $0x74] sm:$0x1]
        %v1040 = vsel %vm975, %v815, %v1039
        %1041 = vst [vmem:[%s966 + $0x74] sm:$0x1] %v1040
        %v1042 = vld [vmem:[%s966 + $0x78] sm:$0xf]
        %v1043 = vsel %vm969, %v822, %v1042
        %1044 = vst [vmem:[%s966 + $0x78] sm:$0xf] %v1043
        %1045 = vst [vmem:[%s966 + $0x7c] sm:$0xf] %v831
        %v1046 = vld [vmem:[%s966 + $0x80] sm:$0x1]
        %v1047 = vsel %vm975, %v832, %v1046
        %1048 = vst [vmem:[%s966 + $0x80] sm:$0x1] %v1047
        %v1049 = vld [vmem:[%s966 + $0x84] sm:$0xf]
        %v1050 = vsel %vm969, %v839, %v1049
        %1051 = vst [vmem:[%s966 + $0x84] sm:$0xf] %v1050
        %1052 = vst [vmem:[%s966 + $0x88] sm:$0xf] %v848
        %v1053 = vld [vmem:[%s966 + $0x8c] sm:$0x1]
        %v1054 = vsel %vm975, %v849, %v1053
        %1055 = vst [vmem:[%s966 + $0x8c] sm:$0x1] %v1054
        %v1056 = vld [vmem:[%s966 + $0x90] sm:$0xf]
        %v1057 = vsel %vm969, %v856, %v1056
        %1058 = vst [vmem:[%s966 + $0x90] sm:$0xf] %v1057
        %1059 = vst [vmem:[%s966 + $0x94] sm:$0xf] %v865
        %v1060 = vld [vmem:[%s966 + $0x98] sm:$0x1]
        %v1061 = vsel %vm975, %v866, %v1060
        %1062 = vst [vmem:[%s966 + $0x98] sm:$0x1] %v1061
        %v1063 = vld [vmem:[%s966 + $0x9c] sm:$0xf]
        %v1064 = vsel %vm969, %v873, %v1063
        %1065 = vst [vmem:[%s966 + $0x9c] sm:$0xf] %v1064
        %1066 = vst [vmem:[%s966 + $0xa0] sm:$0xf] %v882
        %v1067 = vld [vmem:[%s966 + $0xa4] sm:$0x1]
        %v1068 = vsel %vm975, %v883, %v1067
        %1069 = vst [vmem:[%s966 + $0xa4] sm:$0x1] %v1068
        %v1070 = vld [vmem:[%s966 + $0xa8] sm:$0xf]
        %v1071 = vsel %vm969, %v890, %v1070
        %1072 = vst [vmem:[%s966 + $0xa8] sm:$0xf] %v1071
        %1073 = vst [vmem:[%s966 + $0xac] sm:$0xf] %v899
        %v1074 = vld [vmem:[%s966 + $0xb0] sm:$0x1]
        %v1075 = vsel %vm975, %v900, %v1074
        %1076 = vst [vmem:[%s966 + $0xb0] sm:$0x1] %v1075
        %v1077 = vld [vmem:[%s966 + $0xb4] sm:$0xf]
        %v1078 = vsel %vm969, %v907, %v1077
        %1079 = vst [vmem:[%s966 + $0xb4] sm:$0xf] %v1078
        %1080 = vst [vmem:[%s966 + $0xb8] sm:$0xf] %v916
        %v1081 = vld [vmem:[%s966 + $0xbc] sm:$0x1]
        %v1082 = vsel %vm975, %v917, %v1081
        %1083 = vst [vmem:[%s966 + $0xbc] sm:$0x1] %v1082
      $region40: #{resblock_forward.4} parent=35 // pred_fallthru
        _
      %s1084 = smul.u32 %s23, 8
      %s1085 = smul.u32 %s1084, 3
      %s1086 = smul.addr %s1085, 4
      %s1087 = scalar_lea.vmem [#allocation2], %s1086
      %v1088 = vld [vmem:[%s1087] sm:$0xf]
      %v1089 = vld [vmem:[%s1087 + $0x4] sm:$0xf]
      %v1090 = vld [vmem:[%s1087 + $0xc] sm:$0xf]
      %v1091 = vld [vmem:[%s1087 + $0x10] sm:$0xf]
      %v1092 = vld [vmem:[%s1087 + $0x18] sm:$0xf]
      %v1093 = vld [vmem:[%s1087 + $0x1c] sm:$0xf]
      %v1094 = vld [vmem:[%s1087 + $0x24] sm:$0xf]
      %v1095 = vld [vmem:[%s1087 + $0x28] sm:$0xf]
      %v1096 = vld [vmem:[%s1087 + $0x30] sm:$0xf]
      %v1097 = vld [vmem:[%s1087 + $0x34] sm:$0xf]
      %v1098 = vld [vmem:[%s1087 + $0x3c] sm:$0xf]
      %v1099 = vld [vmem:[%s1087 + $0x40] sm:$0xf]
      %v1100 = vld [vmem:[%s1087 + $0x48] sm:$0xf]
      %v1101 = vld [vmem:[%s1087 + $0x4c] sm:$0xf]
      %v1102 = vld [vmem:[%s1087 + $0x54] sm:$0xf]
      %v1103 = vld [vmem:[%s1087 + $0x58] sm:$0xf]
      %v1104 = vld [vmem:[%s3] sm:$0xf]
      %v1105 = vld [vmem:[%s3 + $0x4] sm:$0xf]
      %v1106 = vld [vmem:[%s3 + $0x8] sm:$0xf]
      %v1107 = vld [vmem:[%s3 + $0xc] sm:$0xf]
      %v1108 = vld [vmem:[%s3 + $0x10] sm:$0xf]
      %v1109 = vld [vmem:[%s3 + $0x14] sm:$0xf]
      %v1110 = vld [vmem:[%s3 + $0x18] sm:$0xf]
      %v1111 = vld [vmem:[%s3 + $0x1c] sm:$0xf]
      %v1112 = vld [vmem:[%s3 + $0x20] sm:$0xf]
      %v1113 = vld [vmem:[%s3 + $0x24] sm:$0xf]
      %v1114 = vld [vmem:[%s3 + $0x28] sm:$0xf]
      %v1115 = vld [vmem:[%s3 + $0x2c] sm:$0xf]
      %v1116 = vld [vmem:[%s3 + $0x30] sm:$0xf]
      %v1117 = vld [vmem:[%s3 + $0x34] sm:$0xf]
      %v1118 = vld [vmem:[%s3 + $0x38] sm:$0xf]
      %v1119 = vld [vmem:[%s3 + $0x3c] sm:$0xf]
      %v1120 = vld [vmem:[%s1087 + $0x8] sm:$0x1]
      %v1121 = vld [vmem:[%s1087 + $0x14] sm:$0x1]
      %v1122 = vld [vmem:[%s1087 + $0x20] sm:$0x1]
      %v1123 = vld [vmem:[%s1087 + $0x2c] sm:$0x1]
      %v1124 = vld [vmem:[%s1087 + $0x38] sm:$0x1]
      %v1125 = vld [vmem:[%s1087 + $0x44] sm:$0x1]
      %v1126 = vld [vmem:[%s1087 + $0x50] sm:$0x1]
      %v1127 = vld [vmem:[%s1087 + $0x5c] sm:$0x1]
      %vm1128 = vsmask.f32 3328
      %vm1129 = vsmask.f32 7440
      %vm1130 = vmor %vm1128, %vm1129
      %v1132 = vshrl.u32 %v1088, 16
      %v1134 = vrot.slane %v1132, 4
      %v1135 = vshll.u32 %v1088, 16
      %v1137 = vrot.slane %v1135, 5
      %v1138 = vor.u32 %v1134, %v1137
      %v1139 = vrot.slane %v1138, 4
      %v1141 = vshll.u32 %v1089, 16
      %v1143 = vrot.slane %v1141, 5
      %v1144 = vsel %vm1130, %v1139, %v1143
      %v1145 = vshrl.u32 %v1089, 16
      %v1147 = vrot.slane %v1145, 4
      %v1148 = vor.u32 %v1147, %v1143
      %v1149 = vrot.slane %v1148, 4
      %v1151 = vshll.u32 %v1120, 16
      %v1153 = vrot.slane %v1151, 5
      %v1154 = vsel %vm1130, %v1149, %v1153
      %v1156 = vshrl.u32 %v1090, 16
      %v1158 = vrot.slane %v1156, 4
      %v1159 = vshll.u32 %v1090, 16
      %v1161 = vrot.slane %v1159, 5
      %v1162 = vor.u32 %v1158, %v1161
      %v1163 = vrot.slane %v1162, 4
      %v1165 = vshll.u32 %v1091, 16
      %v1167 = vrot.slane %v1165, 5
      %v1168 = vsel %vm1130, %v1163, %v1167
      %v1169 = vshrl.u32 %v1091, 16
      %v1171 = vrot.slane %v1169, 4
      %v1172 = vor.u32 %v1171, %v1167
      %v1173 = vrot.slane %v1172, 4
      %v1175 = vshll.u32 %v1121, 16
      %v1177 = vrot.slane %v1175, 5
      %v1178 = vsel %vm1130, %v1173, %v1177
      %v1180 = vshrl.u32 %v1092, 16
      %v1182 = vrot.slane %v1180, 4
      %v1183 = vshll.u32 %v1092, 16
      %v1185 = vrot.slane %v1183, 5
      %v1186 = vor.u32 %v1182, %v1185
      %v1187 = vrot.slane %v1186, 4
      %v1189 = vshll.u32 %v1093, 16
      %v1191 = vrot.slane %v1189, 5
      %v1192 = vsel %vm1130, %v1187, %v1191
      %v1193 = vshrl.u32 %v1093, 16
      %v1195 = vrot.slane %v1193, 4
      %v1196 = vor.u32 %v1195, %v1191
      %v1197 = vrot.slane %v1196, 4
      %v1199 = vshll.u32 %v1122, 16
      %v1201 = vrot.slane %v1199, 5
      %v1202 = vsel %vm1130, %v1197, %v1201
      %v1204 = vshrl.u32 %v1094, 16
      %v1206 = vrot.slane %v1204, 4
      %v1207 = vshll.u32 %v1094, 16
      %v1209 = vrot.slane %v1207, 5
      %v1210 = vor.u32 %v1206, %v1209
      %v1211 = vrot.slane %v1210, 4
      %v1213 = vshll.u32 %v1095, 16
      %v1215 = vrot.slane %v1213, 5
      %v1216 = vsel %vm1130, %v1211, %v1215
      %v1217 = vshrl.u32 %v1095, 16
      %v1219 = vrot.slane %v1217, 4
      %v1220 = vor.u32 %v1219, %v1215
      %v1221 = vrot.slane %v1220, 4
      %v1223 = vshll.u32 %v1123, 16
      %v1225 = vrot.slane %v1223, 5
      %v1226 = vsel %vm1130, %v1221, %v1225
      %v1228 = vshrl.u32 %v1096, 16
      %v1230 = vrot.slane %v1228, 4
      %v1231 = vshll.u32 %v1096, 16
      %v1233 = vrot.slane %v1231, 5
      %v1234 = vor.u32 %v1230, %v1233
      %v1235 = vrot.slane %v1234, 4
      %v1237 = vshll.u32 %v1097, 16
      %v1239 = vrot.slane %v1237, 5
      %v1240 = vsel %vm1130, %v1235, %v1239
      %v1241 = vshrl.u32 %v1097, 16
      %v1243 = vrot.slane %v1241, 4
      %v1244 = vor.u32 %v1243, %v1239
      %v1245 = vrot.slane %v1244, 4
      %v1247 = vshll.u32 %v1124, 16
      %v1249 = vrot.slane %v1247, 5
      %v1250 = vsel %vm1130, %v1245, %v1249
      %v1252 = vshrl.u32 %v1098, 16
      %v1254 = vrot.slane %v1252, 4
      %v1255 = vshll.u32 %v1098, 16
      %v1257 = vrot.slane %v1255, 5
      %v1258 = vor.u32 %v1254, %v1257
      %v1259 = vrot.slane %v1258, 4
      %v1261 = vshll.u32 %v1099, 16
      %v1263 = vrot.slane %v1261, 5
      %v1264 = vsel %vm1130, %v1259, %v1263
      %v1265 = vshrl.u32 %v1099, 16
      %v1267 = vrot.slane %v1265, 4
      %v1268 = vor.u32 %v1267, %v1263
      %v1269 = vrot.slane %v1268, 4
      %v1271 = vshll.u32 %v1125, 16
      %v1273 = vrot.slane %v1271, 5
      %v1274 = vsel %vm1130, %v1269, %v1273
      %v1276 = vshrl.u32 %v1100, 16
      %v1278 = vrot.slane %v1276, 4
      %v1279 = vshll.u32 %v1100, 16
      %v1281 = vrot.slane %v1279, 5
      %v1282 = vor.u32 %v1278, %v1281
      %v1283 = vrot.slane %v1282, 4
      %v1285 = vshll.u32 %v1101, 16
      %v1287 = vrot.slane %v1285, 5
      %v1288 = vsel %vm1130, %v1283, %v1287
      %v1289 = vshrl.u32 %v1101, 16
      %v1291 = vrot.slane %v1289, 4
      %v1292 = vor.u32 %v1291, %v1287
      %v1293 = vrot.slane %v1292, 4
      %v1295 = vshll.u32 %v1126, 16
      %v1297 = vrot.slane %v1295, 5
      %v1298 = vsel %vm1130, %v1293, %v1297
      %v1300 = vshrl.u32 %v1102, 16
      %v1302 = vrot.slane %v1300, 4
      %v1303 = vshll.u32 %v1102, 16
      %v1305 = vrot.slane %v1303, 5
      %v1306 = vor.u32 %v1302, %v1305
      %v1307 = vrot.slane %v1306, 4
      %v1309 = vshll.u32 %v1103, 16
      %v1311 = vrot.slane %v1309, 5
      %v1312 = vsel %vm1130, %v1307, %v1311
      %v1313 = vshrl.u32 %v1103, 16
      %v1315 = vrot.slane %v1313, 4
      %v1316 = vor.u32 %v1315, %v1311
      %v1317 = vrot.slane %v1316, 4
      %v1319 = vshll.u32 %v1127, 16
      %v1321 = vrot.slane %v1319, 5
      %v1322 = vsel %vm1130, %v1317, %v1321
      %s1323 = scalar_lea.vmem %s3, 64
      %v1324 = vld [vmem:[%s1323] sm:$0xf]
      %v1325 = vld [vmem:[%s1323 + $0x4] sm:$0xf]
      %v1326 = vld [vmem:[%s1323 + $0x8] sm:$0xf]
      %v1327 = vld [vmem:[%s1323 + $0xc] sm:$0xf]
      %v1328 = vld [vmem:[%s1323 + $0x10] sm:$0xf]
      %v1329 = vld [vmem:[%s1323 + $0x14] sm:$0xf]
      %v1330 = vld [vmem:[%s1323 + $0x18] sm:$0xf]
      %v1331 = vld [vmem:[%s1323 + $0x1c] sm:$0xf]
      %v1332 = vld [vmem:[%s1323 + $0x20] sm:$0xf]
      %v1333 = vld [vmem:[%s1323 + $0x24] sm:$0xf]
      %v1334 = vld [vmem:[%s1323 + $0x28] sm:$0xf]
      %v1335 = vld [vmem:[%s1323 + $0x2c] sm:$0xf]
      %v1336 = vld [vmem:[%s1323 + $0x30] sm:$0xf]
      %v1337 = vld [vmem:[%s1323 + $0x34] sm:$0xf]
      %v1338 = vld [vmem:[%s1323 + $0x38] sm:$0xf]
      %v1339 = vld [vmem:[%s1323 + $0x3c] sm:$0xf]
      %v1340 = vunpack.c.l.b16 %v1144
      %v1341 = vunpack.c.l.b16 %v1154
      %v1342 = vunpack.c.l.b16 %v1168
      %v1343 = vunpack.c.l.b16 %v1178
      %v1344 = vunpack.c.l.b16 %v1192
      %v1345 = vunpack.c.l.b16 %v1202
      %v1346 = vunpack.c.l.b16 %v1216
      %v1347 = vunpack.c.l.b16 %v1226
      %v1348 = vunpack.c.l.b16 %v1240
      %v1349 = vunpack.c.l.b16 %v1250
      %v1350 = vunpack.c.l.b16 %v1264
      %v1351 = vunpack.c.l.b16 %v1274
      %v1352 = vunpack.c.l.b16 %v1288
      %v1353 = vunpack.c.l.b16 %v1298
      %v1354 = vunpack.c.l.b16 %v1312
      %v1355 = vunpack.c.l.b16 %v1322
      %v1356 = vpack.c.b16 %v1341, %v1340
      %v1357 = vpack.c.b16 %v1343, %v1342
      %v1358 = vpack.c.b16 %v1345, %v1344
      %v1359 = vpack.c.b16 %v1347, %v1346
      %v1360 = vpack.c.b16 %v1349, %v1348
      %v1361 = vpack.c.b16 %v1351, %v1350
      %v1362 = vpack.c.b16 %v1353, %v1352
      %v1363 = vpack.c.b16 %v1355, %v1354
      %v1388 = vunpack.c.l.b16 %v1324
      %v1389 = vunpack.c.l.b16 %v1325
      %v1390 = vunpack.c.l.b16 %v1326
      %v1391 = vunpack.c.l.b16 %v1327
      %v1392 = vunpack.c.l.b16 %v1328
      %v1393 = vunpack.c.l.b16 %v1329
      %v1394 = vunpack.c.l.b16 %v1330
      %v1395 = vunpack.c.l.b16 %v1331
      %v1396 = vunpack.c.l.b16 %v1332
      %v1397 = vunpack.c.l.b16 %v1333
      %v1398 = vunpack.c.l.b16 %v1334
      %v1399 = vunpack.c.l.b16 %v1335
      %v1400 = vunpack.c.l.b16 %v1336
      %v1401 = vunpack.c.l.b16 %v1337
      %v1402 = vunpack.c.l.b16 %v1338
      %v1403 = vunpack.c.l.b16 %v1339
      %v1404 = vpack.c.b16 %v1389, %v1388
      %v1405 = vpack.c.b16 %v1391, %v1390
      %v1406 = vpack.c.b16 %v1393, %v1392
      %v1407 = vpack.c.b16 %v1395, %v1394
      %v1408 = vpack.c.b16 %v1397, %v1396
      %v1409 = vpack.c.b16 %v1399, %v1398
      %v1410 = vpack.c.b16 %v1401, %v1400
      %v1411 = vpack.c.b16 %v1403, %v1402
      %1420 = vmatprep.subr.bf16.mxu0 0
      %1421 = vmatpush1.bf16.msra.mxu0 %v1404
      %1422 = vmatprep.subr.bf16.mxu0 0
      %1423 = vmatpush1.bf16.msra.mxu0 %v1405
      %1424 = vmatprep.subr.bf16.mxu0 0
      %1425 = vmatpush1.bf16.msra.mxu0 %v1406
      %1426 = vmatprep.subr.bf16.mxu0 0
      %1427 = vmatpush1.bf16.msra.mxu0 %v1407
      %1428 = vmatprep.subr.bf16.mxu0 0
      %1429 = vmatpush1.bf16.msra.mxu0 %v1408
      %1430 = vmatprep.subr.bf16.mxu0 0
      %1431 = vmatpush1.bf16.msra.mxu0 %v1409
      %1432 = vmatprep.subr.bf16.mxu0 0
      %1433 = vmatpush1.bf16.msra.mxu0 %v1410
      %1434 = vmatprep.subr.bf16.mxu0 0
      %1435 = vmatpush1.bf16.msra.mxu0 %v1411
      %1436 = vmatprep.subr.bf16.mxu0 0
      %1437 = vmatpush1.bf16.msra.mxu0 0
      %1438 = vmatprep.subr.bf16.mxu0 0
      %1439 = vmatpush1.bf16.msra.mxu0 0
      %1440 = vmatprep.subr.bf16.mxu0 0
      %1441 = vmatpush1.bf16.msra.mxu0 0
      %1442 = vmatprep.subr.bf16.mxu0 0
      %1443 = vmatpush1.bf16.msra.mxu0 0
      %1444 = vmatprep.subr.bf16.mxu0 0
      %1445 = vmatpush1.bf16.msra.mxu0 0
      %1446 = vmatprep.subr.bf16.mxu0 0
      %1447 = vmatpush1.bf16.msra.mxu0 0
      %1448 = vmatprep.subr.bf16.mxu0 0
      %1449 = vmatpush1.bf16.msra.mxu0 0
      %1450 = vmatprep.subr.bf16.mxu0 0
      %1451 = vmatpush1.bf16.msra.mxu0 0
      %1452 = vmatprep.mubr.bf16.mxu0 0
      %1453 = vmatmul.mubr.bf16.gmra.mrb[0].mxu0 %v1356
      %v1454 = vpop.f32.mrb[0].mxu0
      %v1455 = vadd.f32 0.0, %v1454
      %v1456 = vpop.f32.mrb[0].mxu0
      %v1457 = vpop.f32.mrb[0].mxu0
      %v1458 = vadd.f32 0.0, %v1457
      %v1459 = vpop.f32.mrb[0].mxu0
      %1460 = vmatprep.mubr.bf16.mxu0 0
      %1461 = vmatmul.mubr.bf16.gmra.mrb[0].mxu0 %v1357
      %v1462 = vpop.f32.mrb[0].mxu0
      %v1463 = vadd.f32 0.0, %v1462
      %v1464 = vpop.f32.mrb[0].mxu0
      %v1465 = vpop.f32.mrb[0].mxu0
      %v1466 = vadd.f32 0.0, %v1465
      %v1467 = vpop.f32.mrb[0].mxu0
      %1468 = vmatprep.mubr.bf16.mxu0 0
      %1469 = vmatmul.mubr.bf16.gmra.mrb[0].mxu0 %v1358
      %v1470 = vpop.f32.mrb[0].mxu0
      %v1471 = vadd.f32 0.0, %v1470
      %v1472 = vpop.f32.mrb[0].mxu0
      %v1473 = vpop.f32.mrb[0].mxu0
      %v1474 = vadd.f32 0.0, %v1473
      %v1475 = vpop.f32.mrb[0].mxu0
      %1476 = vmatprep.mubr.bf16.mxu0 0
      %1477 = vmatmul.mubr.bf16.gmra.mrb[0].mxu0 %v1359
      %v1478 = vpop.f32.mrb[0].mxu0
      %v1479 = vadd.f32 0.0, %v1478
      %v1480 = vpop.f32.mrb[0].mxu0
      %v1481 = vpop.f32.mrb[0].mxu0
      %v1482 = vadd.f32 0.0, %v1481
      %v1483 = vpop.f32.mrb[0].mxu0
      %1484 = vmatprep.mubr.bf16.mxu0 0
      %1485 = vmatmul.mubr.bf16.gmra.mrb[0].mxu0 %v1360
      %v1486 = vpop.f32.mrb[0].mxu0
      %v1487 = vadd.f32 0.0, %v1486
      %v1488 = vpop.f32.mrb[0].mxu0
      %v1489 = vpop.f32.mrb[0].mxu0
      %v1490 = vadd.f32 0.0, %v1489
      %v1491 = vpop.f32.mrb[0].mxu0
      %1492 = vmatprep.mubr.bf16.mxu0 0
      %1493 = vmatmul.mubr.bf16.gmra.mrb[0].mxu0 %v1361
      %v1494 = vpop.f32.mrb[0].mxu0
      %v1495 = vadd.f32 0.0, %v1494
      %v1496 = vpop.f32.mrb[0].mxu0
      %v1497 = vpop.f32.mrb[0].mxu0
      %v1498 = vadd.f32 0.0, %v1497
      %v1499 = vpop.f32.mrb[0].mxu0
      %1500 = vmatprep.mubr.bf16.mxu0 0
      %1501 = vmatmul.mubr.bf16.gmra.mrb[0].mxu0 %v1362
      %v1502 = vpop.f32.mrb[0].mxu0
      %v1503 = vadd.f32 0.0, %v1502
      %v1504 = vpop.f32.mrb[0].mxu0
      %v1505 = vpop.f32.mrb[0].mxu0
      %v1506 = vadd.f32 0.0, %v1505
      %v1507 = vpop.f32.mrb[0].mxu0
      %1508 = vmatprep.mubr.bf16.mxu0 0
      %1509 = vmatmul.mubr.bf16.gmra.mrb[0].mxu0 %v1363
      %v1510 = vpop.f32.mrb[0].mxu0
      %v1511 = vadd.f32 0.0, %v1510
      %v1512 = vpop.f32.mrb[0].mxu0
      %v1513 = vpop.f32.mrb[0].mxu0
      %v1514 = vadd.f32 0.0, %v1513
      %v1515 = vpop.f32.mrb[0].mxu0
      %1516 = vdwg.mxu0
      %v1533 = vunpack.c.l.b16 %v1088
      %v1534 = vunpack.c.l.b16 %v1089
      %v1535 = vunpack.c.l.b16 %v1090
      %v1536 = vunpack.c.l.b16 %v1091
      %v1537 = vunpack.c.l.b16 %v1092
      %v1538 = vunpack.c.l.b16 %v1093
      %v1539 = vunpack.c.l.b16 %v1094
      %v1540 = vunpack.c.l.b16 %v1095
      %v1541 = vunpack.c.l.b16 %v1096
      %v1542 = vunpack.c.l.b16 %v1097
      %v1543 = vunpack.c.l.b16 %v1098
      %v1544 = vunpack.c.l.b16 %v1099
      %v1545 = vunpack.c.l.b16 %v1100
      %v1546 = vunpack.c.l.b16 %v1101
      %v1547 = vunpack.c.l.b16 %v1102
      %v1548 = vunpack.c.l.b16 %v1103
      %v1549 = vpack.c.b16 %v1534, %v1533
      %v1550 = vpack.c.b16 %v1536, %v1535
      %v1551 = vpack.c.b16 %v1538, %v1537
      %v1552 = vpack.c.b16 %v1540, %v1539
      %v1553 = vpack.c.b16 %v1542, %v1541
      %v1554 = vpack.c.b16 %v1544, %v1543
      %v1555 = vpack.c.b16 %v1546, %v1545
      %v1556 = vpack.c.b16 %v1548, %v1547
      %v1581 = vunpack.c.l.b16 %v1104
      %v1582 = vunpack.c.l.b16 %v1105
      %v1583 = vunpack.c.l.b16 %v1106
      %v1584 = vunpack.c.l.b16 %v1107
      %v1585 = vunpack.c.l.b16 %v1108
      %v1586 = vunpack.c.l.b16 %v1109
      %v1587 = vunpack.c.l.b16 %v1110
      %v1588 = vunpack.c.l.b16 %v1111
      %v1589 = vunpack.c.l.b16 %v1112
      %v1590 = vunpack.c.l.b16 %v1113
      %v1591 = vunpack.c.l.b16 %v1114
      %v1592 = vunpack.c.l.b16 %v1115
      %v1593 = vunpack.c.l.b16 %v1116
      %v1594 = vunpack.c.l.b16 %v1117
      %v1595 = vunpack.c.l.b16 %v1118
      %v1596 = vunpack.c.l.b16 %v1119
      %v1597 = vpack.c.b16 %v1582, %v1581
      %v1598 = vpack.c.b16 %v1584, %v1583
      %v1599 = vpack.c.b16 %v1586, %v1585
      %v1600 = vpack.c.b16 %v1588, %v1587
      %v1601 = vpack.c.b16 %v1590, %v1589
      %v1602 = vpack.c.b16 %v1592, %v1591
      %v1603 = vpack.c.b16 %v1594, %v1593
      %v1604 = vpack.c.b16 %v1596, %v1595
      %1613 = vmatprep.subr.bf16.mxu0 0
      %1614 = vmatpush1.bf16.msra.mxu0 %v1597
      %1615 = vmatprep.subr.bf16.mxu0 0
      %1616 = vmatpush1.bf16.msra.mxu0 %v1598
      %1617 = vmatprep.subr.bf16.mxu0 0
      %1618 = vmatpush1.bf16.msra.mxu0 %v1599
      %1619 = vmatprep.subr.bf16.mxu0 0
      %1620 = vmatpush1.bf16.msra.mxu0 %v1600
      %1621 = vmatprep.subr.bf16.mxu0 0
      %1622 = vmatpush1.bf16.msra.mxu0 %v1601
      %1623 = vmatprep.subr.bf16.mxu0 0
      %1624 = vmatpush1.bf16.msra.mxu0 %v1602
      %1625 = vmatprep.subr.bf16.mxu0 0
      %1626 = vmatpush1.bf16.msra.mxu0 %v1603
      %1627 = vmatprep.subr.bf16.mxu0 0
      %1628 = vmatpush1.bf16.msra.mxu0 %v1604
      %1629 = vmatprep.subr.bf16.mxu0 0
      %1630 = vmatpush1.bf16.msra.mxu0 0
      %1631 = vmatprep.subr.bf16.mxu0 0
      %1632 = vmatpush1.bf16.msra.mxu0 0
      %1633 = vmatprep.subr.bf16.mxu0 0
      %1634 = vmatpush1.bf16.msra.mxu0 0
      %1635 = vmatprep.subr.bf16.mxu0 0
      %1636 = vmatpush1.bf16.msra.mxu0 0
      %1637 = vmatprep.subr.bf16.mxu0 0
      %1638 = vmatpush1.bf16.msra.mxu0 0
      %1639 = vmatprep.subr.bf16.mxu0 0
      %1640 = vmatpush1.bf16.msra.mxu0 0
      %1641 = vmatprep.subr.bf16.mxu0 0
      %1642 = vmatpush1.bf16.msra.mxu0 0
      %1643 = vmatprep.subr.bf16.mxu0 0
      %1644 = vmatpush1.bf16.msra.mxu0 0
      %1645 = vmatprep.mubr.bf16.mxu0 0
      %1646 = vmatmul.mubr.bf16.gmra.mrb[0].mxu0 %v1549
      %v1647 = vpop.f32.mrb[0].mxu0
      %v1648 = vadd.f32 %v1455, %v1647
      %v1649 = vpop.f32.mrb[0].mxu0
      %v1650 = vpop.f32.mrb[0].mxu0
      %v1651 = vadd.f32 %v1458, %v1650
      %v1652 = vpop.f32.mrb[0].mxu0
      %1653 = vmatprep.mubr.bf16.mxu0 0
      %1654 = vmatmul.mubr.bf16.gmra.mrb[0].mxu0 %v1550
      %v1655 = vpop.f32.mrb[0].mxu0
      %v1656 = vadd.f32 %v1463, %v1655
      %v1657 = vpop.f32.mrb[0].mxu0
      %v1658 = vpop.f32.mrb[0].mxu0
      %v1659 = vadd.f32 %v1466, %v1658
      %v1660 = vpop.f32.mrb[0].mxu0
      %1661 = vmatprep.mubr.bf16.mxu0 0
      %1662 = vmatmul.mubr.bf16.gmra.mrb[0].mxu0 %v1551
      %v1663 = vpop.f32.mrb[0].mxu0
      %v1664 = vadd.f32 %v1471, %v1663
      %v1665 = vpop.f32.mrb[0].mxu0
      %v1666 = vpop.f32.mrb[0].mxu0
      %v1667 = vadd.f32 %v1474, %v1666
      %v1668 = vpop.f32.mrb[0].mxu0
      %1669 = vmatprep.mubr.bf16.mxu0 0
      %1670 = vmatmul.mubr.bf16.gmra.mrb[0].mxu0 %v1552
      %v1671 = vpop.f32.mrb[0].mxu0
      %v1672 = vadd.f32 %v1479, %v1671
      %v1673 = vpop.f32.mrb[0].mxu0
      %v1674 = vpop.f32.mrb[0].mxu0
      %v1675 = vadd.f32 %v1482, %v1674
      %v1676 = vpop.f32.mrb[0].mxu0
      %1677 = vmatprep.mubr.bf16.mxu0 0
      %1678 = vmatmul.mubr.bf16.gmra.mrb[0].mxu0 %v1553
      %v1679 = vpop.f32.mrb[0].mxu0
      %v1680 = vadd.f32 %v1487, %v1679
      %v1681 = vpop.f32.mrb[0].mxu0
      %v1682 = vpop.f32.mrb[0].mxu0
      %v1683 = vadd.f32 %v1490, %v1682
      %v1684 = vpop.f32.mrb[0].mxu0
      %1685 = vmatprep.mubr.bf16.mxu0 0
      %1686 = vmatmul.mubr.bf16.gmra.mrb[0].mxu0 %v1554
      %v1687 = vpop.f32.mrb[0].mxu0
      %v1688 = vadd.f32 %v1495, %v1687
      %v1689 = vpop.f32.mrb[0].mxu0
      %v1690 = vpop.f32.mrb[0].mxu0
      %v1691 = vadd.f32 %v1498, %v1690
      %v1692 = vpop.f32.mrb[0].mxu0
      %1693 = vmatprep.mubr.bf16.mxu0 0
      %1694 = vmatmul.mubr.bf16.gmra.mrb[0].mxu0 %v1555
      %v1695 = vpop.f32.mrb[0].mxu0
      %v1696 = vadd.f32 %v1503, %v1695
      %v1697 = vpop.f32.mrb[0].mxu0
      %v1698 = vpop.f32.mrb[0].mxu0
      %v1699 = vadd.f32 %v1506, %v1698
      %v1700 = vpop.f32.mrb[0].mxu0
      %1701 = vmatprep.mubr.bf16.mxu0 0
      %1702 = vmatmul.mubr.bf16.gmra.mrb[0].mxu0 %v1556
      %v1703 = vpop.f32.mrb[0].mxu0
      %v1704 = vadd.f32 %v1511, %v1703
      %v1705 = vpop.f32.mrb[0].mxu0
      %v1706 = vpop.f32.mrb[0].mxu0
      %v1707 = vadd.f32 %v1514, %v1706
      %v1708 = vpop.f32.mrb[0].mxu0
      %1709 = vdwg.mxu0
      %v1710 = vld [vmem:[%s1087] sm:$0xe]
      %v1711 = vld [vmem:[%s1087 + $0xc] sm:$0xe]
      %v1712 = vld [vmem:[%s1087 + $0x18] sm:$0xe]
      %v1713 = vld [vmem:[%s1087 + $0x24] sm:$0xe]
      %v1714 = vld [vmem:[%s1087 + $0x30] sm:$0xe]
      %v1715 = vld [vmem:[%s1087 + $0x3c] sm:$0xe]
      %v1716 = vld [vmem:[%s1087 + $0x48] sm:$0xe]
      %v1717 = vld [vmem:[%s1087 + $0x54] sm:$0xe]
      %vm1734 = vcmask 1042432
      %vm1735 = vcmask 1046532
      %vm1736 = vmor %vm1734, %vm1735
      %v1737 = vrot.slane %v1710, 5
      %v1738 = vrot.slane %v1737, 4
      %v1739 = vrot.slane %v1089, 5
      %v1740 = vsel %vm1736, %v1738, %v1739
      %v1741 = vrot.slane %v1739, 4
      %v1742 = vrot.slane %v1120, 5
      %v1743 = vsel %vm1736, %v1741, %v1742
      %v1744 = vrot.slane %v1711, 5
      %v1745 = vrot.slane %v1744, 4
      %v1746 = vrot.slane %v1091, 5
      %v1747 = vsel %vm1736, %v1745, %v1746
      %v1748 = vrot.slane %v1746, 4
      %v1749 = vrot.slane %v1121, 5
      %v1750 = vsel %vm1736, %v1748, %v1749
      %v1751 = vrot.slane %v1712, 5
      %v1752 = vrot.slane %v1751, 4
      %v1753 = vrot.slane %v1093, 5
      %v1754 = vsel %vm1736, %v1752, %v1753
      %v1755 = vrot.slane %v1753, 4
      %v1756 = vrot.slane %v1122, 5
      %v1757 = vsel %vm1736, %v1755, %v1756
      %v1758 = vrot.slane %v1713, 5
      %v1759 = vrot.slane %v1758, 4
      %v1760 = vrot.slane %v1095, 5
      %v1761 = vsel %vm1736, %v1759, %v1760
      %v1762 = vrot.slane %v1760, 4
      %v1763 = vrot.slane %v1123, 5
      %v1764 = vsel %vm1736, %v1762, %v1763
      %v1765 = vrot.slane %v1714, 5
      %v1766 = vrot.slane %v1765, 4
      %v1767 = vrot.slane %v1097, 5
      %v1768 = vsel %vm1736, %v1766, %v1767
      %v1769 = vrot.slane %v1767, 4
      %v1770 = vrot.slane %v1124, 5
      %v1771 = vsel %vm1736, %v1769, %v1770
      %v1772 = vrot.slane %v1715, 5
      %v1773 = vrot.slane %v1772, 4
      %v1774 = vrot.slane %v1099, 5
      %v1775 = vsel %vm1736, %v1773, %v1774
      %v1776 = vrot.slane %v1774, 4
      %v1777 = vrot.slane %v1125, 5
      %v1778 = vsel %vm1736, %v1776, %v1777
      %v1779 = vrot.slane %v1716, 5
      %v1780 = vrot.slane %v1779, 4
      %v1781 = vrot.slane %v1101, 5
      %v1782 = vsel %vm1736, %v1780, %v1781
      %v1783 = vrot.slane %v1781, 4
      %v1784 = vrot.slane %v1126, 5
      %v1785 = vsel %vm1736, %v1783, %v1784
      %v1786 = vrot.slane %v1717, 5
      %v1787 = vrot.slane %v1786, 4
      %v1788 = vrot.slane %v1103, 5
      %v1789 = vsel %vm1736, %v1787, %v1788
      %v1790 = vrot.slane %v1788, 4
      %v1791 = vrot.slane %v1127, 5
      %v1792 = vsel %vm1736, %v1790, %v1791
      %s1793 = scalar_lea.vmem %s3, 128
      %v1794 = vld [vmem:[%s1793] sm:$0xf]
      %v1795 = vld [vmem:[%s1793 + $0x4] sm:$0xf]
      %v1796 = vld [vmem:[%s1793 + $0x8] sm:$0xf]
      %v1797 = vld [vmem:[%s1793 + $0xc] sm:$0xf]
      %v1798 = vld [vmem:[%s1793 + $0x10] sm:$0xf]
      %v1799 = vld [vmem:[%s1793 + $0x14] sm:$0xf]
      %v1800 = vld [vmem:[%s1793 + $0x18] sm:$0xf]
      %v1801 = vld [vmem:[%s1793 + $0x1c] sm:$0xf]
      %v1802 = vld [vmem:[%s1793 + $0x20] sm:$0xf]
      %v1803 = vld [vmem:[%s1793 + $0x24] sm:$0xf]
      %v1804 = vld [vmem:[%s1793 + $0x28] sm:$0xf]
      %v1805 = vld [vmem:[%s1793 + $0x2c] sm:$0xf]
      %v1806 = vld [vmem:[%s1793 + $0x30] sm:$0xf]
      %v1807 = vld [vmem:[%s1793 + $0x34] sm:$0xf]
      %v1808 = vld [vmem:[%s1793 + $0x38] sm:$0xf]
      %v1809 = vld [vmem:[%s1793 + $0x3c] sm:$0xf]
      %v1810 = vunpack.c.l.b16 %v1740
      %v1811 = vunpack.c.l.b16 %v1743
      %v1812 = vunpack.c.l.b16 %v1747
      %v1813 = vunpack.c.l.b16 %v1750
      %v1814 = vunpack.c.l.b16 %v1754
      %v1815 = vunpack.c.l.b16 %v1757
      %v1816 = vunpack.c.l.b16 %v1761
      %v1817 = vunpack.c.l.b16 %v1764
      %v1818 = vunpack.c.l.b16 %v1768
      %v1819 = vunpack.c.l.b16 %v1771
      %v1820 = vunpack.c.l.b16 %v1775
      %v1821 = vunpack.c.l.b16 %v1778
      %v1822 = vunpack.c.l.b16 %v1782
      %v1823 = vunpack.c.l.b16 %v1785
      %v1824 = vunpack.c.l.b16 %v1789
      %v1825 = vunpack.c.l.b16 %v1792
      %v1826 = vpack.c.b16 %v1811, %v1810
      %v1827 = vpack.c.b16 %v1813, %v1812
      %v1828 = vpack.c.b16 %v1815, %v1814
      %v1829 = vpack.c.b16 %v1817, %v1816
      %v1830 = vpack.c.b16 %v1819, %v1818
      %v1831 = vpack.c.b16 %v1821, %v1820
      %v1832 = vpack.c.b16 %v1823, %v1822
      %v1833 = vpack.c.b16 %v1825, %v1824
      %v1858 = vunpack.c.l.b16 %v1794
      %v1859 = vunpack.c.l.b16 %v1795
      %v1860 = vunpack.c.l.b16 %v1796
      %v1861 = vunpack.c.l.b16 %v1797
      %v1862 = vunpack.c.l.b16 %v1798
      %v1863 = vunpack.c.l.b16 %v1799
      %v1864 = vunpack.c.l.b16 %v1800
      %v1865 = vunpack.c.l.b16 %v1801
      %v1866 = vunpack.c.l.b16 %v1802
      %v1867 = vunpack.c.l.b16 %v1803
      %v1868 = vunpack.c.l.b16 %v1804
      %v1869 = vunpack.c.l.b16 %v1805
      %v1870 = vunpack.c.l.b16 %v1806
      %v1871 = vunpack.c.l.b16 %v1807
      %v1872 = vunpack.c.l.b16 %v1808
      %v1873 = vunpack.c.l.b16 %v1809
      %v1874 = vpack.c.b16 %v1859, %v1858
      %v1875 = vpack.c.b16 %v1861, %v1860
      %v1876 = vpack.c.b16 %v1863, %v1862
      %v1877 = vpack.c.b16 %v1865, %v1864
      %v1878 = vpack.c.b16 %v1867, %v1866
      %v1879 = vpack.c.b16 %v1869, %v1868
      %v1880 = vpack.c.b16 %v1871, %v1870
      %v1881 = vpack.c.b16 %v1873, %v1872
      %1890 = vmatprep.subr.bf16.mxu0 0
      %1891 = vmatpush1.bf16.msra.mxu0 %v1874
      %1892 = vmatprep.subr.bf16.mxu0 0
      %1893 = vmatpush1.bf16.msra.mxu0 %v1875
      %1894 = vmatprep.subr.bf16.mxu0 0
      %1895 = vmatpush1.bf16.msra.mxu0 %v1876
      %1896 = vmatprep.subr.bf16.mxu0 0
      %1897 = vmatpush1.bf16.msra.mxu0 %v1877
      %1898 = vmatprep.subr.bf16.mxu0 0
      %1899 = vmatpush1.bf16.msra.mxu0 %v1878
      %1900 = vmatprep.subr.bf16.mxu0 0
      %1901 = vmatpush1.bf16.msra.mxu0 %v1879
      %1902 = vmatprep.subr.bf16.mxu0 0
      %1903 = vmatpush1.bf16.msra.mxu0 %v1880
      %1904 = vmatprep.subr.bf16.mxu0 0
      %1905 = vmatpush1.bf16.msra.mxu0 %v1881
      %1906 = vmatprep.subr.bf16.mxu0 0
      %1907 = vmatpush1.bf16.msra.mxu0 0
      %1908 = vmatprep.subr.bf16.mxu0 0
      %1909 = vmatpush1.bf16.msra.mxu0 0
      %1910 = vmatprep.subr.bf16.mxu0 0
      %1911 = vmatpush1.bf16.msra.mxu0 0
      %1912 = vmatprep.subr.bf16.mxu0 0
      %1913 = vmatpush1.bf16.msra.mxu0 0
      %1914 = vmatprep.subr.bf16.mxu0 0
      %1915 = vmatpush1.bf16.msra.mxu0 0
      %1916 = vmatprep.subr.bf16.mxu0 0
      %1917 = vmatpush1.bf16.msra.mxu0 0
      %1918 = vmatprep.subr.bf16.mxu0 0
      %1919 = vmatpush1.bf16.msra.mxu0 0
      %1920 = vmatprep.subr.bf16.mxu0 0
      %1921 = vmatpush1.bf16.msra.mxu0 0
      %1922 = vmatprep.mubr.bf16.mxu0 0
      %1923 = vmatmul.mubr.bf16.gmra.mrb[0].mxu0 %v1826
      %v1924 = vpop.f32.mrb[0].mxu0
      %v1925 = vadd.f32 0.0, %v1924
      %v1926 = vpop.f32.mrb[0].mxu0
      %v1927 = vpop.f32.mrb[0].mxu0
      %v1928 = vadd.f32 0.0, %v1927
      %v1929 = vpop.f32.mrb[0].mxu0
      %1930 = vmatprep.mubr.bf16.mxu0 0
      %1931 = vmatmul.mubr.bf16.gmra.mrb[0].mxu0 %v1827
      %v1932 = vpop.f32.mrb[0].mxu0
      %v1933 = vadd.f32 0.0, %v1932
      %v1934 = vpop.f32.mrb[0].mxu0
      %v1935 = vpop.f32.mrb[0].mxu0
      %v1936 = vadd.f32 0.0, %v1935
      %v1937 = vpop.f32.mrb[0].mxu0
      %1938 = vmatprep.mubr.bf16.mxu0 0
      %1939 = vmatmul.mubr.bf16.gmra.mrb[0].mxu0 %v1828
      %v1940 = vpop.f32.mrb[0].mxu0
      %v1941 = vadd.f32 0.0, %v1940
      %v1942 = vpop.f32.mrb[0].mxu0
      %v1943 = vpop.f32.mrb[0].mxu0
      %v1944 = vadd.f32 0.0, %v1943
      %v1945 = vpop.f32.mrb[0].mxu0
      %1946 = vmatprep.mubr.bf16.mxu0 0
      %1947 = vmatmul.mubr.bf16.gmra.mrb[0].mxu0 %v1829
      %v1948 = vpop.f32.mrb[0].mxu0
      %v1949 = vadd.f32 0.0, %v1948
      %v1950 = vpop.f32.mrb[0].mxu0
      %v1951 = vpop.f32.mrb[0].mxu0
      %v1952 = vadd.f32 0.0, %v1951
      %v1953 = vpop.f32.mrb[0].mxu0
      %1954 = vmatprep.mubr.bf16.mxu0 0
      %1955 = vmatmul.mubr.bf16.gmra.mrb[0].mxu0 %v1830
      %v1956 = vpop.f32.mrb[0].mxu0
      %v1957 = vadd.f32 0.0, %v1956
      %v1958 = vpop.f32.mrb[0].mxu0
      %v1959 = vpop.f32.mrb[0].mxu0
      %v1960 = vadd.f32 0.0, %v1959
      %v1961 = vpop.f32.mrb[0].mxu0
      %1962 = vmatprep.mubr.bf16.mxu0 0
      %1963 = vmatmul.mubr.bf16.gmra.mrb[0].mxu0 %v1831
      %v1964 = vpop.f32.mrb[0].mxu0
      %v1965 = vadd.f32 0.0, %v1964
      %v1966 = vpop.f32.mrb[0].mxu0
      %v1967 = vpop.f32.mrb[0].mxu0
      %v1968 = vadd.f32 0.0, %v1967
      %v1969 = vpop.f32.mrb[0].mxu0
      %1970 = vmatprep.mubr.bf16.mxu0 0
      %1971 = vmatmul.mubr.bf16.gmra.mrb[0].mxu0 %v1832
      %v1972 = vpop.f32.mrb[0].mxu0
      %v1973 = vadd.f32 0.0, %v1972
      %v1974 = vpop.f32.mrb[0].mxu0
      %v1975 = vpop.f32.mrb[0].mxu0
      %v1976 = vadd.f32 0.0, %v1975
      %v1977 = vpop.f32.mrb[0].mxu0
      %1978 = vmatprep.mubr.bf16.mxu0 0
      %1979 = vmatmul.mubr.bf16.gmra.mrb[0].mxu0 %v1833
      %v1980 = vpop.f32.mrb[0].mxu0
      %v1981 = vadd.f32 0.0, %v1980
      %v1982 = vpop.f32.mrb[0].mxu0
      %v1983 = vpop.f32.mrb[0].mxu0
      %v1984 = vadd.f32 0.0, %v1983
      %v1985 = vpop.f32.mrb[0].mxu0
      %1986 = vdwg.mxu0
      %v1987 = vadd.f32 %v1648, %v1925
      %v1988 = vadd.f32 %v1651, %v1928
      %v1989 = vadd.f32 %v1656, %v1933
      %v1990 = vadd.f32 %v1659, %v1936
      %v1991 = vadd.f32 %v1664, %v1941
      %v1992 = vadd.f32 %v1667, %v1944
      %v1993 = vadd.f32 %v1672, %v1949
      %v1994 = vadd.f32 %v1675, %v1952
      %v1995 = vadd.f32 %v1680, %v1957
      %v1996 = vadd.f32 %v1683, %v1960
      %v1997 = vadd.f32 %v1688, %v1965
      %v1998 = vadd.f32 %v1691, %v1968
      %v1999 = vadd.f32 %v1696, %v1973
      %v2000 = vadd.f32 %v1699, %v1976
      %v2001 = vadd.f32 %v1704, %v1981
      %v2002 = vadd.f32 %v1707, %v1984
      %s2003 = sadd.s32 %s1084, 1
      %s2004 = smul.u32 %s2003, 3
      %s2005 = smul.addr %s2004, 4
      %s2006 = scalar_lea.vmem [#allocation2], %s2005
      %v2007 = vld [vmem:[%s2006] sm:$0xf]
      %v2008 = vld [vmem:[%s2006 + $0x4] sm:$0xf]
      %v2009 = vld [vmem:[%s2006 + $0xc] sm:$0xf]
      %v2010 = vld [vmem:[%s2006 + $0x10] sm:$0xf]
      %v2011 = vld [vmem:[%s2006 + $0x18] sm:$0xf]
      %v2012 = vld [vmem:[%s2006 + $0x1c] sm:$0xf]
      %v2013 = vld [vmem:[%s2006 + $0x24] sm:$0xf]
      %v2014 = vld [vmem:[%s2006 + $0x28] sm:$0xf]
      %v2015 = vld [vmem:[%s2006 + $0x30] sm:$0xf]
      %v2016 = vld [vmem:[%s2006 + $0x34] sm:$0xf]
      %v2017 = vld [vmem:[%s2006 + $0x3c] sm:$0xf]
      %v2018 = vld [vmem:[%s2006 + $0x40] sm:$0xf]
      %v2019 = vld [vmem:[%s2006 + $0x48] sm:$0xf]
      %v2020 = vld [vmem:[%s2006 + $0x4c] sm:$0xf]
      %v2021 = vld [vmem:[%s2006 + $0x54] sm:$0xf]
      %v2022 = vld [vmem:[%s2006 + $0x58] sm:$0xf]
      %s2023 = scalar_lea.vmem %s3, 192
      %v2024 = vld [vmem:[%s2023] sm:$0xf]
      %v2025 = vld [vmem:[%s2023 + $0x4] sm:$0xf]
      %v2026 = vld [vmem:[%s2023 + $0x8] sm:$0xf]
      %v2027 = vld [vmem:[%s2023 + $0xc] sm:$0xf]
      %v2028 = vld [vmem:[%s2023 + $0x10] sm:$0xf]
      %v2029 = vld [vmem:[%s2023 + $0x14] sm:$0xf]
      %v2030 = vld [vmem:[%s2023 + $0x18] sm:$0xf]
      %v2031 = vld [vmem:[%s2023 + $0x1c] sm:$0xf]
      %v2032 = vld [vmem:[%s2023 + $0x20] sm:$0xf]
      %v2033 = vld [vmem:[%s2023 + $0x24] sm:$0xf]
      %v2034 = vld [vmem:[%s2023 + $0x28] sm:$0xf]
      %v2035 = vld [vmem:[%s2023 + $0x2c] sm:$0xf]
      %v2036 = vld [vmem:[%s2023 + $0x30] sm:$0xf]
      %v2037 = vld [vmem:[%s2023 + $0x34] sm:$0xf]
      %v2038 = vld [vmem:[%s2023 + $0x38] sm:$0xf]
      %v2039 = vld [vmem:[%s2023 + $0x3c] sm:$0xf]
      %v2056 = vunpack.c.l.b16 %v2007
      %v2057 = vunpack.c.l.b16 %v2008
      %v2058 = vunpack.c.l.b16 %v2009
      %v2059 = vunpack.c.l.b16 %v2010
      %v2060 = vunpack.c.l.b16 %v2011
      %v2061 = vunpack.c.l.b16 %v2012
      %v2062 = vunpack.c.l.b16 %v2013
      %v2063 = vunpack.c.l.b16 %v2014
      %v2064 = vunpack.c.l.b16 %v2015
      %v2065 = vunpack.c.l.b16 %v2016
      %v2066 = vunpack.c.l.b16 %v2017
      %v2067 = vunpack.c.l.b16 %v2018
      %v2068 = vunpack.c.l.b16 %v2019
      %v2069 = vunpack.c.l.b16 %v2020
      %v2070 = vunpack.c.l.b16 %v2021
      %v2071 = vunpack.c.l.b16 %v2022
      %v2072 = vpack.c.b16 %v2057, %v2056
      %v2073 = vpack.c.b16 %v2059, %v2058
      %v2074 = vpack.c.b16 %v2061, %v2060
      %v2075 = vpack.c.b16 %v2063, %v2062
      %v2076 = vpack.c.b16 %v2065, %v2064
      %v2077 = vpack.c.b16 %v2067, %v2066
      %v2078 = vpack.c.b16 %v2069, %v2068
      %v2079 = vpack.c.b16 %v2071, %v2070
      %v2104 = vunpack.c.l.b16 %v2024
      %v2105 = vunpack.c.l.b16 %v2025
      %v2106 = vunpack.c.l.b16 %v2026
      %v2107 = vunpack.c.l.b16 %v2027
      %v2108 = vunpack.c.l.b16 %v2028
      %v2109 = vunpack.c.l.b16 %v2029
      %v2110 = vunpack.c.l.b16 %v2030
      %v2111 = vunpack.c.l.b16 %v2031
      %v2112 = vunpack.c.l.b16 %v2032
      %v2113 = vunpack.c.l.b16 %v2033
      %v2114 = vunpack.c.l.b16 %v2034
      %v2115 = vunpack.c.l.b16 %v2035
      %v2116 = vunpack.c.l.b16 %v2036
      %v2117 = vunpack.c.l.b16 %v2037
      %v2118 = vunpack.c.l.b16 %v2038
      %v2119 = vunpack.c.l.b16 %v2039
      %v2120 = vpack.c.b16 %v2105, %v2104
      %v2121 = vpack.c.b16 %v2107, %v2106
      %v2122 = vpack.c.b16 %v2109, %v2108
      %v2123 = vpack.c.b16 %v2111, %v2110
      %v2124 = vpack.c.b16 %v2113, %v2112
      %v2125 = vpack.c.b16 %v2115, %v2114
      %v2126 = vpack.c.b16 %v2117, %v2116
      %v2127 = vpack.c.b16 %v2119, %v2118
      %2136 = vmatprep.subr.bf16.mxu0 0
      %2137 = vmatpush1.bf16.msra.mxu0 %v2120
      %2138 = vmatprep.subr.bf16.mxu0 0
      %2139 = vmatpush1.bf16.msra.mxu0 %v2121
      %2140 = vmatprep.subr.bf16.mxu0 0
      %2141 = vmatpush1.bf16.msra.mxu0 %v2122
      %2142 = vmatprep.subr.bf16.mxu0 0
      %2143 = vmatpush1.bf16.msra.mxu0 %v2123
      %2144 = vmatprep.subr.bf16.mxu0 0
      %2145 = vmatpush1.bf16.msra.mxu0 %v2124
      %2146 = vmatprep.subr.bf16.mxu0 0
      %2147 = vmatpush1.bf16.msra.mxu0 %v2125
      %2148 = vmatprep.subr.bf16.mxu0 0
      %2149 = vmatpush1.bf16.msra.mxu0 %v2126
      %2150 = vmatprep.subr.bf16.mxu0 0
      %2151 = vmatpush1.bf16.msra.mxu0 %v2127
      %2152 = vmatprep.subr.bf16.mxu0 0
      %2153 = vmatpush1.bf16.msra.mxu0 0
      %2154 = vmatprep.subr.bf16.mxu0 0
      %2155 = vmatpush1.bf16.msra.mxu0 0
      %2156 = vmatprep.subr.bf16.mxu0 0
      %2157 = vmatpush1.bf16.msra.mxu0 0
      %2158 = vmatprep.subr.bf16.mxu0 0
      %2159 = vmatpush1.bf16.msra.mxu0 0
      %2160 = vmatprep.subr.bf16.mxu0 0
      %2161 = vmatpush1.bf16.msra.mxu0 0
      %2162 = vmatprep.subr.bf16.mxu0 0
      %2163 = vmatpush1.bf16.msra.mxu0 0
      %2164 = vmatprep.subr.bf16.mxu0 0
      %2165 = vmatpush1.bf16.msra.mxu0 0
      %2166 = vmatprep.subr.bf16.mxu0 0
      %2167 = vmatpush1.bf16.msra.mxu0 0
      %2168 = vmatprep.mubr.bf16.mxu0 0
      %2169 = vmatmul.mubr.bf16.gmra.mrb[0].mxu0 %v2072
      %v2170 = vpop.f32.mrb[0].mxu0
      %v2171 = vadd.f32 0.0, %v2170
      %v2172 = vpop.f32.mrb[0].mxu0
      %v2173 = vpop.f32.mrb[0].mxu0
      %v2174 = vadd.f32 0.0, %v2173
      %v2175 = vpop.f32.mrb[0].mxu0
      %2176 = vmatprep.mubr.bf16.mxu0 0
      %2177 = vmatmul.mubr.bf16.gmra.mrb[0].mxu0 %v2073
      %v2178 = vpop.f32.mrb[0].mxu0
      %v2179 = vadd.f32 0.0, %v2178
      %v2180 = vpop.f32.mrb[0].mxu0
      %v2181 = vpop.f32.mrb[0].mxu0
      %v2182 = vadd.f32 0.0, %v2181
      %v2183 = vpop.f32.mrb[0].mxu0
      %2184 = vmatprep.mubr.bf16.mxu0 0
      %2185 = vmatmul.mubr.bf16.gmra.mrb[0].mxu0 %v2074
      %v2186 = vpop.f32.mrb[0].mxu0
      %v2187 = vadd.f32 0.0, %v2186
      %v2188 = vpop.f32.mrb[0].mxu0
      %v2189 = vpop.f32.mrb[0].mxu0
      %v2190 = vadd.f32 0.0, %v2189
      %v2191 = vpop.f32.mrb[0].mxu0
      %2192 = vmatprep.mubr.bf16.mxu0 0
      %2193 = vmatmul.mubr.bf16.gmra.mrb[0].mxu0 %v2075
      %v2194 = vpop.f32.mrb[0].mxu0
      %v2195 = vadd.f32 0.0, %v2194
      %v2196 = vpop.f32.mrb[0].mxu0
      %v2197 = vpop.f32.mrb[0].mxu0
      %v2198 = vadd.f32 0.0, %v2197
      %v2199 = vpop.f32.mrb[0].mxu0
      %2200 = vmatprep.mubr.bf16.mxu0 0
      %2201 = vmatmul.mubr.bf16.gmra.mrb[0].mxu0 %v2076
      %v2202 = vpop.f32.mrb[0].mxu0
      %v2203 = vadd.f32 0.0, %v2202
      %v2204 = vpop.f32.mrb[0].mxu0
      %v2205 = vpop.f32.mrb[0].mxu0
      %v2206 = vadd.f32 0.0, %v2205
      %v2207 = vpop.f32.mrb[0].mxu0
      %2208 = vmatprep.mubr.bf16.mxu0 0
      %2209 = vmatmul.mubr.bf16.gmra.mrb[0].mxu0 %v2077
      %v2210 = vpop.f32.mrb[0].mxu0
      %v2211 = vadd.f32 0.0, %v2210
      %v2212 = vpop.f32.mrb[0].mxu0
      %v2213 = vpop.f32.mrb[0].mxu0
      %v2214 = vadd.f32 0.0, %v2213
      %v2215 = vpop.f32.mrb[0].mxu0
      %2216 = vmatprep.mubr.bf16.mxu0 0
      %2217 = vmatmul.mubr.bf16.gmra.mrb[0].mxu0 %v2078
      %v2218 = vpop.f32.mrb[0].mxu0
      %v2219 = vadd.f32 0.0, %v2218
      %v2220 = vpop.f32.mrb[0].mxu0
      %v2221 = vpop.f32.mrb[0].mxu0
      %v2222 = vadd.f32 0.0, %v2221
      %v2223 = vpop.f32.mrb[0].mxu0
      %2224 = vmatprep.mubr.bf16.mxu0 0
      %2225 = vmatmul.mubr.bf16.gmra.mrb[0].mxu0 %v2079
      %v2226 = vpop.f32.mrb[0].mxu0
      %v2227 = vadd.f32 0.0, %v2226
      %v2228 = vpop.f32.mrb[0].mxu0
      %v2229 = vpop.f32.mrb[0].mxu0
      %v2230 = vadd.f32 0.0, %v2229
      %v2231 = vpop.f32.mrb[0].mxu0
      %2232 = vdwg.mxu0
      %v2233 = vadd.f32 %v1987, %v2171
      %v2234 = vadd.f32 %v1988, %v2174
      %v2235 = vadd.f32 %v1989, %v2179
      %v2236 = vadd.f32 %v1990, %v2182
      %v2237 = vadd.f32 %v1991, %v2187
      %v2238 = vadd.f32 %v1992, %v2190
      %v2239 = vadd.f32 %v1993, %v2195
      %v2240 = vadd.f32 %v1994, %v2198
      %v2241 = vadd.f32 %v1995, %v2203
      %v2242 = vadd.f32 %v1996, %v2206
      %v2243 = vadd.f32 %v1997, %v2211
      %v2244 = vadd.f32 %v1998, %v2214
      %v2245 = vadd.f32 %v1999, %v2219
      %v2246 = vadd.f32 %v2000, %v2222
      %v2247 = vadd.f32 %v2001, %v2227
      %v2248 = vadd.f32 %v2002, %v2230
      %v2249 = vld [vmem:[%s2006] sm:$0xf]
      %v2250 = vld [vmem:[%s2006 + $0x4] sm:$0xf]
      %v2251 = vld [vmem:[%s2006 + $0x8] sm:$0x1]
      %v2252 = vld [vmem:[%s2006 + $0xc] sm:$0xf]
      %v2253 = vld [vmem:[%s2006 + $0x10] sm:$0xf]
      %v2254 = vld [vmem:[%s2006 + $0x14] sm:$0x1]
      %v2255 = vld [vmem:[%s2006 + $0x18] sm:$0xf]
      %v2256 = vld [vmem:[%s2006 + $0x1c] sm:$0xf]
      %v2257 = vld [vmem:[%s2006 + $0x20] sm:$0x1]
      %v2258 = vld [vmem:[%s2006 + $0x24] sm:$0xf]
      %v2259 = vld [vmem:[%s2006 + $0x28] sm:$0xf]
      %v2260 = vld [vmem:[%s2006 + $0x2c] sm:$0x1]
      %v2261 = vld [vmem:[%s2006 + $0x30] sm:$0xf]
      %v2262 = vld [vmem:[%s2006 + $0x34] sm:$0xf]
      %v2263 = vld [vmem:[%s2006 + $0x38] sm:$0x1]
      %v2264 = vld [vmem:[%s2006 + $0x3c] sm:$0xf]
      %v2265 = vld [vmem:[%s2006 + $0x40] sm:$0xf]
      %v2266 = vld [vmem:[%s2006 + $0x44] sm:$0x1]
      %v2267 = vld [vmem:[%s2006 + $0x48] sm:$0xf]
      %v2268 = vld [vmem:[%s2006 + $0x4c] sm:$0xf]
      %v2269 = vld [vmem:[%s2006 + $0x50] sm:$0x1]
      %v2270 = vld [vmem:[%s2006 + $0x54] sm:$0xf]
      %v2271 = vld [vmem:[%s2006 + $0x58] sm:$0xf]
      %v2272 = vld [vmem:[%s2006 + $0x5c] sm:$0x1]
      %v2274 = vshrl.u32 %v2249, 16
      %v2276 = vrot.slane %v2274, 4
      %v2277 = vshll.u32 %v2249, 16
      %v2279 = vrot.slane %v2277, 5
      %v2280 = vor.u32 %v2276, %v2279
      %v2281 = vrot.slane %v2280, 4
      %v2283 = vshll.u32 %v2250, 16
      %v2285 = vrot.slane %v2283, 5
      %v2286 = vsel %vm1130, %v2281, %v2285
      %v2287 = vshrl.u32 %v2250, 16
      %v2289 = vrot.slane %v2287, 4
      %v2290 = vor.u32 %v2289, %v2285
      %v2291 = vrot.slane %v2290, 4
      %v2293 = vshll.u32 %v2251, 16
      %v2295 = vrot.slane %v2293, 5
      %v2296 = vsel %vm1130, %v2291, %v2295
      %v2298 = vshrl.u32 %v2252, 16
      %v2300 = vrot.slane %v2298, 4
      %v2301 = vshll.u32 %v2252, 16
      %v2303 = vrot.slane %v2301, 5
      %v2304 = vor.u32 %v2300, %v2303
      %v2305 = vrot.slane %v2304, 4
      %v2307 = vshll.u32 %v2253, 16
      %v2309 = vrot.slane %v2307, 5
      %v2310 = vsel %vm1130, %v2305, %v2309
      %v2311 = vshrl.u32 %v2253, 16
      %v2313 = vrot.slane %v2311, 4
      %v2314 = vor.u32 %v2313, %v2309
      %v2315 = vrot.slane %v2314, 4
      %v2317 = vshll.u32 %v2254, 16
      %v2319 = vrot.slane %v2317, 5
      %v2320 = vsel %vm1130, %v2315, %v2319
      %v2322 = vshrl.u32 %v2255, 16
      %v2324 = vrot.slane %v2322, 4
      %v2325 = vshll.u32 %v2255, 16
      %v2327 = vrot.slane %v2325, 5
      %v2328 = vor.u32 %v2324, %v2327
      %v2329 = vrot.slane %v2328, 4
      %v2331 = vshll.u32 %v2256, 16
      %v2333 = vrot.slane %v2331, 5
      %v2334 = vsel %vm1130, %v2329, %v2333
      %v2335 = vshrl.u32 %v2256, 16
      %v2337 = vrot.slane %v2335, 4
      %v2338 = vor.u32 %v2337, %v2333
      %v2339 = vrot.slane %v2338, 4
      %v2341 = vshll.u32 %v2257, 16
      %v2343 = vrot.slane %v2341, 5
      %v2344 = vsel %vm1130, %v2339, %v2343
      %v2346 = vshrl.u32 %v2258, 16
      %v2348 = vrot.slane %v2346, 4
      %v2349 = vshll.u32 %v2258, 16
      %v2351 = vrot.slane %v2349, 5
      %v2352 = vor.u32 %v2348, %v2351
      %v2353 = vrot.slane %v2352, 4
      %v2355 = vshll.u32 %v2259, 16
      %v2357 = vrot.slane %v2355, 5
      %v2358 = vsel %vm1130, %v2353, %v2357
      %v2359 = vshrl.u32 %v2259, 16
      %v2361 = vrot.slane %v2359, 4
      %v2362 = vor.u32 %v2361, %v2357
      %v2363 = vrot.slane %v2362, 4
      %v2365 = vshll.u32 %v2260, 16
      %v2367 = vrot.slane %v2365, 5
      %v2368 = vsel %vm1130, %v2363, %v2367
      %v2370 = vshrl.u32 %v2261, 16
      %v2372 = vrot.slane %v2370, 4
      %v2373 = vshll.u32 %v2261, 16
      %v2375 = vrot.slane %v2373, 5
      %v2376 = vor.u32 %v2372, %v2375
      %v2377 = vrot.slane %v2376, 4
      %v2379 = vshll.u32 %v2262, 16
      %v2381 = vrot.slane %v2379, 5
      %v2382 = vsel %vm1130, %v2377, %v2381
      %v2383 = vshrl.u32 %v2262, 16
      %v2385 = vrot.slane %v2383, 4
      %v2386 = vor.u32 %v2385, %v2381
      %v2387 = vrot.slane %v2386, 4
      %v2389 = vshll.u32 %v2263, 16
      %v2391 = vrot.slane %v2389, 5
      %v2392 = vsel %vm1130, %v2387, %v2391
      %v2394 = vshrl.u32 %v2264, 16
      %v2396 = vrot.slane %v2394, 4
      %v2397 = vshll.u32 %v2264, 16
      %v2399 = vrot.slane %v2397, 5
      %v2400 = vor.u32 %v2396, %v2399
      %v2401 = vrot.slane %v2400, 4
      %v2403 = vshll.u32 %v2265, 16
      %v2405 = vrot.slane %v2403, 5
      %v2406 = vsel %vm1130, %v2401, %v2405
      %v2407 = vshrl.u32 %v2265, 16
      %v2409 = vrot.slane %v2407, 4
      %v2410 = vor.u32 %v2409, %v2405
      %v2411 = vrot.slane %v2410, 4
      %v2413 = vshll.u32 %v2266, 16
      %v2415 = vrot.slane %v2413, 5
      %v2416 = vsel %vm1130, %v2411, %v2415
      %v2418 = vshrl.u32 %v2267, 16
      %v2420 = vrot.slane %v2418, 4
      %v2421 = vshll.u32 %v2267, 16
      %v2423 = vrot.slane %v2421, 5
      %v2424 = vor.u32 %v2420, %v2423
      %v2425 = vrot.slane %v2424, 4
      %v2427 = vshll.u32 %v2268, 16
      %v2429 = vrot.slane %v2427, 5
      %v2430 = vsel %vm1130, %v2425, %v2429
      %v2431 = vshrl.u32 %v2268, 16
      %v2433 = vrot.slane %v2431, 4
      %v2434 = vor.u32 %v2433, %v2429
      %v2435 = vrot.slane %v2434, 4
      %v2437 = vshll.u32 %v2269, 16
      %v2439 = vrot.slane %v2437, 5
      %v2440 = vsel %vm1130, %v2435, %v2439
      %v2442 = vshrl.u32 %v2270, 16
      %v2444 = vrot.slane %v2442, 4
      %v2445 = vshll.u32 %v2270, 16
      %v2447 = vrot.slane %v2445, 5
      %v2448 = vor.u32 %v2444, %v2447
      %v2449 = vrot.slane %v2448, 4
      %v2451 = vshll.u32 %v2271, 16
      %v2453 = vrot.slane %v2451, 5
      %v2454 = vsel %vm1130, %v2449, %v2453
      %v2455 = vshrl.u32 %v2271, 16
      %v2457 = vrot.slane %v2455, 4
      %v2458 = vor.u32 %v2457, %v2453
      %v2459 = vrot.slane %v2458, 4
      %v2461 = vshll.u32 %v2272, 16
      %v2463 = vrot.slane %v2461, 5
      %v2464 = vsel %vm1130, %v2459, %v2463
      %s2465 = scalar_lea.vmem %s3, 256
      %v2466 = vld [vmem:[%s2465] sm:$0xf]
      %v2467 = vld [vmem:[%s2465 + $0x4] sm:$0xf]
      %v2468 = vld [vmem:[%s2465 + $0x8] sm:$0xf]
      %v2469 = vld [vmem:[%s2465 + $0xc] sm:$0xf]
      %v2470 = vld [vmem:[%s2465 + $0x10] sm:$0xf]
      %v2471 = vld [vmem:[%s2465 + $0x14] sm:$0xf]
      %v2472 = vld [vmem:[%s2465 + $0x18] sm:$0xf]
      %v2473 = vld [vmem:[%s2465 + $0x1c] sm:$0xf]
      %v2474 = vld [vmem:[%s2465 + $0x20] sm:$0xf]
      %v2475 = vld [vmem:[%s2465 + $0x24] sm:$0xf]
      %v2476 = vld [vmem:[%s2465 + $0x28] sm:$0xf]
      %v2477 = vld [vmem:[%s2465 + $0x2c] sm:$0xf]
      %v2478 = vld [vmem:[%s2465 + $0x30] sm:$0xf]
      %v2479 = vld [vmem:[%s2465 + $0x34] sm:$0xf]
      %v2480 = vld [vmem:[%s2465 + $0x38] sm:$0xf]
      %v2481 = vld [vmem:[%s2465 + $0x3c] sm:$0xf]
      %v2482 = vunpack.c.l.b16 %v2286
      %v2483 = vunpack.c.l.b16 %v2296
      %v2484 = vunpack.c.l.b16 %v2310
      %v2485 = vunpack.c.l.b16 %v2320
      %v2486 = vunpack.c.l.b16 %v2334
      %v2487 = vunpack.c.l.b16 %v2344
      %v2488 = vunpack.c.l.b16 %v2358
      %v2489 = vunpack.c.l.b16 %v2368
      %v2490 = vunpack.c.l.b16 %v2382
      %v2491 = vunpack.c.l.b16 %v2392
      %v2492 = vunpack.c.l.b16 %v2406
      %v2493 = vunpack.c.l.b16 %v2416
      %v2494 = vunpack.c.l.b16 %v2430
      %v2495 = vunpack.c.l.b16 %v2440
      %v2496 = vunpack.c.l.b16 %v2454
      %v2497 = vunpack.c.l.b16 %v2464
      %v2498 = vpack.c.b16 %v2483, %v2482
      %v2499 = vpack.c.b16 %v2485, %v2484
      %v2500 = vpack.c.b16 %v2487, %v2486
      %v2501 = vpack.c.b16 %v2489, %v2488
      %v2502 = vpack.c.b16 %v2491, %v2490
      %v2503 = vpack.c.b16 %v2493, %v2492
      %v2504 = vpack.c.b16 %v2495, %v2494
      %v2505 = vpack.c.b16 %v2497, %v2496
      %v2530 = vunpack.c.l.b16 %v2466
      %v2531 = vunpack.c.l.b16 %v2467
      %v2532 = vunpack.c.l.b16 %v2468
      %v2533 = vunpack.c.l.b16 %v2469
      %v2534 = vunpack.c.l.b16 %v2470
      %v2535 = vunpack.c.l.b16 %v2471
      %v2536 = vunpack.c.l.b16 %v2472
      %v2537 = vunpack.c.l.b16 %v2473
      %v2538 = vunpack.c.l.b16 %v2474
      %v2539 = vunpack.c.l.b16 %v2475
      %v2540 = vunpack.c.l.b16 %v2476
      %v2541 = vunpack.c.l.b16 %v2477
      %v2542 = vunpack.c.l.b16 %v2478
      %v2543 = vunpack.c.l.b16 %v2479
      %v2544 = vunpack.c.l.b16 %v2480
      %v2545 = vunpack.c.l.b16 %v2481
      %v2546 = vpack.c.b16 %v2531, %v2530
      %v2547 = vpack.c.b16 %v2533, %v2532
      %v2548 = vpack.c.b16 %v2535, %v2534
      %v2549 = vpack.c.b16 %v2537, %v2536
      %v2550 = vpack.c.b16 %v2539, %v2538
      %v2551 = vpack.c.b16 %v2541, %v2540
      %v2552 = vpack.c.b16 %v2543, %v2542
      %v2553 = vpack.c.b16 %v2545, %v2544
      %2562 = vmatprep.subr.bf16.mxu0 0
      %2563 = vmatpush1.bf16.msra.mxu0 %v2546
      %2564 = vmatprep.subr.bf16.mxu0 0
      %2565 = vmatpush1.bf16.msra.mxu0 %v2547
      %2566 = vmatprep.subr.bf16.mxu0 0
      %2567 = vmatpush1.bf16.msra.mxu0 %v2548
      %2568 = vmatprep.subr.bf16.mxu0 0
      %2569 = vmatpush1.bf16.msra.mxu0 %v2549
      %2570 = vmatprep.subr.bf16.mxu0 0
      %2571 = vmatpush1.bf16.msra.mxu0 %v2550
      %2572 = vmatprep.subr.bf16.mxu0 0
      %2573 = vmatpush1.bf16.msra.mxu0 %v2551
      %2574 = vmatprep.subr.bf16.mxu0 0
      %2575 = vmatpush1.bf16.msra.mxu0 %v2552
      %2576 = vmatprep.subr.bf16.mxu0 0
      %2577 = vmatpush1.bf16.msra.mxu0 %v2553
      %2578 = vmatprep.subr.bf16.mxu0 0
      %2579 = vmatpush1.bf16.msra.mxu0 0
      %2580 = vmatprep.subr.bf16.mxu0 0
      %2581 = vmatpush1.bf16.msra.mxu0 0
      %2582 = vmatprep.subr.bf16.mxu0 0
      %2583 = vmatpush1.bf16.msra.mxu0 0
      %2584 = vmatprep.subr.bf16.mxu0 0
      %2585 = vmatpush1.bf16.msra.mxu0 0
      %2586 = vmatprep.subr.bf16.mxu0 0
      %2587 = vmatpush1.bf16.msra.mxu0 0
      %2588 = vmatprep.subr.bf16.mxu0 0
      %2589 = vmatpush1.bf16.msra.mxu0 0
      %2590 = vmatprep.subr.bf16.mxu0 0
      %2591 = vmatpush1.bf16.msra.mxu0 0
      %2592 = vmatprep.subr.bf16.mxu0 0
      %2593 = vmatpush1.bf16.msra.mxu0 0
      %2594 = vmatprep.mubr.bf16.mxu0 0
      %2595 = vmatmul.mubr.bf16.gmra.mrb[0].mxu0 %v2498
      %v2596 = vpop.f32.mrb[0].mxu0
      %v2597 = vadd.f32 0.0, %v2596
      %v2598 = vpop.f32.mrb[0].mxu0
      %v2599 = vpop.f32.mrb[0].mxu0
      %v2600 = vadd.f32 0.0, %v2599
      %v2601 = vpop.f32.mrb[0].mxu0
      %2602 = vmatprep.mubr.bf16.mxu0 0
      %2603 = vmatmul.mubr.bf16.gmra.mrb[0].mxu0 %v2499
      %v2604 = vpop.f32.mrb[0].mxu0
      %v2605 = vadd.f32 0.0, %v2604
      %v2606 = vpop.f32.mrb[0].mxu0
      %v2607 = vpop.f32.mrb[0].mxu0
      %v2608 = vadd.f32 0.0, %v2607
      %v2609 = vpop.f32.mrb[0].mxu0
      %2610 = vmatprep.mubr.bf16.mxu0 0
      %2611 = vmatmul.mubr.bf16.gmra.mrb[0].mxu0 %v2500
      %v2612 = vpop.f32.mrb[0].mxu0
      %v2613 = vadd.f32 0.0, %v2612
      %v2614 = vpop.f32.mrb[0].mxu0
      %v2615 = vpop.f32.mrb[0].mxu0
      %v2616 = vadd.f32 0.0, %v2615
      %v2617 = vpop.f32.mrb[0].mxu0
      %2618 = vmatprep.mubr.bf16.mxu0 0
      %2619 = vmatmul.mubr.bf16.gmra.mrb[0].mxu0 %v2501
      %v2620 = vpop.f32.mrb[0].mxu0
      %v2621 = vadd.f32 0.0, %v2620
      %v2622 = vpop.f32.mrb[0].mxu0
      %v2623 = vpop.f32.mrb[0].mxu0
      %v2624 = vadd.f32 0.0, %v2623
      %v2625 = vpop.f32.mrb[0].mxu0
      %2626 = vmatprep.mubr.bf16.mxu0 0
      %2627 = vmatmul.mubr.bf16.gmra.mrb[0].mxu0 %v2502
      %v2628 = vpop.f32.mrb[0].mxu0
      %v2629 = vadd.f32 0.0, %v2628
      %v2630 = vpop.f32.mrb[0].mxu0
      %v2631 = vpop.f32.mrb[0].mxu0
      %v2632 = vadd.f32 0.0, %v2631
      %v2633 = vpop.f32.mrb[0].mxu0
      %2634 = vmatprep.mubr.bf16.mxu0 0
      %2635 = vmatmul.mubr.bf16.gmra.mrb[0].mxu0 %v2503
      %v2636 = vpop.f32.mrb[0].mxu0
      %v2637 = vadd.f32 0.0, %v2636
      %v2638 = vpop.f32.mrb[0].mxu0
      %v2639 = vpop.f32.mrb[0].mxu0
      %v2640 = vadd.f32 0.0, %v2639
      %v2641 = vpop.f32.mrb[0].mxu0
      %2642 = vmatprep.mubr.bf16.mxu0 0
      %2643 = vmatmul.mubr.bf16.gmra.mrb[0].mxu0 %v2504
      %v2644 = vpop.f32.mrb[0].mxu0
      %v2645 = vadd.f32 0.0, %v2644
      %v2646 = vpop.f32.mrb[0].mxu0
      %v2647 = vpop.f32.mrb[0].mxu0
      %v2648 = vadd.f32 0.0, %v2647
      %v2649 = vpop.f32.mrb[0].mxu0
      %2650 = vmatprep.mubr.bf16.mxu0 0
      %2651 = vmatmul.mubr.bf16.gmra.mrb[0].mxu0 %v2505
      %v2652 = vpop.f32.mrb[0].mxu0
      %v2653 = vadd.f32 0.0, %v2652
      %v2654 = vpop.f32.mrb[0].mxu0
      %v2655 = vpop.f32.mrb[0].mxu0
      %v2656 = vadd.f32 0.0, %v2655
      %v2657 = vpop.f32.mrb[0].mxu0
      %2658 = vdwg.mxu0
      %v2659 = vadd.f32 %v2233, %v2597
      %v2660 = vadd.f32 %v2234, %v2600
      %v2661 = vadd.f32 %v2235, %v2605
      %v2662 = vadd.f32 %v2236, %v2608
      %v2663 = vadd.f32 %v2237, %v2613
      %v2664 = vadd.f32 %v2238, %v2616
      %v2665 = vadd.f32 %v2239, %v2621
      %v2666 = vadd.f32 %v2240, %v2624
      %v2667 = vadd.f32 %v2241, %v2629
      %v2668 = vadd.f32 %v2242, %v2632
      %v2669 = vadd.f32 %v2243, %v2637
      %v2670 = vadd.f32 %v2244, %v2640
      %v2671 = vadd.f32 %v2245, %v2645
      %v2672 = vadd.f32 %v2246, %v2648
      %v2673 = vadd.f32 %v2247, %v2653
      %v2674 = vadd.f32 %v2248, %v2656
      %v2675 = vld [vmem:[%s2006] sm:$0xe]
      %v2676 = vld [vmem:[%s2006 + $0xc] sm:$0xe]
      %v2677 = vld [vmem:[%s2006 + $0x18] sm:$0xe]
      %v2678 = vld [vmem:[%s2006 + $0x24] sm:$0xe]
      %v2679 = vld [vmem:[%s2006 + $0x30] sm:$0xe]
      %v2680 = vld [vmem:[%s2006 + $0x3c] sm:$0xe]
      %v2681 = vld [vmem:[%s2006 + $0x48] sm:$0xe]
      %v2682 = vld [vmem:[%s2006 + $0x54] sm:$0xe]
      %v2707 = vrot.slane %v2675, 5
      %v2708 = vrot.slane %v2707, 4
      %v2709 = vrot.slane %v2250, 5
      %v2710 = vsel %vm1736, %v2708, %v2709
      %v2711 = vrot.slane %v2709, 4
      %v2712 = vrot.slane %v2251, 5
      %v2713 = vsel %vm1736, %v2711, %v2712
      %v2714 = vrot.slane %v2676, 5
      %v2715 = vrot.slane %v2714, 4
      %v2716 = vrot.slane %v2253, 5
      %v2717 = vsel %vm1736, %v2715, %v2716
      %v2718 = vrot.slane %v2716, 4
      %v2719 = vrot.slane %v2254, 5
      %v2720 = vsel %vm1736, %v2718, %v2719
      %v2721 = vrot.slane %v2677, 5
      %v2722 = vrot.slane %v2721, 4
      %v2723 = vrot.slane %v2256, 5
      %v2724 = vsel %vm1736, %v2722, %v2723
      %v2725 = vrot.slane %v2723, 4
      %v2726 = vrot.slane %v2257, 5
      %v2727 = vsel %vm1736, %v2725, %v2726
      %v2728 = vrot.slane %v2678, 5
      %v2729 = vrot.slane %v2728, 4
      %v2730 = vrot.slane %v2259, 5
      %v2731 = vsel %vm1736, %v2729, %v2730
      %v2732 = vrot.slane %v2730, 4
      %v2733 = vrot.slane %v2260, 5
      %v2734 = vsel %vm1736, %v2732, %v2733
      %v2735 = vrot.slane %v2679, 5
      %v2736 = vrot.slane %v2735, 4
      %v2737 = vrot.slane %v2262, 5
      %v2738 = vsel %vm1736, %v2736, %v2737
      %v2739 = vrot.slane %v2737, 4
      %v2740 = vrot.slane %v2263, 5
      %v2741 = vsel %vm1736, %v2739, %v2740
      %v2742 = vrot.slane %v2680, 5
      %v2743 = vrot.slane %v2742, 4
      %v2744 = vrot.slane %v2265, 5
      %v2745 = vsel %vm1736, %v2743, %v2744
      %v2746 = vrot.slane %v2744, 4
      %v2747 = vrot.slane %v2266, 5
      %v2748 = vsel %vm1736, %v2746, %v2747
      %v2749 = vrot.slane %v2681, 5
      %v2750 = vrot.slane %v2749, 4
      %v2751 = vrot.slane %v2268, 5
      %v2752 = vsel %vm1736, %v2750, %v2751
      %v2753 = vrot.slane %v2751, 4
      %v2754 = vrot.slane %v2269, 5
      %v2755 = vsel %vm1736, %v2753, %v2754
      %v2756 = vrot.slane %v2682, 5
      %v2757 = vrot.slane %v2756, 4
      %v2758 = vrot.slane %v2271, 5
      %v2759 = vsel %vm1736, %v2757, %v2758
      %v2760 = vrot.slane %v2758, 4
      %v2761 = vrot.slane %v2272, 5
      %v2762 = vsel %vm1736, %v2760, %v2761
      %s2763 = scalar_lea.vmem %s3, 320
      %v2764 = vld [vmem:[%s2763] sm:$0xf]
      %v2765 = vld [vmem:[%s2763 + $0x4] sm:$0xf]
      %v2766 = vld [vmem:[%s2763 + $0x8] sm:$0xf]
      %v2767 = vld [vmem:[%s2763 + $0xc] sm:$0xf]
      %v2768 = vld [vmem:[%s2763 + $0x10] sm:$0xf]
      %v2769 = vld [vmem:[%s2763 + $0x14] sm:$0xf]
      %v2770 = vld [vmem:[%s2763 + $0x18] sm:$0xf]
      %v2771 = vld [vmem:[%s2763 + $0x1c] sm:$0xf]
      %v2772 = vld [vmem:[%s2763 + $0x20] sm:$0xf]
      %v2773 = vld [vmem:[%s2763 + $0x24] sm:$0xf]
      %v2774 = vld [vmem:[%s2763 + $0x28] sm:$0xf]
      %v2775 = vld [vmem:[%s2763 + $0x2c] sm:$0xf]
      %v2776 = vld [vmem:[%s2763 + $0x30] sm:$0xf]
      %v2777 = vld [vmem:[%s2763 + $0x34] sm:$0xf]
      %v2778 = vld [vmem:[%s2763 + $0x38] sm:$0xf]
      %v2779 = vld [vmem:[%s2763 + $0x3c] sm:$0xf]
      %v2780 = vunpack.c.l.b16 %v2710
      %v2781 = vunpack.c.l.b16 %v2713
      %v2782 = vunpack.c.l.b16 %v2717
      %v2783 = vunpack.c.l.b16 %v2720
      %v2784 = vunpack.c.l.b16 %v2724
      %v2785 = vunpack.c.l.b16 %v2727
      %v2786 = vunpack.c.l.b16 %v2731
      %v2787 = vunpack.c.l.b16 %v2734
      %v2788 = vunpack.c.l.b16 %v2738
      %v2789 = vunpack.c.l.b16 %v2741
      %v2790 = vunpack.c.l.b16 %v2745
      %v2791 = vunpack.c.l.b16 %v2748
      %v2792 = vunpack.c.l.b16 %v2752
      %v2793 = vunpack.c.l.b16 %v2755
      %v2794 = vunpack.c.l.b16 %v2759
      %v2795 = vunpack.c.l.b16 %v2762
      %v2796 = vpack.c.b16 %v2781, %v2780
      %v2797 = vpack.c.b16 %v2783, %v2782
      %v2798 = vpack.c.b16 %v2785, %v2784
      %v2799 = vpack.c.b16 %v2787, %v2786
      %v2800 = vpack.c.b16 %v2789, %v2788
      %v2801 = vpack.c.b16 %v2791, %v2790
      %v2802 = vpack.c.b16 %v2793, %v2792
      %v2803 = vpack.c.b16 %v2795, %v2794
      %v2828 = vunpack.c.l.b16 %v2764
      %v2829 = vunpack.c.l.b16 %v2765
      %v2830 = vunpack.c.l.b16 %v2766
      %v2831 = vunpack.c.l.b16 %v2767
      %v2832 = vunpack.c.l.b16 %v2768
      %v2833 = vunpack.c.l.b16 %v2769
      %v2834 = vunpack.c.l.b16 %v2770
      %v2835 = vunpack.c.l.b16 %v2771
      %v2836 = vunpack.c.l.b16 %v2772
      %v2837 = vunpack.c.l.b16 %v2773
      %v2838 = vunpack.c.l.b16 %v2774
      %v2839 = vunpack.c.l.b16 %v2775
      %v2840 = vunpack.c.l.b16 %v2776
      %v2841 = vunpack.c.l.b16 %v2777
      %v2842 = vunpack.c.l.b16 %v2778
      %v2843 = vunpack.c.l.b16 %v2779
      %v2844 = vpack.c.b16 %v2829, %v2828
      %v2845 = vpack.c.b16 %v2831, %v2830
      %v2846 = vpack.c.b16 %v2833, %v2832
      %v2847 = vpack.c.b16 %v2835, %v2834
      %v2848 = vpack.c.b16 %v2837, %v2836
      %v2849 = vpack.c.b16 %v2839, %v2838
      %v2850 = vpack.c.b16 %v2841, %v2840
      %v2851 = vpack.c.b16 %v2843, %v2842
      %2860 = vmatprep.subr.bf16.mxu0 0
      %2861 = vmatpush1.bf16.msra.mxu0 %v2844
      %2862 = vmatprep.subr.bf16.mxu0 0
      %2863 = vmatpush1.bf16.msra.mxu0 %v2845
      %2864 = vmatprep.subr.bf16.mxu0 0
      %2865 = vmatpush1.bf16.msra.mxu0 %v2846
      %2866 = vmatprep.subr.bf16.mxu0 0
      %2867 = vmatpush1.bf16.msra.mxu0 %v2847
      %2868 = vmatprep.subr.bf16.mxu0 0
      %2869 = vmatpush1.bf16.msra.mxu0 %v2848
      %2870 = vmatprep.subr.bf16.mxu0 0
      %2871 = vmatpush1.bf16.msra.mxu0 %v2849
      %2872 = vmatprep.subr.bf16.mxu0 0
      %2873 = vmatpush1.bf16.msra.mxu0 %v2850
      %2874 = vmatprep.subr.bf16.mxu0 0
      %2875 = vmatpush1.bf16.msra.mxu0 %v2851
      %2876 = vmatprep.subr.bf16.mxu0 0
      %2877 = vmatpush1.bf16.msra.mxu0 0
      %2878 = vmatprep.subr.bf16.mxu0 0
      %2879 = vmatpush1.bf16.msra.mxu0 0
      %2880 = vmatprep.subr.bf16.mxu0 0
      %2881 = vmatpush1.bf16.msra.mxu0 0
      %2882 = vmatprep.subr.bf16.mxu0 0
      %2883 = vmatpush1.bf16.msra.mxu0 0
      %2884 = vmatprep.subr.bf16.mxu0 0
      %2885 = vmatpush1.bf16.msra.mxu0 0
      %2886 = vmatprep.subr.bf16.mxu0 0
      %2887 = vmatpush1.bf16.msra.mxu0 0
      %2888 = vmatprep.subr.bf16.mxu0 0
      %2889 = vmatpush1.bf16.msra.mxu0 0
      %2890 = vmatprep.subr.bf16.mxu0 0
      %2891 = vmatpush1.bf16.msra.mxu0 0
      %2892 = vmatprep.mubr.bf16.mxu0 0
      %2893 = vmatmul.mubr.bf16.gmra.mrb[0].mxu0 %v2796
      %v2894 = vpop.f32.mrb[0].mxu0
      %v2895 = vadd.f32 0.0, %v2894
      %v2896 = vpop.f32.mrb[0].mxu0
      %v2897 = vpop.f32.mrb[0].mxu0
      %v2898 = vadd.f32 0.0, %v2897
      %v2899 = vpop.f32.mrb[0].mxu0
      %2900 = vmatprep.mubr.bf16.mxu0 0
      %2901 = vmatmul.mubr.bf16.gmra.mrb[0].mxu0 %v2797
      %v2902 = vpop.f32.mrb[0].mxu0
      %v2903 = vadd.f32 0.0, %v2902
      %v2904 = vpop.f32.mrb[0].mxu0
      %v2905 = vpop.f32.mrb[0].mxu0
      %v2906 = vadd.f32 0.0, %v2905
      %v2907 = vpop.f32.mrb[0].mxu0
      %2908 = vmatprep.mubr.bf16.mxu0 0
      %2909 = vmatmul.mubr.bf16.gmra.mrb[0].mxu0 %v2798
      %v2910 = vpop.f32.mrb[0].mxu0
      %v2911 = vadd.f32 0.0, %v2910
      %v2912 = vpop.f32.mrb[0].mxu0
      %v2913 = vpop.f32.mrb[0].mxu0
      %v2914 = vadd.f32 0.0, %v2913
      %v2915 = vpop.f32.mrb[0].mxu0
      %2916 = vmatprep.mubr.bf16.mxu0 0
      %2917 = vmatmul.mubr.bf16.gmra.mrb[0].mxu0 %v2799
      %v2918 = vpop.f32.mrb[0].mxu0
      %v2919 = vadd.f32 0.0, %v2918
      %v2920 = vpop.f32.mrb[0].mxu0
      %v2921 = vpop.f32.mrb[0].mxu0
      %v2922 = vadd.f32 0.0, %v2921
      %v2923 = vpop.f32.mrb[0].mxu0
      %2924 = vmatprep.mubr.bf16.mxu0 0
      %2925 = vmatmul.mubr.bf16.gmra.mrb[0].mxu0 %v2800
      %v2926 = vpop.f32.mrb[0].mxu0
      %v2927 = vadd.f32 0.0, %v2926
      %v2928 = vpop.f32.mrb[0].mxu0
      %v2929 = vpop.f32.mrb[0].mxu0
      %v2930 = vadd.f32 0.0, %v2929
      %v2931 = vpop.f32.mrb[0].mxu0
      %2932 = vmatprep.mubr.bf16.mxu0 0
      %2933 = vmatmul.mubr.bf16.gmra.mrb[0].mxu0 %v2801
      %v2934 = vpop.f32.mrb[0].mxu0
      %v2935 = vadd.f32 0.0, %v2934
      %v2936 = vpop.f32.mrb[0].mxu0
      %v2937 = vpop.f32.mrb[0].mxu0
      %v2938 = vadd.f32 0.0, %v2937
      %v2939 = vpop.f32.mrb[0].mxu0
      %2940 = vmatprep.mubr.bf16.mxu0 0
      %2941 = vmatmul.mubr.bf16.gmra.mrb[0].mxu0 %v2802
      %v2942 = vpop.f32.mrb[0].mxu0
      %v2943 = vadd.f32 0.0, %v2942
      %v2944 = vpop.f32.mrb[0].mxu0
      %v2945 = vpop.f32.mrb[0].mxu0
      %v2946 = vadd.f32 0.0, %v2945
      %v2947 = vpop.f32.mrb[0].mxu0
      %2948 = vmatprep.mubr.bf16.mxu0 0
      %2949 = vmatmul.mubr.bf16.gmra.mrb[0].mxu0 %v2803
      %v2950 = vpop.f32.mrb[0].mxu0
      %v2951 = vadd.f32 0.0, %v2950
      %v2952 = vpop.f32.mrb[0].mxu0
      %v2953 = vpop.f32.mrb[0].mxu0
      %v2954 = vadd.f32 0.0, %v2953
      %v2955 = vpop.f32.mrb[0].mxu0
      %2956 = vdwg.mxu0
      %v2957 = vadd.f32 %v2659, %v2895
      %v2958 = vadd.f32 %v2660, %v2898
      %v2959 = vadd.f32 %v2661, %v2903
      %v2960 = vadd.f32 %v2662, %v2906
      %v2961 = vadd.f32 %v2663, %v2911
      %v2962 = vadd.f32 %v2664, %v2914
      %v2963 = vadd.f32 %v2665, %v2919
      %v2964 = vadd.f32 %v2666, %v2922
      %v2965 = vadd.f32 %v2667, %v2927
      %v2966 = vadd.f32 %v2668, %v2930
      %v2967 = vadd.f32 %v2669, %v2935
      %v2968 = vadd.f32 %v2670, %v2938
      %v2969 = vadd.f32 %v2671, %v2943
      %v2970 = vadd.f32 %v2672, %v2946
      %v2971 = vadd.f32 %v2673, %v2951
      %v2972 = vadd.f32 %v2674, %v2954
      %s2973 = sadd.s32 %s1084, 2
      %s2974 = smul.u32 %s2973, 3
      %s2975 = smul.addr %s2974, 4
      %s2976 = scalar_lea.vmem [#allocation2], %s2975
      %v2977 = vld [vmem:[%s2976] sm:$0xf]
      %v2978 = vld [vmem:[%s2976 + $0x4] sm:$0xf]
      %v2979 = vld [vmem:[%s2976 + $0xc] sm:$0xf]
      %v2980 = vld [vmem:[%s2976 + $0x10] sm:$0xf]
      %v2981 = vld [vmem:[%s2976 + $0x18] sm:$0xf]
      %v2982 = vld [vmem:[%s2976 + $0x1c] sm:$0xf]
      %v2983 = vld [vmem:[%s2976 + $0x24] sm:$0xf]
      %v2984 = vld [vmem:[%s2976 + $0x28] sm:$0xf]
      %v2985 = vld [vmem:[%s2976 + $0x30] sm:$0xf]
      %v2986 = vld [vmem:[%s2976 + $0x34] sm:$0xf]
      %v2987 = vld [vmem:[%s2976 + $0x3c] sm:$0xf]
      %v2988 = vld [vmem:[%s2976 + $0x40] sm:$0xf]
      %v2989 = vld [vmem:[%s2976 + $0x48] sm:$0xf]
      %v2990 = vld [vmem:[%s2976 + $0x4c] sm:$0xf]
      %v2991 = vld [vmem:[%s2976 + $0x54] sm:$0xf]
      %v2992 = vld [vmem:[%s2976 + $0x58] sm:$0xf]
      %s2993 = scalar_lea.vmem %s3, 384
      %v2994 = vld [vmem:[%s2993] sm:$0xf]
      %v2995 = vld [vmem:[%s2993 + $0x4] sm:$0xf]
      %v2996 = vld [vmem:[%s2993 + $0x8] sm:$0xf]
      %v2997 = vld [vmem:[%s2993 + $0xc] sm:$0xf]
      %v2998 = vld [vmem:[%s2993 + $0x10] sm:$0xf]
      %v2999 = vld [vmem:[%s2993 + $0x14] sm:$0xf]
      %v3000 = vld [vmem:[%s2993 + $0x18] sm:$0xf]
      %v3001 = vld [vmem:[%s2993 + $0x1c] sm:$0xf]
      %v3002 = vld [vmem:[%s2993 + $0x20] sm:$0xf]
      %v3003 = vld [vmem:[%s2993 + $0x24] sm:$0xf]
      %v3004 = vld [vmem:[%s2993 + $0x28] sm:$0xf]
      %v3005 = vld [vmem:[%s2993 + $0x2c] sm:$0xf]
      %v3006 = vld [vmem:[%s2993 + $0x30] sm:$0xf]
      %v3007 = vld [vmem:[%s2993 + $0x34] sm:$0xf]
      %v3008 = vld [vmem:[%s2993 + $0x38] sm:$0xf]
      %v3009 = vld [vmem:[%s2993 + $0x3c] sm:$0xf]
      %v3026 = vunpack.c.l.b16 %v2977
      %v3027 = vunpack.c.l.b16 %v2978
      %v3028 = vunpack.c.l.b16 %v2979
      %v3029 = vunpack.c.l.b16 %v2980
      %v3030 = vunpack.c.l.b16 %v2981
      %v3031 = vunpack.c.l.b16 %v2982
      %v3032 = vunpack.c.l.b16 %v2983
      %v3033 = vunpack.c.l.b16 %v2984
      %v3034 = vunpack.c.l.b16 %v2985
      %v3035 = vunpack.c.l.b16 %v2986
      %v3036 = vunpack.c.l.b16 %v2987
      %v3037 = vunpack.c.l.b16 %v2988
      %v3038 = vunpack.c.l.b16 %v2989
      %v3039 = vunpack.c.l.b16 %v2990
      %v3040 = vunpack.c.l.b16 %v2991
      %v3041 = vunpack.c.l.b16 %v2992
      %v3042 = vpack.c.b16 %v3027, %v3026
      %v3043 = vpack.c.b16 %v3029, %v3028
      %v3044 = vpack.c.b16 %v3031, %v3030
      %v3045 = vpack.c.b16 %v3033, %v3032
      %v3046 = vpack.c.b16 %v3035, %v3034
      %v3047 = vpack.c.b16 %v3037, %v3036
      %v3048 = vpack.c.b16 %v3039, %v3038
      %v3049 = vpack.c.b16 %v3041, %v3040
      %v3074 = vunpack.c.l.b16 %v2994
      %v3075 = vunpack.c.l.b16 %v2995
      %v3076 = vunpack.c.l.b16 %v2996
      %v3077 = vunpack.c.l.b16 %v2997
      %v3078 = vunpack.c.l.b16 %v2998
      %v3079 = vunpack.c.l.b16 %v2999
      %v3080 = vunpack.c.l.b16 %v3000
      %v3081 = vunpack.c.l.b16 %v3001
      %v3082 = vunpack.c.l.b16 %v3002
      %v3083 = vunpack.c.l.b16 %v3003
      %v3084 = vunpack.c.l.b16 %v3004
      %v3085 = vunpack.c.l.b16 %v3005
      %v3086 = vunpack.c.l.b16 %v3006
      %v3087 = vunpack.c.l.b16 %v3007
      %v3088 = vunpack.c.l.b16 %v3008
      %v3089 = vunpack.c.l.b16 %v3009
      %v3090 = vpack.c.b16 %v3075, %v3074
      %v3091 = vpack.c.b16 %v3077, %v3076
      %v3092 = vpack.c.b16 %v3079, %v3078
      %v3093 = vpack.c.b16 %v3081, %v3080
      %v3094 = vpack.c.b16 %v3083, %v3082
      %v3095 = vpack.c.b16 %v3085, %v3084
      %v3096 = vpack.c.b16 %v3087, %v3086
      %v3097 = vpack.c.b16 %v3089, %v3088
      %3106 = vmatprep.subr.bf16.mxu0 0
      %3107 = vmatpush1.bf16.msra.mxu0 %v3090
      %3108 = vmatprep.subr.bf16.mxu0 0
      %3109 = vmatpush1.bf16.msra.mxu0 %v3091
      %3110 = vmatprep.subr.bf16.mxu0 0
      %3111 = vmatpush1.bf16.msra.mxu0 %v3092
      %3112 = vmatprep.subr.bf16.mxu0 0
      %3113 = vmatpush1.bf16.msra.mxu0 %v3093
      %3114 = vmatprep.subr.bf16.mxu0 0
      %3115 = vmatpush1.bf16.msra.mxu0 %v3094
      %3116 = vmatprep.subr.bf16.mxu0 0
      %3117 = vmatpush1.bf16.msra.mxu0 %v3095
      %3118 = vmatprep.subr.bf16.mxu0 0
      %3119 = vmatpush1.bf16.msra.mxu0 %v3096
      %3120 = vmatprep.subr.bf16.mxu0 0
      %3121 = vmatpush1.bf16.msra.mxu0 %v3097
      %3122 = vmatprep.subr.bf16.mxu0 0
      %3123 = vmatpush1.bf16.msra.mxu0 0
      %3124 = vmatprep.subr.bf16.mxu0 0
      %3125 = vmatpush1.bf16.msra.mxu0 0
      %3126 = vmatprep.subr.bf16.mxu0 0
      %3127 = vmatpush1.bf16.msra.mxu0 0
      %3128 = vmatprep.subr.bf16.mxu0 0
      %3129 = vmatpush1.bf16.msra.mxu0 0
      %3130 = vmatprep.subr.bf16.mxu0 0
      %3131 = vmatpush1.bf16.msra.mxu0 0
      %3132 = vmatprep.subr.bf16.mxu0 0
      %3133 = vmatpush1.bf16.msra.mxu0 0
      %3134 = vmatprep.subr.bf16.mxu0 0
      %3135 = vmatpush1.bf16.msra.mxu0 0
      %3136 = vmatprep.subr.bf16.mxu0 0
      %3137 = vmatpush1.bf16.msra.mxu0 0
      %3138 = vmatprep.mubr.bf16.mxu0 0
      %3139 = vmatmul.mubr.bf16.gmra.mrb[0].mxu0 %v3042
      %v3140 = vpop.f32.mrb[0].mxu0
      %v3141 = vadd.f32 0.0, %v3140
      %v3142 = vpop.f32.mrb[0].mxu0
      %v3143 = vpop.f32.mrb[0].mxu0
      %v3144 = vadd.f32 0.0, %v3143
      %v3145 = vpop.f32.mrb[0].mxu0
      %3146 = vmatprep.mubr.bf16.mxu0 0
      %3147 = vmatmul.mubr.bf16.gmra.mrb[0].mxu0 %v3043
      %v3148 = vpop.f32.mrb[0].mxu0
      %v3149 = vadd.f32 0.0, %v3148
      %v3150 = vpop.f32.mrb[0].mxu0
      %v3151 = vpop.f32.mrb[0].mxu0
      %v3152 = vadd.f32 0.0, %v3151
      %v3153 = vpop.f32.mrb[0].mxu0
      %3154 = vmatprep.mubr.bf16.mxu0 0
      %3155 = vmatmul.mubr.bf16.gmra.mrb[0].mxu0 %v3044
      %v3156 = vpop.f32.mrb[0].mxu0
      %v3157 = vadd.f32 0.0, %v3156
      %v3158 = vpop.f32.mrb[0].mxu0
      %v3159 = vpop.f32.mrb[0].mxu0
      %v3160 = vadd.f32 0.0, %v3159
      %v3161 = vpop.f32.mrb[0].mxu0
      %3162 = vmatprep.mubr.bf16.mxu0 0
      %3163 = vmatmul.mubr.bf16.gmra.mrb[0].mxu0 %v3045
      %v3164 = vpop.f32.mrb[0].mxu0
      %v3165 = vadd.f32 0.0, %v3164
      %v3166 = vpop.f32.mrb[0].mxu0
      %v3167 = vpop.f32.mrb[0].mxu0
      %v3168 = vadd.f32 0.0, %v3167
      %v3169 = vpop.f32.mrb[0].mxu0
      %3170 = vmatprep.mubr.bf16.mxu0 0
      %3171 = vmatmul.mubr.bf16.gmra.mrb[0].mxu0 %v3046
      %v3172 = vpop.f32.mrb[0].mxu0
      %v3173 = vadd.f32 0.0, %v3172
      %v3174 = vpop.f32.mrb[0].mxu0
      %v3175 = vpop.f32.mrb[0].mxu0
      %v3176 = vadd.f32 0.0, %v3175
      %v3177 = vpop.f32.mrb[0].mxu0
      %3178 = vmatprep.mubr.bf16.mxu0 0
      %3179 = vmatmul.mubr.bf16.gmra.mrb[0].mxu0 %v3047
      %v3180 = vpop.f32.mrb[0].mxu0
      %v3181 = vadd.f32 0.0, %v3180
      %v3182 = vpop.f32.mrb[0].mxu0
      %v3183 = vpop.f32.mrb[0].mxu0
      %v3184 = vadd.f32 0.0, %v3183
      %v3185 = vpop.f32.mrb[0].mxu0
      %3186 = vmatprep.mubr.bf16.mxu0 0
      %3187 = vmatmul.mubr.bf16.gmra.mrb[0].mxu0 %v3048
      %v3188 = vpop.f32.mrb[0].mxu0
      %v3189 = vadd.f32 0.0, %v3188
      %v3190 = vpop.f32.mrb[0].mxu0
      %v3191 = vpop.f32.mrb[0].mxu0
      %v3192 = vadd.f32 0.0, %v3191
      %v3193 = vpop.f32.mrb[0].mxu0
      %3194 = vmatprep.mubr.bf16.mxu0 0
      %3195 = vmatmul.mubr.bf16.gmra.mrb[0].mxu0 %v3049
      %v3196 = vpop.f32.mrb[0].mxu0
      %v3197 = vadd.f32 0.0, %v3196
      %v3198 = vpop.f32.mrb[0].mxu0
      %v3199 = vpop.f32.mrb[0].mxu0
      %v3200 = vadd.f32 0.0, %v3199
      %v3201 = vpop.f32.mrb[0].mxu0
      %3202 = vdwg.mxu0
      %v3203 = vadd.f32 %v2957, %v3141
      %v3204 = vadd.f32 %v2958, %v3144
      %v3205 = vadd.f32 %v2959, %v3149
      %v3206 = vadd.f32 %v2960, %v3152
      %v3207 = vadd.f32 %v2961, %v3157
      %v3208 = vadd.f32 %v2962, %v3160
      %v3209 = vadd.f32 %v2963, %v3165
      %v3210 = vadd.f32 %v2964, %v3168
      %v3211 = vadd.f32 %v2965, %v3173
      %v3212 = vadd.f32 %v2966, %v3176
      %v3213 = vadd.f32 %v2967, %v3181
      %v3214 = vadd.f32 %v2968, %v3184
      %v3215 = vadd.f32 %v2969, %v3189
      %v3216 = vadd.f32 %v2970, %v3192
      %v3217 = vadd.f32 %v2971, %v3197
      %v3218 = vadd.f32 %v2972, %v3200
      %v3219 = vld [vmem:[%s2976] sm:$0xf]
      %v3220 = vld [vmem:[%s2976 + $0x4] sm:$0xf]
      %v3221 = vld [vmem:[%s2976 + $0x8] sm:$0x1]
      %v3222 = vld [vmem:[%s2976 + $0xc] sm:$0xf]
      %v3223 = vld [vmem:[%s2976 + $0x10] sm:$0xf]
      %v3224 = vld [vmem:[%s2976 + $0x14] sm:$0x1]
      %v3225 = vld [vmem:[%s2976 + $0x18] sm:$0xf]
      %v3226 = vld [vmem:[%s2976 + $0x1c] sm:$0xf]
      %v3227 = vld [vmem:[%s2976 + $0x20] sm:$0x1]
      %v3228 = vld [vmem:[%s2976 + $0x24] sm:$0xf]
      %v3229 = vld [vmem:[%s2976 + $0x28] sm:$0xf]
      %v3230 = vld [vmem:[%s2976 + $0x2c] sm:$0x1]
      %v3231 = vld [vmem:[%s2976 + $0x30] sm:$0xf]
      %v3232 = vld [vmem:[%s2976 + $0x34] sm:$0xf]
      %v3233 = vld [vmem:[%s2976 + $0x38] sm:$0x1]
      %v3234 = vld [vmem:[%s2976 + $0x3c] sm:$0xf]
      %v3235 = vld [vmem:[%s2976 + $0x40] sm:$0xf]
      %v3236 = vld [vmem:[%s2976 + $0x44] sm:$0x1]
      %v3237 = vld [vmem:[%s2976 + $0x48] sm:$0xf]
      %v3238 = vld [vmem:[%s2976 + $0x4c] sm:$0xf]
      %v3239 = vld [vmem:[%s2976 + $0x50] sm:$0x1]
      %v3240 = vld [vmem:[%s2976 + $0x54] sm:$0xf]
      %v3241 = vld [vmem:[%s2976 + $0x58] sm:$0xf]
      %v3242 = vld [vmem:[%s2976 + $0x5c] sm:$0x1]
      %v3244 = vshrl.u32 %v3219, 16
      %v3246 = vrot.slane %v3244, 4
      %v3247 = vshll.u32 %v3219, 16
      %v3249 = vrot.slane %v3247, 5
      %v3250 = vor.u32 %v3246, %v3249
      %v3251 = vrot.slane %v3250, 4
      %v3253 = vshll.u32 %v3220, 16
      %v3255 = vrot.slane %v3253, 5
      %v3256 = vsel %vm1130, %v3251, %v3255
      %v3257 = vshrl.u32 %v3220, 16
      %v3259 = vrot.slane %v3257, 4
      %v3260 = vor.u32 %v3259, %v3255
      %v3261 = vrot.slane %v3260, 4
      %v3263 = vshll.u32 %v3221, 16
      %v3265 = vrot.slane %v3263, 5
      %v3266 = vsel %vm1130, %v3261, %v3265
      %v3268 = vshrl.u32 %v3222, 16
      %v3270 = vrot.slane %v3268, 4
      %v3271 = vshll.u32 %v3222, 16
      %v3273 = vrot.slane %v3271, 5
      %v3274 = vor.u32 %v3270, %v3273
      %v3275 = vrot.slane %v3274, 4
      %v3277 = vshll.u32 %v3223, 16
      %v3279 = vrot.slane %v3277, 5
      %v3280 = vsel %vm1130, %v3275, %v3279
      %v3281 = vshrl.u32 %v3223, 16
      %v3283 = vrot.slane %v3281, 4
      %v3284 = vor.u32 %v3283, %v3279
      %v3285 = vrot.slane %v3284, 4
      %v3287 = vshll.u32 %v3224, 16
      %v3289 = vrot.slane %v3287, 5
      %v3290 = vsel %vm1130, %v3285, %v3289
      %v3292 = vshrl.u32 %v3225, 16
      %v3294 = vrot.slane %v3292, 4
      %v3295 = vshll.u32 %v3225, 16
      %v3297 = vrot.slane %v3295, 5
      %v3298 = vor.u32 %v3294, %v3297
      %v3299 = vrot.slane %v3298, 4
      %v3301 = vshll.u32 %v3226, 16
      %v3303 = vrot.slane %v3301, 5
      %v3304 = vsel %vm1130, %v3299, %v3303
      %v3305 = vshrl.u32 %v3226, 16
      %v3307 = vrot.slane %v3305, 4
      %v3308 = vor.u32 %v3307, %v3303
      %v3309 = vrot.slane %v3308, 4
      %v3311 = vshll.u32 %v3227, 16
      %v3313 = vrot.slane %v3311, 5
      %v3314 = vsel %vm1130, %v3309, %v3313
      %v3316 = vshrl.u32 %v3228, 16
      %v3318 = vrot.slane %v3316, 4
      %v3319 = vshll.u32 %v3228, 16
      %v3321 = vrot.slane %v3319, 5
      %v3322 = vor.u32 %v3318, %v3321
      %v3323 = vrot.slane %v3322, 4
      %v3325 = vshll.u32 %v3229, 16
      %v3327 = vrot.slane %v3325, 5
      %v3328 = vsel %vm1130, %v3323, %v3327
      %v3329 = vshrl.u32 %v3229, 16
      %v3331 = vrot.slane %v3329, 4
      %v3332 = vor.u32 %v3331, %v3327
      %v3333 = vrot.slane %v3332, 4
      %v3335 = vshll.u32 %v3230, 16
      %v3337 = vrot.slane %v3335, 5
      %v3338 = vsel %vm1130, %v3333, %v3337
      %v3340 = vshrl.u32 %v3231, 16
      %v3342 = vrot.slane %v3340, 4
      %v3343 = vshll.u32 %v3231, 16
      %v3345 = vrot.slane %v3343, 5
      %v3346 = vor.u32 %v3342, %v3345
      %v3347 = vrot.slane %v3346, 4
      %v3349 = vshll.u32 %v3232, 16
      %v3351 = vrot.slane %v3349, 5
      %v3352 = vsel %vm1130, %v3347, %v3351
      %v3353 = vshrl.u32 %v3232, 16
      %v3355 = vrot.slane %v3353, 4
      %v3356 = vor.u32 %v3355, %v3351
      %v3357 = vrot.slane %v3356, 4
      %v3359 = vshll.u32 %v3233, 16
      %v3361 = vrot.slane %v3359, 5
      %v3362 = vsel %vm1130, %v3357, %v3361
      %v3364 = vshrl.u32 %v3234, 16
      %v3366 = vrot.slane %v3364, 4
      %v3367 = vshll.u32 %v3234, 16
      %v3369 = vrot.slane %v3367, 5
      %v3370 = vor.u32 %v3366, %v3369
      %v3371 = vrot.slane %v3370, 4
      %v3373 = vshll.u32 %v3235, 16
      %v3375 = vrot.slane %v3373, 5
      %v3376 = vsel %vm1130, %v3371, %v3375
      %v3377 = vshrl.u32 %v3235, 16
      %v3379 = vrot.slane %v3377, 4
      %v3380 = vor.u32 %v3379, %v3375
      %v3381 = vrot.slane %v3380, 4
      %v3383 = vshll.u32 %v3236, 16
      %v3385 = vrot.slane %v3383, 5
      %v3386 = vsel %vm1130, %v3381, %v3385
      %v3388 = vshrl.u32 %v3237, 16
      %v3390 = vrot.slane %v3388, 4
      %v3391 = vshll.u32 %v3237, 16
      %v3393 = vrot.slane %v3391, 5
      %v3394 = vor.u32 %v3390, %v3393
      %v3395 = vrot.slane %v3394, 4
      %v3397 = vshll.u32 %v3238, 16
      %v3399 = vrot.slane %v3397, 5
      %v3400 = vsel %vm1130, %v3395, %v3399
      %v3401 = vshrl.u32 %v3238, 16
      %v3403 = vrot.slane %v3401, 4
      %v3404 = vor.u32 %v3403, %v3399
      %v3405 = vrot.slane %v3404, 4
      %v3407 = vshll.u32 %v3239, 16
      %v3409 = vrot.slane %v3407, 5
      %v3410 = vsel %vm1130, %v3405, %v3409
      %v3412 = vshrl.u32 %v3240, 16
      %v3414 = vrot.slane %v3412, 4
      %v3415 = vshll.u32 %v3240, 16
      %v3417 = vrot.slane %v3415, 5
      %v3418 = vor.u32 %v3414, %v3417
      %v3419 = vrot.slane %v3418, 4
      %v3421 = vshll.u32 %v3241, 16
      %v3423 = vrot.slane %v3421, 5
      %v3424 = vsel %vm1130, %v3419, %v3423
      %v3425 = vshrl.u32 %v3241, 16
      %v3427 = vrot.slane %v3425, 4
      %v3428 = vor.u32 %v3427, %v3423
      %v3429 = vrot.slane %v3428, 4
      %v3431 = vshll.u32 %v3242, 16
      %v3433 = vrot.slane %v3431, 5
      %v3434 = vsel %vm1130, %v3429, %v3433
      %s3435 = scalar_lea.vmem %s3, 448
      %v3436 = vld [vmem:[%s3435] sm:$0xf]
      %v3437 = vld [vmem:[%s3435 + $0x4] sm:$0xf]
      %v3438 = vld [vmem:[%s3435 + $0x8] sm:$0xf]
      %v3439 = vld [vmem:[%s3435 + $0xc] sm:$0xf]
      %v3440 = vld [vmem:[%s3435 + $0x10] sm:$0xf]
      %v3441 = vld [vmem:[%s3435 + $0x14] sm:$0xf]
      %v3442 = vld [vmem:[%s3435 + $0x18] sm:$0xf]
      %v3443 = vld [vmem:[%s3435 + $0x1c] sm:$0xf]
      %v3444 = vld [vmem:[%s3435 + $0x20] sm:$0xf]
      %v3445 = vld [vmem:[%s3435 + $0x24] sm:$0xf]
      %v3446 = vld [vmem:[%s3435 + $0x28] sm:$0xf]
      %v3447 = vld [vmem:[%s3435 + $0x2c] sm:$0xf]
      %v3448 = vld [vmem:[%s3435 + $0x30] sm:$0xf]
      %v3449 = vld [vmem:[%s3435 + $0x34] sm:$0xf]
      %v3450 = vld [vmem:[%s3435 + $0x38] sm:$0xf]
      %v3451 = vld [vmem:[%s3435 + $0x3c] sm:$0xf]
      %v3452 = vunpack.c.l.b16 %v3256
      %v3453 = vunpack.c.l.b16 %v3266
      %v3454 = vunpack.c.l.b16 %v3280
      %v3455 = vunpack.c.l.b16 %v3290
      %v3456 = vunpack.c.l.b16 %v3304
      %v3457 = vunpack.c.l.b16 %v3314
      %v3458 = vunpack.c.l.b16 %v3328
      %v3459 = vunpack.c.l.b16 %v3338
      %v3460 = vunpack.c.l.b16 %v3352
      %v3461 = vunpack.c.l.b16 %v3362
      %v3462 = vunpack.c.l.b16 %v3376
      %v3463 = vunpack.c.l.b16 %v3386
      %v3464 = vunpack.c.l.b16 %v3400
      %v3465 = vunpack.c.l.b16 %v3410
      %v3466 = vunpack.c.l.b16 %v3424
      %v3467 = vunpack.c.l.b16 %v3434
      %v3468 = vpack.c.b16 %v3453, %v3452
      %v3469 = vpack.c.b16 %v3455, %v3454
      %v3470 = vpack.c.b16 %v3457, %v3456
      %v3471 = vpack.c.b16 %v3459, %v3458
      %v3472 = vpack.c.b16 %v3461, %v3460
      %v3473 = vpack.c.b16 %v3463, %v3462
      %v3474 = vpack.c.b16 %v3465, %v3464
      %v3475 = vpack.c.b16 %v3467, %v3466
      %v3500 = vunpack.c.l.b16 %v3436
      %v3501 = vunpack.c.l.b16 %v3437
      %v3502 = vunpack.c.l.b16 %v3438
      %v3503 = vunpack.c.l.b16 %v3439
      %v3504 = vunpack.c.l.b16 %v3440
      %v3505 = vunpack.c.l.b16 %v3441
      %v3506 = vunpack.c.l.b16 %v3442
      %v3507 = vunpack.c.l.b16 %v3443
      %v3508 = vunpack.c.l.b16 %v3444
      %v3509 = vunpack.c.l.b16 %v3445
      %v3510 = vunpack.c.l.b16 %v3446
      %v3511 = vunpack.c.l.b16 %v3447
      %v3512 = vunpack.c.l.b16 %v3448
      %v3513 = vunpack.c.l.b16 %v3449
      %v3514 = vunpack.c.l.b16 %v3450
      %v3515 = vunpack.c.l.b16 %v3451
      %v3516 = vpack.c.b16 %v3501, %v3500
      %v3517 = vpack.c.b16 %v3503, %v3502
      %v3518 = vpack.c.b16 %v3505, %v3504
      %v3519 = vpack.c.b16 %v3507, %v3506
      %v3520 = vpack.c.b16 %v3509, %v3508
      %v3521 = vpack.c.b16 %v3511, %v3510
      %v3522 = vpack.c.b16 %v3513, %v3512
      %v3523 = vpack.c.b16 %v3515, %v3514
      %3532 = vmatprep.subr.bf16.mxu0 0
      %3533 = vmatpush1.bf16.msra.mxu0 %v3516
      %3534 = vmatprep.subr.bf16.mxu0 0
      %3535 = vmatpush1.bf16.msra.mxu0 %v3517
      %3536 = vmatprep.subr.bf16.mxu0 0
      %3537 = vmatpush1.bf16.msra.mxu0 %v3518
      %3538 = vmatprep.subr.bf16.mxu0 0
      %3539 = vmatpush1.bf16.msra.mxu0 %v3519
      %3540 = vmatprep.subr.bf16.mxu0 0
      %3541 = vmatpush1.bf16.msra.mxu0 %v3520
      %3542 = vmatprep.subr.bf16.mxu0 0
      %3543 = vmatpush1.bf16.msra.mxu0 %v3521
      %3544 = vmatprep.subr.bf16.mxu0 0
      %3545 = vmatpush1.bf16.msra.mxu0 %v3522
      %3546 = vmatprep.subr.bf16.mxu0 0
      %3547 = vmatpush1.bf16.msra.mxu0 %v3523
      %3548 = vmatprep.subr.bf16.mxu0 0
      %3549 = vmatpush1.bf16.msra.mxu0 0
      %3550 = vmatprep.subr.bf16.mxu0 0
      %3551 = vmatpush1.bf16.msra.mxu0 0
      %3552 = vmatprep.subr.bf16.mxu0 0
      %3553 = vmatpush1.bf16.msra.mxu0 0
      %3554 = vmatprep.subr.bf16.mxu0 0
      %3555 = vmatpush1.bf16.msra.mxu0 0
      %3556 = vmatprep.subr.bf16.mxu0 0
      %3557 = vmatpush1.bf16.msra.mxu0 0
      %3558 = vmatprep.subr.bf16.mxu0 0
      %3559 = vmatpush1.bf16.msra.mxu0 0
      %3560 = vmatprep.subr.bf16.mxu0 0
      %3561 = vmatpush1.bf16.msra.mxu0 0
      %3562 = vmatprep.subr.bf16.mxu0 0
      %3563 = vmatpush1.bf16.msra.mxu0 0
      %3564 = vmatprep.mubr.bf16.mxu0 0
      %3565 = vmatmul.mubr.bf16.gmra.mrb[0].mxu0 %v3468
      %v3566 = vpop.f32.mrb[0].mxu0
      %v3567 = vadd.f32 0.0, %v3566
      %v3568 = vpop.f32.mrb[0].mxu0
      %v3569 = vpop.f32.mrb[0].mxu0
      %v3570 = vadd.f32 0.0, %v3569
      %v3571 = vpop.f32.mrb[0].mxu0
      %3572 = vmatprep.mubr.bf16.mxu0 0
      %3573 = vmatmul.mubr.bf16.gmra.mrb[0].mxu0 %v3469
      %v3574 = vpop.f32.mrb[0].mxu0
      %v3575 = vadd.f32 0.0, %v3574
      %v3576 = vpop.f32.mrb[0].mxu0
      %v3577 = vpop.f32.mrb[0].mxu0
      %v3578 = vadd.f32 0.0, %v3577
      %v3579 = vpop.f32.mrb[0].mxu0
      %3580 = vmatprep.mubr.bf16.mxu0 0
      %3581 = vmatmul.mubr.bf16.gmra.mrb[0].mxu0 %v3470
      %v3582 = vpop.f32.mrb[0].mxu0
      %v3583 = vadd.f32 0.0, %v3582
      %v3584 = vpop.f32.mrb[0].mxu0
      %v3585 = vpop.f32.mrb[0].mxu0
      %v3586 = vadd.f32 0.0, %v3585
      %v3587 = vpop.f32.mrb[0].mxu0
      %3588 = vmatprep.mubr.bf16.mxu0 0
      %3589 = vmatmul.mubr.bf16.gmra.mrb[0].mxu0 %v3471
      %v3590 = vpop.f32.mrb[0].mxu0
      %v3591 = vadd.f32 0.0, %v3590
      %v3592 = vpop.f32.mrb[0].mxu0
      %v3593 = vpop.f32.mrb[0].mxu0
      %v3594 = vadd.f32 0.0, %v3593
      %v3595 = vpop.f32.mrb[0].mxu0
      %3596 = vmatprep.mubr.bf16.mxu0 0
      %3597 = vmatmul.mubr.bf16.gmra.mrb[0].mxu0 %v3472
      %v3598 = vpop.f32.mrb[0].mxu0
      %v3599 = vadd.f32 0.0, %v3598
      %v3600 = vpop.f32.mrb[0].mxu0
      %v3601 = vpop.f32.mrb[0].mxu0
      %v3602 = vadd.f32 0.0, %v3601
      %v3603 = vpop.f32.mrb[0].mxu0
      %3604 = vmatprep.mubr.bf16.mxu0 0
      %3605 = vmatmul.mubr.bf16.gmra.mrb[0].mxu0 %v3473
      %v3606 = vpop.f32.mrb[0].mxu0
      %v3607 = vadd.f32 0.0, %v3606
      %v3608 = vpop.f32.mrb[0].mxu0
      %v3609 = vpop.f32.mrb[0].mxu0
      %v3610 = vadd.f32 0.0, %v3609
      %v3611 = vpop.f32.mrb[0].mxu0
      %3612 = vmatprep.mubr.bf16.mxu0 0
      %3613 = vmatmul.mubr.bf16.gmra.mrb[0].mxu0 %v3474
      %v3614 = vpop.f32.mrb[0].mxu0
      %v3615 = vadd.f32 0.0, %v3614
      %v3616 = vpop.f32.mrb[0].mxu0
      %v3617 = vpop.f32.mrb[0].mxu0
      %v3618 = vadd.f32 0.0, %v3617
      %v3619 = vpop.f32.mrb[0].mxu0
      %3620 = vmatprep.mubr.bf16.mxu0 0
      %3621 = vmatmul.mubr.bf16.gmra.mrb[0].mxu0 %v3475
      %v3622 = vpop.f32.mrb[0].mxu0
      %v3623 = vadd.f32 0.0, %v3622
      %v3624 = vpop.f32.mrb[0].mxu0
      %v3625 = vpop.f32.mrb[0].mxu0
      %v3626 = vadd.f32 0.0, %v3625
      %v3627 = vpop.f32.mrb[0].mxu0
      %3628 = vdwg.mxu0
      %v3629 = vadd.f32 %v3203, %v3567
      %v3630 = vadd.f32 %v3204, %v3570
      %v3631 = vadd.f32 %v3205, %v3575
      %v3632 = vadd.f32 %v3206, %v3578
      %v3633 = vadd.f32 %v3207, %v3583
      %v3634 = vadd.f32 %v3208, %v3586
      %v3635 = vadd.f32 %v3209, %v3591
      %v3636 = vadd.f32 %v3210, %v3594
      %v3637 = vadd.f32 %v3211, %v3599
      %v3638 = vadd.f32 %v3212, %v3602
      %v3639 = vadd.f32 %v3213, %v3607
      %v3640 = vadd.f32 %v3214, %v3610
      %v3641 = vadd.f32 %v3215, %v3615
      %v3642 = vadd.f32 %v3216, %v3618
      %v3643 = vadd.f32 %v3217, %v3623
      %v3644 = vadd.f32 %v3218, %v3626
      %v3645 = vld [vmem:[%s2976] sm:$0xe]
      %v3646 = vld [vmem:[%s2976 + $0xc] sm:$0xe]
      %v3647 = vld [vmem:[%s2976 + $0x18] sm:$0xe]
      %v3648 = vld [vmem:[%s2976 + $0x24] sm:$0xe]
      %v3649 = vld [vmem:[%s2976 + $0x30] sm:$0xe]
      %v3650 = vld [vmem:[%s2976 + $0x3c] sm:$0xe]
      %v3651 = vld [vmem:[%s2976 + $0x48] sm:$0xe]
      %v3652 = vld [vmem:[%s2976 + $0x54] sm:$0xe]
      %v3677 = vrot.slane %v3645, 5
      %v3678 = vrot.slane %v3677, 4
      %v3679 = vrot.slane %v3220, 5
      %v3680 = vsel %vm1736, %v3678, %v3679
      %v3681 = vrot.slane %v3679, 4
      %v3682 = vrot.slane %v3221, 5
      %v3683 = vsel %vm1736, %v3681, %v3682
      %v3684 = vrot.slane %v3646, 5
      %v3685 = vrot.slane %v3684, 4
      %v3686 = vrot.slane %v3223, 5
      %v3687 = vsel %vm1736, %v3685, %v3686
      %v3688 = vrot.slane %v3686, 4
      %v3689 = vrot.slane %v3224, 5
      %v3690 = vsel %vm1736, %v3688, %v3689
      %v3691 = vrot.slane %v3647, 5
      %v3692 = vrot.slane %v3691, 4
      %v3693 = vrot.slane %v3226, 5
      %v3694 = vsel %vm1736, %v3692, %v3693
      %v3695 = vrot.slane %v3693, 4
      %v3696 = vrot.slane %v3227, 5
      %v3697 = vsel %vm1736, %v3695, %v3696
      %v3698 = vrot.slane %v3648, 5
      %v3699 = vrot.slane %v3698, 4
      %v3700 = vrot.slane %v3229, 5
      %v3701 = vsel %vm1736, %v3699, %v3700
      %v3702 = vrot.slane %v3700, 4
      %v3703 = vrot.slane %v3230, 5
      %v3704 = vsel %vm1736, %v3702, %v3703
      %v3705 = vrot.slane %v3649, 5
      %v3706 = vrot.slane %v3705, 4
      %v3707 = vrot.slane %v3232, 5
      %v3708 = vsel %vm1736, %v3706, %v3707
      %v3709 = vrot.slane %v3707, 4
      %v3710 = vrot.slane %v3233, 5
      %v3711 = vsel %vm1736, %v3709, %v3710
      %v3712 = vrot.slane %v3650, 5
      %v3713 = vrot.slane %v3712, 4
      %v3714 = vrot.slane %v3235, 5
      %v3715 = vsel %vm1736, %v3713, %v3714
      %v3716 = vrot.slane %v3714, 4
      %v3717 = vrot.slane %v3236, 5
      %v3718 = vsel %vm1736, %v3716, %v3717
      %v3719 = vrot.slane %v3651, 5
      %v3720 = vrot.slane %v3719, 4
      %v3721 = vrot.slane %v3238, 5
      %v3722 = vsel %vm1736, %v3720, %v3721
      %v3723 = vrot.slane %v3721, 4
      %v3724 = vrot.slane %v3239, 5
      %v3725 = vsel %vm1736, %v3723, %v3724
      %v3726 = vrot.slane %v3652, 5
      %v3727 = vrot.slane %v3726, 4
      %v3728 = vrot.slane %v3241, 5
      %v3729 = vsel %vm1736, %v3727, %v3728
      %v3730 = vrot.slane %v3728, 4
      %v3731 = vrot.slane %v3242, 5
      %v3732 = vsel %vm1736, %v3730, %v3731
      %s3733 = scalar_lea.vmem %s3, 512
      %v3734 = vld [vmem:[%s3733] sm:$0xf]
      %v3735 = vld [vmem:[%s3733 + $0x4] sm:$0xf]
      %v3736 = vld [vmem:[%s3733 + $0x8] sm:$0xf]
      %v3737 = vld [vmem:[%s3733 + $0xc] sm:$0xf]
      %v3738 = vld [vmem:[%s3733 + $0x10] sm:$0xf]
      %v3739 = vld [vmem:[%s3733 + $0x14] sm:$0xf]
      %v3740 = vld [vmem:[%s3733 + $0x18] sm:$0xf]
      %v3741 = vld [vmem:[%s3733 + $0x1c] sm:$0xf]
      %v3742 = vld [vmem:[%s3733 + $0x20] sm:$0xf]
      %v3743 = vld [vmem:[%s3733 + $0x24] sm:$0xf]
      %v3744 = vld [vmem:[%s3733 + $0x28] sm:$0xf]
      %v3745 = vld [vmem:[%s3733 + $0x2c] sm:$0xf]
      %v3746 = vld [vmem:[%s3733 + $0x30] sm:$0xf]
      %v3747 = vld [vmem:[%s3733 + $0x34] sm:$0xf]
      %v3748 = vld [vmem:[%s3733 + $0x38] sm:$0xf]
      %v3749 = vld [vmem:[%s3733 + $0x3c] sm:$0xf]
      %v3750 = vunpack.c.l.b16 %v3680
      %v3751 = vunpack.c.l.b16 %v3683
      %v3752 = vunpack.c.l.b16 %v3687
      %v3753 = vunpack.c.l.b16 %v3690
      %v3754 = vunpack.c.l.b16 %v3694
      %v3755 = vunpack.c.l.b16 %v3697
      %v3756 = vunpack.c.l.b16 %v3701
      %v3757 = vunpack.c.l.b16 %v3704
      %v3758 = vunpack.c.l.b16 %v3708
      %v3759 = vunpack.c.l.b16 %v3711
      %v3760 = vunpack.c.l.b16 %v3715
      %v3761 = vunpack.c.l.b16 %v3718
      %v3762 = vunpack.c.l.b16 %v3722
      %v3763 = vunpack.c.l.b16 %v3725
      %v3764 = vunpack.c.l.b16 %v3729
      %v3765 = vunpack.c.l.b16 %v3732
      %v3766 = vpack.c.b16 %v3751, %v3750
      %v3767 = vpack.c.b16 %v3753, %v3752
      %v3768 = vpack.c.b16 %v3755, %v3754
      %v3769 = vpack.c.b16 %v3757, %v3756
      %v3770 = vpack.c.b16 %v3759, %v3758
      %v3771 = vpack.c.b16 %v3761, %v3760
      %v3772 = vpack.c.b16 %v3763, %v3762
      %v3773 = vpack.c.b16 %v3765, %v3764
      %v3798 = vunpack.c.l.b16 %v3734
      %v3799 = vunpack.c.l.b16 %v3735
      %v3800 = vunpack.c.l.b16 %v3736
      %v3801 = vunpack.c.l.b16 %v3737
      %v3802 = vunpack.c.l.b16 %v3738
      %v3803 = vunpack.c.l.b16 %v3739
      %v3804 = vunpack.c.l.b16 %v3740
      %v3805 = vunpack.c.l.b16 %v3741
      %v3806 = vunpack.c.l.b16 %v3742
      %v3807 = vunpack.c.l.b16 %v3743
      %v3808 = vunpack.c.l.b16 %v3744
      %v3809 = vunpack.c.l.b16 %v3745
      %v3810 = vunpack.c.l.b16 %v3746
      %v3811 = vunpack.c.l.b16 %v3747
      %v3812 = vunpack.c.l.b16 %v3748
      %v3813 = vunpack.c.l.b16 %v3749
      %v3814 = vpack.c.b16 %v3799, %v3798
      %v3815 = vpack.c.b16 %v3801, %v3800
      %v3816 = vpack.c.b16 %v3803, %v3802
      %v3817 = vpack.c.b16 %v3805, %v3804
      %v3818 = vpack.c.b16 %v3807, %v3806
      %v3819 = vpack.c.b16 %v3809, %v3808
      %v3820 = vpack.c.b16 %v3811, %v3810
      %v3821 = vpack.c.b16 %v3813, %v3812
      %3830 = vmatprep.subr.bf16.mxu0 0
      %3831 = vmatpush1.bf16.msra.mxu0 %v3814
      %3832 = vmatprep.subr.bf16.mxu0 0
      %3833 = vmatpush1.bf16.msra.mxu0 %v3815
      %3834 = vmatprep.subr.bf16.mxu0 0
      %3835 = vmatpush1.bf16.msra.mxu0 %v3816
      %3836 = vmatprep.subr.bf16.mxu0 0
      %3837 = vmatpush1.bf16.msra.mxu0 %v3817
      %3838 = vmatprep.subr.bf16.mxu0 0
      %3839 = vmatpush1.bf16.msra.mxu0 %v3818
      %3840 = vmatprep.subr.bf16.mxu0 0
      %3841 = vmatpush1.bf16.msra.mxu0 %v3819
      %3842 = vmatprep.subr.bf16.mxu0 0
      %3843 = vmatpush1.bf16.msra.mxu0 %v3820
      %3844 = vmatprep.subr.bf16.mxu0 0
      %3845 = vmatpush1.bf16.msra.mxu0 %v3821
      %3846 = vmatprep.subr.bf16.mxu0 0
      %3847 = vmatpush1.bf16.msra.mxu0 0
      %3848 = vmatprep.subr.bf16.mxu0 0
      %3849 = vmatpush1.bf16.msra.mxu0 0
      %3850 = vmatprep.subr.bf16.mxu0 0
      %3851 = vmatpush1.bf16.msra.mxu0 0
      %3852 = vmatprep.subr.bf16.mxu0 0
      %3853 = vmatpush1.bf16.msra.mxu0 0
      %3854 = vmatprep.subr.bf16.mxu0 0
      %3855 = vmatpush1.bf16.msra.mxu0 0
      %3856 = vmatprep.subr.bf16.mxu0 0
      %3857 = vmatpush1.bf16.msra.mxu0 0
      %3858 = vmatprep.subr.bf16.mxu0 0
      %3859 = vmatpush1.bf16.msra.mxu0 0
      %3860 = vmatprep.subr.bf16.mxu0 0
      %3861 = vmatpush1.bf16.msra.mxu0 0
      %3862 = vmatprep.mubr.bf16.mxu0 0
      %3863 = vmatmul.mubr.bf16.gmra.mrb[0].mxu0 %v3766
      %v3864 = vpop.f32.mrb[0].mxu0
      %v3865 = vadd.f32 0.0, %v3864
      %v3866 = vpop.f32.mrb[0].mxu0
      %v3867 = vpop.f32.mrb[0].mxu0
      %v3868 = vadd.f32 0.0, %v3867
      %v3869 = vpop.f32.mrb[0].mxu0
      %3870 = vmatprep.mubr.bf16.mxu0 0
      %3871 = vmatmul.mubr.bf16.gmra.mrb[0].mxu0 %v3767
      %v3872 = vpop.f32.mrb[0].mxu0
      %v3873 = vadd.f32 0.0, %v3872
      %v3874 = vpop.f32.mrb[0].mxu0
      %v3875 = vpop.f32.mrb[0].mxu0
      %v3876 = vadd.f32 0.0, %v3875
      %v3877 = vpop.f32.mrb[0].mxu0
      %3878 = vmatprep.mubr.bf16.mxu0 0
      %3879 = vmatmul.mubr.bf16.gmra.mrb[0].mxu0 %v3768
      %v3880 = vpop.f32.mrb[0].mxu0
      %v3881 = vadd.f32 0.0, %v3880
      %v3882 = vpop.f32.mrb[0].mxu0
      %v3883 = vpop.f32.mrb[0].mxu0
      %v3884 = vadd.f32 0.0, %v3883
      %v3885 = vpop.f32.mrb[0].mxu0
      %3886 = vmatprep.mubr.bf16.mxu0 0
      %3887 = vmatmul.mubr.bf16.gmra.mrb[0].mxu0 %v3769
      %v3888 = vpop.f32.mrb[0].mxu0
      %v3889 = vadd.f32 0.0, %v3888
      %v3890 = vpop.f32.mrb[0].mxu0
      %v3891 = vpop.f32.mrb[0].mxu0
      %v3892 = vadd.f32 0.0, %v3891
      %v3893 = vpop.f32.mrb[0].mxu0
      %3894 = vmatprep.mubr.bf16.mxu0 0
      %3895 = vmatmul.mubr.bf16.gmra.mrb[0].mxu0 %v3770
      %v3896 = vpop.f32.mrb[0].mxu0
      %v3897 = vadd.f32 0.0, %v3896
      %v3898 = vpop.f32.mrb[0].mxu0
      %v3899 = vpop.f32.mrb[0].mxu0
      %v3900 = vadd.f32 0.0, %v3899
      %v3901 = vpop.f32.mrb[0].mxu0
      %3902 = vmatprep.mubr.bf16.mxu0 0
      %3903 = vmatmul.mubr.bf16.gmra.mrb[0].mxu0 %v3771
      %v3904 = vpop.f32.mrb[0].mxu0
      %v3905 = vadd.f32 0.0, %v3904
      %v3906 = vpop.f32.mrb[0].mxu0
      %v3907 = vpop.f32.mrb[0].mxu0
      %v3908 = vadd.f32 0.0, %v3907
      %v3909 = vpop.f32.mrb[0].mxu0
      %3910 = vmatprep.mubr.bf16.mxu0 0
      %3911 = vmatmul.mubr.bf16.gmra.mrb[0].mxu0 %v3772
      %v3912 = vpop.f32.mrb[0].mxu0
      %v3913 = vadd.f32 0.0, %v3912
      %v3914 = vpop.f32.mrb[0].mxu0
      %v3915 = vpop.f32.mrb[0].mxu0
      %v3916 = vadd.f32 0.0, %v3915
      %v3917 = vpop.f32.mrb[0].mxu0
      %3918 = vmatprep.mubr.bf16.mxu0 0
      %3919 = vmatmul.mubr.bf16.gmra.mrb[0].mxu0 %v3773
      %v3920 = vpop.f32.mrb[0].mxu0
      %v3921 = vadd.f32 0.0, %v3920
      %v3922 = vpop.f32.mrb[0].mxu0
      %v3923 = vpop.f32.mrb[0].mxu0
      %v3924 = vadd.f32 0.0, %v3923
      %v3925 = vpop.f32.mrb[0].mxu0
      %3926 = vdwg.mxu0
      %v3927 = vadd.f32 %v3629, %v3865
      %v3928 = vadd.f32 %v3630, %v3868
      %v3929 = vadd.f32 %v3631, %v3873
      %v3930 = vadd.f32 %v3632, %v3876
      %v3931 = vadd.f32 %v3633, %v3881
      %v3932 = vadd.f32 %v3634, %v3884
      %v3933 = vadd.f32 %v3635, %v3889
      %v3934 = vadd.f32 %v3636, %v3892
      %v3935 = vadd.f32 %v3637, %v3897
      %v3936 = vadd.f32 %v3638, %v3900
      %v3937 = vadd.f32 %v3639, %v3905
      %v3938 = vadd.f32 %v3640, %v3908
      %v3939 = vadd.f32 %v3641, %v3913
      %v3940 = vadd.f32 %v3642, %v3916
      %v3941 = vadd.f32 %v3643, %v3921
      %v3942 = vadd.f32 %v3644, %v3924
      %v3943 = vpack.c.bf16 %v3928, %v3927
      %v3944 = vpack.c.bf16 %v3930, %v3929
      %v3945 = vpack.c.bf16 %v3932, %v3931
      %v3946 = vpack.c.bf16 %v3934, %v3933
      %v3947 = vpack.c.bf16 %v3936, %v3935
      %v3948 = vpack.c.bf16 %v3938, %v3937
      %v3949 = vpack.c.bf16 %v3940, %v3939
      %v3950 = vpack.c.bf16 %v3942, %v3941
      %v3959 = vunpack.c.l.b16 %v3943
      %v3960 = vunpack.c.h.b16 %v3943
      %v3961 = vunpack.c.l.b16 %v3944
      %v3962 = vunpack.c.h.b16 %v3944
      %v3963 = vunpack.c.l.b16 %v3945
      %v3964 = vunpack.c.h.b16 %v3945
      %v3965 = vunpack.c.l.b16 %v3946
      %v3966 = vunpack.c.h.b16 %v3946
      %v3967 = vunpack.c.l.b16 %v3947
      %v3968 = vunpack.c.h.b16 %v3947
      %v3969 = vunpack.c.l.b16 %v3948
      %v3970 = vunpack.c.h.b16 %v3948
      %v3971 = vunpack.c.l.b16 %v3949
      %v3972 = vunpack.c.h.b16 %v3949
      %v3973 = vunpack.c.l.b16 %v3950
      %v3974 = vunpack.c.h.b16 %v3950
      %v3975 = vpack.c.b16 %v3959, %v3959
      %v3976 = vpack.c.b16 %v3960, %v3960
      %v3977 = vpack.c.b16 %v3961, %v3961
      %v3978 = vpack.c.b16 %v3962, %v3962
      %v3979 = vpack.c.b16 %v3963, %v3963
      %v3980 = vpack.c.b16 %v3964, %v3964
      %v3981 = vpack.c.b16 %v3965, %v3965
      %v3982 = vpack.c.b16 %v3966, %v3966
      %v3983 = vpack.c.b16 %v3967, %v3967
      %v3984 = vpack.c.b16 %v3968, %v3968
      %v3985 = vpack.c.b16 %v3969, %v3969
      %v3986 = vpack.c.b16 %v3970, %v3970
      %v3987 = vpack.c.b16 %v3971, %v3971
      %v3988 = vpack.c.b16 %v3972, %v3972
      %v3989 = vpack.c.b16 %v3973, %v3973
      %v3990 = vpack.c.b16 %v3974, %v3974
      %4007 = vst [vmem:[%s298] sm:$0xf] %v3975
      %4008 = vst [vmem:[%s298 + $0x4] sm:$0xf] %v3976
      %4009 = vst [vmem:[%s298 + $0x8] sm:$0xf] %v3977
      %4010 = vst [vmem:[%s298 + $0xc] sm:$0xf] %v3978
      %4011 = vst [vmem:[%s298 + $0x10] sm:$0xf] %v3979
      %4012 = vst [vmem:[%s298 + $0x14] sm:$0xf] %v3980
      %4013 = vst [vmem:[%s298 + $0x18] sm:$0xf] %v3981
      %4014 = vst [vmem:[%s298 + $0x1c] sm:$0xf] %v3982
      %4015 = vst [vmem:[%s298 + $0x20] sm:$0xf] %v3983
      %4016 = vst [vmem:[%s298 + $0x24] sm:$0xf] %v3984
      %4017 = vst [vmem:[%s298 + $0x28] sm:$0xf] %v3985
      %4018 = vst [vmem:[%s298 + $0x2c] sm:$0xf] %v3986
      %4019 = vst [vmem:[%s298 + $0x30] sm:$0xf] %v3987
      %4020 = vst [vmem:[%s298 + $0x34] sm:$0xf] %v3988
      %4021 = vst [vmem:[%s298 + $0x38] sm:$0xf] %v3989
      %4022 = vst [vmem:[%s298 + $0x3c] sm:$0xf] %v3990
      %v4023 = vadd.f32 %v3927, %v3928
      %v4024 = vadd.f32 %v4023, %v3929
      %v4025 = vadd.f32 %v4024, %v3930
      %v4026 = vadd.f32 %v4025, %v3931
      %v4027 = vadd.f32 %v4026, %v3932
      %v4028 = vadd.f32 %v4027, %v3933
      %v4029 = vadd.f32 %v4028, %v3934
      %v4030 = vadd.f32 %v4029, %v3935
      %v4031 = vadd.f32 %v4030, %v3936
      %v4032 = vadd.f32 %v4031, %v3937
      %v4033 = vadd.f32 %v4032, %v3938
      %v4034 = vadd.f32 %v4033, %v3939
      %v4035 = vadd.f32 %v4034, %v3940
      %v4036 = vadd.f32 %v4035, %v3941
      %v4037 = vadd.f32 %v4036, %v3942
      %v4038 = vrot.slane %v4037, 4
      %v4039 = vadd.f32 %v4037, %v4038
      %v4040 = vrot.slane %v4039, 2
      %v4041 = vadd.f32 %v4039, %v4040
      %v4042 = vrot.slane %v4041, 1
      %v4043 = vadd.f32 %v4041, %v4042
      %4044 = vst [vmem:[%s306] sm:$0x1] %v4043
      %v4045 = vmul.f32 %v3927, %v3927
      %v4046 = vmul.f32 %v3928, %v3928
      %v4047 = vmul.f32 %v3929, %v3929
      %v4048 = vmul.f32 %v3930, %v3930
      %v4049 = vmul.f32 %v3931, %v3931
      %v4050 = vmul.f32 %v3932, %v3932
      %v4051 = vmul.f32 %v3933, %v3933
      %v4052 = vmul.f32 %v3934, %v3934
      %v4053 = vmul.f32 %v3935, %v3935
      %v4054 = vmul.f32 %v3936, %v3936
      %v4055 = vmul.f32 %v3937, %v3937
      %v4056 = vmul.f32 %v3938, %v3938
      %v4057 = vmul.f32 %v3939, %v3939
      %v4058 = vmul.f32 %v3940, %v3940
      %v4059 = vmul.f32 %v3941, %v3941
      %v4060 = vmul.f32 %v3942, %v3942
      %v4061 = vadd.f32 %v4045, %v4046
      %v4062 = vadd.f32 %v4061, %v4047
      %v4063 = vadd.f32 %v4062, %v4048
      %v4064 = vadd.f32 %v4063, %v4049
      %v4065 = vadd.f32 %v4064, %v4050
      %v4066 = vadd.f32 %v4065, %v4051
      %v4067 = vadd.f32 %v4066, %v4052
      %v4068 = vadd.f32 %v4067, %v4053
      %v4069 = vadd.f32 %v4068, %v4054
      %v4070 = vadd.f32 %v4069, %v4055
      %v4071 = vadd.f32 %v4070, %v4056
      %v4072 = vadd.f32 %v4071, %v4057
      %v4073 = vadd.f32 %v4072, %v4058
      %v4074 = vadd.f32 %v4073, %v4059
      %v4075 = vadd.f32 %v4074, %v4060
      %v4076 = vrot.slane %v4075, 4
      %v4077 = vadd.f32 %v4075, %v4076
      %v4078 = vrot.slane %v4077, 2
      %v4079 = vadd.f32 %v4077, %v4078
      %v4080 = vrot.slane %v4079, 1
      %v4081 = vadd.f32 %v4079, %v4080
      %4082 = vst [vmem:[%s313] sm:$0x1] %v4081
      %s4083 = smul.u32 8, %s23
      %p4084 = scmp.lt.s32.totalorder %s22, 1
      %s4085 = scalar_select %p4084, %s22, 1
      %p4086 = scmp.lt.s32.totalorder %s4083, 15
      %s4087 = scalar_select %p4086, %s4083, 15
      %s4088 = smul.addr %s4087, 2
      %s4089 = smul.addr %s4085, 32
      %s4090 = sadd.s32 %s4088, %s4089
      %s4091 = smul.addr %s4090, 4
      %s4092 = scalar_lea.vmem %s4, %s4091
      %p4093 = scmp.lt.s32.totalorder %s22, 1
      %s4094 = scalar_select %p4093, %s22, 1
      %p4095 = scmp.lt.s32.totalorder %s23, 1
      %s4096 = scalar_select %p4095, %s23, 1
      %s4097 = smul.addr %s4094, 2
      %s4098 = sadd.s32 %s4096, %s4097
      %s4099 = scalar_lea.vmem %s5, %s4098
      %p4100 = scmp.lt.s32.totalorder %s22, 1
      %s4101 = scalar_select %p4100, %s22, 1
      %p4102 = scmp.lt.s32.totalorder %s23, 1
      %s4103 = scalar_select %p4102, %s23, 1
      %s4104 = smul.addr %s4101, 2
      %s4105 = sadd.s32 %s4103, %s4104
      %s4106 = scalar_lea.vmem %s6, %s4105
      // Predicated region
      $region41: #{resblock_forward.4} parent=35 // pred_check
        %p4107 = pneg %p139
      $region42: #{resblock_forward.4} parent=35 // pred_check_branch
        %4109 = sbr.rel (%p4107) target = $region44
      $region43: #{resblock_forward.4} parent=35 // pred_region
        %s4110 = smul.u32 8, %s23
      $region44: #{resblock_forward.4} parent=35 // pred_fallthru
        _
      // Predicated region
      $region45: #{resblock_forward.4} parent=35 // pred_check
        %p4111 = pneg %p167
      $region46: #{resblock_forward.4} parent=35 // pred_check_branch
        %4113 = sbr.rel (%p4111) target = $region48
      $region47: #{resblock_forward.4} parent=35 // pred_region
        _
      $region48: #{resblock_forward.4} parent=35 // pred_fallthru
        _
      // Predicated region
      $region49: #{resblock_forward.4} parent=35 // pred_check
        %p4114 = pneg %p195
      $region50: #{resblock_forward.4} parent=35 // pred_check_branch
        %4116 = sbr.rel (%p4114) target = $region52
      $region51: #{resblock_forward.4} parent=35 // pred_region
        _
      $region52: #{resblock_forward.4} parent=35 // pred_fallthru
        _
    $region36: #{resblock_forward.4} parent=5 // pred_fallthru
      _
    %p4117 = scmp.le.s32.totalorder 2, %s13
    // Predicated region
    $region53: #{resblock_forward.4} parent=5 // pred_check
      %p4118 = pneg %p4117
    $region54: #{resblock_forward.4} parent=5 // pred_check_branch
      %4120 = sbr.rel (%p4118) target = $region56
    $region55: #{resblock_forward.4} parent=5 // pred_region
      %s4121 = ssub.s32 %s13, 2
      // Predicated region
      $region57: #{resblock_forward.4} parent=55 // pred_check
        %p4122 = pneg %p145
      $region58: #{resblock_forward.4} parent=55 // pred_check_branch
        %4124 = sbr.rel (%p4122) target = $region60
      $region59: #{resblock_forward.4} parent=55 // pred_region
        %s4125 = smul.u32 8, %s25
        %p4126 = scmp.lt.s32.totalorder %s24, 1
        %s4127 = scalar_select %p4126, %s24, 1
        %p4128 = scmp.lt.s32.totalorder %s4125, 15
        %s4129 = scalar_select %p4128, %s4125, 15
        %s4130 = smul.addr %s4129, 2
        %s4131 = smul.addr %s4127, 32
        %s4132 = sadd.s32 %s4130, %s4131
        %s4133 = smul.addr %s4132, 4
        %s4134 = scalar_lea.vmem %s4, %s4133
      $region60: #{resblock_forward.4} parent=55 // pred_fallthru
        _
      // Predicated region
      $region61: #{resblock_forward.4} parent=55 // pred_check
        %p4135 = pneg %p173
      $region62: #{resblock_forward.4} parent=55 // pred_check_branch
        %4137 = sbr.rel (%p4135) target = $region64
      $region63: #{resblock_forward.4} parent=55 // pred_region
        %p4138 = scmp.lt.s32.totalorder %s24, 1
        %s4139 = scalar_select %p4138, %s24, 1
        %p4140 = scmp.lt.s32.totalorder %s25, 1
        %s4141 = scalar_select %p4140, %s25, 1
        %s4142 = smul.addr %s4139, 2
        %s4143 = sadd.s32 %s4141, %s4142
        %s4144 = scalar_lea.vmem %s5, %s4143
      $region64: #{resblock_forward.4} parent=55 // pred_fallthru
        _
      // Predicated region
      $region65: #{resblock_forward.4} parent=55 // pred_check
        %p4145 = pneg %p201
      $region66: #{resblock_forward.4} parent=55 // pred_check_branch
        %4147 = sbr.rel (%p4145) target = $region68
      $region67: #{resblock_forward.4} parent=55 // pred_region
        %p4148 = scmp.lt.s32.totalorder %s24, 1
        %s4149 = scalar_select %p4148, %s24, 1
        %p4150 = scmp.lt.s32.totalorder %s25, 1
        %s4151 = scalar_select %p4150, %s25, 1
        %s4152 = smul.addr %s4149, 2
        %s4153 = sadd.s32 %s4151, %s4152
        %s4154 = scalar_lea.vmem %s6, %s4153
      $region68: #{resblock_forward.4} parent=55 // pred_fallthru
        _
    $region56: #{resblock_forward.4} parent=5 // pred_fallthru
      _
  $region6: #{resblock_forward.4} parent=0 // loop_footer
    %s17 = sadd.s32 1, %s13
  $region7: #{resblock_forward.4} parent=0 // loop_footer_branch
    %12 = sbr.rel target = $region3
  $region8: #{resblock_forward.4} parent=0 // loop_exit
    _

</llo_original>
